<compile_context>
chip_gen: v7x
topology: tpu7x:2x2x1
jax: 0.10.0
libtpu: 0.0.40
codegen_flags: <defaults>
</compile_context>

<pallas_src>
import numpy as np
import jax
import jax.numpy as jnp
from jax import lax
from jax.experimental import pallas as pl
from jax.experimental.pallas import tpu as pltpu

# ----------------------------- fixed geometry ------------------------------ #
H = W = 28          # input spatial (forced by the 50*4*4 ip1 fan-in)
K = 5               # conv kernel size
C1, C2 = 20, 50     # conv output channels
P1 = 12             # pool1 output spatial (conv1 out 24x24 -> 12x12)
P2 = 4              # pool2 output spatial (conv2 out 8x8 -> 4x4)
R1 = 6              # conv1 output rows per residue group (24 / 4)
HALF = 256          # lane half-width (128-aligned); holds 12*20=240 / 4*50=200 cols
N1 = 2 * HALF       # conv1 GEMM lane width (even-w half | odd-w half)
N2 = 2 * HALF       # conv2 GEMM lane width
NF1 = 512           # ip1 padded width (500 -> 512)
NF2 = 128           # ip2 padded width (10  -> 128)


# ------------------------------ Pallas kernel ------------------------------ #
def _lenet5_kernel(x_ref, w1_ref, b1_ref, w2_ref, b2_ref,
                   wfc1_ref, bfc1_ref, wfc2_ref, bfc2_ref,
                   o_ref, p1_ref, p2_ref):
    f32 = jnp.float32

    # ---- conv1 + ReLU --------------------------------------------------- #
    # Output rows are produced in 4 groups by residue r = h % 4 so that the
    # 2x2 pool below needs only whole-tensor maxes (no strided row access).
    # x_ref is (4, 7, 28): plane q holds input rows q, q+4, ..., q+24.
    b1 = b1_ref[...]                                        # (1, N1)
    z1 = []
    for r in range(4):
        acc = jnp.zeros((R1, N1), f32)
        for i in range(K):
            s = r + i                                        # input-row offset
            xs = x_ref[s % 4, s // 4: s // 4 + R1, :]        # rows s, s+4, ..., s+20
            acc = acc + jnp.dot(xs, w1_ref[i], preferred_element_type=f32)
        z1.append(jnp.maximum(acc + b1, 0.0))                # (R1, N1)

    # ---- pool1 (2x2, stride 2) ------------------------------------------ #
    # rows (4t, 4t+1) -> even pooled rows, (4t+2, 4t+3) -> odd pooled rows;
    # the two 256-lane halves hold even-/odd-w columns.
    m_e = jnp.maximum(z1[0], z1[1])
    m_o = jnp.maximum(z1[2], z1[3])
    p1_ref[0] = jnp.maximum(m_e[:, :HALF], m_e[:, HALF:])    # pooled rows 0,2,...,10
    p1_ref[1] = jnp.maximum(m_o[:, :HALF], m_o[:, HALF:])    # pooled rows 1,3,...,11

    # ---- conv2 + ReLU (output rows split by parity p = h % 2) ------------ #
    b2 = b2_ref[...]                                         # (1, N2)
    z2 = []
    for p in range(2):
        acc = jnp.zeros((P2, N2), f32)
        for i in range(K):
            s = p + i
            a = p1_ref[s % 2, s // 2: s // 2 + P2, :]        # (4, HALF)
            acc = acc + jnp.dot(a, w2_ref[i], preferred_element_type=f32)
        z2.append(jnp.maximum(acc + b2, 0.0))                # (4, N2)

    # ---- pool2 ------------------------------------------------------------ #
    m2 = jnp.maximum(z2[0], z2[1])
    p2_ref[...] = jnp.maximum(m2[:, :HALF], m2[:, HALF:])    # (4, HALF)

    # ---- ip1 + ReLU (contract over pooled rows & lanes) ------------------- #
    acc = bfc1_ref[...]                                      # (1, NF1)
    for h in range(P2):
        acc = acc + jnp.dot(p2_ref[pl.ds(h, 1), :], wfc1_ref[h],
                            preferred_element_type=f32)
    h1 = jnp.maximum(acc, 0.0)                               # (1, NF1)

    # ---- ip2 --------------------------------------------------------------- #
    o_ref[...] = (jnp.dot(h1, wfc2_ref[...], preferred_element_type=f32)
                  + bfc2_ref[...])                           # (1, NF2)


# ------------------------- one-time weight repack --------------------------- #
def init_params(key):
    """Random parameters in PyTorch layouts (Conv2d OIHW, Linear (out,in))."""
    ks = jax.random.split(key, 8)
    s = 0.05
    return {
        "conv1_w": s * jax.random.normal(ks[0], (C1, 1, K, K), jnp.float32),
        "conv1_b": s * jax.random.normal(ks[1], (C1,), jnp.float32),
        "conv2_w": s * jax.random.normal(ks[2], (C2, C1, K, K), jnp.float32),
        "conv2_b": s * jax.random.normal(ks[3], (C2,), jnp.float32),
        "ip1_w": s * jax.random.normal(ks[4], (500, C2 * P2 * P2), jnp.float32),
        "ip1_b": s * jax.random.normal(ks[5], (500,), jnp.float32),
        "ip2_w": s * jax.random.normal(ks[6], (10, 500), jnp.float32),
        "ip2_b": s * jax.random.normal(ks[7], (10,), jnp.float32),
    }


def prepare_params(params):
    """Host-side, one-time repack into kernel-ready (Toeplitz / permuted) matrices."""
    c1w = np.asarray(params["conv1_w"], np.float32)
    c1b = np.asarray(params["conv1_b"], np.float32)
    c2w = np.asarray(params["conv2_w"], np.float32)
    c2b = np.asarray(params["conv2_b"], np.float32)
    fc1w = np.asarray(params["ip1_w"], np.float32)
    fc1b = np.asarray(params["ip1_b"], np.float32)
    fc2w = np.asarray(params["ip2_w"], np.float32)
    fc2b = np.asarray(params["ip2_b"], np.float32)

    # conv1: (K, W, N1); output column = dw*HALF + pw*C1 + c_out, w_out = 2*pw+dw.
    w1 = np.zeros((K, W, N1), np.float32)
    b1 = np.zeros((1, N1), np.float32)
    for dw in range(2):
        for pw in range(P1):
            col = dw * HALF + pw * C1
            b1[0, col:col + C1] = c1b
            wcol = 2 * pw + dw
            for i in range(K):
                for j in range(K):
                    w1[i, wcol + j, col:col + C1] = c1w[:, 0, i, j]

    # conv2: (K, HALF, N2); row = w_in*C1 + c_in, column = dw*HALF + pw*C2 + c_out.
    w2 = np.zeros((K, HALF, N2), np.float32)
    b2 = np.zeros((1, N2), np.float32)
    for dw in range(2):
        for pw in range(P2):
            col = dw * HALF + pw * C2
            b2[0, col:col + C2] = c2b
            wcol = 2 * pw + dw
            for i in range(K):
                for j in range(K):
                    rows = (wcol + j) * C1
                    w2[i, rows:rows + C1, col:col + C2] = c2w[:, :, i, j].T

    # ip1: permute columns from PyTorch's NCHW flatten (c,h,w) to our (h, w, c)+pad.
    wfc1 = np.zeros((P2, HALF, NF1), np.float32)
    a = fc1w.T.reshape(C2, P2, P2, 500)                    # (c, h, w, n)
    a = np.transpose(a, (1, 2, 0, 3)).reshape(P2, P2 * C2, 500)
    wfc1[:, :P2 * C2, :500] = a
    bfc1 = np.zeros((1, NF1), np.float32)
    bfc1[0, :500] = fc1b

    # ip2: pad 500 -> NF1 rows, 10 -> NF2 cols.
    wfc2 = np.zeros((NF1, NF2), np.float32)
    wfc2[:500, :10] = fc2w.T
    bfc2 = np.zeros((1, NF2), np.float32)
    bfc2[0, :10] = fc2b

    packed = {"w1": w1, "b1": b1, "w2": w2, "b2": b2,
              "wfc1": wfc1, "bfc1": bfc1, "wfc2": wfc2, "bfc2": bfc2}
    return {k: jnp.asarray(v) for k, v in packed.items()}


# ------------------------------ forward pass -------------------------------- #
def _lenet5_forward(x_nchw, prep):
    B = x_nchw.shape[0]
    # NCHW (C=1) -> (B, 4, 7, 28): plane q holds input rows q, q+4, ..., q+24.
    x = x_nchw.astype(jnp.float32).reshape(B, H, W)
    x = x.reshape(B, H // 4, 4, W).transpose(0, 2, 1, 3)

    out = pl.pallas_call(
        _lenet5_kernel,
        out_shape=jax.ShapeDtypeStruct((B, 1, NF2), jnp.float32),
        grid=(B,),
        in_specs=[
            pl.BlockSpec((None, 4, H // 4, W), lambda b: (b, 0, 0, 0)),  # input image
            pl.BlockSpec((K, W, N1), lambda b: (0, 0, 0)),               # conv1 Toeplitz
            pl.BlockSpec((1, N1), lambda b: (0, 0)),
            pl.BlockSpec((K, HALF, N2), lambda b: (0, 0, 0)),            # conv2 Toeplitz
            pl.BlockSpec((1, N2), lambda b: (0, 0)),
            pl.BlockSpec((P2, HALF, NF1), lambda b: (0, 0, 0)),          # ip1 (permuted)
            pl.BlockSpec((1, NF1), lambda b: (0, 0)),
            pl.BlockSpec((NF1, NF2), lambda b: (0, 0)),                  # ip2 (padded)
            pl.BlockSpec((1, NF2), lambda b: (0, 0)),
        ],
        out_specs=pl.BlockSpec((None, 1, NF2), lambda b: (b, 0, 0)),
        scratch_shapes=[
            pltpu.VMEM((2, R1, HALF), jnp.float32),   # pool1 output (row-parity split)
            pltpu.VMEM((P2, HALF), jnp.float32),      # pool2 output
        ],
        compiler_params=pltpu.CompilerParams(
            dimension_semantics=("parallel",),
            vmem_limit_bytes=32 * 1024 * 1024,
        ),
    )(x, prep["w1"], prep["b1"], prep["w2"], prep["b2"],
      prep["wfc1"], prep["bfc1"], prep["wfc2"], prep["bfc2"])

    return out[:, 0, :10]


lenet5_forward = jax.jit(_lenet5_forward)


# --------------------------- pure-JAX reference ----------------------------- #
def lenet5_reference(x_nchw, params):
    dn = ("NCHW", "OIHW", "NCHW")
    y = lax.conv_general_dilated(x_nchw, params["conv1_w"], (1, 1), "VALID",
                                 dimension_numbers=dn)
    y = jnp.maximum(y + params["conv1_b"][None, :, None, None], 0.0)
    y = lax.reduce_window(y, -jnp.inf, lax.max, (1, 1, 2, 2), (1, 1, 2, 2), "VALID")
    y = lax.conv_general_dilated(y, params["conv2_w"], (1, 1), "VALID",
                                 dimension_numbers=dn)
    y = jnp.maximum(y + params["conv2_b"][None, :, None, None], 0.0)
    y = lax.reduce_window(y, -jnp.inf, lax.max, (1, 1, 2, 2), (1, 1, 2, 2), "VALID")
    y = y.reshape(y.shape[0], C2 * P2 * P2)                 # NCHW flatten, like .view
    y = jnp.maximum(y @ params["ip1_w"].T + params["ip1_b"], 0.0)
    return y @ params["ip2_w"].T + params["ip2_b"]


if __name__ == "__main__":
    key = jax.random.PRNGKey(0)
    k_x, k_p = jax.random.split(key)
    x = jax.random.normal(k_x, (2, 1, H, W), jnp.float32)   # MNIST-shaped input
    params = init_params(k_p)
    prep = prepare_params(params)                           # one-time weight repack

    logits = lenet5_forward(x, prep)
    jax.block_until_ready(logits)
    assert logits.shape == (2, 10) and logits.dtype == jnp.float32

    ref = lenet5_reference(x, params)
    np.testing.assert_allclose(np.asarray(logits), np.asarray(ref),
                               rtol=5e-2, atol=2e-2)
    print("KERNEL_OK")
</pallas_src>

<mosaic_0001>
module attributes {stable_mosaic.version = 11 : i64} {
  func.func @_lenet5_kernel(%arg0: i32, %arg1: memref<1x4x7x28xf32, #tpu.memory_space<vmem>>, %arg2: memref<5x28x512xf32, #tpu.memory_space<vmem>>, %arg3: memref<1x512xf32, #tpu.memory_space<vmem>>, %arg4: memref<5x256x512xf32, #tpu.memory_space<vmem>>, %arg5: memref<1x512xf32, #tpu.memory_space<vmem>>, %arg6: memref<4x256x512xf32, #tpu.memory_space<vmem>>, %arg7: memref<1x512xf32, #tpu.memory_space<vmem>>, %arg8: memref<512x128xf32, #tpu.memory_space<vmem>>, %arg9: memref<1x128xf32, #tpu.memory_space<vmem>>, %arg10: memref<1x1x128xf32, #tpu.memory_space<vmem>>, %arg11: memref<2x6x256xf32, #tpu.memory_space<vmem>>, %arg12: memref<4x256xf32, #tpu.memory_space<vmem>>) attributes {dimension_semantics = [#tpu.dimension_semantics<parallel>], iteration_bounds = array<i64: 2>, scalar_prefetch = 0 : i64, scratch_operands = 2 : i64, tpu.core_type = #tpu.core_type<tc>, window_params = [{transform_indices = @transform_0, window_bounds = array<i64: 1, 4, 7, 28>}, {pipeline_mode = #tpu.pipeline_mode<synchronous>, transform_indices = @transform_1, window_bounds = array<i64: 5, 28, 512>}, {pipeline_mode = #tpu.pipeline_mode<synchronous>, transform_indices = @transform_2, window_bounds = array<i64: 1, 512>}, {pipeline_mode = #tpu.pipeline_mode<synchronous>, transform_indices = @transform_3, window_bounds = array<i64: 5, 256, 512>}, {pipeline_mode = #tpu.pipeline_mode<synchronous>, transform_indices = @transform_4, window_bounds = array<i64: 1, 512>}, {pipeline_mode = #tpu.pipeline_mode<synchronous>, transform_indices = @transform_5, window_bounds = array<i64: 4, 256, 512>}, {pipeline_mode = #tpu.pipeline_mode<synchronous>, transform_indices = @transform_6, window_bounds = array<i64: 1, 512>}, {pipeline_mode = #tpu.pipeline_mode<synchronous>, transform_indices = @transform_7, window_bounds = array<i64: 512, 128>}, {pipeline_mode = #tpu.pipeline_mode<synchronous>, transform_indices = @transform_8, window_bounds = array<i64: 1, 128>}, {transform_indices = @transform_9, window_bounds = array<i64: 1, 1, 128>}]} {
    %c0 = arith.constant 0 : index
    %c0_0 = arith.constant 0 : index
    %0 = vector.load %arg3[%c0, %c0_0] : memref<1x512xf32, #tpu.memory_space<vmem>>, vector<1x512xf32>
    %cst = arith.constant 0.000000e+00 : f32
    %1 = vector.broadcast %cst : f32 to vector<6x512xf32>
    %c0_1 = arith.constant 0 : index
    %c0_2 = arith.constant 0 : index
    %c0_3 = arith.constant 0 : index
    %c0_4 = arith.constant 0 : index
    %2 = vector.load %arg1[%c0_1, %c0_2, %c0_3, %c0_4] : memref<1x4x7x28xf32, #tpu.memory_space<vmem>>, vector<1x1x6x28xf32>
    %3 = vector.shape_cast %2 : vector<1x1x6x28xf32> to vector<6x28xf32>
    %c0_5 = arith.constant 0 : index
    %c0_6 = arith.constant 0 : index
    %c0_7 = arith.constant 0 : index
    %4 = vector.load %arg2[%c0_5, %c0_6, %c0_7] : memref<5x28x512xf32, #tpu.memory_space<vmem>>, vector<1x28x512xf32>
    %5 = vector.shape_cast %4 : vector<1x28x512xf32> to vector<28x512xf32>
    %cst_8 = arith.constant dense<0.000000e+00> : vector<6x512xf32>
    %6 = tpu.matmul %3, %5, %cst_8 {dimension_numbers = #tpu.dot_dimension_numbers<[1], [0], [0], [1], [0, 0, 1, 1], [], []>} : vector<6x28xf32>, vector<28x512xf32>, vector<6x512xf32> -> vector<6x512xf32>
    %7 = arith.addf %1, %6 : vector<6x512xf32>
    %c0_9 = arith.constant 0 : index
    %c1 = arith.constant 1 : index
    %c0_10 = arith.constant 0 : index
    %c0_11 = arith.constant 0 : index
    %8 = vector.load %arg1[%c0_9, %c1, %c0_10, %c0_11] : memref<1x4x7x28xf32, #tpu.memory_space<vmem>>, vector<1x1x6x28xf32>
    %9 = vector.shape_cast %8 : vector<1x1x6x28xf32> to vector<6x28xf32>
    %c1_12 = arith.constant 1 : index
    %c0_13 = arith.constant 0 : index
    %c0_14 = arith.constant 0 : index
    %10 = vector.load %arg2[%c1_12, %c0_13, %c0_14] : memref<5x28x512xf32, #tpu.memory_space<vmem>>, vector<1x28x512xf32>
    %11 = vector.shape_cast %10 : vector<1x28x512xf32> to vector<28x512xf32>
    %cst_15 = arith.constant dense<0.000000e+00> : vector<6x512xf32>
    %12 = tpu.matmul %9, %11, %cst_15 {dimension_numbers = #tpu.dot_dimension_numbers<[1], [0], [0], [1], [0, 0, 1, 1], [], []>} : vector<6x28xf32>, vector<28x512xf32>, vector<6x512xf32> -> vector<6x512xf32>
    %13 = arith.addf %7, %12 : vector<6x512xf32>
    %c0_16 = arith.constant 0 : index
    %c2 = arith.constant 2 : index
    %c0_17 = arith.constant 0 : index
    %c0_18 = arith.constant 0 : index
    %14 = vector.load %arg1[%c0_16, %c2, %c0_17, %c0_18] : memref<1x4x7x28xf32, #tpu.memory_space<vmem>>, vector<1x1x6x28xf32>
    %15 = vector.shape_cast %14 : vector<1x1x6x28xf32> to vector<6x28xf32>
    %c2_19 = arith.constant 2 : index
    %c0_20 = arith.constant 0 : index
    %c0_21 = arith.constant 0 : index
    %16 = vector.load %arg2[%c2_19, %c0_20, %c0_21] : memref<5x28x512xf32, #tpu.memory_space<vmem>>, vector<1x28x512xf32>
    %17 = vector.shape_cast %16 : vector<1x28x512xf32> to vector<28x512xf32>
    %cst_22 = arith.constant dense<0.000000e+00> : vector<6x512xf32>
    %18 = tpu.matmul %15, %17, %cst_22 {dimension_numbers = #tpu.dot_dimension_numbers<[1], [0], [0], [1], [0, 0, 1, 1], [], []>} : vector<6x28xf32>, vector<28x512xf32>, vector<6x512xf32> -> vector<6x512xf32>
    %19 = arith.addf %13, %18 : vector<6x512xf32>
    %c0_23 = arith.constant 0 : index
    %c3 = arith.constant 3 : index
    %c0_24 = arith.constant 0 : index
    %c0_25 = arith.constant 0 : index
    %20 = vector.load %arg1[%c0_23, %c3, %c0_24, %c0_25] : memref<1x4x7x28xf32, #tpu.memory_space<vmem>>, vector<1x1x6x28xf32>
    %21 = vector.shape_cast %20 : vector<1x1x6x28xf32> to vector<6x28xf32>
    %c3_26 = arith.constant 3 : index
    %c0_27 = arith.constant 0 : index
    %c0_28 = arith.constant 0 : index
    %22 = vector.load %arg2[%c3_26, %c0_27, %c0_28] : memref<5x28x512xf32, #tpu.memory_space<vmem>>, vector<1x28x512xf32>
    %23 = vector.shape_cast %22 : vector<1x28x512xf32> to vector<28x512xf32>
    %cst_29 = arith.constant dense<0.000000e+00> : vector<6x512xf32>
    %24 = tpu.matmul %21, %23, %cst_29 {dimension_numbers = #tpu.dot_dimension_numbers<[1], [0], [0], [1], [0, 0, 1, 1], [], []>} : vector<6x28xf32>, vector<28x512xf32>, vector<6x512xf32> -> vector<6x512xf32>
    %25 = arith.addf %19, %24 : vector<6x512xf32>
    %c0_30 = arith.constant 0 : index
    %c0_31 = arith.constant 0 : index
    %c1_32 = arith.constant 1 : index
    %c0_33 = arith.constant 0 : index
    %26 = vector.load %arg1[%c0_30, %c0_31, %c1_32, %c0_33] : memref<1x4x7x28xf32, #tpu.memory_space<vmem>>, vector<1x1x6x28xf32>
    %27 = vector.shape_cast %26 : vector<1x1x6x28xf32> to vector<6x28xf32>
    %c4 = arith.constant 4 : index
    %c0_34 = arith.constant 0 : index
    %c0_35 = arith.constant 0 : index
    %28 = vector.load %arg2[%c4, %c0_34, %c0_35] : memref<5x28x512xf32, #tpu.memory_space<vmem>>, vector<1x28x512xf32>
    %29 = vector.shape_cast %28 : vector<1x28x512xf32> to vector<28x512xf32>
    %cst_36 = arith.constant dense<0.000000e+00> : vector<6x512xf32>
    %30 = tpu.matmul %27, %29, %cst_36 {dimension_numbers = #tpu.dot_dimension_numbers<[1], [0], [0], [1], [0, 0, 1, 1], [], []>} : vector<6x28xf32>, vector<28x512xf32>, vector<6x512xf32> -> vector<6x512xf32>
    %31 = arith.addf %25, %30 : vector<6x512xf32>
    %32 = vector.broadcast %0 : vector<1x512xf32> to vector<6x512xf32>
    %33 = arith.addf %31, %32 : vector<6x512xf32>
    %cst_37 = arith.constant 0.000000e+00 : f32
    %34 = vector.broadcast %cst_37 : f32 to vector<6x512xf32>
    %35 = arith.maximumf %33, %34 : vector<6x512xf32>
    %cst_38 = arith.constant 0.000000e+00 : f32
    %36 = vector.broadcast %cst_38 : f32 to vector<6x512xf32>
    %c0_39 = arith.constant 0 : index
    %c1_40 = arith.constant 1 : index
    %c0_41 = arith.constant 0 : index
    %c0_42 = arith.constant 0 : index
    %37 = vector.load %arg1[%c0_39, %c1_40, %c0_41, %c0_42] : memref<1x4x7x28xf32, #tpu.memory_space<vmem>>, vector<1x1x6x28xf32>
    %38 = vector.shape_cast %37 : vector<1x1x6x28xf32> to vector<6x28xf32>
    %c0_43 = arith.constant 0 : index
    %c0_44 = arith.constant 0 : index
    %c0_45 = arith.constant 0 : index
    %39 = vector.load %arg2[%c0_43, %c0_44, %c0_45] : memref<5x28x512xf32, #tpu.memory_space<vmem>>, vector<1x28x512xf32>
    %40 = vector.shape_cast %39 : vector<1x28x512xf32> to vector<28x512xf32>
    %cst_46 = arith.constant dense<0.000000e+00> : vector<6x512xf32>
    %41 = tpu.matmul %38, %40, %cst_46 {dimension_numbers = #tpu.dot_dimension_numbers<[1], [0], [0], [1], [0, 0, 1, 1], [], []>} : vector<6x28xf32>, vector<28x512xf32>, vector<6x512xf32> -> vector<6x512xf32>
    %42 = arith.addf %36, %41 : vector<6x512xf32>
    %c0_47 = arith.constant 0 : index
    %c2_48 = arith.constant 2 : index
    %c0_49 = arith.constant 0 : index
    %c0_50 = arith.constant 0 : index
    %43 = vector.load %arg1[%c0_47, %c2_48, %c0_49, %c0_50] : memref<1x4x7x28xf32, #tpu.memory_space<vmem>>, vector<1x1x6x28xf32>
    %44 = vector.shape_cast %43 : vector<1x1x6x28xf32> to vector<6x28xf32>
    %c1_51 = arith.constant 1 : index
    %c0_52 = arith.constant 0 : index
    %c0_53 = arith.constant 0 : index
    %45 = vector.load %arg2[%c1_51, %c0_52, %c0_53] : memref<5x28x512xf32, #tpu.memory_space<vmem>>, vector<1x28x512xf32>
    %46 = vector.shape_cast %45 : vector<1x28x512xf32> to vector<28x512xf32>
    %cst_54 = arith.constant dense<0.000000e+00> : vector<6x512xf32>
    %47 = tpu.matmul %44, %46, %cst_54 {dimension_numbers = #tpu.dot_dimension_numbers<[1], [0], [0], [1], [0, 0, 1, 1], [], []>} : vector<6x28xf32>, vector<28x512xf32>, vector<6x512xf32> -> vector<6x512xf32>
    %48 = arith.addf %42, %47 : vector<6x512xf32>
    %c0_55 = arith.constant 0 : index
    %c3_56 = arith.constant 3 : index
    %c0_57 = arith.constant 0 : index
    %c0_58 = arith.constant 0 : index
    %49 = vector.load %arg1[%c0_55, %c3_56, %c0_57, %c0_58] : memref<1x4x7x28xf32, #tpu.memory_space<vmem>>, vector<1x1x6x28xf32>
    %50 = vector.shape_cast %49 : vector<1x1x6x28xf32> to vector<6x28xf32>
    %c2_59 = arith.constant 2 : index
    %c0_60 = arith.constant 0 : index
    %c0_61 = arith.constant 0 : index
    %51 = vector.load %arg2[%c2_59, %c0_60, %c0_61] : memref<5x28x512xf32, #tpu.memory_space<vmem>>, vector<1x28x512xf32>
    %52 = vector.shape_cast %51 : vector<1x28x512xf32> to vector<28x512xf32>
    %cst_62 = arith.constant dense<0.000000e+00> : vector<6x512xf32>
    %53 = tpu.matmul %50, %52, %cst_62 {dimension_numbers = #tpu.dot_dimension_numbers<[1], [0], [0], [1], [0, 0, 1, 1], [], []>} : vector<6x28xf32>, vector<28x512xf32>, vector<6x512xf32> -> vector<6x512xf32>
    %54 = arith.addf %48, %53 : vector<6x512xf32>
    %c0_63 = arith.constant 0 : index
    %c0_64 = arith.constant 0 : index
    %c1_65 = arith.constant 1 : index
    %c0_66 = arith.constant 0 : index
    %55 = vector.load %arg1[%c0_63, %c0_64, %c1_65, %c0_66] : memref<1x4x7x28xf32, #tpu.memory_space<vmem>>, vector<1x1x6x28xf32>
    %56 = vector.shape_cast %55 : vector<1x1x6x28xf32> to vector<6x28xf32>
    %c3_67 = arith.constant 3 : index
    %c0_68 = arith.constant 0 : index
    %c0_69 = arith.constant 0 : index
    %57 = vector.load %arg2[%c3_67, %c0_68, %c0_69] : memref<5x28x512xf32, #tpu.memory_space<vmem>>, vector<1x28x512xf32>
    %58 = vector.shape_cast %57 : vector<1x28x512xf32> to vector<28x512xf32>
    %cst_70 = arith.constant dense<0.000000e+00> : vector<6x512xf32>
    %59 = tpu.matmul %56, %58, %cst_70 {dimension_numbers = #tpu.dot_dimension_numbers<[1], [0], [0], [1], [0, 0, 1, 1], [], []>} : vector<6x28xf32>, vector<28x512xf32>, vector<6x512xf32> -> vector<6x512xf32>
    %60 = arith.addf %54, %59 : vector<6x512xf32>
    %c0_71 = arith.constant 0 : index
    %c1_72 = arith.constant 1 : index
    %c1_73 = arith.constant 1 : index
    %c0_74 = arith.constant 0 : index
    %61 = vector.load %arg1[%c0_71, %c1_72, %c1_73, %c0_74] : memref<1x4x7x28xf32, #tpu.memory_space<vmem>>, vector<1x1x6x28xf32>
    %62 = vector.shape_cast %61 : vector<1x1x6x28xf32> to vector<6x28xf32>
    %c4_75 = arith.constant 4 : index
    %c0_76 = arith.constant 0 : index
    %c0_77 = arith.constant 0 : index
    %63 = vector.load %arg2[%c4_75, %c0_76, %c0_77] : memref<5x28x512xf32, #tpu.memory_space<vmem>>, vector<1x28x512xf32>
    %64 = vector.shape_cast %63 : vector<1x28x512xf32> to vector<28x512xf32>
    %cst_78 = arith.constant dense<0.000000e+00> : vector<6x512xf32>
    %65 = tpu.matmul %62, %64, %cst_78 {dimension_numbers = #tpu.dot_dimension_numbers<[1], [0], [0], [1], [0, 0, 1, 1], [], []>} : vector<6x28xf32>, vector<28x512xf32>, vector<6x512xf32> -> vector<6x512xf32>
    %66 = arith.addf %60, %65 : vector<6x512xf32>
    %67 = vector.broadcast %0 : vector<1x512xf32> to vector<6x512xf32>
    %68 = arith.addf %66, %67 : vector<6x512xf32>
    %cst_79 = arith.constant 0.000000e+00 : f32
    %69 = vector.broadcast %cst_79 : f32 to vector<6x512xf32>
    %70 = arith.maximumf %68, %69 : vector<6x512xf32>
    %cst_80 = arith.constant 0.000000e+00 : f32
    %71 = vector.broadcast %cst_80 : f32 to vector<6x512xf32>
    %c0_81 = arith.constant 0 : index
    %c2_82 = arith.constant 2 : index
    %c0_83 = arith.constant 0 : index
    %c0_84 = arith.constant 0 : index
    %72 = vector.load %arg1[%c0_81, %c2_82, %c0_83, %c0_84] : memref<1x4x7x28xf32, #tpu.memory_space<vmem>>, vector<1x1x6x28xf32>
    %73 = vector.shape_cast %72 : vector<1x1x6x28xf32> to vector<6x28xf32>
    %c0_85 = arith.constant 0 : index
    %c0_86 = arith.constant 0 : index
    %c0_87 = arith.constant 0 : index
    %74 = vector.load %arg2[%c0_85, %c0_86, %c0_87] : memref<5x28x512xf32, #tpu.memory_space<vmem>>, vector<1x28x512xf32>
    %75 = vector.shape_cast %74 : vector<1x28x512xf32> to vector<28x512xf32>
    %cst_88 = arith.constant dense<0.000000e+00> : vector<6x512xf32>
    %76 = tpu.matmul %73, %75, %cst_88 {dimension_numbers = #tpu.dot_dimension_numbers<[1], [0], [0], [1], [0, 0, 1, 1], [], []>} : vector<6x28xf32>, vector<28x512xf32>, vector<6x512xf32> -> vector<6x512xf32>
    %77 = arith.addf %71, %76 : vector<6x512xf32>
    %c0_89 = arith.constant 0 : index
    %c3_90 = arith.constant 3 : index
    %c0_91 = arith.constant 0 : index
    %c0_92 = arith.constant 0 : index
    %78 = vector.load %arg1[%c0_89, %c3_90, %c0_91, %c0_92] : memref<1x4x7x28xf32, #tpu.memory_space<vmem>>, vector<1x1x6x28xf32>
    %79 = vector.shape_cast %78 : vector<1x1x6x28xf32> to vector<6x28xf32>
    %c1_93 = arith.constant 1 : index
    %c0_94 = arith.constant 0 : index
    %c0_95 = arith.constant 0 : index
    %80 = vector.load %arg2[%c1_93, %c0_94, %c0_95] : memref<5x28x512xf32, #tpu.memory_space<vmem>>, vector<1x28x512xf32>
    %81 = vector.shape_cast %80 : vector<1x28x512xf32> to vector<28x512xf32>
    %cst_96 = arith.constant dense<0.000000e+00> : vector<6x512xf32>
    %82 = tpu.matmul %79, %81, %cst_96 {dimension_numbers = #tpu.dot_dimension_numbers<[1], [0], [0], [1], [0, 0, 1, 1], [], []>} : vector<6x28xf32>, vector<28x512xf32>, vector<6x512xf32> -> vector<6x512xf32>
    %83 = arith.addf %77, %82 : vector<6x512xf32>
    %c0_97 = arith.constant 0 : index
    %c0_98 = arith.constant 0 : index
    %c1_99 = arith.constant 1 : index
    %c0_100 = arith.constant 0 : index
    %84 = vector.load %arg1[%c0_97, %c0_98, %c1_99, %c0_100] : memref<1x4x7x28xf32, #tpu.memory_space<vmem>>, vector<1x1x6x28xf32>
    %85 = vector.shape_cast %84 : vector<1x1x6x28xf32> to vector<6x28xf32>
    %c2_101 = arith.constant 2 : index
    %c0_102 = arith.constant 0 : index
    %c0_103 = arith.constant 0 : index
    %86 = vector.load %arg2[%c2_101, %c0_102, %c0_103] : memref<5x28x512xf32, #tpu.memory_space<vmem>>, vector<1x28x512xf32>
    %87 = vector.shape_cast %86 : vector<1x28x512xf32> to vector<28x512xf32>
    %cst_104 = arith.constant dense<0.000000e+00> : vector<6x512xf32>
    %88 = tpu.matmul %85, %87, %cst_104 {dimension_numbers = #tpu.dot_dimension_numbers<[1], [0], [0], [1], [0, 0, 1, 1], [], []>} : vector<6x28xf32>, vector<28x512xf32>, vector<6x512xf32> -> vector<6x512xf32>
    %89 = arith.addf %83, %88 : vector<6x512xf32>
    %c0_105 = arith.constant 0 : index
    %c1_106 = arith.constant 1 : index
    %c1_107 = arith.constant 1 : index
    %c0_108 = arith.constant 0 : index
    %90 = vector.load %arg1[%c0_105, %c1_106, %c1_107, %c0_108] : memref<1x4x7x28xf32, #tpu.memory_space<vmem>>, vector<1x1x6x28xf32>
    %91 = vector.shape_cast %90 : vector<1x1x6x28xf32> to vector<6x28xf32>
    %c3_109 = arith.constant 3 : index
    %c0_110 = arith.constant 0 : index
    %c0_111 = arith.constant 0 : index
    %92 = vector.load %arg2[%c3_109, %c0_110, %c0_111] : memref<5x28x512xf32, #tpu.memory_space<vmem>>, vector<1x28x512xf32>
    %93 = vector.shape_cast %92 : vector<1x28x512xf32> to vector<28x512xf32>
    %cst_112 = arith.constant dense<0.000000e+00> : vector<6x512xf32>
    %94 = tpu.matmul %91, %93, %cst_112 {dimension_numbers = #tpu.dot_dimension_numbers<[1], [0], [0], [1], [0, 0, 1, 1], [], []>} : vector<6x28xf32>, vector<28x512xf32>, vector<6x512xf32> -> vector<6x512xf32>
    %95 = arith.addf %89, %94 : vector<6x512xf32>
    %c0_113 = arith.constant 0 : index
    %c2_114 = arith.constant 2 : index
    %c1_115 = arith.constant 1 : index
    %c0_116 = arith.constant 0 : index
    %96 = vector.load %arg1[%c0_113, %c2_114, %c1_115, %c0_116] : memref<1x4x7x28xf32, #tpu.memory_space<vmem>>, vector<1x1x6x28xf32>
    %97 = vector.shape_cast %96 : vector<1x1x6x28xf32> to vector<6x28xf32>
    %c4_117 = arith.constant 4 : index
    %c0_118 = arith.constant 0 : index
    %c0_119 = arith.constant 0 : index
    %98 = vector.load %arg2[%c4_117, %c0_118, %c0_119] : memref<5x28x512xf32, #tpu.memory_space<vmem>>, vector<1x28x512xf32>
    %99 = vector.shape_cast %98 : vector<1x28x512xf32> to vector<28x512xf32>
    %cst_120 = arith.constant dense<0.000000e+00> : vector<6x512xf32>
    %100 = tpu.matmul %97, %99, %cst_120 {dimension_numbers = #tpu.dot_dimension_numbers<[1], [0], [0], [1], [0, 0, 1, 1], [], []>} : vector<6x28xf32>, vector<28x512xf32>, vector<6x512xf32> -> vector<6x512xf32>
    %101 = arith.addf %95, %100 : vector<6x512xf32>
    %102 = vector.broadcast %0 : vector<1x512xf32> to vector<6x512xf32>
    %103 = arith.addf %101, %102 : vector<6x512xf32>
    %cst_121 = arith.constant 0.000000e+00 : f32
    %104 = vector.broadcast %cst_121 : f32 to vector<6x512xf32>
    %105 = arith.maximumf %103, %104 : vector<6x512xf32>
    %cst_122 = arith.constant 0.000000e+00 : f32
    %106 = vector.broadcast %cst_122 : f32 to vector<6x512xf32>
    %c0_123 = arith.constant 0 : index
    %c3_124 = arith.constant 3 : index
    %c0_125 = arith.constant 0 : index
    %c0_126 = arith.constant 0 : index
    %107 = vector.load %arg1[%c0_123, %c3_124, %c0_125, %c0_126] : memref<1x4x7x28xf32, #tpu.memory_space<vmem>>, vector<1x1x6x28xf32>
    %108 = vector.shape_cast %107 : vector<1x1x6x28xf32> to vector<6x28xf32>
    %c0_127 = arith.constant 0 : index
    %c0_128 = arith.constant 0 : index
    %c0_129 = arith.constant 0 : index
    %109 = vector.load %arg2[%c0_127, %c0_128, %c0_129] : memref<5x28x512xf32, #tpu.memory_space<vmem>>, vector<1x28x512xf32>
    %110 = vector.shape_cast %109 : vector<1x28x512xf32> to vector<28x512xf32>
    %cst_130 = arith.constant dense<0.000000e+00> : vector<6x512xf32>
    %111 = tpu.matmul %108, %110, %cst_130 {dimension_numbers = #tpu.dot_dimension_numbers<[1], [0], [0], [1], [0, 0, 1, 1], [], []>} : vector<6x28xf32>, vector<28x512xf32>, vector<6x512xf32> -> vector<6x512xf32>
    %112 = arith.addf %106, %111 : vector<6x512xf32>
    %c0_131 = arith.constant 0 : index
    %c0_132 = arith.constant 0 : index
    %c1_133 = arith.constant 1 : index
    %c0_134 = arith.constant 0 : index
    %113 = vector.load %arg1[%c0_131, %c0_132, %c1_133, %c0_134] : memref<1x4x7x28xf32, #tpu.memory_space<vmem>>, vector<1x1x6x28xf32>
    %114 = vector.shape_cast %113 : vector<1x1x6x28xf32> to vector<6x28xf32>
    %c1_135 = arith.constant 1 : index
    %c0_136 = arith.constant 0 : index
    %c0_137 = arith.constant 0 : index
    %115 = vector.load %arg2[%c1_135, %c0_136, %c0_137] : memref<5x28x512xf32, #tpu.memory_space<vmem>>, vector<1x28x512xf32>
    %116 = vector.shape_cast %115 : vector<1x28x512xf32> to vector<28x512xf32>
    %cst_138 = arith.constant dense<0.000000e+00> : vector<6x512xf32>
    %117 = tpu.matmul %114, %116, %cst_138 {dimension_numbers = #tpu.dot_dimension_numbers<[1], [0], [0], [1], [0, 0, 1, 1], [], []>} : vector<6x28xf32>, vector<28x512xf32>, vector<6x512xf32> -> vector<6x512xf32>
    %118 = arith.addf %112, %117 : vector<6x512xf32>
    %c0_139 = arith.constant 0 : index
    %c1_140 = arith.constant 1 : index
    %c1_141 = arith.constant 1 : index
    %c0_142 = arith.constant 0 : index
    %119 = vector.load %arg1[%c0_139, %c1_140, %c1_141, %c0_142] : memref<1x4x7x28xf32, #tpu.memory_space<vmem>>, vector<1x1x6x28xf32>
    %120 = vector.shape_cast %119 : vector<1x1x6x28xf32> to vector<6x28xf32>
    %c2_143 = arith.constant 2 : index
    %c0_144 = arith.constant 0 : index
    %c0_145 = arith.constant 0 : index
    %121 = vector.load %arg2[%c2_143, %c0_144, %c0_145] : memref<5x28x512xf32, #tpu.memory_space<vmem>>, vector<1x28x512xf32>
    %122 = vector.shape_cast %121 : vector<1x28x512xf32> to vector<28x512xf32>
    %cst_146 = arith.constant dense<0.000000e+00> : vector<6x512xf32>
    %123 = tpu.matmul %120, %122, %cst_146 {dimension_numbers = #tpu.dot_dimension_numbers<[1], [0], [0], [1], [0, 0, 1, 1], [], []>} : vector<6x28xf32>, vector<28x512xf32>, vector<6x512xf32> -> vector<6x512xf32>
    %124 = arith.addf %118, %123 : vector<6x512xf32>
    %c0_147 = arith.constant 0 : index
    %c2_148 = arith.constant 2 : index
    %c1_149 = arith.constant 1 : index
    %c0_150 = arith.constant 0 : index
    %125 = vector.load %arg1[%c0_147, %c2_148, %c1_149, %c0_150] : memref<1x4x7x28xf32, #tpu.memory_space<vmem>>, vector<1x1x6x28xf32>
    %126 = vector.shape_cast %125 : vector<1x1x6x28xf32> to vector<6x28xf32>
    %c3_151 = arith.constant 3 : index
    %c0_152 = arith.constant 0 : index
    %c0_153 = arith.constant 0 : index
    %127 = vector.load %arg2[%c3_151, %c0_152, %c0_153] : memref<5x28x512xf32, #tpu.memory_space<vmem>>, vector<1x28x512xf32>
    %128 = vector.shape_cast %127 : vector<1x28x512xf32> to vector<28x512xf32>
    %cst_154 = arith.constant dense<0.000000e+00> : vector<6x512xf32>
    %129 = tpu.matmul %126, %128, %cst_154 {dimension_numbers = #tpu.dot_dimension_numbers<[1], [0], [0], [1], [0, 0, 1, 1], [], []>} : vector<6x28xf32>, vector<28x512xf32>, vector<6x512xf32> -> vector<6x512xf32>
    %130 = arith.addf %124, %129 : vector<6x512xf32>
    %c0_155 = arith.constant 0 : index
    %c3_156 = arith.constant 3 : index
    %c1_157 = arith.constant 1 : index
    %c0_158 = arith.constant 0 : index
    %131 = vector.load %arg1[%c0_155, %c3_156, %c1_157, %c0_158] : memref<1x4x7x28xf32, #tpu.memory_space<vmem>>, vector<1x1x6x28xf32>
    %132 = vector.shape_cast %131 : vector<1x1x6x28xf32> to vector<6x28xf32>
    %c4_159 = arith.constant 4 : index
    %c0_160 = arith.constant 0 : index
    %c0_161 = arith.constant 0 : index
    %133 = vector.load %arg2[%c4_159, %c0_160, %c0_161] : memref<5x28x512xf32, #tpu.memory_space<vmem>>, vector<1x28x512xf32>
    %134 = vector.shape_cast %133 : vector<1x28x512xf32> to vector<28x512xf32>
    %cst_162 = arith.constant dense<0.000000e+00> : vector<6x512xf32>
    %135 = tpu.matmul %132, %134, %cst_162 {dimension_numbers = #tpu.dot_dimension_numbers<[1], [0], [0], [1], [0, 0, 1, 1], [], []>} : vector<6x28xf32>, vector<28x512xf32>, vector<6x512xf32> -> vector<6x512xf32>
    %136 = arith.addf %130, %135 : vector<6x512xf32>
    %137 = vector.broadcast %0 : vector<1x512xf32> to vector<6x512xf32>
    %138 = arith.addf %136, %137 : vector<6x512xf32>
    %cst_163 = arith.constant 0.000000e+00 : f32
    %139 = vector.broadcast %cst_163 : f32 to vector<6x512xf32>
    %140 = arith.maximumf %138, %139 : vector<6x512xf32>
    %141 = arith.maximumf %35, %70 : vector<6x512xf32>
    %142 = arith.maximumf %105, %140 : vector<6x512xf32>
    %143 = vector.extract_strided_slice %141 {offsets = [0, 0], sizes = [6, 256], strides = [1, 1]} : vector<6x512xf32> to vector<6x256xf32>
    %144 = vector.extract_strided_slice %141 {offsets = [0, 256], sizes = [6, 256], strides = [1, 1]} : vector<6x512xf32> to vector<6x256xf32>
    %145 = arith.maximumf %143, %144 : vector<6x256xf32>
    %c0_164 = arith.constant 0 : index
    %c0_165 = arith.constant 0 : index
    %c0_166 = arith.constant 0 : index
    %146 = vector.load %arg11[%c0_164, %c0_165, %c0_166] : memref<2x6x256xf32, #tpu.memory_space<vmem>>, vector<1x6x256xf32>
    %147 = vector.shape_cast %146 : vector<1x6x256xf32> to vector<6x256xf32>
    %148 = vector.shape_cast %145 : vector<6x256xf32> to vector<1x6x256xf32>
    tpu.vector_store %arg11[%c0_164, %c0_165, %c0_166], %148 {strides = array<i32>} : memref<2x6x256xf32, #tpu.memory_space<vmem>>, vector<1x6x256xf32>,
    %149 = vector.extract_strided_slice %142 {offsets = [0, 0], sizes = [6, 256], strides = [1, 1]} : vector<6x512xf32> to vector<6x256xf32>
    %150 = vector.extract_strided_slice %142 {offsets = [0, 256], sizes = [6, 256], strides = [1, 1]} : vector<6x512xf32> to vector<6x256xf32>
    %151 = arith.maximumf %149, %150 : vector<6x256xf32>
    %c1_167 = arith.constant 1 : index
    %c0_168 = arith.constant 0 : index
    %c0_169 = arith.constant 0 : index
    %152 = vector.load %arg11[%c1_167, %c0_168, %c0_169] : memref<2x6x256xf32, #tpu.memory_space<vmem>>, vector<1x6x256xf32>
    %153 = vector.shape_cast %152 : vector<1x6x256xf32> to vector<6x256xf32>
    %154 = vector.shape_cast %151 : vector<6x256xf32> to vector<1x6x256xf32>
    tpu.vector_store %arg11[%c1_167, %c0_168, %c0_169], %154 {strides = array<i32>} : memref<2x6x256xf32, #tpu.memory_space<vmem>>, vector<1x6x256xf32>,
    %c0_170 = arith.constant 0 : index
    %c0_171 = arith.constant 0 : index
    %155 = vector.load %arg5[%c0_170, %c0_171] : memref<1x512xf32, #tpu.memory_space<vmem>>, vector<1x512xf32>
    %cst_172 = arith.constant 0.000000e+00 : f32
    %156 = vector.broadcast %cst_172 : f32 to vector<4x512xf32>
    %c0_173 = arith.constant 0 : index
    %c0_174 = arith.constant 0 : index
    %c0_175 = arith.constant 0 : index
    %157 = vector.load %arg11[%c0_173, %c0_174, %c0_175] : memref<2x6x256xf32, #tpu.memory_space<vmem>>, vector<1x4x256xf32>
    %158 = vector.shape_cast %157 : vector<1x4x256xf32> to vector<4x256xf32>
    %c0_176 = arith.constant 0 : index
    %c0_177 = arith.constant 0 : index
    %c0_178 = arith.constant 0 : index
    %159 = vector.load %arg4[%c0_176, %c0_177, %c0_178] : memref<5x256x512xf32, #tpu.memory_space<vmem>>, vector<1x256x512xf32>
    %160 = vector.shape_cast %159 : vector<1x256x512xf32> to vector<256x512xf32>
    %cst_179 = arith.constant dense<0.000000e+00> : vector<4x512xf32>
    %161 = tpu.matmul %158, %160, %cst_179 {dimension_numbers = #tpu.dot_dimension_numbers<[1], [0], [0], [1], [0, 0, 1, 1], [], []>} : vector<4x256xf32>, vector<256x512xf32>, vector<4x512xf32> -> vector<4x512xf32>
    %162 = arith.addf %156, %161 : vector<4x512xf32>
    %c1_180 = arith.constant 1 : index
    %c0_181 = arith.constant 0 : index
    %c0_182 = arith.constant 0 : index
    %163 = vector.load %arg11[%c1_180, %c0_181, %c0_182] : memref<2x6x256xf32, #tpu.memory_space<vmem>>, vector<1x4x256xf32>
    %164 = vector.shape_cast %163 : vector<1x4x256xf32> to vector<4x256xf32>
    %c1_183 = arith.constant 1 : index
    %c0_184 = arith.constant 0 : index
    %c0_185 = arith.constant 0 : index
    %165 = vector.load %arg4[%c1_183, %c0_184, %c0_185] : memref<5x256x512xf32, #tpu.memory_space<vmem>>, vector<1x256x512xf32>
    %166 = vector.shape_cast %165 : vector<1x256x512xf32> to vector<256x512xf32>
    %cst_186 = arith.constant dense<0.000000e+00> : vector<4x512xf32>
    %167 = tpu.matmul %164, %166, %cst_186 {dimension_numbers = #tpu.dot_dimension_numbers<[1], [0], [0], [1], [0, 0, 1, 1], [], []>} : vector<4x256xf32>, vector<256x512xf32>, vector<4x512xf32> -> vector<4x512xf32>
    %168 = arith.addf %162, %167 : vector<4x512xf32>
    %c0_187 = arith.constant 0 : index
    %c1_188 = arith.constant 1 : index
    %c0_189 = arith.constant 0 : index
    %169 = vector.load %arg11[%c0_187, %c1_188, %c0_189] : memref<2x6x256xf32, #tpu.memory_space<vmem>>, vector<1x4x256xf32>
    %170 = vector.shape_cast %169 : vector<1x4x256xf32> to vector<4x256xf32>
    %c2_190 = arith.constant 2 : index
    %c0_191 = arith.constant 0 : index
    %c0_192 = arith.constant 0 : index
    %171 = vector.load %arg4[%c2_190, %c0_191, %c0_192] : memref<5x256x512xf32, #tpu.memory_space<vmem>>, vector<1x256x512xf32>
    %172 = vector.shape_cast %171 : vector<1x256x512xf32> to vector<256x512xf32>
    %cst_193 = arith.constant dense<0.000000e+00> : vector<4x512xf32>
    %173 = tpu.matmul %170, %172, %cst_193 {dimension_numbers = #tpu.dot_dimension_numbers<[1], [0], [0], [1], [0, 0, 1, 1], [], []>} : vector<4x256xf32>, vector<256x512xf32>, vector<4x512xf32> -> vector<4x512xf32>
    %174 = arith.addf %168, %173 : vector<4x512xf32>
    %c1_194 = arith.constant 1 : index
    %c1_195 = arith.constant 1 : index
    %c0_196 = arith.constant 0 : index
    %175 = vector.load %arg11[%c1_194, %c1_195, %c0_196] : memref<2x6x256xf32, #tpu.memory_space<vmem>>, vector<1x4x256xf32>
    %176 = vector.shape_cast %175 : vector<1x4x256xf32> to vector<4x256xf32>
    %c3_197 = arith.constant 3 : index
    %c0_198 = arith.constant 0 : index
    %c0_199 = arith.constant 0 : index
    %177 = vector.load %arg4[%c3_197, %c0_198, %c0_199] : memref<5x256x512xf32, #tpu.memory_space<vmem>>, vector<1x256x512xf32>
    %178 = vector.shape_cast %177 : vector<1x256x512xf32> to vector<256x512xf32>
    %cst_200 = arith.constant dense<0.000000e+00> : vector<4x512xf32>
    %179 = tpu.matmul %176, %178, %cst_200 {dimension_numbers = #tpu.dot_dimension_numbers<[1], [0], [0], [1], [0, 0, 1, 1], [], []>} : vector<4x256xf32>, vector<256x512xf32>, vector<4x512xf32> -> vector<4x512xf32>
    %180 = arith.addf %174, %179 : vector<4x512xf32>
    %c0_201 = arith.constant 0 : index
    %c2_202 = arith.constant 2 : index
    %c0_203 = arith.constant 0 : index
    %181 = vector.load %arg11[%c0_201, %c2_202, %c0_203] : memref<2x6x256xf32, #tpu.memory_space<vmem>>, vector<1x4x256xf32>
    %182 = vector.shape_cast %181 : vector<1x4x256xf32> to vector<4x256xf32>
    %c4_204 = arith.constant 4 : index
    %c0_205 = arith.constant 0 : index
    %c0_206 = arith.constant 0 : index
    %183 = vector.load %arg4[%c4_204, %c0_205, %c0_206] : memref<5x256x512xf32, #tpu.memory_space<vmem>>, vector<1x256x512xf32>
    %184 = vector.shape_cast %183 : vector<1x256x512xf32> to vector<256x512xf32>
    %cst_207 = arith.constant dense<0.000000e+00> : vector<4x512xf32>
    %185 = tpu.matmul %182, %184, %cst_207 {dimension_numbers = #tpu.dot_dimension_numbers<[1], [0], [0], [1], [0, 0, 1, 1], [], []>} : vector<4x256xf32>, vector<256x512xf32>, vector<4x512xf32> -> vector<4x512xf32>
    %186 = arith.addf %180, %185 : vector<4x512xf32>
    %187 = vector.broadcast %155 : vector<1x512xf32> to vector<4x512xf32>
    %188 = arith.addf %186, %187 : vector<4x512xf32>
    %cst_208 = arith.constant 0.000000e+00 : f32
    %189 = vector.broadcast %cst_208 : f32 to vector<4x512xf32>
    %190 = arith.maximumf %188, %189 : vector<4x512xf32>
    %cst_209 = arith.constant 0.000000e+00 : f32
    %191 = vector.broadcast %cst_209 : f32 to vector<4x512xf32>
    %c1_210 = arith.constant 1 : index
    %c0_211 = arith.constant 0 : index
    %c0_212 = arith.constant 0 : index
    %192 = vector.load %arg11[%c1_210, %c0_211, %c0_212] : memref<2x6x256xf32, #tpu.memory_space<vmem>>, vector<1x4x256xf32>
    %193 = vector.shape_cast %192 : vector<1x4x256xf32> to vector<4x256xf32>
    %c0_213 = arith.constant 0 : index
    %c0_214 = arith.constant 0 : index
    %c0_215 = arith.constant 0 : index
    %194 = vector.load %arg4[%c0_213, %c0_214, %c0_215] : memref<5x256x512xf32, #tpu.memory_space<vmem>>, vector<1x256x512xf32>
    %195 = vector.shape_cast %194 : vector<1x256x512xf32> to vector<256x512xf32>
    %cst_216 = arith.constant dense<0.000000e+00> : vector<4x512xf32>
    %196 = tpu.matmul %193, %195, %cst_216 {dimension_numbers = #tpu.dot_dimension_numbers<[1], [0], [0], [1], [0, 0, 1, 1], [], []>} : vector<4x256xf32>, vector<256x512xf32>, vector<4x512xf32> -> vector<4x512xf32>
    %197 = arith.addf %191, %196 : vector<4x512xf32>
    %c0_217 = arith.constant 0 : index
    %c1_218 = arith.constant 1 : index
    %c0_219 = arith.constant 0 : index
    %198 = vector.load %arg11[%c0_217, %c1_218, %c0_219] : memref<2x6x256xf32, #tpu.memory_space<vmem>>, vector<1x4x256xf32>
    %199 = vector.shape_cast %198 : vector<1x4x256xf32> to vector<4x256xf32>
    %c1_220 = arith.constant 1 : index
    %c0_221 = arith.constant 0 : index
    %c0_222 = arith.constant 0 : index
    %200 = vector.load %arg4[%c1_220, %c0_221, %c0_222] : memref<5x256x512xf32, #tpu.memory_space<vmem>>, vector<1x256x512xf32>
    %201 = vector.shape_cast %200 : vector<1x256x512xf32> to vector<256x512xf32>
    %cst_223 = arith.constant dense<0.000000e+00> : vector<4x512xf32>
    %202 = tpu.matmul %199, %201, %cst_223 {dimension_numbers = #tpu.dot_dimension_numbers<[1], [0], [0], [1], [0, 0, 1, 1], [], []>} : vector<4x256xf32>, vector<256x512xf32>, vector<4x512xf32> -> vector<4x512xf32>
    %203 = arith.addf %197, %202 : vector<4x512xf32>
    %c1_224 = arith.constant 1 : index
    %c1_225 = arith.constant 1 : index
    %c0_226 = arith.constant 0 : index
    %204 = vector.load %arg11[%c1_224, %c1_225, %c0_226] : memref<2x6x256xf32, #tpu.memory_space<vmem>>, vector<1x4x256xf32>
    %205 = vector.shape_cast %204 : vector<1x4x256xf32> to vector<4x256xf32>
    %c2_227 = arith.constant 2 : index
    %c0_228 = arith.constant 0 : index
    %c0_229 = arith.constant 0 : index
    %206 = vector.load %arg4[%c2_227, %c0_228, %c0_229] : memref<5x256x512xf32, #tpu.memory_space<vmem>>, vector<1x256x512xf32>
    %207 = vector.shape_cast %206 : vector<1x256x512xf32> to vector<256x512xf32>
    %cst_230 = arith.constant dense<0.000000e+00> : vector<4x512xf32>
    %208 = tpu.matmul %205, %207, %cst_230 {dimension_numbers = #tpu.dot_dimension_numbers<[1], [0], [0], [1], [0, 0, 1, 1], [], []>} : vector<4x256xf32>, vector<256x512xf32>, vector<4x512xf32> -> vector<4x512xf32>
    %209 = arith.addf %203, %208 : vector<4x512xf32>
    %c0_231 = arith.constant 0 : index
    %c2_232 = arith.constant 2 : index
    %c0_233 = arith.constant 0 : index
    %210 = vector.load %arg11[%c0_231, %c2_232, %c0_233] : memref<2x6x256xf32, #tpu.memory_space<vmem>>, vector<1x4x256xf32>
    %211 = vector.shape_cast %210 : vector<1x4x256xf32> to vector<4x256xf32>
    %c3_234 = arith.constant 3 : index
    %c0_235 = arith.constant 0 : index
    %c0_236 = arith.constant 0 : index
    %212 = vector.load %arg4[%c3_234, %c0_235, %c0_236] : memref<5x256x512xf32, #tpu.memory_space<vmem>>, vector<1x256x512xf32>
    %213 = vector.shape_cast %212 : vector<1x256x512xf32> to vector<256x512xf32>
    %cst_237 = arith.constant dense<0.000000e+00> : vector<4x512xf32>
    %214 = tpu.matmul %211, %213, %cst_237 {dimension_numbers = #tpu.dot_dimension_numbers<[1], [0], [0], [1], [0, 0, 1, 1], [], []>} : vector<4x256xf32>, vector<256x512xf32>, vector<4x512xf32> -> vector<4x512xf32>
    %215 = arith.addf %209, %214 : vector<4x512xf32>
    %c1_238 = arith.constant 1 : index
    %c2_239 = arith.constant 2 : index
    %c0_240 = arith.constant 0 : index
    %216 = vector.load %arg11[%c1_238, %c2_239, %c0_240] : memref<2x6x256xf32, #tpu.memory_space<vmem>>, vector<1x4x256xf32>
    %217 = vector.shape_cast %216 : vector<1x4x256xf32> to vector<4x256xf32>
    %c4_241 = arith.constant 4 : index
    %c0_242 = arith.constant 0 : index
    %c0_243 = arith.constant 0 : index
    %218 = vector.load %arg4[%c4_241, %c0_242, %c0_243] : memref<5x256x512xf32, #tpu.memory_space<vmem>>, vector<1x256x512xf32>
    %219 = vector.shape_cast %218 : vector<1x256x512xf32> to vector<256x512xf32>
    %cst_244 = arith.constant dense<0.000000e+00> : vector<4x512xf32>
    %220 = tpu.matmul %217, %219, %cst_244 {dimension_numbers = #tpu.dot_dimension_numbers<[1], [0], [0], [1], [0, 0, 1, 1], [], []>} : vector<4x256xf32>, vector<256x512xf32>, vector<4x512xf32> -> vector<4x512xf32>
    %221 = arith.addf %215, %220 : vector<4x512xf32>
    %222 = vector.broadcast %155 : vector<1x512xf32> to vector<4x512xf32>
    %223 = arith.addf %221, %222 : vector<4x512xf32>
    %cst_245 = arith.constant 0.000000e+00 : f32
    %224 = vector.broadcast %cst_245 : f32 to vector<4x512xf32>
    %225 = arith.maximumf %223, %224 : vector<4x512xf32>
    %226 = arith.maximumf %190, %225 : vector<4x512xf32>
    %227 = vector.extract_strided_slice %226 {offsets = [0, 0], sizes = [4, 256], strides = [1, 1]} : vector<4x512xf32> to vector<4x256xf32>
    %228 = vector.extract_strided_slice %226 {offsets = [0, 256], sizes = [4, 256], strides = [1, 1]} : vector<4x512xf32> to vector<4x256xf32>
    %229 = arith.maximumf %227, %228 : vector<4x256xf32>
    %c0_246 = arith.constant 0 : index
    %c0_247 = arith.constant 0 : index
    %230 = vector.load %arg12[%c0_246, %c0_247] : memref<4x256xf32, #tpu.memory_space<vmem>>, vector<4x256xf32>
    tpu.vector_store %arg12[%c0_246, %c0_247], %229 {strides = array<i32>} : memref<4x256xf32, #tpu.memory_space<vmem>>, vector<4x256xf32>,
    %c0_248 = arith.constant 0 : index
    %c0_249 = arith.constant 0 : index
    %231 = vector.load %arg7[%c0_248, %c0_249] : memref<1x512xf32, #tpu.memory_space<vmem>>, vector<1x512xf32>
    %c0_250 = arith.constant 0 : index
    %c0_251 = arith.constant 0 : index
    %232 = vector.load %arg12[%c0_250, %c0_251] : memref<4x256xf32, #tpu.memory_space<vmem>>, vector<1x256xf32>
    %c0_252 = arith.constant 0 : index
    %c0_253 = arith.constant 0 : index
    %c0_254 = arith.constant 0 : index
    %233 = vector.load %arg6[%c0_252, %c0_253, %c0_254] : memref<4x256x512xf32, #tpu.memory_space<vmem>>, vector<1x256x512xf32>
    %234 = vector.shape_cast %233 : vector<1x256x512xf32> to vector<256x512xf32>
    %cst_255 = arith.constant dense<0.000000e+00> : vector<1x512xf32>
    %235 = tpu.matmul %232, %234, %cst_255 {dimension_numbers = #tpu.dot_dimension_numbers<[1], [0], [0], [1], [0, 0, 1, 1], [], []>} : vector<1x256xf32>, vector<256x512xf32>, vector<1x512xf32> -> vector<1x512xf32>
    %236 = arith.addf %231, %235 : vector<1x512xf32>
    %c1_256 = arith.constant 1 : index
    %c0_257 = arith.constant 0 : index
    %237 = vector.load %arg12[%c1_256, %c0_257] : memref<4x256xf32, #tpu.memory_space<vmem>>, vector<1x256xf32>
    %c1_258 = arith.constant 1 : index
    %c0_259 = arith.constant 0 : index
    %c0_260 = arith.constant 0 : index
    %238 = vector.load %arg6[%c1_258, %c0_259, %c0_260] : memref<4x256x512xf32, #tpu.memory_space<vmem>>, vector<1x256x512xf32>
    %239 = vector.shape_cast %238 : vector<1x256x512xf32> to vector<256x512xf32>
    %cst_261 = arith.constant dense<0.000000e+00> : vector<1x512xf32>
    %240 = tpu.matmul %237, %239, %cst_261 {dimension_numbers = #tpu.dot_dimension_numbers<[1], [0], [0], [1], [0, 0, 1, 1], [], []>} : vector<1x256xf32>, vector<256x512xf32>, vector<1x512xf32> -> vector<1x512xf32>
    %241 = arith.addf %236, %240 : vector<1x512xf32>
    %c2_262 = arith.constant 2 : index
    %c0_263 = arith.constant 0 : index
    %242 = vector.load %arg12[%c2_262, %c0_263] : memref<4x256xf32, #tpu.memory_space<vmem>>, vector<1x256xf32>
    %c2_264 = arith.constant 2 : index
    %c0_265 = arith.constant 0 : index
    %c0_266 = arith.constant 0 : index
    %243 = vector.load %arg6[%c2_264, %c0_265, %c0_266] : memref<4x256x512xf32, #tpu.memory_space<vmem>>, vector<1x256x512xf32>
    %244 = vector.shape_cast %243 : vector<1x256x512xf32> to vector<256x512xf32>
    %cst_267 = arith.constant dense<0.000000e+00> : vector<1x512xf32>
    %245 = tpu.matmul %242, %244, %cst_267 {dimension_numbers = #tpu.dot_dimension_numbers<[1], [0], [0], [1], [0, 0, 1, 1], [], []>} : vector<1x256xf32>, vector<256x512xf32>, vector<1x512xf32> -> vector<1x512xf32>
    %246 = arith.addf %241, %245 : vector<1x512xf32>
    %c3_268 = arith.constant 3 : index
    %c0_269 = arith.constant 0 : index
    %247 = vector.load %arg12[%c3_268, %c0_269] : memref<4x256xf32, #tpu.memory_space<vmem>>, vector<1x256xf32>
    %c3_270 = arith.constant 3 : index
    %c0_271 = arith.constant 0 : index
    %c0_272 = arith.constant 0 : index
    %248 = vector.load %arg6[%c3_270, %c0_271, %c0_272] : memref<4x256x512xf32, #tpu.memory_space<vmem>>, vector<1x256x512xf32>
    %249 = vector.shape_cast %248 : vector<1x256x512xf32> to vector<256x512xf32>
    %cst_273 = arith.constant dense<0.000000e+00> : vector<1x512xf32>
    %250 = tpu.matmul %247, %249, %cst_273 {dimension_numbers = #tpu.dot_dimension_numbers<[1], [0], [0], [1], [0, 0, 1, 1], [], []>} : vector<1x256xf32>, vector<256x512xf32>, vector<1x512xf32> -> vector<1x512xf32>
    %251 = arith.addf %246, %250 : vector<1x512xf32>
    %cst_274 = arith.constant 0.000000e+00 : f32
    %252 = vector.broadcast %cst_274 : f32 to vector<1x512xf32>
    %253 = arith.maximumf %251, %252 : vector<1x512xf32>
    %c0_275 = arith.constant 0 : index
    %c0_276 = arith.constant 0 : index
    %254 = vector.load %arg8[%c0_275, %c0_276] : memref<512x128xf32, #tpu.memory_space<vmem>>, vector<512x128xf32>
    %cst_277 = arith.constant dense<0.000000e+00> : vector<1x128xf32>
    %255 = tpu.matmul %253, %254, %cst_277 {dimension_numbers = #tpu.dot_dimension_numbers<[1], [0], [0], [1], [0, 0, 1, 1], [], []>} : vector<1x512xf32>, vector<512x128xf32>, vector<1x128xf32> -> vector<1x128xf32>
    %c0_278 = arith.constant 0 : index
    %c0_279 = arith.constant 0 : index
    %256 = vector.load %arg9[%c0_278, %c0_279] : memref<1x128xf32, #tpu.memory_space<vmem>>, vector<1x128xf32>
    %257 = arith.addf %255, %256 : vector<1x128xf32>
    %c0_280 = arith.constant 0 : index
    %c0_281 = arith.constant 0 : index
    %c0_282 = arith.constant 0 : index
    %258 = vector.load %arg10[%c0_280, %c0_281, %c0_282] : memref<1x1x128xf32, #tpu.memory_space<vmem>>, vector<1x1x128xf32>
    %259 = vector.shape_cast %258 : vector<1x1x128xf32> to vector<1x128xf32>
    %260 = vector.shape_cast %257 : vector<1x128xf32> to vector<1x1x128xf32>
    tpu.vector_store %arg10[%c0_280, %c0_281, %c0_282], %260 {strides = array<i32>} : memref<1x1x128xf32, #tpu.memory_space<vmem>>, vector<1x1x128xf32>,
    return
  }
  func.func @transform_0(%arg0: i32) -> (i32, i32, i32, i32) {
    %c0_i32 = arith.constant 0 : i32
    %c0_i32_0 = arith.constant 0 : i32
    %c0_i32_1 = arith.constant 0 : i32
    %c0_i32_2 = arith.constant 0 : i32
    return %arg0, %c0_i32, %c0_i32_0, %c0_i32_1 : i32, i32, i32, i32
  }
  func.func @transform_1(%arg0: i32) -> (i32, i32, i32) {
    %c0_i32 = arith.constant 0 : i32
    %c0_i32_0 = arith.constant 0 : i32
    %c0_i32_1 = arith.constant 0 : i32
    %c0_i32_2 = arith.constant 0 : i32
    return %c0_i32, %c0_i32_0, %c0_i32_1 : i32, i32, i32
  }
  func.func @transform_2(%arg0: i32) -> (i32, i32) {
    %c0_i32 = arith.constant 0 : i32
    %c0_i32_0 = arith.constant 0 : i32
    %c0_i32_1 = arith.constant 0 : i32
    return %c0_i32, %c0_i32_0 : i32, i32
  }
  func.func @transform_3(%arg0: i32) -> (i32, i32, i32) {
    %c0_i32 = arith.constant 0 : i32
    %c0_i32_0 = arith.constant 0 : i32
    %c0_i32_1 = arith.constant 0 : i32
    %c0_i32_2 = arith.constant 0 : i32
    return %c0_i32, %c0_i32_0, %c0_i32_1 : i32, i32, i32
  }
  func.func @transform_4(%arg0: i32) -> (i32, i32) {
    %c0_i32 = arith.constant 0 : i32
    %c0_i32_0 = arith.constant 0 : i32
    %c0_i32_1 = arith.constant 0 : i32
    return %c0_i32, %c0_i32_0 : i32, i32
  }
  func.func @transform_5(%arg0: i32) -> (i32, i32, i32) {
    %c0_i32 = arith.constant 0 : i32
    %c0_i32_0 = arith.constant 0 : i32
    %c0_i32_1 = arith.constant 0 : i32
    %c0_i32_2 = arith.constant 0 : i32
    return %c0_i32, %c0_i32_0, %c0_i32_1 : i32, i32, i32
  }
  func.func @transform_6(%arg0: i32) -> (i32, i32) {
    %c0_i32 = arith.constant 0 : i32
    %c0_i32_0 = arith.constant 0 : i32
    %c0_i32_1 = arith.constant 0 : i32
    return %c0_i32, %c0_i32_0 : i32, i32
  }
  func.func @transform_7(%arg0: i32) -> (i32, i32) {
    %c0_i32 = arith.constant 0 : i32
    %c0_i32_0 = arith.constant 0 : i32
    %c0_i32_1 = arith.constant 0 : i32
    return %c0_i32, %c0_i32_0 : i32, i32
  }
  func.func @transform_8(%arg0: i32) -> (i32, i32) {
    %c0_i32 = arith.constant 0 : i32
    %c0_i32_0 = arith.constant 0 : i32
    %c0_i32_1 = arith.constant 0 : i32
    return %c0_i32, %c0_i32_0 : i32, i32
  }
  func.func @transform_9(%arg0: i32) -> (i32, i32, i32) {
    %c0_i32 = arith.constant 0 : i32
    %c0_i32_0 = arith.constant 0 : i32
    %c0_i32_1 = arith.constant 0 : i32
    return %arg0, %c0_i32, %c0_i32_0 : i32, i32, i32
  }
}

</mosaic_0001>

<llo_original>
// kernel: _lenet5_forward.1
$region0: #{_lenet5_forward.1}
  #allocation0 [shape = 'u32[]', space=smem, size = 0x4, offset = 0x4, fixed_abs, tag = 'smem constant byte address 0x4 - core index']
  #allocation1 [shape = 'u32[144,128]{1,0:T(1,128)}', space=vmem, size = 0x12000, scoped, tag = 'internal scratch']
  #allocation2 [shape = 'f32[2,6,256]{2,1,0:T(8,128)}', space=vmem, size = 0x4000, scoped, tag = 'scratch operand']
  #allocation3 [shape = 'f32[4,256]{1,0:T(4,128)}', space=vmem, size = 0x1000, scoped, tag = 'scratch operand']
  %s0 = inlined_call_operand.vmem [shape: f32[2,4,7,28], index: 0, kind: input, shape index: {}]
  %s1 = inlined_call_operand.hbm [shape: f32[5,28,512], index: 1, kind: input, shape index: {}]
  %s2 = inlined_call_operand.hbm [shape: f32[1,512], index: 2, kind: input, shape index: {}]
  %s3 = inlined_call_operand.hbm [shape: f32[5,256,512], index: 3, kind: input, shape index: {}]
  %s4 = inlined_call_operand.hbm [shape: f32[1,512], index: 4, kind: input, shape index: {}]
  %s5 = inlined_call_operand.hbm [shape: f32[4,256,512], index: 5, kind: input, shape index: {}]
  %s6 = inlined_call_operand.hbm [shape: f32[1,512], index: 6, kind: input, shape index: {}]
  %s7 = inlined_call_operand.hbm [shape: f32[512,128], index: 7, kind: input, shape index: {}]
  %s8 = inlined_call_operand.hbm [shape: f32[1,128], index: 8, kind: input, shape index: {}]
  %s9 = inlined_call_operand.hbm [shape: f32[2,1,128], index: 9, kind: output, shape index: {}]
  %s10 = sld [smem:[#allocation0]]
  $region101: #{_lenet5_forward.1} parent=0
    _
  %s12 = ssub.s32 1, %s10
  %s13 = scalar_select 0, %s12, %s10
  $region1: #{_lenet5_forward.1} parent=0
    #allocation4 [shape = 'u8[327680]{0}', space=vmem, size = 0x50000, scoped, tag = 'input window, operand 1, single buffered']
    #allocation5 [shape = 's32[2]{0}', space=sflag, size = 0x8, scoped, tag = 'scoped memory for _lenet5_forward.1']
    #allocation6 [shape = 's32[2]{0}', space=sflag, size = 0x8, scoped, tag = 'scoped memory for _lenet5_forward.1']
    #allocation7 [shape = 'u8[2048]{0}', space=vmem, size = 0x800, scoped, tag = 'input window, operand 2, single buffered']
    #allocation8 [shape = 's32[1]{0}', space=sflag, size = 0x4, scoped, tag = 'scoped memory for _lenet5_forward.1']
    #allocation9 [shape = 'u8[2621440]{0}', space=vmem, size = 0x280000, scoped, tag = 'input window, operand 3, single buffered']
    #allocation10 [shape = 'u8[2048]{0}', space=vmem, size = 0x800, scoped, tag = 'input window, operand 4, single buffered']
    #allocation11 [shape = 's32[1]{0}', space=sflag, size = 0x4, scoped, tag = 'scoped memory for _lenet5_forward.1']
    #allocation12 [shape = 'u8[2097152]{0}', space=vmem, size = 0x200000, scoped, tag = 'input window, operand 5, single buffered']
    #allocation13 [shape = 'u8[2048]{0}', space=vmem, size = 0x800, scoped, tag = 'input window, operand 6, single buffered']
    #allocation14 [shape = 's32[1]{0}', space=sflag, size = 0x4, scoped, tag = 'scoped memory for _lenet5_forward.1']
    #allocation15 [shape = 'u8[262144]{0}', space=vmem, size = 0x40000, scoped, tag = 'input window, operand 7, single buffered']
    #allocation16 [shape = 'u8[512]{0}', space=vmem, size = 0x400, scoped, tag = 'input window, operand 8, single buffered']
    #allocation17 [shape = 's32[1]{0}', space=sflag, size = 0x4, scoped, tag = 'scoped memory for _lenet5_forward.1']
    #allocation18 [shape = 'u8[1024]{0}', space=vmem, size = 0x400, scoped, tag = 'output window, operand 0']
    %14 = vsyncpa [#allocation5], 0
    %15 = vsyncpa [#allocation8], 0
    %16 = vsyncpa [#allocation11], 0
    %17 = vsyncpa [#allocation14], 0
    %18 = vsyncpa [#allocation17], 0
    %19 = vsyncpa [#allocation6], 0
    %s20 = scalar_lea.sflag [#allocation6], 1
    %21 = vsyncpa %s20, 0
    loop: start=0, step=1, limit=4
    $region2: #{_lenet5_forward.1} parent=1 // loop_pre_header
      _
    $region3: #{_lenet5_forward.1} parent=1 // loop_header
      %s23 = sphi 0, %s27
      %p24 = scmp.ge.s32.totalorder %s23, 4
      %s33 = sphi 0, %s35
      %s36 = sphi 0, %s33
      %s37 = sphi 0, %s36
      %s53 = sphi 0, %s37
      %s57 = sphi 0, %s57
      %s59 = sphi 0, %s57
      %s60 = sphi 0, %s59
      %s74 = sphi 0, %s60
      %s78 = sphi 0, %s78
      %s80 = sphi 0, %s78
      %s81 = sphi 0, %s80
      %s95 = sphi 0, %s81
      %s99 = sphi 0, %s99
      %s101 = sphi 0, %s99
      %s102 = sphi 0, %s101
      %s116 = sphi 0, %s102
      %s120 = sphi 0, %s120
      %s122 = sphi 0, %s120
      %s123 = sphi 0, %s122
      %s137 = sphi 0, %s123
      %s141 = sphi 0, %s141
      %s143 = sphi 0, %s141
      %s144 = sphi 0, %s143
      %s158 = sphi 0, %s144
      %s162 = sphi 0, %s162
      %s164 = sphi 0, %s162
      %s165 = sphi 0, %s164
      %s179 = sphi 0, %s165
      %s183 = sphi 0, %s183
      %s185 = sphi 0, %s183
      %s186 = sphi 0, %s185
      %s200 = sphi 0, %s186
      %s204 = sphi 0, %s204
      %s206 = sphi 0, %s204
      %s207 = sphi 0, %s206
      %s221 = sphi 0, %s207
      %s227 = sphi 0, %s229
      %s230 = sphi 0, %s227
      %s231 = sphi 0, %s230
      %s247 = sphi 0, %s231
    $region4: #{_lenet5_forward.1} parent=1 // loop_header_branch
      %26 = sbr.rel (%p24) target = $region8
    $region5: #{_lenet5_forward.1} parent=1 // loop_body
      %s28 = ssub.s32 %s23, 1
      %s29 = ssub.s32 %s23, 2
      %s30 = sadd.s32 %s23, 1
      %s31 = ssub.s32 %s23, %s30
      %p32 = scmp.eq.s32.totalorder %s31, 0
      %s34 = sadd.s32 %s33, 1
      %s35 = scalar_select %p32, %s33, %s34
      %p38 = pneg %p32
      %p39 = scmp.eq.s32.totalorder %s23, 1
      %p40 = por %p38, %p39
      %p41 = scmp.ne.s32.totalorder %s33, %s36
      %p42 = scmp.eq.s32.totalorder %s23, 0
      %p43 = por %p41, %p42
      %p44 = scmp.ne.s32.totalorder %s33, %s36
      %p45 = scmp.eq.s32.totalorder %s28, 1
      %p46 = por %p44, %p45
      %p47 = scmp.ne.s32.totalorder %s36, %s37
      %p48 = scmp.eq.s32.totalorder %s28, 0
      %p49 = por %p47, %p48
      %p50 = scmp.ne.s32.totalorder %s36, %s37
      %p51 = scmp.eq.s32.totalorder %s29, 1
      %p52 = por %p50, %p51
      %p54 = scmp.ne.s32.totalorder %s37, %s53
      %p55 = scmp.eq.s32.totalorder %s29, 0
      %p56 = por %p54, %p55
      %s58 = sadd.s32 %s57, 1
      %p61 = scmp.eq.s32.totalorder %s23, 1
      %p62 = scmp.ne.s32.totalorder %s57, %s59
      %p63 = scmp.eq.s32.totalorder %s23, 0
      %p64 = por %p62, %p63
      %p65 = scmp.ne.s32.totalorder %s57, %s59
      %p66 = scmp.eq.s32.totalorder %s28, 1
      %p67 = por %p65, %p66
      %p68 = scmp.ne.s32.totalorder %s59, %s60
      %p69 = scmp.eq.s32.totalorder %s28, 0
      %p70 = por %p68, %p69
      %p71 = scmp.ne.s32.totalorder %s59, %s60
      %p72 = scmp.eq.s32.totalorder %s29, 1
      %p73 = por %p71, %p72
      %p75 = scmp.ne.s32.totalorder %s60, %s74
      %p76 = scmp.eq.s32.totalorder %s29, 0
      %p77 = por %p75, %p76
      %s79 = sadd.s32 %s78, 1
      %p82 = scmp.eq.s32.totalorder %s23, 1
      %p83 = scmp.ne.s32.totalorder %s78, %s80
      %p84 = scmp.eq.s32.totalorder %s23, 0
      %p85 = por %p83, %p84
      %p86 = scmp.ne.s32.totalorder %s78, %s80
      %p87 = scmp.eq.s32.totalorder %s28, 1
      %p88 = por %p86, %p87
      %p89 = scmp.ne.s32.totalorder %s80, %s81
      %p90 = scmp.eq.s32.totalorder %s28, 0
      %p91 = por %p89, %p90
      %p92 = scmp.ne.s32.totalorder %s80, %s81
      %p93 = scmp.eq.s32.totalorder %s29, 1
      %p94 = por %p92, %p93
      %p96 = scmp.ne.s32.totalorder %s81, %s95
      %p97 = scmp.eq.s32.totalorder %s29, 0
      %p98 = por %p96, %p97
      %s100 = sadd.s32 %s99, 1
      %p103 = scmp.eq.s32.totalorder %s23, 1
      %p104 = scmp.ne.s32.totalorder %s99, %s101
      %p105 = scmp.eq.s32.totalorder %s23, 0
      %p106 = por %p104, %p105
      %p107 = scmp.ne.s32.totalorder %s99, %s101
      %p108 = scmp.eq.s32.totalorder %s28, 1
      %p109 = por %p107, %p108
      %p110 = scmp.ne.s32.totalorder %s101, %s102
      %p111 = scmp.eq.s32.totalorder %s28, 0
      %p112 = por %p110, %p111
      %p113 = scmp.ne.s32.totalorder %s101, %s102
      %p114 = scmp.eq.s32.totalorder %s29, 1
      %p115 = por %p113, %p114
      %p117 = scmp.ne.s32.totalorder %s102, %s116
      %p118 = scmp.eq.s32.totalorder %s29, 0
      %p119 = por %p117, %p118
      %s121 = sadd.s32 %s120, 1
      %p124 = scmp.eq.s32.totalorder %s23, 1
      %p125 = scmp.ne.s32.totalorder %s120, %s122
      %p126 = scmp.eq.s32.totalorder %s23, 0
      %p127 = por %p125, %p126
      %p128 = scmp.ne.s32.totalorder %s120, %s122
      %p129 = scmp.eq.s32.totalorder %s28, 1
      %p130 = por %p128, %p129
      %p131 = scmp.ne.s32.totalorder %s122, %s123
      %p132 = scmp.eq.s32.totalorder %s28, 0
      %p133 = por %p131, %p132
      %p134 = scmp.ne.s32.totalorder %s122, %s123
      %p135 = scmp.eq.s32.totalorder %s29, 1
      %p136 = por %p134, %p135
      %p138 = scmp.ne.s32.totalorder %s123, %s137
      %p139 = scmp.eq.s32.totalorder %s29, 0
      %p140 = por %p138, %p139
      %s142 = sadd.s32 %s141, 1
      %p145 = scmp.eq.s32.totalorder %s23, 1
      %p146 = scmp.ne.s32.totalorder %s141, %s143
      %p147 = scmp.eq.s32.totalorder %s23, 0
      %p148 = por %p146, %p147
      %p149 = scmp.ne.s32.totalorder %s141, %s143
      %p150 = scmp.eq.s32.totalorder %s28, 1
      %p151 = por %p149, %p150
      %p152 = scmp.ne.s32.totalorder %s143, %s144
      %p153 = scmp.eq.s32.totalorder %s28, 0
      %p154 = por %p152, %p153
      %p155 = scmp.ne.s32.totalorder %s143, %s144
      %p156 = scmp.eq.s32.totalorder %s29, 1
      %p157 = por %p155, %p156
      %p159 = scmp.ne.s32.totalorder %s144, %s158
      %p160 = scmp.eq.s32.totalorder %s29, 0
      %p161 = por %p159, %p160
      %s163 = sadd.s32 %s162, 1
      %p166 = scmp.eq.s32.totalorder %s23, 1
      %p167 = scmp.ne.s32.totalorder %s162, %s164
      %p168 = scmp.eq.s32.totalorder %s23, 0
      %p169 = por %p167, %p168
      %p170 = scmp.ne.s32.totalorder %s162, %s164
      %p171 = scmp.eq.s32.totalorder %s28, 1
      %p172 = por %p170, %p171
      %p173 = scmp.ne.s32.totalorder %s164, %s165
      %p174 = scmp.eq.s32.totalorder %s28, 0
      %p175 = por %p173, %p174
      %p176 = scmp.ne.s32.totalorder %s164, %s165
      %p177 = scmp.eq.s32.totalorder %s29, 1
      %p178 = por %p176, %p177
      %p180 = scmp.ne.s32.totalorder %s165, %s179
      %p181 = scmp.eq.s32.totalorder %s29, 0
      %p182 = por %p180, %p181
      %s184 = sadd.s32 %s183, 1
      %p187 = scmp.eq.s32.totalorder %s23, 1
      %p188 = scmp.ne.s32.totalorder %s183, %s185
      %p189 = scmp.eq.s32.totalorder %s23, 0
      %p190 = por %p188, %p189
      %p191 = scmp.ne.s32.totalorder %s183, %s185
      %p192 = scmp.eq.s32.totalorder %s28, 1
      %p193 = por %p191, %p192
      %p194 = scmp.ne.s32.totalorder %s185, %s186
      %p195 = scmp.eq.s32.totalorder %s28, 0
      %p196 = por %p194, %p195
      %p197 = scmp.ne.s32.totalorder %s185, %s186
      %p198 = scmp.eq.s32.totalorder %s29, 1
      %p199 = por %p197, %p198
      %p201 = scmp.ne.s32.totalorder %s186, %s200
      %p202 = scmp.eq.s32.totalorder %s29, 0
      %p203 = por %p201, %p202
      %s205 = sadd.s32 %s204, 1
      %p208 = scmp.eq.s32.totalorder %s23, 1
      %p209 = scmp.ne.s32.totalorder %s204, %s206
      %p210 = scmp.eq.s32.totalorder %s23, 0
      %p211 = por %p209, %p210
      %p212 = scmp.ne.s32.totalorder %s204, %s206
      %p213 = scmp.eq.s32.totalorder %s28, 1
      %p214 = por %p212, %p213
      %p215 = scmp.ne.s32.totalorder %s206, %s207
      %p216 = scmp.eq.s32.totalorder %s28, 0
      %p217 = por %p215, %p216
      %p218 = scmp.ne.s32.totalorder %s206, %s207
      %p219 = scmp.eq.s32.totalorder %s29, 1
      %p220 = por %p218, %p219
      %p222 = scmp.ne.s32.totalorder %s207, %s221
      %p223 = scmp.eq.s32.totalorder %s29, 0
      %p224 = por %p222, %p223
      %s225 = ssub.s32 %s23, %s30
      %p226 = scmp.eq.s32.totalorder %s225, 0
      %s228 = sadd.s32 %s227, 1
      %s229 = scalar_select %p226, %s227, %s228
      %p232 = pneg %p226
      %p233 = scmp.eq.s32.totalorder %s23, 1
      %p234 = por %p232, %p233
      %p235 = scmp.ne.s32.totalorder %s227, %s230
      %p236 = scmp.eq.s32.totalorder %s23, 0
      %p237 = por %p235, %p236
      %p238 = scmp.ne.s32.totalorder %s227, %s230
      %p239 = scmp.eq.s32.totalorder %s28, 1
      %p240 = por %p238, %p239
      %p241 = scmp.ne.s32.totalorder %s230, %s231
      %p242 = scmp.eq.s32.totalorder %s28, 0
      %p243 = por %p241, %p242
      %p244 = scmp.ne.s32.totalorder %s230, %s231
      %p245 = scmp.eq.s32.totalorder %s29, 1
      %p246 = por %p244, %p245
      %p248 = scmp.ne.s32.totalorder %s231, %s247
      %p249 = scmp.eq.s32.totalorder %s29, 0
      %p250 = por %p248, %p249
      %p251 = scmp.le.s32.totalorder 1, %s23
      %p252 = scmp.lt.s32.totalorder %s23, 3
      %p253 = pnand %p251, %p252
      %p254 = pneg %p253
      // Predicated region
      $region9: #{_lenet5_forward.1} parent=5 // pred_check
        _
      $region10: #{_lenet5_forward.1} parent=5 // pred_check_branch
        %256 = sbr.rel (%p253) target = $region12
      $region11: #{_lenet5_forward.1} parent=5 // pred_region
        %s257 = ssub.s32 %s23, 1
        // Predicated region
        $region13: #{_lenet5_forward.1} parent=11 // pred_check
          %p258 = pneg %p70
        $region14: #{_lenet5_forward.1} parent=11 // pred_check_branch
          %260 = sbr.rel (%p258) target = $region16
        $region15: #{_lenet5_forward.1} parent=11 // pred_region
          %s262 = ssub.s32 10240, 10240
          %263 = vsyncadd [#allocation5], %s262
          %s264 = sshll.u32 [#allocation4], 4
          %s265 = int_to_ptr.vmem [resolvable:$true] %s264
          %270 = dma.hbm_to_vmem [thread:$0]  %s1, 10240, %s265, [#allocation5], 512, 512, 32
        $region16: #{_lenet5_forward.1} parent=11 // pred_fallthru
          _
        // Predicated region
        $region17: #{_lenet5_forward.1} parent=11 // pred_check
          %p271 = pneg %p91
        $region18: #{_lenet5_forward.1} parent=11 // pred_check_branch
          %273 = sbr.rel (%p271) target = $region20
        $region19: #{_lenet5_forward.1} parent=11 // pred_region
          %s275 = ssub.s32 64, 64
          %276 = vsyncadd [#allocation8], %s275
          %s278 = sshll.u32 [#allocation7], 4
          %s279 = int_to_ptr.vmem [resolvable:$true] %s278
          %281 = dma.hbm_to_vmem [thread:$0]  %s2, 64, %s279, [#allocation8]
        $region20: #{_lenet5_forward.1} parent=11 // pred_fallthru
          _
        // Predicated region
        $region21: #{_lenet5_forward.1} parent=11 // pred_check
          %p282 = pneg %p112
        $region22: #{_lenet5_forward.1} parent=11 // pred_check_branch
          %284 = sbr.rel (%p282) target = $region24
        $region23: #{_lenet5_forward.1} parent=11 // pred_region
          %s286 = ssub.s32 81920, 81920
          %287 = vsyncadd [#allocation8], %s286
          %s288 = sshll.u32 [#allocation9], 4
          %s289 = int_to_ptr.vmem [resolvable:$true] %s288
          %294 = dma.hbm_to_vmem [thread:$0]  %s3, 81920, %s289, [#allocation8], 512, 512, 32
        $region24: #{_lenet5_forward.1} parent=11 // pred_fallthru
          _
        // Predicated region
        $region25: #{_lenet5_forward.1} parent=11 // pred_check
          %p295 = pneg %p133
        $region26: #{_lenet5_forward.1} parent=11 // pred_check_branch
          %297 = sbr.rel (%p295) target = $region28
        $region27: #{_lenet5_forward.1} parent=11 // pred_region
          %s299 = ssub.s32 64, 64
          %300 = vsyncadd [#allocation11], %s299
          %s302 = sshll.u32 [#allocation10], 4
          %s303 = int_to_ptr.vmem [resolvable:$true] %s302
          %305 = dma.hbm_to_vmem [thread:$0]  %s4, 64, %s303, [#allocation11]
        $region28: #{_lenet5_forward.1} parent=11 // pred_fallthru
          _
        // Predicated region
        $region29: #{_lenet5_forward.1} parent=11 // pred_check
          %p306 = pneg %p154
        $region30: #{_lenet5_forward.1} parent=11 // pred_check_branch
          %308 = sbr.rel (%p306) target = $region32
        $region31: #{_lenet5_forward.1} parent=11 // pred_region
          %s310 = ssub.s32 65536, 65536
          %311 = vsyncadd [#allocation11], %s310
          %s312 = sshll.u32 [#allocation12], 4
          %s313 = int_to_ptr.vmem [resolvable:$true] %s312
          %318 = dma.hbm_to_vmem [thread:$0]  %s5, 65536, %s313, [#allocation11], 512, 512, 32
        $region32: #{_lenet5_forward.1} parent=11 // pred_fallthru
          _
        // Predicated region
        $region33: #{_lenet5_forward.1} parent=11 // pred_check
          %p319 = pneg %p175
        $region34: #{_lenet5_forward.1} parent=11 // pred_check_branch
          %321 = sbr.rel (%p319) target = $region36
        $region35: #{_lenet5_forward.1} parent=11 // pred_region
          %s323 = ssub.s32 64, 64
          %324 = vsyncadd [#allocation14], %s323
          %s326 = sshll.u32 [#allocation13], 4
          %s327 = int_to_ptr.vmem [resolvable:$true] %s326
          %329 = dma.hbm_to_vmem [thread:$0]  %s6, 64, %s327, [#allocation14]
        $region36: #{_lenet5_forward.1} parent=11 // pred_fallthru
          _
        // Predicated region
        $region37: #{_lenet5_forward.1} parent=11 // pred_check
          %p330 = pneg %p196
        $region38: #{_lenet5_forward.1} parent=11 // pred_check_branch
          %332 = sbr.rel (%p330) target = $region40
        $region39: #{_lenet5_forward.1} parent=11 // pred_region
          %s334 = ssub.s32 8192, 8192
          %335 = vsyncadd [#allocation14], %s334
          %s336 = sshll.u32 [#allocation15], 4
          %s337 = int_to_ptr.vmem [resolvable:$true] %s336
          %342 = dma.hbm_to_vmem [thread:$0]  %s7, 8192, %s337, [#allocation14], 128, 128, 8
        $region40: #{_lenet5_forward.1} parent=11 // pred_fallthru
          _
        // Predicated region
        $region41: #{_lenet5_forward.1} parent=11 // pred_check
          %p343 = pneg %p217
        $region42: #{_lenet5_forward.1} parent=11 // pred_check_branch
          %345 = sbr.rel (%p343) target = $region44
        $region43: #{_lenet5_forward.1} parent=11 // pred_region
          %s347 = ssub.s32 16, 16
          %348 = vsyncadd [#allocation17], %s347
          %s350 = sshll.u32 [#allocation16], 4
          %s351 = int_to_ptr.vmem [resolvable:$true] %s350
          %353 = dma.hbm_to_vmem [thread:$0]  %s8, 16, %s351, [#allocation17]
        $region44: #{_lenet5_forward.1} parent=11 // pred_fallthru
          _
      $region12: #{_lenet5_forward.1} parent=5 // pred_fallthru
        _
      %p354 = scmp.lt.s32.totalorder %s23, 2
      // Predicated region
      $region45: #{_lenet5_forward.1} parent=5 // pred_check
        %p355 = pneg %p354
      $region46: #{_lenet5_forward.1} parent=5 // pred_check_branch
        %357 = sbr.rel (%p355) target = $region48
      $region47: #{_lenet5_forward.1} parent=5 // pred_region
        // Predicated region
        $region49: #{_lenet5_forward.1} parent=47 // pred_check
          %p358 = pneg %p43
        $region50: #{_lenet5_forward.1} parent=47 // pred_check_branch
          %360 = sbr.rel (%p358) target = $region52
        $region51: #{_lenet5_forward.1} parent=47 // pred_region
          %p361 = scmp.lt.s32.totalorder %s23, 1
          %s362 = scalar_select %p361, %s23, 1
          %s363 = smul.addr %s362, 4
          %s364 = smul.addr %s363, 8
          %s365 = scalar_lea.vmem %s0, %s364
        $region52: #{_lenet5_forward.1} parent=47 // pred_fallthru
          _
      $region48: #{_lenet5_forward.1} parent=5 // pred_fallthru
        _
      %p366 = scmp.le.s32.totalorder 1, %s23
      %p367 = scmp.lt.s32.totalorder %s23, 3
      %p368 = pnand %p366, %p367
      %p369 = pneg %p368
      // Predicated region
      $region53: #{_lenet5_forward.1} parent=5 // pred_check
        _
      $region54: #{_lenet5_forward.1} parent=5 // pred_check_branch
        %371 = sbr.rel (%p368) target = $region56
      $region55: #{_lenet5_forward.1} parent=5 // pred_region
        %s372 = ssub.s32 %s23, 1
        // Predicated region
        $region57: #{_lenet5_forward.1} parent=55 // pred_check
          %p373 = pneg %p70
        $region58: #{_lenet5_forward.1} parent=55 // pred_check_branch
          %375 = sbr.rel (%p373) target = $region60
        $region59: #{_lenet5_forward.1} parent=55 // pred_region
          %376 = dma.done [#allocation5], 10240
        $region60: #{_lenet5_forward.1} parent=55 // pred_fallthru
          _
        // Predicated region
        $region61: #{_lenet5_forward.1} parent=55 // pred_check
          %p377 = pneg %p91
        $region62: #{_lenet5_forward.1} parent=55 // pred_check_branch
          %379 = sbr.rel (%p377) target = $region64
        $region63: #{_lenet5_forward.1} parent=55 // pred_region
          %380 = dma.done [#allocation8], 64
        $region64: #{_lenet5_forward.1} parent=55 // pred_fallthru
          _
        // Predicated region
        $region65: #{_lenet5_forward.1} parent=55 // pred_check
          %p381 = pneg %p112
        $region66: #{_lenet5_forward.1} parent=55 // pred_check_branch
          %383 = sbr.rel (%p381) target = $region68
        $region67: #{_lenet5_forward.1} parent=55 // pred_region
          %384 = dma.done [#allocation8], 81920
        $region68: #{_lenet5_forward.1} parent=55 // pred_fallthru
          _
        // Predicated region
        $region69: #{_lenet5_forward.1} parent=55 // pred_check
          %p385 = pneg %p133
        $region70: #{_lenet5_forward.1} parent=55 // pred_check_branch
          %387 = sbr.rel (%p385) target = $region72
        $region71: #{_lenet5_forward.1} parent=55 // pred_region
          %388 = dma.done [#allocation11], 64
        $region72: #{_lenet5_forward.1} parent=55 // pred_fallthru
          _
        // Predicated region
        $region73: #{_lenet5_forward.1} parent=55 // pred_check
          %p389 = pneg %p154
        $region74: #{_lenet5_forward.1} parent=55 // pred_check_branch
          %391 = sbr.rel (%p389) target = $region76
        $region75: #{_lenet5_forward.1} parent=55 // pred_region
          %392 = dma.done [#allocation11], 65536
        $region76: #{_lenet5_forward.1} parent=55 // pred_fallthru
          _
        // Predicated region
        $region77: #{_lenet5_forward.1} parent=55 // pred_check
          %p393 = pneg %p175
        $region78: #{_lenet5_forward.1} parent=55 // pred_check_branch
          %395 = sbr.rel (%p393) target = $region80
        $region79: #{_lenet5_forward.1} parent=55 // pred_region
          %396 = dma.done [#allocation14], 64
        $region80: #{_lenet5_forward.1} parent=55 // pred_fallthru
          _
        // Predicated region
        $region81: #{_lenet5_forward.1} parent=55 // pred_check
          %p397 = pneg %p196
        $region82: #{_lenet5_forward.1} parent=55 // pred_check_branch
          %399 = sbr.rel (%p397) target = $region84
        $region83: #{_lenet5_forward.1} parent=55 // pred_region
          %400 = dma.done [#allocation14], 8192
        $region84: #{_lenet5_forward.1} parent=55 // pred_fallthru
          _
        // Predicated region
        $region85: #{_lenet5_forward.1} parent=55 // pred_check
          %p401 = pneg %p217
        $region86: #{_lenet5_forward.1} parent=55 // pred_check_branch
          %403 = sbr.rel (%p401) target = $region88
        $region87: #{_lenet5_forward.1} parent=55 // pred_region
          %404 = dma.done [#allocation17], 16
        $region88: #{_lenet5_forward.1} parent=55 // pred_fallthru
          _
        %p405 = scmp.lt.s32.totalorder %s28, 1
        %s406 = scalar_select %p405, %s28, 1
        %s407 = smul.addr %s406, 4
        %s408 = smul.addr %s407, 8
        %s409 = scalar_lea.vmem %s0, %s408
        %p410 = pneg %p49
        %p411 = pneg %p46
        %p412 = pneg %p70
        %p413 = pneg %p67
        %p414 = pneg %p91
        %p415 = pneg %p88
        %p416 = pneg %p112
        %p417 = pneg %p109
        %p418 = pneg %p133
        %p419 = pneg %p130
        %p420 = pneg %p154
        %p421 = pneg %p151
        %p422 = pneg %p175
        %p423 = pneg %p172
        %p424 = pneg %p196
        %p425 = pneg %p193
        %p426 = pneg %p217
        %p427 = pneg %p214
        %p428 = pneg %p243
        %p429 = pneg %p240
        %s430 = sand.u32 %s230, 1
        %s431 = scalar_lea.sflag [#allocation6], %s430
        %s432 = sand.u32 %s230, 1
        %s433 = scalar_lea.vmem [#allocation18], %s432
        %p434 = scmp.lt.s32.totalorder %s28, 1
        %s435 = scalar_select %p434, %s28, 1
        %s436 = smul.addr %s435, 4
        %s437 = smul.addr %s436, 8
        %s438 = scalar_lea.vmem %s0, %s437
        %v439 = vld [vmem:[#allocation7] sm:$0xf]
        %v440 = vld [vmem:[%s438] sm:$0x3f]
        %v441 = vld [vmem:[#allocation4] sm:$0xff]
        %v442 = vld [vmem:[#allocation4 + $0x8] sm:$0xff]
        %v443 = vld [vmem:[#allocation4 + $0x10] sm:$0xff]
        %v444 = vld [vmem:[#allocation4 + $0x18] sm:$0xff]
        %v445 = vld [vmem:[#allocation4 + $0x20] sm:$0xff]
        %v446 = vld [vmem:[#allocation4 + $0x28] sm:$0xff]
        %v447 = vld [vmem:[#allocation4 + $0x30] sm:$0xff]
        %v448 = vld [vmem:[#allocation4 + $0x38] sm:$0xff]
        %v449 = vld [vmem:[#allocation4 + $0x40] sm:$0xff]
        %v450 = vld [vmem:[#allocation4 + $0x48] sm:$0xff]
        %v451 = vld [vmem:[#allocation4 + $0x50] sm:$0xff]
        %v452 = vld [vmem:[#allocation4 + $0x58] sm:$0xff]
        %v453 = vld [vmem:[#allocation4 + $0x60] sm:$0xf]
        %v454 = vld [vmem:[#allocation4 + $0x68] sm:$0xf]
        %v455 = vld [vmem:[#allocation4 + $0x70] sm:$0xf]
        %v456 = vld [vmem:[#allocation4 + $0x78] sm:$0xf]
        %s457 = scalar_lea.vmem %s438, 8
        %v458 = vld [vmem:[%s457] sm:$0x3f]
        %s459 = scalar_lea.vmem [#allocation4], 128
        %v460 = vld [vmem:[%s459] sm:$0xff]
        %v461 = vld [vmem:[%s459 + $0x8] sm:$0xff]
        %v462 = vld [vmem:[%s459 + $0x10] sm:$0xff]
        %v463 = vld [vmem:[%s459 + $0x18] sm:$0xff]
        %v464 = vld [vmem:[%s459 + $0x20] sm:$0xff]
        %v465 = vld [vmem:[%s459 + $0x28] sm:$0xff]
        %v466 = vld [vmem:[%s459 + $0x30] sm:$0xff]
        %v467 = vld [vmem:[%s459 + $0x38] sm:$0xff]
        %v468 = vld [vmem:[%s459 + $0x40] sm:$0xff]
        %v469 = vld [vmem:[%s459 + $0x48] sm:$0xff]
        %v470 = vld [vmem:[%s459 + $0x50] sm:$0xff]
        %v471 = vld [vmem:[%s459 + $0x58] sm:$0xff]
        %v472 = vld [vmem:[%s459 + $0x60] sm:$0xf]
        %v473 = vld [vmem:[%s459 + $0x68] sm:$0xf]
        %v474 = vld [vmem:[%s459 + $0x70] sm:$0xf]
        %v475 = vld [vmem:[%s459 + $0x78] sm:$0xf]
        %vm476 = vcmask 228352
        %v478 = vsel %vm476, %v458, 0
        %vm480 = vcmask 1043456
        %v482 = vsel %vm480, %v472, 0
        %v485 = vsel %vm480, %v473, 0
        %v488 = vsel %vm480, %v474, 0
        %v491 = vsel %vm480, %v475, 0
        %493 = vmatprep.subr.mxu0 %v461
        %494 = vmatpush1.msra.mxu0 %v460
        %495 = vmatprep.subr.mxu0 %v465
        %496 = vmatpush1.msra.mxu0 %v464
        %497 = vmatprep.subr.mxu0 %v469
        %498 = vmatpush1.msra.mxu0 %v468
        %499 = vmatprep.subr.mxu0 %v485
        %500 = vmatpush1.msra.mxu0 %v482
        %501 = vmatprep.subr.mxu0 0.0
        %502 = vmatpush1.msra.mxu0 0.0
        %503 = vmatprep.subr.mxu0 0.0
        %504 = vmatpush1.msra.mxu0 0.0
        %505 = vmatprep.subr.mxu0 0.0
        %506 = vmatpush1.msra.mxu0 0.0
        %507 = vmatprep.subr.mxu0 0.0
        %508 = vmatpush1.msra.mxu0 0.0
        %509 = vmatprep.subr.mxu0 0.0
        %510 = vmatpush1.msra.mxu0 0.0
        %511 = vmatprep.subr.mxu0 0.0
        %512 = vmatpush1.msra.mxu0 0.0
        %513 = vmatprep.subr.mxu0 0.0
        %514 = vmatpush1.msra.mxu0 0.0
        %515 = vmatprep.subr.mxu0 0.0
        %516 = vmatpush1.msra.mxu0 0.0
        %517 = vmatprep.subr.mxu0 0.0
        %518 = vmatpush1.msra.mxu0 0.0
        %519 = vmatprep.subr.mxu0 0.0
        %520 = vmatpush1.msra.mxu0 0.0
        %521 = vmatprep.subr.mxu0 0.0
        %522 = vmatpush1.msra.mxu0 0.0
        %523 = vmatprep.subr.mxu0 0.0
        %524 = vmatpush1.msra.mxu0 0.0
        %525 = vmatprep.subr.mxu0 0.0
        %526 = vmatpush1.msra.mxu0 0.0
        %527 = vmatprep.subr.mxu0 0.0
        %528 = vmatpush1.msra.mxu0 0.0
        %529 = vmatprep.subr.mxu0 0.0
        %530 = vmatpush1.msra.mxu0 0.0
        %531 = vmatprep.subr.mxu0 0.0
        %532 = vmatpush1.msra.mxu0 0.0
        %533 = vmatprep.subr.mxu0 0.0
        %534 = vmatpush1.msra.mxu0 0.0
        %535 = vmatprep.subr.mxu0 0.0
        %536 = vmatpush1.msra.mxu0 0.0
        %537 = vmatprep.subr.mxu0 0.0
        %538 = vmatpush1.msra.mxu0 0.0
        %539 = vmatprep.subr.mxu0 0.0
        %540 = vmatpush1.msra.mxu0 0.0
        %541 = vmatprep.subr.mxu0 0.0
        %542 = vmatpush1.msra.mxu0 0.0
        %543 = vmatprep.subr.mxu0 0.0
        %544 = vmatpush1.msra.mxu0 0.0
        %545 = vmatprep.subr.mxu0 0.0
        %546 = vmatpush1.msra.mxu0 0.0
        %547 = vmatprep.subr.mxu0 0.0
        %548 = vmatpush1.msra.mxu0 0.0
        %549 = vmatprep.subr.mxu0 0.0
        %550 = vmatpush1.msra.mxu0 0.0
        %551 = vmatprep.subr.mxu0 0.0
        %552 = vmatpush1.msra.mxu0 0.0
        %553 = vmatprep.subr.mxu0 0.0
        %554 = vmatpush1.msra.mxu0 0.0
        %555 = vmatprep.subr.mxu0 0.0
        %556 = vmatpush1.msra.mxu0 0.0
        %557 = vmatprep.mubr.f32.mxu0 0.0
        %558 = vmatmul.mubr.f32.gmra.mrb[0].mxu0 %v478
        %v559 = vpop.f32.mrb[0].mxu0
        %v560 = vadd.f32 0.0, %v559
        %v561 = vpop.f32.mrb[0].mxu0
        %v562 = vadd.f32 0.0, %v561
        %563 = vdwg.mxu0
        %564 = vmatprep.subr.mxu0 %v463
        %565 = vmatpush1.msra.mxu0 %v462
        %566 = vmatprep.subr.mxu0 %v467
        %567 = vmatpush1.msra.mxu0 %v466
        %568 = vmatprep.subr.mxu0 %v471
        %569 = vmatpush1.msra.mxu0 %v470
        %570 = vmatprep.subr.mxu0 %v491
        %571 = vmatpush1.msra.mxu0 %v488
        %572 = vmatprep.subr.mxu0 0.0
        %573 = vmatpush1.msra.mxu0 0.0
        %574 = vmatprep.subr.mxu0 0.0
        %575 = vmatpush1.msra.mxu0 0.0
        %576 = vmatprep.subr.mxu0 0.0
        %577 = vmatpush1.msra.mxu0 0.0
        %578 = vmatprep.subr.mxu0 0.0
        %579 = vmatpush1.msra.mxu0 0.0
        %580 = vmatprep.subr.mxu0 0.0
        %581 = vmatpush1.msra.mxu0 0.0
        %582 = vmatprep.subr.mxu0 0.0
        %583 = vmatpush1.msra.mxu0 0.0
        %584 = vmatprep.subr.mxu0 0.0
        %585 = vmatpush1.msra.mxu0 0.0
        %586 = vmatprep.subr.mxu0 0.0
        %587 = vmatpush1.msra.mxu0 0.0
        %588 = vmatprep.subr.mxu0 0.0
        %589 = vmatpush1.msra.mxu0 0.0
        %590 = vmatprep.subr.mxu0 0.0
        %591 = vmatpush1.msra.mxu0 0.0
        %592 = vmatprep.subr.mxu0 0.0
        %593 = vmatpush1.msra.mxu0 0.0
        %594 = vmatprep.subr.mxu0 0.0
        %595 = vmatpush1.msra.mxu0 0.0
        %596 = vmatprep.subr.mxu0 0.0
        %597 = vmatpush1.msra.mxu0 0.0
        %598 = vmatprep.subr.mxu0 0.0
        %599 = vmatpush1.msra.mxu0 0.0
        %600 = vmatprep.subr.mxu0 0.0
        %601 = vmatpush1.msra.mxu0 0.0
        %602 = vmatprep.subr.mxu0 0.0
        %603 = vmatpush1.msra.mxu0 0.0
        %604 = vmatprep.subr.mxu0 0.0
        %605 = vmatpush1.msra.mxu0 0.0
        %606 = vmatprep.subr.mxu0 0.0
        %607 = vmatpush1.msra.mxu0 0.0
        %608 = vmatprep.subr.mxu0 0.0
        %609 = vmatpush1.msra.mxu0 0.0
        %610 = vmatprep.subr.mxu0 0.0
        %611 = vmatpush1.msra.mxu0 0.0
        %612 = vmatprep.subr.mxu0 0.0
        %613 = vmatpush1.msra.mxu0 0.0
        %614 = vmatprep.subr.mxu0 0.0
        %615 = vmatpush1.msra.mxu0 0.0
        %616 = vmatprep.subr.mxu0 0.0
        %617 = vmatpush1.msra.mxu0 0.0
        %618 = vmatprep.subr.mxu0 0.0
        %619 = vmatpush1.msra.mxu0 0.0
        %620 = vmatprep.subr.mxu0 0.0
        %621 = vmatpush1.msra.mxu0 0.0
        %622 = vmatprep.subr.mxu0 0.0
        %623 = vmatpush1.msra.mxu0 0.0
        %624 = vmatprep.subr.mxu0 0.0
        %625 = vmatpush1.msra.mxu0 0.0
        %626 = vmatprep.subr.mxu0 0.0
        %627 = vmatpush1.msra.mxu0 0.0
        %628 = vmatprep.mubr.f32.mxu0 0.0
        %629 = vmatmul.mubr.f32.gmra.mrb[0].mxu0 %v478
        %v630 = vpop.f32.mrb[0].mxu0
        %v631 = vadd.f32 0.0, %v630
        %v632 = vpop.f32.mrb[0].mxu0
        %v633 = vadd.f32 0.0, %v632
        %634 = vdwg.mxu0
        %v636 = vsel %vm476, %v440, 0
        %v639 = vsel %vm480, %v453, 0
        %v642 = vsel %vm480, %v454, 0
        %v645 = vsel %vm480, %v455, 0
        %v648 = vsel %vm480, %v456, 0
        %650 = vmatprep.subr.mxu0 %v442
        %651 = vmatpush1.msra.mxu0 %v441
        %652 = vmatprep.subr.mxu0 %v446
        %653 = vmatpush1.msra.mxu0 %v445
        %654 = vmatprep.subr.mxu0 %v450
        %655 = vmatpush1.msra.mxu0 %v449
        %656 = vmatprep.subr.mxu0 %v642
        %657 = vmatpush1.msra.mxu0 %v639
        %658 = vmatprep.subr.mxu0 0.0
        %659 = vmatpush1.msra.mxu0 0.0
        %660 = vmatprep.subr.mxu0 0.0
        %661 = vmatpush1.msra.mxu0 0.0
        %662 = vmatprep.subr.mxu0 0.0
        %663 = vmatpush1.msra.mxu0 0.0
        %664 = vmatprep.subr.mxu0 0.0
        %665 = vmatpush1.msra.mxu0 0.0
        %666 = vmatprep.subr.mxu0 0.0
        %667 = vmatpush1.msra.mxu0 0.0
        %668 = vmatprep.subr.mxu0 0.0
        %669 = vmatpush1.msra.mxu0 0.0
        %670 = vmatprep.subr.mxu0 0.0
        %671 = vmatpush1.msra.mxu0 0.0
        %672 = vmatprep.subr.mxu0 0.0
        %673 = vmatpush1.msra.mxu0 0.0
        %674 = vmatprep.subr.mxu0 0.0
        %675 = vmatpush1.msra.mxu0 0.0
        %676 = vmatprep.subr.mxu0 0.0
        %677 = vmatpush1.msra.mxu0 0.0
        %678 = vmatprep.subr.mxu0 0.0
        %679 = vmatpush1.msra.mxu0 0.0
        %680 = vmatprep.subr.mxu0 0.0
        %681 = vmatpush1.msra.mxu0 0.0
        %682 = vmatprep.subr.mxu0 0.0
        %683 = vmatpush1.msra.mxu0 0.0
        %684 = vmatprep.subr.mxu0 0.0
        %685 = vmatpush1.msra.mxu0 0.0
        %686 = vmatprep.subr.mxu0 0.0
        %687 = vmatpush1.msra.mxu0 0.0
        %688 = vmatprep.subr.mxu0 0.0
        %689 = vmatpush1.msra.mxu0 0.0
        %690 = vmatprep.subr.mxu0 0.0
        %691 = vmatpush1.msra.mxu0 0.0
        %692 = vmatprep.subr.mxu0 0.0
        %693 = vmatpush1.msra.mxu0 0.0
        %694 = vmatprep.subr.mxu0 0.0
        %695 = vmatpush1.msra.mxu0 0.0
        %696 = vmatprep.subr.mxu0 0.0
        %697 = vmatpush1.msra.mxu0 0.0
        %698 = vmatprep.subr.mxu0 0.0
        %699 = vmatpush1.msra.mxu0 0.0
        %700 = vmatprep.subr.mxu0 0.0
        %701 = vmatpush1.msra.mxu0 0.0
        %702 = vmatprep.subr.mxu0 0.0
        %703 = vmatpush1.msra.mxu0 0.0
        %704 = vmatprep.subr.mxu0 0.0
        %705 = vmatpush1.msra.mxu0 0.0
        %706 = vmatprep.subr.mxu0 0.0
        %707 = vmatpush1.msra.mxu0 0.0
        %708 = vmatprep.subr.mxu0 0.0
        %709 = vmatpush1.msra.mxu0 0.0
        %710 = vmatprep.subr.mxu0 0.0
        %711 = vmatpush1.msra.mxu0 0.0
        %712 = vmatprep.subr.mxu0 0.0
        %713 = vmatpush1.msra.mxu0 0.0
        %714 = vmatprep.mubr.f32.mxu0 0.0
        %715 = vmatmul.mubr.f32.gmra.mrb[0].mxu0 %v636
        %v716 = vpop.f32.mrb[0].mxu0
        %v717 = vadd.f32 %v560, %v716
        %v718 = vpop.f32.mrb[0].mxu0
        %v719 = vadd.f32 %v562, %v718
        %720 = vdwg.mxu0
        %721 = vmatprep.subr.mxu0 %v444
        %722 = vmatpush1.msra.mxu0 %v443
        %723 = vmatprep.subr.mxu0 %v448
        %724 = vmatpush1.msra.mxu0 %v447
        %725 = vmatprep.subr.mxu0 %v452
        %726 = vmatpush1.msra.mxu0 %v451
        %727 = vmatprep.subr.mxu0 %v648
        %728 = vmatpush1.msra.mxu0 %v645
        %729 = vmatprep.subr.mxu0 0.0
        %730 = vmatpush1.msra.mxu0 0.0
        %731 = vmatprep.subr.mxu0 0.0
        %732 = vmatpush1.msra.mxu0 0.0
        %733 = vmatprep.subr.mxu0 0.0
        %734 = vmatpush1.msra.mxu0 0.0
        %735 = vmatprep.subr.mxu0 0.0
        %736 = vmatpush1.msra.mxu0 0.0
        %737 = vmatprep.subr.mxu0 0.0
        %738 = vmatpush1.msra.mxu0 0.0
        %739 = vmatprep.subr.mxu0 0.0
        %740 = vmatpush1.msra.mxu0 0.0
        %741 = vmatprep.subr.mxu0 0.0
        %742 = vmatpush1.msra.mxu0 0.0
        %743 = vmatprep.subr.mxu0 0.0
        %744 = vmatpush1.msra.mxu0 0.0
        %745 = vmatprep.subr.mxu0 0.0
        %746 = vmatpush1.msra.mxu0 0.0
        %747 = vmatprep.subr.mxu0 0.0
        %748 = vmatpush1.msra.mxu0 0.0
        %749 = vmatprep.subr.mxu0 0.0
        %750 = vmatpush1.msra.mxu0 0.0
        %751 = vmatprep.subr.mxu0 0.0
        %752 = vmatpush1.msra.mxu0 0.0
        %753 = vmatprep.subr.mxu0 0.0
        %754 = vmatpush1.msra.mxu0 0.0
        %755 = vmatprep.subr.mxu0 0.0
        %756 = vmatpush1.msra.mxu0 0.0
        %757 = vmatprep.subr.mxu0 0.0
        %758 = vmatpush1.msra.mxu0 0.0
        %759 = vmatprep.subr.mxu0 0.0
        %760 = vmatpush1.msra.mxu0 0.0
        %761 = vmatprep.subr.mxu0 0.0
        %762 = vmatpush1.msra.mxu0 0.0
        %763 = vmatprep.subr.mxu0 0.0
        %764 = vmatpush1.msra.mxu0 0.0
        %765 = vmatprep.subr.mxu0 0.0
        %766 = vmatpush1.msra.mxu0 0.0
        %767 = vmatprep.subr.mxu0 0.0
        %768 = vmatpush1.msra.mxu0 0.0
        %769 = vmatprep.subr.mxu0 0.0
        %770 = vmatpush1.msra.mxu0 0.0
        %771 = vmatprep.subr.mxu0 0.0
        %772 = vmatpush1.msra.mxu0 0.0
        %773 = vmatprep.subr.mxu0 0.0
        %774 = vmatpush1.msra.mxu0 0.0
        %775 = vmatprep.subr.mxu0 0.0
        %776 = vmatpush1.msra.mxu0 0.0
        %777 = vmatprep.subr.mxu0 0.0
        %778 = vmatpush1.msra.mxu0 0.0
        %779 = vmatprep.subr.mxu0 0.0
        %780 = vmatpush1.msra.mxu0 0.0
        %781 = vmatprep.subr.mxu0 0.0
        %782 = vmatpush1.msra.mxu0 0.0
        %783 = vmatprep.subr.mxu0 0.0
        %784 = vmatpush1.msra.mxu0 0.0
        %785 = vmatprep.mubr.f32.mxu0 0.0
        %786 = vmatmul.mubr.f32.gmra.mrb[0].mxu0 %v636
        %v787 = vpop.f32.mrb[0].mxu0
        %v788 = vadd.f32 %v631, %v787
        %v789 = vpop.f32.mrb[0].mxu0
        %v790 = vadd.f32 %v633, %v789
        %791 = vdwg.mxu0
        %s792 = scalar_lea.vmem %s438, 16
        %v793 = vld [vmem:[%s792] sm:$0x3f]
        %s794 = scalar_lea.vmem [#allocation4], 256
        %v795 = vld [vmem:[%s794] sm:$0xff]
        %v796 = vld [vmem:[%s794 + $0x8] sm:$0xff]
        %v797 = vld [vmem:[%s794 + $0x10] sm:$0xff]
        %v798 = vld [vmem:[%s794 + $0x18] sm:$0xff]
        %v799 = vld [vmem:[%s794 + $0x20] sm:$0xff]
        %v800 = vld [vmem:[%s794 + $0x28] sm:$0xff]
        %v801 = vld [vmem:[%s794 + $0x30] sm:$0xff]
        %v802 = vld [vmem:[%s794 + $0x38] sm:$0xff]
        %v803 = vld [vmem:[%s794 + $0x40] sm:$0xff]
        %v804 = vld [vmem:[%s794 + $0x48] sm:$0xff]
        %v805 = vld [vmem:[%s794 + $0x50] sm:$0xff]
        %v806 = vld [vmem:[%s794 + $0x58] sm:$0xff]
        %v807 = vld [vmem:[%s794 + $0x60] sm:$0xf]
        %v808 = vld [vmem:[%s794 + $0x68] sm:$0xf]
        %v809 = vld [vmem:[%s794 + $0x70] sm:$0xf]
        %v810 = vld [vmem:[%s794 + $0x78] sm:$0xf]
        %v812 = vsel %vm476, %v793, 0
        %v815 = vsel %vm480, %v807, 0
        %v818 = vsel %vm480, %v808, 0
        %v821 = vsel %vm480, %v809, 0
        %v824 = vsel %vm480, %v810, 0
        %826 = vmatprep.subr.mxu0 %v796
        %827 = vmatpush1.msra.mxu0 %v795
        %828 = vmatprep.subr.mxu0 %v800
        %829 = vmatpush1.msra.mxu0 %v799
        %830 = vmatprep.subr.mxu0 %v804
        %831 = vmatpush1.msra.mxu0 %v803
        %832 = vmatprep.subr.mxu0 %v818
        %833 = vmatpush1.msra.mxu0 %v815
        %834 = vmatprep.subr.mxu0 0.0
        %835 = vmatpush1.msra.mxu0 0.0
        %836 = vmatprep.subr.mxu0 0.0
        %837 = vmatpush1.msra.mxu0 0.0
        %838 = vmatprep.subr.mxu0 0.0
        %839 = vmatpush1.msra.mxu0 0.0
        %840 = vmatprep.subr.mxu0 0.0
        %841 = vmatpush1.msra.mxu0 0.0
        %842 = vmatprep.subr.mxu0 0.0
        %843 = vmatpush1.msra.mxu0 0.0
        %844 = vmatprep.subr.mxu0 0.0
        %845 = vmatpush1.msra.mxu0 0.0
        %846 = vmatprep.subr.mxu0 0.0
        %847 = vmatpush1.msra.mxu0 0.0
        %848 = vmatprep.subr.mxu0 0.0
        %849 = vmatpush1.msra.mxu0 0.0
        %850 = vmatprep.subr.mxu0 0.0
        %851 = vmatpush1.msra.mxu0 0.0
        %852 = vmatprep.subr.mxu0 0.0
        %853 = vmatpush1.msra.mxu0 0.0
        %854 = vmatprep.subr.mxu0 0.0
        %855 = vmatpush1.msra.mxu0 0.0
        %856 = vmatprep.subr.mxu0 0.0
        %857 = vmatpush1.msra.mxu0 0.0
        %858 = vmatprep.subr.mxu0 0.0
        %859 = vmatpush1.msra.mxu0 0.0
        %860 = vmatprep.subr.mxu0 0.0
        %861 = vmatpush1.msra.mxu0 0.0
        %862 = vmatprep.subr.mxu0 0.0
        %863 = vmatpush1.msra.mxu0 0.0
        %864 = vmatprep.subr.mxu0 0.0
        %865 = vmatpush1.msra.mxu0 0.0
        %866 = vmatprep.subr.mxu0 0.0
        %867 = vmatpush1.msra.mxu0 0.0
        %868 = vmatprep.subr.mxu0 0.0
        %869 = vmatpush1.msra.mxu0 0.0
        %870 = vmatprep.subr.mxu0 0.0
        %871 = vmatpush1.msra.mxu0 0.0
        %872 = vmatprep.subr.mxu0 0.0
        %873 = vmatpush1.msra.mxu0 0.0
        %874 = vmatprep.subr.mxu0 0.0
        %875 = vmatpush1.msra.mxu0 0.0
        %876 = vmatprep.subr.mxu0 0.0
        %877 = vmatpush1.msra.mxu0 0.0
        %878 = vmatprep.subr.mxu0 0.0
        %879 = vmatpush1.msra.mxu0 0.0
        %880 = vmatprep.subr.mxu0 0.0
        %881 = vmatpush1.msra.mxu0 0.0
        %882 = vmatprep.subr.mxu0 0.0
        %883 = vmatpush1.msra.mxu0 0.0
        %884 = vmatprep.subr.mxu0 0.0
        %885 = vmatpush1.msra.mxu0 0.0
        %886 = vmatprep.subr.mxu0 0.0
        %887 = vmatpush1.msra.mxu0 0.0
        %888 = vmatprep.subr.mxu0 0.0
        %889 = vmatpush1.msra.mxu0 0.0
        %890 = vmatprep.mubr.f32.mxu0 0.0
        %891 = vmatmul.mubr.f32.gmra.mrb[0].mxu0 %v812
        %v892 = vpop.f32.mrb[0].mxu0
        %v893 = vadd.f32 0.0, %v892
        %v894 = vpop.f32.mrb[0].mxu0
        %v895 = vadd.f32 0.0, %v894
        %896 = vdwg.mxu0
        %897 = vmatprep.subr.mxu0 %v798
        %898 = vmatpush1.msra.mxu0 %v797
        %899 = vmatprep.subr.mxu0 %v802
        %900 = vmatpush1.msra.mxu0 %v801
        %901 = vmatprep.subr.mxu0 %v806
        %902 = vmatpush1.msra.mxu0 %v805
        %903 = vmatprep.subr.mxu0 %v824
        %904 = vmatpush1.msra.mxu0 %v821
        %905 = vmatprep.subr.mxu0 0.0
        %906 = vmatpush1.msra.mxu0 0.0
        %907 = vmatprep.subr.mxu0 0.0
        %908 = vmatpush1.msra.mxu0 0.0
        %909 = vmatprep.subr.mxu0 0.0
        %910 = vmatpush1.msra.mxu0 0.0
        %911 = vmatprep.subr.mxu0 0.0
        %912 = vmatpush1.msra.mxu0 0.0
        %913 = vmatprep.subr.mxu0 0.0
        %914 = vmatpush1.msra.mxu0 0.0
        %915 = vmatprep.subr.mxu0 0.0
        %916 = vmatpush1.msra.mxu0 0.0
        %917 = vmatprep.subr.mxu0 0.0
        %918 = vmatpush1.msra.mxu0 0.0
        %919 = vmatprep.subr.mxu0 0.0
        %920 = vmatpush1.msra.mxu0 0.0
        %921 = vmatprep.subr.mxu0 0.0
        %922 = vmatpush1.msra.mxu0 0.0
        %923 = vmatprep.subr.mxu0 0.0
        %924 = vmatpush1.msra.mxu0 0.0
        %925 = vmatprep.subr.mxu0 0.0
        %926 = vmatpush1.msra.mxu0 0.0
        %927 = vmatprep.subr.mxu0 0.0
        %928 = vmatpush1.msra.mxu0 0.0
        %929 = vmatprep.subr.mxu0 0.0
        %930 = vmatpush1.msra.mxu0 0.0
        %931 = vmatprep.subr.mxu0 0.0
        %932 = vmatpush1.msra.mxu0 0.0
        %933 = vmatprep.subr.mxu0 0.0
        %934 = vmatpush1.msra.mxu0 0.0
        %935 = vmatprep.subr.mxu0 0.0
        %936 = vmatpush1.msra.mxu0 0.0
        %937 = vmatprep.subr.mxu0 0.0
        %938 = vmatpush1.msra.mxu0 0.0
        %939 = vmatprep.subr.mxu0 0.0
        %940 = vmatpush1.msra.mxu0 0.0
        %941 = vmatprep.subr.mxu0 0.0
        %942 = vmatpush1.msra.mxu0 0.0
        %943 = vmatprep.subr.mxu0 0.0
        %944 = vmatpush1.msra.mxu0 0.0
        %945 = vmatprep.subr.mxu0 0.0
        %946 = vmatpush1.msra.mxu0 0.0
        %947 = vmatprep.subr.mxu0 0.0
        %948 = vmatpush1.msra.mxu0 0.0
        %949 = vmatprep.subr.mxu0 0.0
        %950 = vmatpush1.msra.mxu0 0.0
        %951 = vmatprep.subr.mxu0 0.0
        %952 = vmatpush1.msra.mxu0 0.0
        %953 = vmatprep.subr.mxu0 0.0
        %954 = vmatpush1.msra.mxu0 0.0
        %955 = vmatprep.subr.mxu0 0.0
        %956 = vmatpush1.msra.mxu0 0.0
        %957 = vmatprep.subr.mxu0 0.0
        %958 = vmatpush1.msra.mxu0 0.0
        %959 = vmatprep.subr.mxu0 0.0
        %960 = vmatpush1.msra.mxu0 0.0
        %961 = vmatprep.mubr.f32.mxu0 0.0
        %962 = vmatmul.mubr.f32.gmra.mrb[0].mxu0 %v812
        %v963 = vpop.f32.mrb[0].mxu0
        %v964 = vadd.f32 0.0, %v963
        %v965 = vpop.f32.mrb[0].mxu0
        %v966 = vadd.f32 0.0, %v965
        %967 = vdwg.mxu0
        %v968 = vadd.f32 %v717, %v893
        %v969 = vadd.f32 %v719, %v895
        %v970 = vadd.f32 %v788, %v964
        %v971 = vadd.f32 %v790, %v966
        %s972 = scalar_lea.vmem %s438, 24
        %v973 = vld [vmem:[%s972] sm:$0x3f]
        %s974 = scalar_lea.vmem [#allocation4], 384
        %v975 = vld [vmem:[%s974] sm:$0xff]
        %v976 = vld [vmem:[%s974 + $0x8] sm:$0xff]
        %v977 = vld [vmem:[%s974 + $0x10] sm:$0xff]
        %v978 = vld [vmem:[%s974 + $0x18] sm:$0xff]
        %v979 = vld [vmem:[%s974 + $0x20] sm:$0xff]
        %v980 = vld [vmem:[%s974 + $0x28] sm:$0xff]
        %v981 = vld [vmem:[%s974 + $0x30] sm:$0xff]
        %v982 = vld [vmem:[%s974 + $0x38] sm:$0xff]
        %v983 = vld [vmem:[%s974 + $0x40] sm:$0xff]
        %v984 = vld [vmem:[%s974 + $0x48] sm:$0xff]
        %v985 = vld [vmem:[%s974 + $0x50] sm:$0xff]
        %v986 = vld [vmem:[%s974 + $0x58] sm:$0xff]
        %v987 = vld [vmem:[%s974 + $0x60] sm:$0xf]
        %v988 = vld [vmem:[%s974 + $0x68] sm:$0xf]
        %v989 = vld [vmem:[%s974 + $0x70] sm:$0xf]
        %v990 = vld [vmem:[%s974 + $0x78] sm:$0xf]
        %v992 = vsel %vm476, %v973, 0
        %v995 = vsel %vm480, %v987, 0
        %v998 = vsel %vm480, %v988, 0
        %v1001 = vsel %vm480, %v989, 0
        %v1004 = vsel %vm480, %v990, 0
        %1006 = vmatprep.subr.mxu0 %v976
        %1007 = vmatpush1.msra.mxu0 %v975
        %1008 = vmatprep.subr.mxu0 %v980
        %1009 = vmatpush1.msra.mxu0 %v979
        %1010 = vmatprep.subr.mxu0 %v984
        %1011 = vmatpush1.msra.mxu0 %v983
        %1012 = vmatprep.subr.mxu0 %v998
        %1013 = vmatpush1.msra.mxu0 %v995
        %1014 = vmatprep.subr.mxu0 0.0
        %1015 = vmatpush1.msra.mxu0 0.0
        %1016 = vmatprep.subr.mxu0 0.0
        %1017 = vmatpush1.msra.mxu0 0.0
        %1018 = vmatprep.subr.mxu0 0.0
        %1019 = vmatpush1.msra.mxu0 0.0
        %1020 = vmatprep.subr.mxu0 0.0
        %1021 = vmatpush1.msra.mxu0 0.0
        %1022 = vmatprep.subr.mxu0 0.0
        %1023 = vmatpush1.msra.mxu0 0.0
        %1024 = vmatprep.subr.mxu0 0.0
        %1025 = vmatpush1.msra.mxu0 0.0
        %1026 = vmatprep.subr.mxu0 0.0
        %1027 = vmatpush1.msra.mxu0 0.0
        %1028 = vmatprep.subr.mxu0 0.0
        %1029 = vmatpush1.msra.mxu0 0.0
        %1030 = vmatprep.subr.mxu0 0.0
        %1031 = vmatpush1.msra.mxu0 0.0
        %1032 = vmatprep.subr.mxu0 0.0
        %1033 = vmatpush1.msra.mxu0 0.0
        %1034 = vmatprep.subr.mxu0 0.0
        %1035 = vmatpush1.msra.mxu0 0.0
        %1036 = vmatprep.subr.mxu0 0.0
        %1037 = vmatpush1.msra.mxu0 0.0
        %1038 = vmatprep.subr.mxu0 0.0
        %1039 = vmatpush1.msra.mxu0 0.0
        %1040 = vmatprep.subr.mxu0 0.0
        %1041 = vmatpush1.msra.mxu0 0.0
        %1042 = vmatprep.subr.mxu0 0.0
        %1043 = vmatpush1.msra.mxu0 0.0
        %1044 = vmatprep.subr.mxu0 0.0
        %1045 = vmatpush1.msra.mxu0 0.0
        %1046 = vmatprep.subr.mxu0 0.0
        %1047 = vmatpush1.msra.mxu0 0.0
        %1048 = vmatprep.subr.mxu0 0.0
        %1049 = vmatpush1.msra.mxu0 0.0
        %1050 = vmatprep.subr.mxu0 0.0
        %1051 = vmatpush1.msra.mxu0 0.0
        %1052 = vmatprep.subr.mxu0 0.0
        %1053 = vmatpush1.msra.mxu0 0.0
        %1054 = vmatprep.subr.mxu0 0.0
        %1055 = vmatpush1.msra.mxu0 0.0
        %1056 = vmatprep.subr.mxu0 0.0
        %1057 = vmatpush1.msra.mxu0 0.0
        %1058 = vmatprep.subr.mxu0 0.0
        %1059 = vmatpush1.msra.mxu0 0.0
        %1060 = vmatprep.subr.mxu0 0.0
        %1061 = vmatpush1.msra.mxu0 0.0
        %1062 = vmatprep.subr.mxu0 0.0
        %1063 = vmatpush1.msra.mxu0 0.0
        %1064 = vmatprep.subr.mxu0 0.0
        %1065 = vmatpush1.msra.mxu0 0.0
        %1066 = vmatprep.subr.mxu0 0.0
        %1067 = vmatpush1.msra.mxu0 0.0
        %1068 = vmatprep.subr.mxu0 0.0
        %1069 = vmatpush1.msra.mxu0 0.0
        %1070 = vmatprep.mubr.f32.mxu0 0.0
        %1071 = vmatmul.mubr.f32.gmra.mrb[0].mxu0 %v992
        %v1072 = vpop.f32.mrb[0].mxu0
        %v1073 = vadd.f32 0.0, %v1072
        %v1074 = vpop.f32.mrb[0].mxu0
        %v1075 = vadd.f32 0.0, %v1074
        %1076 = vdwg.mxu0
        %1077 = vmatprep.subr.mxu0 %v978
        %1078 = vmatpush1.msra.mxu0 %v977
        %1079 = vmatprep.subr.mxu0 %v982
        %1080 = vmatpush1.msra.mxu0 %v981
        %1081 = vmatprep.subr.mxu0 %v986
        %1082 = vmatpush1.msra.mxu0 %v985
        %1083 = vmatprep.subr.mxu0 %v1004
        %1084 = vmatpush1.msra.mxu0 %v1001
        %1085 = vmatprep.subr.mxu0 0.0
        %1086 = vmatpush1.msra.mxu0 0.0
        %1087 = vmatprep.subr.mxu0 0.0
        %1088 = vmatpush1.msra.mxu0 0.0
        %1089 = vmatprep.subr.mxu0 0.0
        %1090 = vmatpush1.msra.mxu0 0.0
        %1091 = vmatprep.subr.mxu0 0.0
        %1092 = vmatpush1.msra.mxu0 0.0
        %1093 = vmatprep.subr.mxu0 0.0
        %1094 = vmatpush1.msra.mxu0 0.0
        %1095 = vmatprep.subr.mxu0 0.0
        %1096 = vmatpush1.msra.mxu0 0.0
        %1097 = vmatprep.subr.mxu0 0.0
        %1098 = vmatpush1.msra.mxu0 0.0
        %1099 = vmatprep.subr.mxu0 0.0
        %1100 = vmatpush1.msra.mxu0 0.0
        %1101 = vmatprep.subr.mxu0 0.0
        %1102 = vmatpush1.msra.mxu0 0.0
        %1103 = vmatprep.subr.mxu0 0.0
        %1104 = vmatpush1.msra.mxu0 0.0
        %1105 = vmatprep.subr.mxu0 0.0
        %1106 = vmatpush1.msra.mxu0 0.0
        %1107 = vmatprep.subr.mxu0 0.0
        %1108 = vmatpush1.msra.mxu0 0.0
        %1109 = vmatprep.subr.mxu0 0.0
        %1110 = vmatpush1.msra.mxu0 0.0
        %1111 = vmatprep.subr.mxu0 0.0
        %1112 = vmatpush1.msra.mxu0 0.0
        %1113 = vmatprep.subr.mxu0 0.0
        %1114 = vmatpush1.msra.mxu0 0.0
        %1115 = vmatprep.subr.mxu0 0.0
        %1116 = vmatpush1.msra.mxu0 0.0
        %1117 = vmatprep.subr.mxu0 0.0
        %1118 = vmatpush1.msra.mxu0 0.0
        %1119 = vmatprep.subr.mxu0 0.0
        %1120 = vmatpush1.msra.mxu0 0.0
        %1121 = vmatprep.subr.mxu0 0.0
        %1122 = vmatpush1.msra.mxu0 0.0
        %1123 = vmatprep.subr.mxu0 0.0
        %1124 = vmatpush1.msra.mxu0 0.0
        %1125 = vmatprep.subr.mxu0 0.0
        %1126 = vmatpush1.msra.mxu0 0.0
        %1127 = vmatprep.subr.mxu0 0.0
        %1128 = vmatpush1.msra.mxu0 0.0
        %1129 = vmatprep.subr.mxu0 0.0
        %1130 = vmatpush1.msra.mxu0 0.0
        %1131 = vmatprep.subr.mxu0 0.0
        %1132 = vmatpush1.msra.mxu0 0.0
        %1133 = vmatprep.subr.mxu0 0.0
        %1134 = vmatpush1.msra.mxu0 0.0
        %1135 = vmatprep.subr.mxu0 0.0
        %1136 = vmatpush1.msra.mxu0 0.0
        %1137 = vmatprep.subr.mxu0 0.0
        %1138 = vmatpush1.msra.mxu0 0.0
        %1139 = vmatprep.subr.mxu0 0.0
        %1140 = vmatpush1.msra.mxu0 0.0
        %1141 = vmatprep.mubr.f32.mxu0 0.0
        %1142 = vmatmul.mubr.f32.gmra.mrb[0].mxu0 %v992
        %v1143 = vpop.f32.mrb[0].mxu0
        %v1144 = vadd.f32 0.0, %v1143
        %v1145 = vpop.f32.mrb[0].mxu0
        %v1146 = vadd.f32 0.0, %v1145
        %1147 = vdwg.mxu0
        %v1148 = vadd.f32 %v968, %v1073
        %v1149 = vadd.f32 %v969, %v1075
        %v1150 = vadd.f32 %v970, %v1144
        %v1151 = vadd.f32 %v971, %v1146
        %v1152 = vld [vmem:[%s438 + $0x1] sm:$0x3f]
        %s1153 = scalar_lea.vmem [#allocation4], 512
        %v1154 = vld [vmem:[%s1153] sm:$0xff]
        %v1155 = vld [vmem:[%s1153 + $0x8] sm:$0xff]
        %v1156 = vld [vmem:[%s1153 + $0x10] sm:$0xff]
        %v1157 = vld [vmem:[%s1153 + $0x18] sm:$0xff]
        %v1158 = vld [vmem:[%s1153 + $0x20] sm:$0xff]
        %v1159 = vld [vmem:[%s1153 + $0x28] sm:$0xff]
        %v1160 = vld [vmem:[%s1153 + $0x30] sm:$0xff]
        %v1161 = vld [vmem:[%s1153 + $0x38] sm:$0xff]
        %v1162 = vld [vmem:[%s1153 + $0x40] sm:$0xff]
        %v1163 = vld [vmem:[%s1153 + $0x48] sm:$0xff]
        %v1164 = vld [vmem:[%s1153 + $0x50] sm:$0xff]
        %v1165 = vld [vmem:[%s1153 + $0x58] sm:$0xff]
        %v1166 = vld [vmem:[%s1153 + $0x60] sm:$0xf]
        %v1167 = vld [vmem:[%s1153 + $0x68] sm:$0xf]
        %v1168 = vld [vmem:[%s1153 + $0x70] sm:$0xf]
        %v1169 = vld [vmem:[%s1153 + $0x78] sm:$0xf]
        %v1171 = vsel %vm476, %v1152, 0
        %v1174 = vsel %vm480, %v1166, 0
        %v1177 = vsel %vm480, %v1167, 0
        %v1180 = vsel %vm480, %v1168, 0
        %v1183 = vsel %vm480, %v1169, 0
        %1185 = vmatprep.subr.mxu0 %v1155
        %1186 = vmatpush1.msra.mxu0 %v1154
        %1187 = vmatprep.subr.mxu0 %v1159
        %1188 = vmatpush1.msra.mxu0 %v1158
        %1189 = vmatprep.subr.mxu0 %v1163
        %1190 = vmatpush1.msra.mxu0 %v1162
        %1191 = vmatprep.subr.mxu0 %v1177
        %1192 = vmatpush1.msra.mxu0 %v1174
        %1193 = vmatprep.subr.mxu0 0.0
        %1194 = vmatpush1.msra.mxu0 0.0
        %1195 = vmatprep.subr.mxu0 0.0
        %1196 = vmatpush1.msra.mxu0 0.0
        %1197 = vmatprep.subr.mxu0 0.0
        %1198 = vmatpush1.msra.mxu0 0.0
        %1199 = vmatprep.subr.mxu0 0.0
        %1200 = vmatpush1.msra.mxu0 0.0
        %1201 = vmatprep.subr.mxu0 0.0
        %1202 = vmatpush1.msra.mxu0 0.0
        %1203 = vmatprep.subr.mxu0 0.0
        %1204 = vmatpush1.msra.mxu0 0.0
        %1205 = vmatprep.subr.mxu0 0.0
        %1206 = vmatpush1.msra.mxu0 0.0
        %1207 = vmatprep.subr.mxu0 0.0
        %1208 = vmatpush1.msra.mxu0 0.0
        %1209 = vmatprep.subr.mxu0 0.0
        %1210 = vmatpush1.msra.mxu0 0.0
        %1211 = vmatprep.subr.mxu0 0.0
        %1212 = vmatpush1.msra.mxu0 0.0
        %1213 = vmatprep.subr.mxu0 0.0
        %1214 = vmatpush1.msra.mxu0 0.0
        %1215 = vmatprep.subr.mxu0 0.0
        %1216 = vmatpush1.msra.mxu0 0.0
        %1217 = vmatprep.subr.mxu0 0.0
        %1218 = vmatpush1.msra.mxu0 0.0
        %1219 = vmatprep.subr.mxu0 0.0
        %1220 = vmatpush1.msra.mxu0 0.0
        %1221 = vmatprep.subr.mxu0 0.0
        %1222 = vmatpush1.msra.mxu0 0.0
        %1223 = vmatprep.subr.mxu0 0.0
        %1224 = vmatpush1.msra.mxu0 0.0
        %1225 = vmatprep.subr.mxu0 0.0
        %1226 = vmatpush1.msra.mxu0 0.0
        %1227 = vmatprep.subr.mxu0 0.0
        %1228 = vmatpush1.msra.mxu0 0.0
        %1229 = vmatprep.subr.mxu0 0.0
        %1230 = vmatpush1.msra.mxu0 0.0
        %1231 = vmatprep.subr.mxu0 0.0
        %1232 = vmatpush1.msra.mxu0 0.0
        %1233 = vmatprep.subr.mxu0 0.0
        %1234 = vmatpush1.msra.mxu0 0.0
        %1235 = vmatprep.subr.mxu0 0.0
        %1236 = vmatpush1.msra.mxu0 0.0
        %1237 = vmatprep.subr.mxu0 0.0
        %1238 = vmatpush1.msra.mxu0 0.0
        %1239 = vmatprep.subr.mxu0 0.0
        %1240 = vmatpush1.msra.mxu0 0.0
        %1241 = vmatprep.subr.mxu0 0.0
        %1242 = vmatpush1.msra.mxu0 0.0
        %1243 = vmatprep.subr.mxu0 0.0
        %1244 = vmatpush1.msra.mxu0 0.0
        %1245 = vmatprep.subr.mxu0 0.0
        %1246 = vmatpush1.msra.mxu0 0.0
        %1247 = vmatprep.subr.mxu0 0.0
        %1248 = vmatpush1.msra.mxu0 0.0
        %1249 = vmatprep.mubr.f32.mxu0 0.0
        %1250 = vmatmul.mubr.f32.gmra.mrb[0].mxu0 %v1171
        %v1251 = vpop.f32.mrb[0].mxu0
        %v1252 = vadd.f32 0.0, %v1251
        %v1253 = vpop.f32.mrb[0].mxu0
        %v1254 = vadd.f32 0.0, %v1253
        %1255 = vdwg.mxu0
        %1256 = vmatprep.subr.mxu0 %v1157
        %1257 = vmatpush1.msra.mxu0 %v1156
        %1258 = vmatprep.subr.mxu0 %v1161
        %1259 = vmatpush1.msra.mxu0 %v1160
        %1260 = vmatprep.subr.mxu0 %v1165
        %1261 = vmatpush1.msra.mxu0 %v1164
        %1262 = vmatprep.subr.mxu0 %v1183
        %1263 = vmatpush1.msra.mxu0 %v1180
        %1264 = vmatprep.subr.mxu0 0.0
        %1265 = vmatpush1.msra.mxu0 0.0
        %1266 = vmatprep.subr.mxu0 0.0
        %1267 = vmatpush1.msra.mxu0 0.0
        %1268 = vmatprep.subr.mxu0 0.0
        %1269 = vmatpush1.msra.mxu0 0.0
        %1270 = vmatprep.subr.mxu0 0.0
        %1271 = vmatpush1.msra.mxu0 0.0
        %1272 = vmatprep.subr.mxu0 0.0
        %1273 = vmatpush1.msra.mxu0 0.0
        %1274 = vmatprep.subr.mxu0 0.0
        %1275 = vmatpush1.msra.mxu0 0.0
        %1276 = vmatprep.subr.mxu0 0.0
        %1277 = vmatpush1.msra.mxu0 0.0
        %1278 = vmatprep.subr.mxu0 0.0
        %1279 = vmatpush1.msra.mxu0 0.0
        %1280 = vmatprep.subr.mxu0 0.0
        %1281 = vmatpush1.msra.mxu0 0.0
        %1282 = vmatprep.subr.mxu0 0.0
        %1283 = vmatpush1.msra.mxu0 0.0
        %1284 = vmatprep.subr.mxu0 0.0
        %1285 = vmatpush1.msra.mxu0 0.0
        %1286 = vmatprep.subr.mxu0 0.0
        %1287 = vmatpush1.msra.mxu0 0.0
        %1288 = vmatprep.subr.mxu0 0.0
        %1289 = vmatpush1.msra.mxu0 0.0
        %1290 = vmatprep.subr.mxu0 0.0
        %1291 = vmatpush1.msra.mxu0 0.0
        %1292 = vmatprep.subr.mxu0 0.0
        %1293 = vmatpush1.msra.mxu0 0.0
        %1294 = vmatprep.subr.mxu0 0.0
        %1295 = vmatpush1.msra.mxu0 0.0
        %1296 = vmatprep.subr.mxu0 0.0
        %1297 = vmatpush1.msra.mxu0 0.0
        %1298 = vmatprep.subr.mxu0 0.0
        %1299 = vmatpush1.msra.mxu0 0.0
        %1300 = vmatprep.subr.mxu0 0.0
        %1301 = vmatpush1.msra.mxu0 0.0
        %1302 = vmatprep.subr.mxu0 0.0
        %1303 = vmatpush1.msra.mxu0 0.0
        %1304 = vmatprep.subr.mxu0 0.0
        %1305 = vmatpush1.msra.mxu0 0.0
        %1306 = vmatprep.subr.mxu0 0.0
        %1307 = vmatpush1.msra.mxu0 0.0
        %1308 = vmatprep.subr.mxu0 0.0
        %1309 = vmatpush1.msra.mxu0 0.0
        %1310 = vmatprep.subr.mxu0 0.0
        %1311 = vmatpush1.msra.mxu0 0.0
        %1312 = vmatprep.subr.mxu0 0.0
        %1313 = vmatpush1.msra.mxu0 0.0
        %1314 = vmatprep.subr.mxu0 0.0
        %1315 = vmatpush1.msra.mxu0 0.0
        %1316 = vmatprep.subr.mxu0 0.0
        %1317 = vmatpush1.msra.mxu0 0.0
        %1318 = vmatprep.subr.mxu0 0.0
        %1319 = vmatpush1.msra.mxu0 0.0
        %1320 = vmatprep.mubr.f32.mxu0 0.0
        %1321 = vmatmul.mubr.f32.gmra.mrb[0].mxu0 %v1171
        %v1322 = vpop.f32.mrb[0].mxu0
        %v1323 = vadd.f32 0.0, %v1322
        %v1324 = vpop.f32.mrb[0].mxu0
        %v1325 = vadd.f32 0.0, %v1324
        %1326 = vdwg.mxu0
        %v1327 = vadd.f32 %v1148, %v1252
        %v1328 = vadd.f32 %v1149, %v1254
        %v1329 = vadd.f32 %v1150, %v1323
        %v1330 = vadd.f32 %v1151, %v1325
        %v1332 = vlaneseq
        %v1333 = vshrl.u32 %v1332, 7
        %v1334 = vsub.s32 0, %v1333
        %v1335 = vrot.slane %v439, %v1334
        %v1336 = vlaneseq
        %v1337 = vshrl.u32 %v1336, 7
        %v1338 = vsub.s32 1, %v1337
        %v1339 = vrot.slane %v439, %v1338
        %v1340 = vlaneseq
        %v1341 = vshrl.u32 %v1340, 7
        %v1342 = vsub.s32 2, %v1341
        %v1343 = vrot.slane %v439, %v1342
        %v1344 = vlaneseq
        %v1345 = vshrl.u32 %v1344, 7
        %v1346 = vsub.s32 3, %v1345
        %v1347 = vrot.slane %v439, %v1346
        %v1352 = vadd.f32 %v1327, %v1335
        %v1353 = vadd.f32 %v1328, %v1339
        %v1354 = vadd.f32 %v1329, %v1343
        %v1355 = vadd.f32 %v1330, %v1347
        %v1356 = vmax.f32 %v1352, 0.0
        %v1357 = vmax.f32 %v1353, 0.0
        %v1358 = vmax.f32 %v1354, 0.0
        %v1359 = vmax.f32 %v1355, 0.0
        %1360 = vmatprep.subr.mxu0 %v461
        %1361 = vmatpush1.msra.mxu0 %v460
        %1362 = vmatprep.subr.mxu0 %v465
        %1363 = vmatpush1.msra.mxu0 %v464
        %1364 = vmatprep.subr.mxu0 %v469
        %1365 = vmatpush1.msra.mxu0 %v468
        %1366 = vmatprep.subr.mxu0 %v485
        %1367 = vmatpush1.msra.mxu0 %v482
        %1368 = vmatprep.subr.mxu0 0.0
        %1369 = vmatpush1.msra.mxu0 0.0
        %1370 = vmatprep.subr.mxu0 0.0
        %1371 = vmatpush1.msra.mxu0 0.0
        %1372 = vmatprep.subr.mxu0 0.0
        %1373 = vmatpush1.msra.mxu0 0.0
        %1374 = vmatprep.subr.mxu0 0.0
        %1375 = vmatpush1.msra.mxu0 0.0
        %1376 = vmatprep.subr.mxu0 0.0
        %1377 = vmatpush1.msra.mxu0 0.0
        %1378 = vmatprep.subr.mxu0 0.0
        %1379 = vmatpush1.msra.mxu0 0.0
        %1380 = vmatprep.subr.mxu0 0.0
        %1381 = vmatpush1.msra.mxu0 0.0
        %1382 = vmatprep.subr.mxu0 0.0
        %1383 = vmatpush1.msra.mxu0 0.0
        %1384 = vmatprep.subr.mxu0 0.0
        %1385 = vmatpush1.msra.mxu0 0.0
        %1386 = vmatprep.subr.mxu0 0.0
        %1387 = vmatpush1.msra.mxu0 0.0
        %1388 = vmatprep.subr.mxu0 0.0
        %1389 = vmatpush1.msra.mxu0 0.0
        %1390 = vmatprep.subr.mxu0 0.0
        %1391 = vmatpush1.msra.mxu0 0.0
        %1392 = vmatprep.subr.mxu0 0.0
        %1393 = vmatpush1.msra.mxu0 0.0
        %1394 = vmatprep.subr.mxu0 0.0
        %1395 = vmatpush1.msra.mxu0 0.0
        %1396 = vmatprep.subr.mxu0 0.0
        %1397 = vmatpush1.msra.mxu0 0.0
        %1398 = vmatprep.subr.mxu0 0.0
        %1399 = vmatpush1.msra.mxu0 0.0
        %1400 = vmatprep.subr.mxu0 0.0
        %1401 = vmatpush1.msra.mxu0 0.0
        %1402 = vmatprep.subr.mxu0 0.0
        %1403 = vmatpush1.msra.mxu0 0.0
        %1404 = vmatprep.subr.mxu0 0.0
        %1405 = vmatpush1.msra.mxu0 0.0
        %1406 = vmatprep.subr.mxu0 0.0
        %1407 = vmatpush1.msra.mxu0 0.0
        %1408 = vmatprep.subr.mxu0 0.0
        %1409 = vmatpush1.msra.mxu0 0.0
        %1410 = vmatprep.subr.mxu0 0.0
        %1411 = vmatpush1.msra.mxu0 0.0
        %1412 = vmatprep.subr.mxu0 0.0
        %1413 = vmatpush1.msra.mxu0 0.0
        %1414 = vmatprep.subr.mxu0 0.0
        %1415 = vmatpush1.msra.mxu0 0.0
        %1416 = vmatprep.subr.mxu0 0.0
        %1417 = vmatpush1.msra.mxu0 0.0
        %1418 = vmatprep.subr.mxu0 0.0
        %1419 = vmatpush1.msra.mxu0 0.0
        %1420 = vmatprep.subr.mxu0 0.0
        %1421 = vmatpush1.msra.mxu0 0.0
        %1422 = vmatprep.subr.mxu0 0.0
        %1423 = vmatpush1.msra.mxu0 0.0
        %1424 = vmatprep.mubr.f32.mxu0 0.0
        %1425 = vmatmul.mubr.f32.gmra.mrb[0].mxu0 %v812
        %v1426 = vpop.f32.mrb[0].mxu0
        %v1427 = vadd.f32 0.0, %v1426
        %v1428 = vpop.f32.mrb[0].mxu0
        %v1429 = vadd.f32 0.0, %v1428
        %1430 = vdwg.mxu0
        %1431 = vmatprep.subr.mxu0 %v463
        %1432 = vmatpush1.msra.mxu0 %v462
        %1433 = vmatprep.subr.mxu0 %v467
        %1434 = vmatpush1.msra.mxu0 %v466
        %1435 = vmatprep.subr.mxu0 %v471
        %1436 = vmatpush1.msra.mxu0 %v470
        %1437 = vmatprep.subr.mxu0 %v491
        %1438 = vmatpush1.msra.mxu0 %v488
        %1439 = vmatprep.subr.mxu0 0.0
        %1440 = vmatpush1.msra.mxu0 0.0
        %1441 = vmatprep.subr.mxu0 0.0
        %1442 = vmatpush1.msra.mxu0 0.0
        %1443 = vmatprep.subr.mxu0 0.0
        %1444 = vmatpush1.msra.mxu0 0.0
        %1445 = vmatprep.subr.mxu0 0.0
        %1446 = vmatpush1.msra.mxu0 0.0
        %1447 = vmatprep.subr.mxu0 0.0
        %1448 = vmatpush1.msra.mxu0 0.0
        %1449 = vmatprep.subr.mxu0 0.0
        %1450 = vmatpush1.msra.mxu0 0.0
        %1451 = vmatprep.subr.mxu0 0.0
        %1452 = vmatpush1.msra.mxu0 0.0
        %1453 = vmatprep.subr.mxu0 0.0
        %1454 = vmatpush1.msra.mxu0 0.0
        %1455 = vmatprep.subr.mxu0 0.0
        %1456 = vmatpush1.msra.mxu0 0.0
        %1457 = vmatprep.subr.mxu0 0.0
        %1458 = vmatpush1.msra.mxu0 0.0
        %1459 = vmatprep.subr.mxu0 0.0
        %1460 = vmatpush1.msra.mxu0 0.0
        %1461 = vmatprep.subr.mxu0 0.0
        %1462 = vmatpush1.msra.mxu0 0.0
        %1463 = vmatprep.subr.mxu0 0.0
        %1464 = vmatpush1.msra.mxu0 0.0
        %1465 = vmatprep.subr.mxu0 0.0
        %1466 = vmatpush1.msra.mxu0 0.0
        %1467 = vmatprep.subr.mxu0 0.0
        %1468 = vmatpush1.msra.mxu0 0.0
        %1469 = vmatprep.subr.mxu0 0.0
        %1470 = vmatpush1.msra.mxu0 0.0
        %1471 = vmatprep.subr.mxu0 0.0
        %1472 = vmatpush1.msra.mxu0 0.0
        %1473 = vmatprep.subr.mxu0 0.0
        %1474 = vmatpush1.msra.mxu0 0.0
        %1475 = vmatprep.subr.mxu0 0.0
        %1476 = vmatpush1.msra.mxu0 0.0
        %1477 = vmatprep.subr.mxu0 0.0
        %1478 = vmatpush1.msra.mxu0 0.0
        %1479 = vmatprep.subr.mxu0 0.0
        %1480 = vmatpush1.msra.mxu0 0.0
        %1481 = vmatprep.subr.mxu0 0.0
        %1482 = vmatpush1.msra.mxu0 0.0
        %1483 = vmatprep.subr.mxu0 0.0
        %1484 = vmatpush1.msra.mxu0 0.0
        %1485 = vmatprep.subr.mxu0 0.0
        %1486 = vmatpush1.msra.mxu0 0.0
        %1487 = vmatprep.subr.mxu0 0.0
        %1488 = vmatpush1.msra.mxu0 0.0
        %1489 = vmatprep.subr.mxu0 0.0
        %1490 = vmatpush1.msra.mxu0 0.0
        %1491 = vmatprep.subr.mxu0 0.0
        %1492 = vmatpush1.msra.mxu0 0.0
        %1493 = vmatprep.subr.mxu0 0.0
        %1494 = vmatpush1.msra.mxu0 0.0
        %1495 = vmatprep.mubr.f32.mxu0 0.0
        %1496 = vmatmul.mubr.f32.gmra.mrb[0].mxu0 %v812
        %v1497 = vpop.f32.mrb[0].mxu0
        %v1498 = vadd.f32 0.0, %v1497
        %v1499 = vpop.f32.mrb[0].mxu0
        %v1500 = vadd.f32 0.0, %v1499
        %1501 = vdwg.mxu0
        %1502 = vmatprep.subr.mxu0 %v442
        %1503 = vmatpush1.msra.mxu0 %v441
        %1504 = vmatprep.subr.mxu0 %v446
        %1505 = vmatpush1.msra.mxu0 %v445
        %1506 = vmatprep.subr.mxu0 %v450
        %1507 = vmatpush1.msra.mxu0 %v449
        %1508 = vmatprep.subr.mxu0 %v642
        %1509 = vmatpush1.msra.mxu0 %v639
        %1510 = vmatprep.subr.mxu0 0.0
        %1511 = vmatpush1.msra.mxu0 0.0
        %1512 = vmatprep.subr.mxu0 0.0
        %1513 = vmatpush1.msra.mxu0 0.0
        %1514 = vmatprep.subr.mxu0 0.0
        %1515 = vmatpush1.msra.mxu0 0.0
        %1516 = vmatprep.subr.mxu0 0.0
        %1517 = vmatpush1.msra.mxu0 0.0
        %1518 = vmatprep.subr.mxu0 0.0
        %1519 = vmatpush1.msra.mxu0 0.0
        %1520 = vmatprep.subr.mxu0 0.0
        %1521 = vmatpush1.msra.mxu0 0.0
        %1522 = vmatprep.subr.mxu0 0.0
        %1523 = vmatpush1.msra.mxu0 0.0
        %1524 = vmatprep.subr.mxu0 0.0
        %1525 = vmatpush1.msra.mxu0 0.0
        %1526 = vmatprep.subr.mxu0 0.0
        %1527 = vmatpush1.msra.mxu0 0.0
        %1528 = vmatprep.subr.mxu0 0.0
        %1529 = vmatpush1.msra.mxu0 0.0
        %1530 = vmatprep.subr.mxu0 0.0
        %1531 = vmatpush1.msra.mxu0 0.0
        %1532 = vmatprep.subr.mxu0 0.0
        %1533 = vmatpush1.msra.mxu0 0.0
        %1534 = vmatprep.subr.mxu0 0.0
        %1535 = vmatpush1.msra.mxu0 0.0
        %1536 = vmatprep.subr.mxu0 0.0
        %1537 = vmatpush1.msra.mxu0 0.0
        %1538 = vmatprep.subr.mxu0 0.0
        %1539 = vmatpush1.msra.mxu0 0.0
        %1540 = vmatprep.subr.mxu0 0.0
        %1541 = vmatpush1.msra.mxu0 0.0
        %1542 = vmatprep.subr.mxu0 0.0
        %1543 = vmatpush1.msra.mxu0 0.0
        %1544 = vmatprep.subr.mxu0 0.0
        %1545 = vmatpush1.msra.mxu0 0.0
        %1546 = vmatprep.subr.mxu0 0.0
        %1547 = vmatpush1.msra.mxu0 0.0
        %1548 = vmatprep.subr.mxu0 0.0
        %1549 = vmatpush1.msra.mxu0 0.0
        %1550 = vmatprep.subr.mxu0 0.0
        %1551 = vmatpush1.msra.mxu0 0.0
        %1552 = vmatprep.subr.mxu0 0.0
        %1553 = vmatpush1.msra.mxu0 0.0
        %1554 = vmatprep.subr.mxu0 0.0
        %1555 = vmatpush1.msra.mxu0 0.0
        %1556 = vmatprep.subr.mxu0 0.0
        %1557 = vmatpush1.msra.mxu0 0.0
        %1558 = vmatprep.subr.mxu0 0.0
        %1559 = vmatpush1.msra.mxu0 0.0
        %1560 = vmatprep.subr.mxu0 0.0
        %1561 = vmatpush1.msra.mxu0 0.0
        %1562 = vmatprep.subr.mxu0 0.0
        %1563 = vmatpush1.msra.mxu0 0.0
        %1564 = vmatprep.subr.mxu0 0.0
        %1565 = vmatpush1.msra.mxu0 0.0
        %1566 = vmatprep.mubr.f32.mxu0 0.0
        %1567 = vmatmul.mubr.f32.gmra.mrb[0].mxu0 %v478
        %v1568 = vpop.f32.mrb[0].mxu0
        %v1569 = vadd.f32 %v1427, %v1568
        %v1570 = vpop.f32.mrb[0].mxu0
        %v1571 = vadd.f32 %v1429, %v1570
        %1572 = vdwg.mxu0
        %1573 = vmatprep.subr.mxu0 %v444
        %1574 = vmatpush1.msra.mxu0 %v443
        %1575 = vmatprep.subr.mxu0 %v448
        %1576 = vmatpush1.msra.mxu0 %v447
        %1577 = vmatprep.subr.mxu0 %v452
        %1578 = vmatpush1.msra.mxu0 %v451
        %1579 = vmatprep.subr.mxu0 %v648
        %1580 = vmatpush1.msra.mxu0 %v645
        %1581 = vmatprep.subr.mxu0 0.0
        %1582 = vmatpush1.msra.mxu0 0.0
        %1583 = vmatprep.subr.mxu0 0.0
        %1584 = vmatpush1.msra.mxu0 0.0
        %1585 = vmatprep.subr.mxu0 0.0
        %1586 = vmatpush1.msra.mxu0 0.0
        %1587 = vmatprep.subr.mxu0 0.0
        %1588 = vmatpush1.msra.mxu0 0.0
        %1589 = vmatprep.subr.mxu0 0.0
        %1590 = vmatpush1.msra.mxu0 0.0
        %1591 = vmatprep.subr.mxu0 0.0
        %1592 = vmatpush1.msra.mxu0 0.0
        %1593 = vmatprep.subr.mxu0 0.0
        %1594 = vmatpush1.msra.mxu0 0.0
        %1595 = vmatprep.subr.mxu0 0.0
        %1596 = vmatpush1.msra.mxu0 0.0
        %1597 = vmatprep.subr.mxu0 0.0
        %1598 = vmatpush1.msra.mxu0 0.0
        %1599 = vmatprep.subr.mxu0 0.0
        %1600 = vmatpush1.msra.mxu0 0.0
        %1601 = vmatprep.subr.mxu0 0.0
        %1602 = vmatpush1.msra.mxu0 0.0
        %1603 = vmatprep.subr.mxu0 0.0
        %1604 = vmatpush1.msra.mxu0 0.0
        %1605 = vmatprep.subr.mxu0 0.0
        %1606 = vmatpush1.msra.mxu0 0.0
        %1607 = vmatprep.subr.mxu0 0.0
        %1608 = vmatpush1.msra.mxu0 0.0
        %1609 = vmatprep.subr.mxu0 0.0
        %1610 = vmatpush1.msra.mxu0 0.0
        %1611 = vmatprep.subr.mxu0 0.0
        %1612 = vmatpush1.msra.mxu0 0.0
        %1613 = vmatprep.subr.mxu0 0.0
        %1614 = vmatpush1.msra.mxu0 0.0
        %1615 = vmatprep.subr.mxu0 0.0
        %1616 = vmatpush1.msra.mxu0 0.0
        %1617 = vmatprep.subr.mxu0 0.0
        %1618 = vmatpush1.msra.mxu0 0.0
        %1619 = vmatprep.subr.mxu0 0.0
        %1620 = vmatpush1.msra.mxu0 0.0
        %1621 = vmatprep.subr.mxu0 0.0
        %1622 = vmatpush1.msra.mxu0 0.0
        %1623 = vmatprep.subr.mxu0 0.0
        %1624 = vmatpush1.msra.mxu0 0.0
        %1625 = vmatprep.subr.mxu0 0.0
        %1626 = vmatpush1.msra.mxu0 0.0
        %1627 = vmatprep.subr.mxu0 0.0
        %1628 = vmatpush1.msra.mxu0 0.0
        %1629 = vmatprep.subr.mxu0 0.0
        %1630 = vmatpush1.msra.mxu0 0.0
        %1631 = vmatprep.subr.mxu0 0.0
        %1632 = vmatpush1.msra.mxu0 0.0
        %1633 = vmatprep.subr.mxu0 0.0
        %1634 = vmatpush1.msra.mxu0 0.0
        %1635 = vmatprep.subr.mxu0 0.0
        %1636 = vmatpush1.msra.mxu0 0.0
        %1637 = vmatprep.mubr.f32.mxu0 0.0
        %1638 = vmatmul.mubr.f32.gmra.mrb[0].mxu0 %v478
        %v1639 = vpop.f32.mrb[0].mxu0
        %v1640 = vadd.f32 %v1498, %v1639
        %v1641 = vpop.f32.mrb[0].mxu0
        %v1642 = vadd.f32 %v1500, %v1641
        %1643 = vdwg.mxu0
        %1644 = vmatprep.subr.mxu0 %v796
        %1645 = vmatpush1.msra.mxu0 %v795
        %1646 = vmatprep.subr.mxu0 %v800
        %1647 = vmatpush1.msra.mxu0 %v799
        %1648 = vmatprep.subr.mxu0 %v804
        %1649 = vmatpush1.msra.mxu0 %v803
        %1650 = vmatprep.subr.mxu0 %v818
        %1651 = vmatpush1.msra.mxu0 %v815
        %1652 = vmatprep.subr.mxu0 0.0
        %1653 = vmatpush1.msra.mxu0 0.0
        %1654 = vmatprep.subr.mxu0 0.0
        %1655 = vmatpush1.msra.mxu0 0.0
        %1656 = vmatprep.subr.mxu0 0.0
        %1657 = vmatpush1.msra.mxu0 0.0
        %1658 = vmatprep.subr.mxu0 0.0
        %1659 = vmatpush1.msra.mxu0 0.0
        %1660 = vmatprep.subr.mxu0 0.0
        %1661 = vmatpush1.msra.mxu0 0.0
        %1662 = vmatprep.subr.mxu0 0.0
        %1663 = vmatpush1.msra.mxu0 0.0
        %1664 = vmatprep.subr.mxu0 0.0
        %1665 = vmatpush1.msra.mxu0 0.0
        %1666 = vmatprep.subr.mxu0 0.0
        %1667 = vmatpush1.msra.mxu0 0.0
        %1668 = vmatprep.subr.mxu0 0.0
        %1669 = vmatpush1.msra.mxu0 0.0
        %1670 = vmatprep.subr.mxu0 0.0
        %1671 = vmatpush1.msra.mxu0 0.0
        %1672 = vmatprep.subr.mxu0 0.0
        %1673 = vmatpush1.msra.mxu0 0.0
        %1674 = vmatprep.subr.mxu0 0.0
        %1675 = vmatpush1.msra.mxu0 0.0
        %1676 = vmatprep.subr.mxu0 0.0
        %1677 = vmatpush1.msra.mxu0 0.0
        %1678 = vmatprep.subr.mxu0 0.0
        %1679 = vmatpush1.msra.mxu0 0.0
        %1680 = vmatprep.subr.mxu0 0.0
        %1681 = vmatpush1.msra.mxu0 0.0
        %1682 = vmatprep.subr.mxu0 0.0
        %1683 = vmatpush1.msra.mxu0 0.0
        %1684 = vmatprep.subr.mxu0 0.0
        %1685 = vmatpush1.msra.mxu0 0.0
        %1686 = vmatprep.subr.mxu0 0.0
        %1687 = vmatpush1.msra.mxu0 0.0
        %1688 = vmatprep.subr.mxu0 0.0
        %1689 = vmatpush1.msra.mxu0 0.0
        %1690 = vmatprep.subr.mxu0 0.0
        %1691 = vmatpush1.msra.mxu0 0.0
        %1692 = vmatprep.subr.mxu0 0.0
        %1693 = vmatpush1.msra.mxu0 0.0
        %1694 = vmatprep.subr.mxu0 0.0
        %1695 = vmatpush1.msra.mxu0 0.0
        %1696 = vmatprep.subr.mxu0 0.0
        %1697 = vmatpush1.msra.mxu0 0.0
        %1698 = vmatprep.subr.mxu0 0.0
        %1699 = vmatpush1.msra.mxu0 0.0
        %1700 = vmatprep.subr.mxu0 0.0
        %1701 = vmatpush1.msra.mxu0 0.0
        %1702 = vmatprep.subr.mxu0 0.0
        %1703 = vmatpush1.msra.mxu0 0.0
        %1704 = vmatprep.subr.mxu0 0.0
        %1705 = vmatpush1.msra.mxu0 0.0
        %1706 = vmatprep.subr.mxu0 0.0
        %1707 = vmatpush1.msra.mxu0 0.0
        %1708 = vmatprep.mubr.f32.mxu0 0.0
        %1709 = vmatmul.mubr.f32.gmra.mrb[0].mxu0 %v992
        %v1710 = vpop.f32.mrb[0].mxu0
        %v1711 = vadd.f32 0.0, %v1710
        %v1712 = vpop.f32.mrb[0].mxu0
        %v1713 = vadd.f32 0.0, %v1712
        %1714 = vdwg.mxu0
        %1715 = vmatprep.subr.mxu0 %v798
        %1716 = vmatpush1.msra.mxu0 %v797
        %1717 = vmatprep.subr.mxu0 %v802
        %1718 = vmatpush1.msra.mxu0 %v801
        %1719 = vmatprep.subr.mxu0 %v806
        %1720 = vmatpush1.msra.mxu0 %v805
        %1721 = vmatprep.subr.mxu0 %v824
        %1722 = vmatpush1.msra.mxu0 %v821
        %1723 = vmatprep.subr.mxu0 0.0
        %1724 = vmatpush1.msra.mxu0 0.0
        %1725 = vmatprep.subr.mxu0 0.0
        %1726 = vmatpush1.msra.mxu0 0.0
        %1727 = vmatprep.subr.mxu0 0.0
        %1728 = vmatpush1.msra.mxu0 0.0
        %1729 = vmatprep.subr.mxu0 0.0
        %1730 = vmatpush1.msra.mxu0 0.0
        %1731 = vmatprep.subr.mxu0 0.0
        %1732 = vmatpush1.msra.mxu0 0.0
        %1733 = vmatprep.subr.mxu0 0.0
        %1734 = vmatpush1.msra.mxu0 0.0
        %1735 = vmatprep.subr.mxu0 0.0
        %1736 = vmatpush1.msra.mxu0 0.0
        %1737 = vmatprep.subr.mxu0 0.0
        %1738 = vmatpush1.msra.mxu0 0.0
        %1739 = vmatprep.subr.mxu0 0.0
        %1740 = vmatpush1.msra.mxu0 0.0
        %1741 = vmatprep.subr.mxu0 0.0
        %1742 = vmatpush1.msra.mxu0 0.0
        %1743 = vmatprep.subr.mxu0 0.0
        %1744 = vmatpush1.msra.mxu0 0.0
        %1745 = vmatprep.subr.mxu0 0.0
        %1746 = vmatpush1.msra.mxu0 0.0
        %1747 = vmatprep.subr.mxu0 0.0
        %1748 = vmatpush1.msra.mxu0 0.0
        %1749 = vmatprep.subr.mxu0 0.0
        %1750 = vmatpush1.msra.mxu0 0.0
        %1751 = vmatprep.subr.mxu0 0.0
        %1752 = vmatpush1.msra.mxu0 0.0
        %1753 = vmatprep.subr.mxu0 0.0
        %1754 = vmatpush1.msra.mxu0 0.0
        %1755 = vmatprep.subr.mxu0 0.0
        %1756 = vmatpush1.msra.mxu0 0.0
        %1757 = vmatprep.subr.mxu0 0.0
        %1758 = vmatpush1.msra.mxu0 0.0
        %1759 = vmatprep.subr.mxu0 0.0
        %1760 = vmatpush1.msra.mxu0 0.0
        %1761 = vmatprep.subr.mxu0 0.0
        %1762 = vmatpush1.msra.mxu0 0.0
        %1763 = vmatprep.subr.mxu0 0.0
        %1764 = vmatpush1.msra.mxu0 0.0
        %1765 = vmatprep.subr.mxu0 0.0
        %1766 = vmatpush1.msra.mxu0 0.0
        %1767 = vmatprep.subr.mxu0 0.0
        %1768 = vmatpush1.msra.mxu0 0.0
        %1769 = vmatprep.subr.mxu0 0.0
        %1770 = vmatpush1.msra.mxu0 0.0
        %1771 = vmatprep.subr.mxu0 0.0
        %1772 = vmatpush1.msra.mxu0 0.0
        %1773 = vmatprep.subr.mxu0 0.0
        %1774 = vmatpush1.msra.mxu0 0.0
        %1775 = vmatprep.subr.mxu0 0.0
        %1776 = vmatpush1.msra.mxu0 0.0
        %1777 = vmatprep.subr.mxu0 0.0
        %1778 = vmatpush1.msra.mxu0 0.0
        %1779 = vmatprep.mubr.f32.mxu0 0.0
        %1780 = vmatmul.mubr.f32.gmra.mrb[0].mxu0 %v992
        %v1781 = vpop.f32.mrb[0].mxu0
        %v1782 = vadd.f32 0.0, %v1781
        %v1783 = vpop.f32.mrb[0].mxu0
        %v1784 = vadd.f32 0.0, %v1783
        %1785 = vdwg.mxu0
        %v1786 = vadd.f32 %v1569, %v1711
        %v1787 = vadd.f32 %v1571, %v1713
        %v1788 = vadd.f32 %v1640, %v1782
        %v1789 = vadd.f32 %v1642, %v1784
        %1790 = vmatprep.subr.mxu0 %v976
        %1791 = vmatpush1.msra.mxu0 %v975
        %1792 = vmatprep.subr.mxu0 %v980
        %1793 = vmatpush1.msra.mxu0 %v979
        %1794 = vmatprep.subr.mxu0 %v984
        %1795 = vmatpush1.msra.mxu0 %v983
        %1796 = vmatprep.subr.mxu0 %v998
        %1797 = vmatpush1.msra.mxu0 %v995
        %1798 = vmatprep.subr.mxu0 0.0
        %1799 = vmatpush1.msra.mxu0 0.0
        %1800 = vmatprep.subr.mxu0 0.0
        %1801 = vmatpush1.msra.mxu0 0.0
        %1802 = vmatprep.subr.mxu0 0.0
        %1803 = vmatpush1.msra.mxu0 0.0
        %1804 = vmatprep.subr.mxu0 0.0
        %1805 = vmatpush1.msra.mxu0 0.0
        %1806 = vmatprep.subr.mxu0 0.0
        %1807 = vmatpush1.msra.mxu0 0.0
        %1808 = vmatprep.subr.mxu0 0.0
        %1809 = vmatpush1.msra.mxu0 0.0
        %1810 = vmatprep.subr.mxu0 0.0
        %1811 = vmatpush1.msra.mxu0 0.0
        %1812 = vmatprep.subr.mxu0 0.0
        %1813 = vmatpush1.msra.mxu0 0.0
        %1814 = vmatprep.subr.mxu0 0.0
        %1815 = vmatpush1.msra.mxu0 0.0
        %1816 = vmatprep.subr.mxu0 0.0
        %1817 = vmatpush1.msra.mxu0 0.0
        %1818 = vmatprep.subr.mxu0 0.0
        %1819 = vmatpush1.msra.mxu0 0.0
        %1820 = vmatprep.subr.mxu0 0.0
        %1821 = vmatpush1.msra.mxu0 0.0
        %1822 = vmatprep.subr.mxu0 0.0
        %1823 = vmatpush1.msra.mxu0 0.0
        %1824 = vmatprep.subr.mxu0 0.0
        %1825 = vmatpush1.msra.mxu0 0.0
        %1826 = vmatprep.subr.mxu0 0.0
        %1827 = vmatpush1.msra.mxu0 0.0
        %1828 = vmatprep.subr.mxu0 0.0
        %1829 = vmatpush1.msra.mxu0 0.0
        %1830 = vmatprep.subr.mxu0 0.0
        %1831 = vmatpush1.msra.mxu0 0.0
        %1832 = vmatprep.subr.mxu0 0.0
        %1833 = vmatpush1.msra.mxu0 0.0
        %1834 = vmatprep.subr.mxu0 0.0
        %1835 = vmatpush1.msra.mxu0 0.0
        %1836 = vmatprep.subr.mxu0 0.0
        %1837 = vmatpush1.msra.mxu0 0.0
        %1838 = vmatprep.subr.mxu0 0.0
        %1839 = vmatpush1.msra.mxu0 0.0
        %1840 = vmatprep.subr.mxu0 0.0
        %1841 = vmatpush1.msra.mxu0 0.0
        %1842 = vmatprep.subr.mxu0 0.0
        %1843 = vmatpush1.msra.mxu0 0.0
        %1844 = vmatprep.subr.mxu0 0.0
        %1845 = vmatpush1.msra.mxu0 0.0
        %1846 = vmatprep.subr.mxu0 0.0
        %1847 = vmatpush1.msra.mxu0 0.0
        %1848 = vmatprep.subr.mxu0 0.0
        %1849 = vmatpush1.msra.mxu0 0.0
        %1850 = vmatprep.subr.mxu0 0.0
        %1851 = vmatpush1.msra.mxu0 0.0
        %1852 = vmatprep.subr.mxu0 0.0
        %1853 = vmatpush1.msra.mxu0 0.0
        %1854 = vmatprep.mubr.f32.mxu0 0.0
        %1855 = vmatmul.mubr.f32.gmra.mrb[0].mxu0 %v1171
        %v1856 = vpop.f32.mrb[0].mxu0
        %v1857 = vadd.f32 0.0, %v1856
        %v1858 = vpop.f32.mrb[0].mxu0
        %v1859 = vadd.f32 0.0, %v1858
        %1860 = vdwg.mxu0
        %1861 = vmatprep.subr.mxu0 %v978
        %1862 = vmatpush1.msra.mxu0 %v977
        %1863 = vmatprep.subr.mxu0 %v982
        %1864 = vmatpush1.msra.mxu0 %v981
        %1865 = vmatprep.subr.mxu0 %v986
        %1866 = vmatpush1.msra.mxu0 %v985
        %1867 = vmatprep.subr.mxu0 %v1004
        %1868 = vmatpush1.msra.mxu0 %v1001
        %1869 = vmatprep.subr.mxu0 0.0
        %1870 = vmatpush1.msra.mxu0 0.0
        %1871 = vmatprep.subr.mxu0 0.0
        %1872 = vmatpush1.msra.mxu0 0.0
        %1873 = vmatprep.subr.mxu0 0.0
        %1874 = vmatpush1.msra.mxu0 0.0
        %1875 = vmatprep.subr.mxu0 0.0
        %1876 = vmatpush1.msra.mxu0 0.0
        %1877 = vmatprep.subr.mxu0 0.0
        %1878 = vmatpush1.msra.mxu0 0.0
        %1879 = vmatprep.subr.mxu0 0.0
        %1880 = vmatpush1.msra.mxu0 0.0
        %1881 = vmatprep.subr.mxu0 0.0
        %1882 = vmatpush1.msra.mxu0 0.0
        %1883 = vmatprep.subr.mxu0 0.0
        %1884 = vmatpush1.msra.mxu0 0.0
        %1885 = vmatprep.subr.mxu0 0.0
        %1886 = vmatpush1.msra.mxu0 0.0
        %1887 = vmatprep.subr.mxu0 0.0
        %1888 = vmatpush1.msra.mxu0 0.0
        %1889 = vmatprep.subr.mxu0 0.0
        %1890 = vmatpush1.msra.mxu0 0.0
        %1891 = vmatprep.subr.mxu0 0.0
        %1892 = vmatpush1.msra.mxu0 0.0
        %1893 = vmatprep.subr.mxu0 0.0
        %1894 = vmatpush1.msra.mxu0 0.0
        %1895 = vmatprep.subr.mxu0 0.0
        %1896 = vmatpush1.msra.mxu0 0.0
        %1897 = vmatprep.subr.mxu0 0.0
        %1898 = vmatpush1.msra.mxu0 0.0
        %1899 = vmatprep.subr.mxu0 0.0
        %1900 = vmatpush1.msra.mxu0 0.0
        %1901 = vmatprep.subr.mxu0 0.0
        %1902 = vmatpush1.msra.mxu0 0.0
        %1903 = vmatprep.subr.mxu0 0.0
        %1904 = vmatpush1.msra.mxu0 0.0
        %1905 = vmatprep.subr.mxu0 0.0
        %1906 = vmatpush1.msra.mxu0 0.0
        %1907 = vmatprep.subr.mxu0 0.0
        %1908 = vmatpush1.msra.mxu0 0.0
        %1909 = vmatprep.subr.mxu0 0.0
        %1910 = vmatpush1.msra.mxu0 0.0
        %1911 = vmatprep.subr.mxu0 0.0
        %1912 = vmatpush1.msra.mxu0 0.0
        %1913 = vmatprep.subr.mxu0 0.0
        %1914 = vmatpush1.msra.mxu0 0.0
        %1915 = vmatprep.subr.mxu0 0.0
        %1916 = vmatpush1.msra.mxu0 0.0
        %1917 = vmatprep.subr.mxu0 0.0
        %1918 = vmatpush1.msra.mxu0 0.0
        %1919 = vmatprep.subr.mxu0 0.0
        %1920 = vmatpush1.msra.mxu0 0.0
        %1921 = vmatprep.subr.mxu0 0.0
        %1922 = vmatpush1.msra.mxu0 0.0
        %1923 = vmatprep.subr.mxu0 0.0
        %1924 = vmatpush1.msra.mxu0 0.0
        %1925 = vmatprep.mubr.f32.mxu0 0.0
        %1926 = vmatmul.mubr.f32.gmra.mrb[0].mxu0 %v1171
        %v1927 = vpop.f32.mrb[0].mxu0
        %v1928 = vadd.f32 0.0, %v1927
        %v1929 = vpop.f32.mrb[0].mxu0
        %v1930 = vadd.f32 0.0, %v1929
        %1931 = vdwg.mxu0
        %v1932 = vadd.f32 %v1786, %v1857
        %v1933 = vadd.f32 %v1787, %v1859
        %v1934 = vadd.f32 %v1788, %v1928
        %v1935 = vadd.f32 %v1789, %v1930
        %v1936 = vld [vmem:[%s457 + $0x1] sm:$0x3f]
        %v1938 = vsel %vm476, %v1936, 0
        %1940 = vmatprep.subr.mxu0 %v1155
        %1941 = vmatpush1.msra.mxu0 %v1154
        %1942 = vmatprep.subr.mxu0 %v1159
        %1943 = vmatpush1.msra.mxu0 %v1158
        %1944 = vmatprep.subr.mxu0 %v1163
        %1945 = vmatpush1.msra.mxu0 %v1162
        %1946 = vmatprep.subr.mxu0 %v1177
        %1947 = vmatpush1.msra.mxu0 %v1174
        %1948 = vmatprep.subr.mxu0 0.0
        %1949 = vmatpush1.msra.mxu0 0.0
        %1950 = vmatprep.subr.mxu0 0.0
        %1951 = vmatpush1.msra.mxu0 0.0
        %1952 = vmatprep.subr.mxu0 0.0
        %1953 = vmatpush1.msra.mxu0 0.0
        %1954 = vmatprep.subr.mxu0 0.0
        %1955 = vmatpush1.msra.mxu0 0.0
        %1956 = vmatprep.subr.mxu0 0.0
        %1957 = vmatpush1.msra.mxu0 0.0
        %1958 = vmatprep.subr.mxu0 0.0
        %1959 = vmatpush1.msra.mxu0 0.0
        %1960 = vmatprep.subr.mxu0 0.0
        %1961 = vmatpush1.msra.mxu0 0.0
        %1962 = vmatprep.subr.mxu0 0.0
        %1963 = vmatpush1.msra.mxu0 0.0
        %1964 = vmatprep.subr.mxu0 0.0
        %1965 = vmatpush1.msra.mxu0 0.0
        %1966 = vmatprep.subr.mxu0 0.0
        %1967 = vmatpush1.msra.mxu0 0.0
        %1968 = vmatprep.subr.mxu0 0.0
        %1969 = vmatpush1.msra.mxu0 0.0
        %1970 = vmatprep.subr.mxu0 0.0
        %1971 = vmatpush1.msra.mxu0 0.0
        %1972 = vmatprep.subr.mxu0 0.0
        %1973 = vmatpush1.msra.mxu0 0.0
        %1974 = vmatprep.subr.mxu0 0.0
        %1975 = vmatpush1.msra.mxu0 0.0
        %1976 = vmatprep.subr.mxu0 0.0
        %1977 = vmatpush1.msra.mxu0 0.0
        %1978 = vmatprep.subr.mxu0 0.0
        %1979 = vmatpush1.msra.mxu0 0.0
        %1980 = vmatprep.subr.mxu0 0.0
        %1981 = vmatpush1.msra.mxu0 0.0
        %1982 = vmatprep.subr.mxu0 0.0
        %1983 = vmatpush1.msra.mxu0 0.0
        %1984 = vmatprep.subr.mxu0 0.0
        %1985 = vmatpush1.msra.mxu0 0.0
        %1986 = vmatprep.subr.mxu0 0.0
        %1987 = vmatpush1.msra.mxu0 0.0
        %1988 = vmatprep.subr.mxu0 0.0
        %1989 = vmatpush1.msra.mxu0 0.0
        %1990 = vmatprep.subr.mxu0 0.0
        %1991 = vmatpush1.msra.mxu0 0.0
        %1992 = vmatprep.subr.mxu0 0.0
        %1993 = vmatpush1.msra.mxu0 0.0
        %1994 = vmatprep.subr.mxu0 0.0
        %1995 = vmatpush1.msra.mxu0 0.0
        %1996 = vmatprep.subr.mxu0 0.0
        %1997 = vmatpush1.msra.mxu0 0.0
        %1998 = vmatprep.subr.mxu0 0.0
        %1999 = vmatpush1.msra.mxu0 0.0
        %2000 = vmatprep.subr.mxu0 0.0
        %2001 = vmatpush1.msra.mxu0 0.0
        %2002 = vmatprep.subr.mxu0 0.0
        %2003 = vmatpush1.msra.mxu0 0.0
        %2004 = vmatprep.mubr.f32.mxu0 0.0
        %2005 = vmatmul.mubr.f32.gmra.mrb[0].mxu0 %v1938
        %v2006 = vpop.f32.mrb[0].mxu0
        %v2007 = vadd.f32 0.0, %v2006
        %v2008 = vpop.f32.mrb[0].mxu0
        %v2009 = vadd.f32 0.0, %v2008
        %2010 = vdwg.mxu0
        %2011 = vmatprep.subr.mxu0 %v1157
        %2012 = vmatpush1.msra.mxu0 %v1156
        %2013 = vmatprep.subr.mxu0 %v1161
        %2014 = vmatpush1.msra.mxu0 %v1160
        %2015 = vmatprep.subr.mxu0 %v1165
        %2016 = vmatpush1.msra.mxu0 %v1164
        %2017 = vmatprep.subr.mxu0 %v1183
        %2018 = vmatpush1.msra.mxu0 %v1180
        %2019 = vmatprep.subr.mxu0 0.0
        %2020 = vmatpush1.msra.mxu0 0.0
        %2021 = vmatprep.subr.mxu0 0.0
        %2022 = vmatpush1.msra.mxu0 0.0
        %2023 = vmatprep.subr.mxu0 0.0
        %2024 = vmatpush1.msra.mxu0 0.0
        %2025 = vmatprep.subr.mxu0 0.0
        %2026 = vmatpush1.msra.mxu0 0.0
        %2027 = vmatprep.subr.mxu0 0.0
        %2028 = vmatpush1.msra.mxu0 0.0
        %2029 = vmatprep.subr.mxu0 0.0
        %2030 = vmatpush1.msra.mxu0 0.0
        %2031 = vmatprep.subr.mxu0 0.0
        %2032 = vmatpush1.msra.mxu0 0.0
        %2033 = vmatprep.subr.mxu0 0.0
        %2034 = vmatpush1.msra.mxu0 0.0
        %2035 = vmatprep.subr.mxu0 0.0
        %2036 = vmatpush1.msra.mxu0 0.0
        %2037 = vmatprep.subr.mxu0 0.0
        %2038 = vmatpush1.msra.mxu0 0.0
        %2039 = vmatprep.subr.mxu0 0.0
        %2040 = vmatpush1.msra.mxu0 0.0
        %2041 = vmatprep.subr.mxu0 0.0
        %2042 = vmatpush1.msra.mxu0 0.0
        %2043 = vmatprep.subr.mxu0 0.0
        %2044 = vmatpush1.msra.mxu0 0.0
        %2045 = vmatprep.subr.mxu0 0.0
        %2046 = vmatpush1.msra.mxu0 0.0
        %2047 = vmatprep.subr.mxu0 0.0
        %2048 = vmatpush1.msra.mxu0 0.0
        %2049 = vmatprep.subr.mxu0 0.0
        %2050 = vmatpush1.msra.mxu0 0.0
        %2051 = vmatprep.subr.mxu0 0.0
        %2052 = vmatpush1.msra.mxu0 0.0
        %2053 = vmatprep.subr.mxu0 0.0
        %2054 = vmatpush1.msra.mxu0 0.0
        %2055 = vmatprep.subr.mxu0 0.0
        %2056 = vmatpush1.msra.mxu0 0.0
        %2057 = vmatprep.subr.mxu0 0.0
        %2058 = vmatpush1.msra.mxu0 0.0
        %2059 = vmatprep.subr.mxu0 0.0
        %2060 = vmatpush1.msra.mxu0 0.0
        %2061 = vmatprep.subr.mxu0 0.0
        %2062 = vmatpush1.msra.mxu0 0.0
        %2063 = vmatprep.subr.mxu0 0.0
        %2064 = vmatpush1.msra.mxu0 0.0
        %2065 = vmatprep.subr.mxu0 0.0
        %2066 = vmatpush1.msra.mxu0 0.0
        %2067 = vmatprep.subr.mxu0 0.0
        %2068 = vmatpush1.msra.mxu0 0.0
        %2069 = vmatprep.subr.mxu0 0.0
        %2070 = vmatpush1.msra.mxu0 0.0
        %2071 = vmatprep.subr.mxu0 0.0
        %2072 = vmatpush1.msra.mxu0 0.0
        %2073 = vmatprep.subr.mxu0 0.0
        %2074 = vmatpush1.msra.mxu0 0.0
        %2075 = vmatprep.mubr.f32.mxu0 0.0
        %2076 = vmatmul.mubr.f32.gmra.mrb[0].mxu0 %v1938
        %v2077 = vpop.f32.mrb[0].mxu0
        %v2078 = vadd.f32 0.0, %v2077
        %v2079 = vpop.f32.mrb[0].mxu0
        %v2080 = vadd.f32 0.0, %v2079
        %2081 = vdwg.mxu0
        %v2082 = vadd.f32 %v1932, %v2007
        %v2083 = vadd.f32 %v1933, %v2009
        %v2084 = vadd.f32 %v1934, %v2078
        %v2085 = vadd.f32 %v1935, %v2080
        %v2086 = vadd.f32 %v2082, %v1335
        %v2087 = vadd.f32 %v2083, %v1339
        %v2088 = vadd.f32 %v2084, %v1343
        %v2089 = vadd.f32 %v2085, %v1347
        %v2090 = vmax.f32 %v2086, 0.0
        %v2091 = vmax.f32 %v2087, 0.0
        %v2092 = vmax.f32 %v2088, 0.0
        %v2093 = vmax.f32 %v2089, 0.0
        %2094 = vmatprep.subr.mxu0 %v461
        %2095 = vmatpush1.msra.mxu0 %v460
        %2096 = vmatprep.subr.mxu0 %v465
        %2097 = vmatpush1.msra.mxu0 %v464
        %2098 = vmatprep.subr.mxu0 %v469
        %2099 = vmatpush1.msra.mxu0 %v468
        %2100 = vmatprep.subr.mxu0 %v485
        %2101 = vmatpush1.msra.mxu0 %v482
        %2102 = vmatprep.subr.mxu0 0.0
        %2103 = vmatpush1.msra.mxu0 0.0
        %2104 = vmatprep.subr.mxu0 0.0
        %2105 = vmatpush1.msra.mxu0 0.0
        %2106 = vmatprep.subr.mxu0 0.0
        %2107 = vmatpush1.msra.mxu0 0.0
        %2108 = vmatprep.subr.mxu0 0.0
        %2109 = vmatpush1.msra.mxu0 0.0
        %2110 = vmatprep.subr.mxu0 0.0
        %2111 = vmatpush1.msra.mxu0 0.0
        %2112 = vmatprep.subr.mxu0 0.0
        %2113 = vmatpush1.msra.mxu0 0.0
        %2114 = vmatprep.subr.mxu0 0.0
        %2115 = vmatpush1.msra.mxu0 0.0
        %2116 = vmatprep.subr.mxu0 0.0
        %2117 = vmatpush1.msra.mxu0 0.0
        %2118 = vmatprep.subr.mxu0 0.0
        %2119 = vmatpush1.msra.mxu0 0.0
        %2120 = vmatprep.subr.mxu0 0.0
        %2121 = vmatpush1.msra.mxu0 0.0
        %2122 = vmatprep.subr.mxu0 0.0
        %2123 = vmatpush1.msra.mxu0 0.0
        %2124 = vmatprep.subr.mxu0 0.0
        %2125 = vmatpush1.msra.mxu0 0.0
        %2126 = vmatprep.subr.mxu0 0.0
        %2127 = vmatpush1.msra.mxu0 0.0
        %2128 = vmatprep.subr.mxu0 0.0
        %2129 = vmatpush1.msra.mxu0 0.0
        %2130 = vmatprep.subr.mxu0 0.0
        %2131 = vmatpush1.msra.mxu0 0.0
        %2132 = vmatprep.subr.mxu0 0.0
        %2133 = vmatpush1.msra.mxu0 0.0
        %2134 = vmatprep.subr.mxu0 0.0
        %2135 = vmatpush1.msra.mxu0 0.0
        %2136 = vmatprep.subr.mxu0 0.0
        %2137 = vmatpush1.msra.mxu0 0.0
        %2138 = vmatprep.subr.mxu0 0.0
        %2139 = vmatpush1.msra.mxu0 0.0
        %2140 = vmatprep.subr.mxu0 0.0
        %2141 = vmatpush1.msra.mxu0 0.0
        %2142 = vmatprep.subr.mxu0 0.0
        %2143 = vmatpush1.msra.mxu0 0.0
        %2144 = vmatprep.subr.mxu0 0.0
        %2145 = vmatpush1.msra.mxu0 0.0
        %2146 = vmatprep.subr.mxu0 0.0
        %2147 = vmatpush1.msra.mxu0 0.0
        %2148 = vmatprep.subr.mxu0 0.0
        %2149 = vmatpush1.msra.mxu0 0.0
        %2150 = vmatprep.subr.mxu0 0.0
        %2151 = vmatpush1.msra.mxu0 0.0
        %2152 = vmatprep.subr.mxu0 0.0
        %2153 = vmatpush1.msra.mxu0 0.0
        %2154 = vmatprep.subr.mxu0 0.0
        %2155 = vmatpush1.msra.mxu0 0.0
        %2156 = vmatprep.subr.mxu0 0.0
        %2157 = vmatpush1.msra.mxu0 0.0
        %2158 = vmatprep.mubr.f32.mxu0 0.0
        %2159 = vmatmul.mubr.f32.gmra.mrb[0].mxu0 %v992
        %v2160 = vpop.f32.mrb[0].mxu0
        %v2161 = vadd.f32 0.0, %v2160
        %v2162 = vpop.f32.mrb[0].mxu0
        %v2163 = vadd.f32 0.0, %v2162
        %2164 = vdwg.mxu0
        %2165 = vmatprep.subr.mxu0 %v463
        %2166 = vmatpush1.msra.mxu0 %v462
        %2167 = vmatprep.subr.mxu0 %v467
        %2168 = vmatpush1.msra.mxu0 %v466
        %2169 = vmatprep.subr.mxu0 %v471
        %2170 = vmatpush1.msra.mxu0 %v470
        %2171 = vmatprep.subr.mxu0 %v491
        %2172 = vmatpush1.msra.mxu0 %v488
        %2173 = vmatprep.subr.mxu0 0.0
        %2174 = vmatpush1.msra.mxu0 0.0
        %2175 = vmatprep.subr.mxu0 0.0
        %2176 = vmatpush1.msra.mxu0 0.0
        %2177 = vmatprep.subr.mxu0 0.0
        %2178 = vmatpush1.msra.mxu0 0.0
        %2179 = vmatprep.subr.mxu0 0.0
        %2180 = vmatpush1.msra.mxu0 0.0
        %2181 = vmatprep.subr.mxu0 0.0
        %2182 = vmatpush1.msra.mxu0 0.0
        %2183 = vmatprep.subr.mxu0 0.0
        %2184 = vmatpush1.msra.mxu0 0.0
        %2185 = vmatprep.subr.mxu0 0.0
        %2186 = vmatpush1.msra.mxu0 0.0
        %2187 = vmatprep.subr.mxu0 0.0
        %2188 = vmatpush1.msra.mxu0 0.0
        %2189 = vmatprep.subr.mxu0 0.0
        %2190 = vmatpush1.msra.mxu0 0.0
        %2191 = vmatprep.subr.mxu0 0.0
        %2192 = vmatpush1.msra.mxu0 0.0
        %2193 = vmatprep.subr.mxu0 0.0
        %2194 = vmatpush1.msra.mxu0 0.0
        %2195 = vmatprep.subr.mxu0 0.0
        %2196 = vmatpush1.msra.mxu0 0.0
        %2197 = vmatprep.subr.mxu0 0.0
        %2198 = vmatpush1.msra.mxu0 0.0
        %2199 = vmatprep.subr.mxu0 0.0
        %2200 = vmatpush1.msra.mxu0 0.0
        %2201 = vmatprep.subr.mxu0 0.0
        %2202 = vmatpush1.msra.mxu0 0.0
        %2203 = vmatprep.subr.mxu0 0.0
        %2204 = vmatpush1.msra.mxu0 0.0
        %2205 = vmatprep.subr.mxu0 0.0
        %2206 = vmatpush1.msra.mxu0 0.0
        %2207 = vmatprep.subr.mxu0 0.0
        %2208 = vmatpush1.msra.mxu0 0.0
        %2209 = vmatprep.subr.mxu0 0.0
        %2210 = vmatpush1.msra.mxu0 0.0
        %2211 = vmatprep.subr.mxu0 0.0
        %2212 = vmatpush1.msra.mxu0 0.0
        %2213 = vmatprep.subr.mxu0 0.0
        %2214 = vmatpush1.msra.mxu0 0.0
        %2215 = vmatprep.subr.mxu0 0.0
        %2216 = vmatpush1.msra.mxu0 0.0
        %2217 = vmatprep.subr.mxu0 0.0
        %2218 = vmatpush1.msra.mxu0 0.0
        %2219 = vmatprep.subr.mxu0 0.0
        %2220 = vmatpush1.msra.mxu0 0.0
        %2221 = vmatprep.subr.mxu0 0.0
        %2222 = vmatpush1.msra.mxu0 0.0
        %2223 = vmatprep.subr.mxu0 0.0
        %2224 = vmatpush1.msra.mxu0 0.0
        %2225 = vmatprep.subr.mxu0 0.0
        %2226 = vmatpush1.msra.mxu0 0.0
        %2227 = vmatprep.subr.mxu0 0.0
        %2228 = vmatpush1.msra.mxu0 0.0
        %2229 = vmatprep.mubr.f32.mxu0 0.0
        %2230 = vmatmul.mubr.f32.gmra.mrb[0].mxu0 %v992
        %v2231 = vpop.f32.mrb[0].mxu0
        %v2232 = vadd.f32 0.0, %v2231
        %v2233 = vpop.f32.mrb[0].mxu0
        %v2234 = vadd.f32 0.0, %v2233
        %2235 = vdwg.mxu0
        %2236 = vmatprep.subr.mxu0 %v442
        %2237 = vmatpush1.msra.mxu0 %v441
        %2238 = vmatprep.subr.mxu0 %v446
        %2239 = vmatpush1.msra.mxu0 %v445
        %2240 = vmatprep.subr.mxu0 %v450
        %2241 = vmatpush1.msra.mxu0 %v449
        %2242 = vmatprep.subr.mxu0 %v642
        %2243 = vmatpush1.msra.mxu0 %v639
        %2244 = vmatprep.subr.mxu0 0.0
        %2245 = vmatpush1.msra.mxu0 0.0
        %2246 = vmatprep.subr.mxu0 0.0
        %2247 = vmatpush1.msra.mxu0 0.0
        %2248 = vmatprep.subr.mxu0 0.0
        %2249 = vmatpush1.msra.mxu0 0.0
        %2250 = vmatprep.subr.mxu0 0.0
        %2251 = vmatpush1.msra.mxu0 0.0
        %2252 = vmatprep.subr.mxu0 0.0
        %2253 = vmatpush1.msra.mxu0 0.0
        %2254 = vmatprep.subr.mxu0 0.0
        %2255 = vmatpush1.msra.mxu0 0.0
        %2256 = vmatprep.subr.mxu0 0.0
        %2257 = vmatpush1.msra.mxu0 0.0
        %2258 = vmatprep.subr.mxu0 0.0
        %2259 = vmatpush1.msra.mxu0 0.0
        %2260 = vmatprep.subr.mxu0 0.0
        %2261 = vmatpush1.msra.mxu0 0.0
        %2262 = vmatprep.subr.mxu0 0.0
        %2263 = vmatpush1.msra.mxu0 0.0
        %2264 = vmatprep.subr.mxu0 0.0
        %2265 = vmatpush1.msra.mxu0 0.0
        %2266 = vmatprep.subr.mxu0 0.0
        %2267 = vmatpush1.msra.mxu0 0.0
        %2268 = vmatprep.subr.mxu0 0.0
        %2269 = vmatpush1.msra.mxu0 0.0
        %2270 = vmatprep.subr.mxu0 0.0
        %2271 = vmatpush1.msra.mxu0 0.0
        %2272 = vmatprep.subr.mxu0 0.0
        %2273 = vmatpush1.msra.mxu0 0.0
        %2274 = vmatprep.subr.mxu0 0.0
        %2275 = vmatpush1.msra.mxu0 0.0
        %2276 = vmatprep.subr.mxu0 0.0
        %2277 = vmatpush1.msra.mxu0 0.0
        %2278 = vmatprep.subr.mxu0 0.0
        %2279 = vmatpush1.msra.mxu0 0.0
        %2280 = vmatprep.subr.mxu0 0.0
        %2281 = vmatpush1.msra.mxu0 0.0
        %2282 = vmatprep.subr.mxu0 0.0
        %2283 = vmatpush1.msra.mxu0 0.0
        %2284 = vmatprep.subr.mxu0 0.0
        %2285 = vmatpush1.msra.mxu0 0.0
        %2286 = vmatprep.subr.mxu0 0.0
        %2287 = vmatpush1.msra.mxu0 0.0
        %2288 = vmatprep.subr.mxu0 0.0
        %2289 = vmatpush1.msra.mxu0 0.0
        %2290 = vmatprep.subr.mxu0 0.0
        %2291 = vmatpush1.msra.mxu0 0.0
        %2292 = vmatprep.subr.mxu0 0.0
        %2293 = vmatpush1.msra.mxu0 0.0
        %2294 = vmatprep.subr.mxu0 0.0
        %2295 = vmatpush1.msra.mxu0 0.0
        %2296 = vmatprep.subr.mxu0 0.0
        %2297 = vmatpush1.msra.mxu0 0.0
        %2298 = vmatprep.subr.mxu0 0.0
        %2299 = vmatpush1.msra.mxu0 0.0
        %2300 = vmatprep.mubr.f32.mxu0 0.0
        %2301 = vmatmul.mubr.f32.gmra.mrb[0].mxu0 %v812
        %v2302 = vpop.f32.mrb[0].mxu0
        %v2303 = vadd.f32 %v2161, %v2302
        %v2304 = vpop.f32.mrb[0].mxu0
        %v2305 = vadd.f32 %v2163, %v2304
        %2306 = vdwg.mxu0
        %2307 = vmatprep.subr.mxu0 %v444
        %2308 = vmatpush1.msra.mxu0 %v443
        %2309 = vmatprep.subr.mxu0 %v448
        %2310 = vmatpush1.msra.mxu0 %v447
        %2311 = vmatprep.subr.mxu0 %v452
        %2312 = vmatpush1.msra.mxu0 %v451
        %2313 = vmatprep.subr.mxu0 %v648
        %2314 = vmatpush1.msra.mxu0 %v645
        %2315 = vmatprep.subr.mxu0 0.0
        %2316 = vmatpush1.msra.mxu0 0.0
        %2317 = vmatprep.subr.mxu0 0.0
        %2318 = vmatpush1.msra.mxu0 0.0
        %2319 = vmatprep.subr.mxu0 0.0
        %2320 = vmatpush1.msra.mxu0 0.0
        %2321 = vmatprep.subr.mxu0 0.0
        %2322 = vmatpush1.msra.mxu0 0.0
        %2323 = vmatprep.subr.mxu0 0.0
        %2324 = vmatpush1.msra.mxu0 0.0
        %2325 = vmatprep.subr.mxu0 0.0
        %2326 = vmatpush1.msra.mxu0 0.0
        %2327 = vmatprep.subr.mxu0 0.0
        %2328 = vmatpush1.msra.mxu0 0.0
        %2329 = vmatprep.subr.mxu0 0.0
        %2330 = vmatpush1.msra.mxu0 0.0
        %2331 = vmatprep.subr.mxu0 0.0
        %2332 = vmatpush1.msra.mxu0 0.0
        %2333 = vmatprep.subr.mxu0 0.0
        %2334 = vmatpush1.msra.mxu0 0.0
        %2335 = vmatprep.subr.mxu0 0.0
        %2336 = vmatpush1.msra.mxu0 0.0
        %2337 = vmatprep.subr.mxu0 0.0
        %2338 = vmatpush1.msra.mxu0 0.0
        %2339 = vmatprep.subr.mxu0 0.0
        %2340 = vmatpush1.msra.mxu0 0.0
        %2341 = vmatprep.subr.mxu0 0.0
        %2342 = vmatpush1.msra.mxu0 0.0
        %2343 = vmatprep.subr.mxu0 0.0
        %2344 = vmatpush1.msra.mxu0 0.0
        %2345 = vmatprep.subr.mxu0 0.0
        %2346 = vmatpush1.msra.mxu0 0.0
        %2347 = vmatprep.subr.mxu0 0.0
        %2348 = vmatpush1.msra.mxu0 0.0
        %2349 = vmatprep.subr.mxu0 0.0
        %2350 = vmatpush1.msra.mxu0 0.0
        %2351 = vmatprep.subr.mxu0 0.0
        %2352 = vmatpush1.msra.mxu0 0.0
        %2353 = vmatprep.subr.mxu0 0.0
        %2354 = vmatpush1.msra.mxu0 0.0
        %2355 = vmatprep.subr.mxu0 0.0
        %2356 = vmatpush1.msra.mxu0 0.0
        %2357 = vmatprep.subr.mxu0 0.0
        %2358 = vmatpush1.msra.mxu0 0.0
        %2359 = vmatprep.subr.mxu0 0.0
        %2360 = vmatpush1.msra.mxu0 0.0
        %2361 = vmatprep.subr.mxu0 0.0
        %2362 = vmatpush1.msra.mxu0 0.0
        %2363 = vmatprep.subr.mxu0 0.0
        %2364 = vmatpush1.msra.mxu0 0.0
        %2365 = vmatprep.subr.mxu0 0.0
        %2366 = vmatpush1.msra.mxu0 0.0
        %2367 = vmatprep.subr.mxu0 0.0
        %2368 = vmatpush1.msra.mxu0 0.0
        %2369 = vmatprep.subr.mxu0 0.0
        %2370 = vmatpush1.msra.mxu0 0.0
        %2371 = vmatprep.mubr.f32.mxu0 0.0
        %2372 = vmatmul.mubr.f32.gmra.mrb[0].mxu0 %v812
        %v2373 = vpop.f32.mrb[0].mxu0
        %v2374 = vadd.f32 %v2232, %v2373
        %v2375 = vpop.f32.mrb[0].mxu0
        %v2376 = vadd.f32 %v2234, %v2375
        %2377 = vdwg.mxu0
        %2378 = vmatprep.subr.mxu0 %v796
        %2379 = vmatpush1.msra.mxu0 %v795
        %2380 = vmatprep.subr.mxu0 %v800
        %2381 = vmatpush1.msra.mxu0 %v799
        %2382 = vmatprep.subr.mxu0 %v804
        %2383 = vmatpush1.msra.mxu0 %v803
        %2384 = vmatprep.subr.mxu0 %v818
        %2385 = vmatpush1.msra.mxu0 %v815
        %2386 = vmatprep.subr.mxu0 0.0
        %2387 = vmatpush1.msra.mxu0 0.0
        %2388 = vmatprep.subr.mxu0 0.0
        %2389 = vmatpush1.msra.mxu0 0.0
        %2390 = vmatprep.subr.mxu0 0.0
        %2391 = vmatpush1.msra.mxu0 0.0
        %2392 = vmatprep.subr.mxu0 0.0
        %2393 = vmatpush1.msra.mxu0 0.0
        %2394 = vmatprep.subr.mxu0 0.0
        %2395 = vmatpush1.msra.mxu0 0.0
        %2396 = vmatprep.subr.mxu0 0.0
        %2397 = vmatpush1.msra.mxu0 0.0
        %2398 = vmatprep.subr.mxu0 0.0
        %2399 = vmatpush1.msra.mxu0 0.0
        %2400 = vmatprep.subr.mxu0 0.0
        %2401 = vmatpush1.msra.mxu0 0.0
        %2402 = vmatprep.subr.mxu0 0.0
        %2403 = vmatpush1.msra.mxu0 0.0
        %2404 = vmatprep.subr.mxu0 0.0
        %2405 = vmatpush1.msra.mxu0 0.0
        %2406 = vmatprep.subr.mxu0 0.0
        %2407 = vmatpush1.msra.mxu0 0.0
        %2408 = vmatprep.subr.mxu0 0.0
        %2409 = vmatpush1.msra.mxu0 0.0
        %2410 = vmatprep.subr.mxu0 0.0
        %2411 = vmatpush1.msra.mxu0 0.0
        %2412 = vmatprep.subr.mxu0 0.0
        %2413 = vmatpush1.msra.mxu0 0.0
        %2414 = vmatprep.subr.mxu0 0.0
        %2415 = vmatpush1.msra.mxu0 0.0
        %2416 = vmatprep.subr.mxu0 0.0
        %2417 = vmatpush1.msra.mxu0 0.0
        %2418 = vmatprep.subr.mxu0 0.0
        %2419 = vmatpush1.msra.mxu0 0.0
        %2420 = vmatprep.subr.mxu0 0.0
        %2421 = vmatpush1.msra.mxu0 0.0
        %2422 = vmatprep.subr.mxu0 0.0
        %2423 = vmatpush1.msra.mxu0 0.0
        %2424 = vmatprep.subr.mxu0 0.0
        %2425 = vmatpush1.msra.mxu0 0.0
        %2426 = vmatprep.subr.mxu0 0.0
        %2427 = vmatpush1.msra.mxu0 0.0
        %2428 = vmatprep.subr.mxu0 0.0
        %2429 = vmatpush1.msra.mxu0 0.0
        %2430 = vmatprep.subr.mxu0 0.0
        %2431 = vmatpush1.msra.mxu0 0.0
        %2432 = vmatprep.subr.mxu0 0.0
        %2433 = vmatpush1.msra.mxu0 0.0
        %2434 = vmatprep.subr.mxu0 0.0
        %2435 = vmatpush1.msra.mxu0 0.0
        %2436 = vmatprep.subr.mxu0 0.0
        %2437 = vmatpush1.msra.mxu0 0.0
        %2438 = vmatprep.subr.mxu0 0.0
        %2439 = vmatpush1.msra.mxu0 0.0
        %2440 = vmatprep.subr.mxu0 0.0
        %2441 = vmatpush1.msra.mxu0 0.0
        %2442 = vmatprep.mubr.f32.mxu0 0.0
        %2443 = vmatmul.mubr.f32.gmra.mrb[0].mxu0 %v1171
        %v2444 = vpop.f32.mrb[0].mxu0
        %v2445 = vadd.f32 0.0, %v2444
        %v2446 = vpop.f32.mrb[0].mxu0
        %v2447 = vadd.f32 0.0, %v2446
        %2448 = vdwg.mxu0
        %2449 = vmatprep.subr.mxu0 %v798
        %2450 = vmatpush1.msra.mxu0 %v797
        %2451 = vmatprep.subr.mxu0 %v802
        %2452 = vmatpush1.msra.mxu0 %v801
        %2453 = vmatprep.subr.mxu0 %v806
        %2454 = vmatpush1.msra.mxu0 %v805
        %2455 = vmatprep.subr.mxu0 %v824
        %2456 = vmatpush1.msra.mxu0 %v821
        %2457 = vmatprep.subr.mxu0 0.0
        %2458 = vmatpush1.msra.mxu0 0.0
        %2459 = vmatprep.subr.mxu0 0.0
        %2460 = vmatpush1.msra.mxu0 0.0
        %2461 = vmatprep.subr.mxu0 0.0
        %2462 = vmatpush1.msra.mxu0 0.0
        %2463 = vmatprep.subr.mxu0 0.0
        %2464 = vmatpush1.msra.mxu0 0.0
        %2465 = vmatprep.subr.mxu0 0.0
        %2466 = vmatpush1.msra.mxu0 0.0
        %2467 = vmatprep.subr.mxu0 0.0
        %2468 = vmatpush1.msra.mxu0 0.0
        %2469 = vmatprep.subr.mxu0 0.0
        %2470 = vmatpush1.msra.mxu0 0.0
        %2471 = vmatprep.subr.mxu0 0.0
        %2472 = vmatpush1.msra.mxu0 0.0
        %2473 = vmatprep.subr.mxu0 0.0
        %2474 = vmatpush1.msra.mxu0 0.0
        %2475 = vmatprep.subr.mxu0 0.0
        %2476 = vmatpush1.msra.mxu0 0.0
        %2477 = vmatprep.subr.mxu0 0.0
        %2478 = vmatpush1.msra.mxu0 0.0
        %2479 = vmatprep.subr.mxu0 0.0
        %2480 = vmatpush1.msra.mxu0 0.0
        %2481 = vmatprep.subr.mxu0 0.0
        %2482 = vmatpush1.msra.mxu0 0.0
        %2483 = vmatprep.subr.mxu0 0.0
        %2484 = vmatpush1.msra.mxu0 0.0
        %2485 = vmatprep.subr.mxu0 0.0
        %2486 = vmatpush1.msra.mxu0 0.0
        %2487 = vmatprep.subr.mxu0 0.0
        %2488 = vmatpush1.msra.mxu0 0.0
        %2489 = vmatprep.subr.mxu0 0.0
        %2490 = vmatpush1.msra.mxu0 0.0
        %2491 = vmatprep.subr.mxu0 0.0
        %2492 = vmatpush1.msra.mxu0 0.0
        %2493 = vmatprep.subr.mxu0 0.0
        %2494 = vmatpush1.msra.mxu0 0.0
        %2495 = vmatprep.subr.mxu0 0.0
        %2496 = vmatpush1.msra.mxu0 0.0
        %2497 = vmatprep.subr.mxu0 0.0
        %2498 = vmatpush1.msra.mxu0 0.0
        %2499 = vmatprep.subr.mxu0 0.0
        %2500 = vmatpush1.msra.mxu0 0.0
        %2501 = vmatprep.subr.mxu0 0.0
        %2502 = vmatpush1.msra.mxu0 0.0
        %2503 = vmatprep.subr.mxu0 0.0
        %2504 = vmatpush1.msra.mxu0 0.0
        %2505 = vmatprep.subr.mxu0 0.0
        %2506 = vmatpush1.msra.mxu0 0.0
        %2507 = vmatprep.subr.mxu0 0.0
        %2508 = vmatpush1.msra.mxu0 0.0
        %2509 = vmatprep.subr.mxu0 0.0
        %2510 = vmatpush1.msra.mxu0 0.0
        %2511 = vmatprep.subr.mxu0 0.0
        %2512 = vmatpush1.msra.mxu0 0.0
        %2513 = vmatprep.mubr.f32.mxu0 0.0
        %2514 = vmatmul.mubr.f32.gmra.mrb[0].mxu0 %v1171
        %v2515 = vpop.f32.mrb[0].mxu0
        %v2516 = vadd.f32 0.0, %v2515
        %v2517 = vpop.f32.mrb[0].mxu0
        %v2518 = vadd.f32 0.0, %v2517
        %2519 = vdwg.mxu0
        %v2520 = vadd.f32 %v2303, %v2445
        %v2521 = vadd.f32 %v2305, %v2447
        %v2522 = vadd.f32 %v2374, %v2516
        %v2523 = vadd.f32 %v2376, %v2518
        %2524 = vmatprep.subr.mxu0 %v976
        %2525 = vmatpush1.msra.mxu0 %v975
        %2526 = vmatprep.subr.mxu0 %v980
        %2527 = vmatpush1.msra.mxu0 %v979
        %2528 = vmatprep.subr.mxu0 %v984
        %2529 = vmatpush1.msra.mxu0 %v983
        %2530 = vmatprep.subr.mxu0 %v998
        %2531 = vmatpush1.msra.mxu0 %v995
        %2532 = vmatprep.subr.mxu0 0.0
        %2533 = vmatpush1.msra.mxu0 0.0
        %2534 = vmatprep.subr.mxu0 0.0
        %2535 = vmatpush1.msra.mxu0 0.0
        %2536 = vmatprep.subr.mxu0 0.0
        %2537 = vmatpush1.msra.mxu0 0.0
        %2538 = vmatprep.subr.mxu0 0.0
        %2539 = vmatpush1.msra.mxu0 0.0
        %2540 = vmatprep.subr.mxu0 0.0
        %2541 = vmatpush1.msra.mxu0 0.0
        %2542 = vmatprep.subr.mxu0 0.0
        %2543 = vmatpush1.msra.mxu0 0.0
        %2544 = vmatprep.subr.mxu0 0.0
        %2545 = vmatpush1.msra.mxu0 0.0
        %2546 = vmatprep.subr.mxu0 0.0
        %2547 = vmatpush1.msra.mxu0 0.0
        %2548 = vmatprep.subr.mxu0 0.0
        %2549 = vmatpush1.msra.mxu0 0.0
        %2550 = vmatprep.subr.mxu0 0.0
        %2551 = vmatpush1.msra.mxu0 0.0
        %2552 = vmatprep.subr.mxu0 0.0
        %2553 = vmatpush1.msra.mxu0 0.0
        %2554 = vmatprep.subr.mxu0 0.0
        %2555 = vmatpush1.msra.mxu0 0.0
        %2556 = vmatprep.subr.mxu0 0.0
        %2557 = vmatpush1.msra.mxu0 0.0
        %2558 = vmatprep.subr.mxu0 0.0
        %2559 = vmatpush1.msra.mxu0 0.0
        %2560 = vmatprep.subr.mxu0 0.0
        %2561 = vmatpush1.msra.mxu0 0.0
        %2562 = vmatprep.subr.mxu0 0.0
        %2563 = vmatpush1.msra.mxu0 0.0
        %2564 = vmatprep.subr.mxu0 0.0
        %2565 = vmatpush1.msra.mxu0 0.0
        %2566 = vmatprep.subr.mxu0 0.0
        %2567 = vmatpush1.msra.mxu0 0.0
        %2568 = vmatprep.subr.mxu0 0.0
        %2569 = vmatpush1.msra.mxu0 0.0
        %2570 = vmatprep.subr.mxu0 0.0
        %2571 = vmatpush1.msra.mxu0 0.0
        %2572 = vmatprep.subr.mxu0 0.0
        %2573 = vmatpush1.msra.mxu0 0.0
        %2574 = vmatprep.subr.mxu0 0.0
        %2575 = vmatpush1.msra.mxu0 0.0
        %2576 = vmatprep.subr.mxu0 0.0
        %2577 = vmatpush1.msra.mxu0 0.0
        %2578 = vmatprep.subr.mxu0 0.0
        %2579 = vmatpush1.msra.mxu0 0.0
        %2580 = vmatprep.subr.mxu0 0.0
        %2581 = vmatpush1.msra.mxu0 0.0
        %2582 = vmatprep.subr.mxu0 0.0
        %2583 = vmatpush1.msra.mxu0 0.0
        %2584 = vmatprep.subr.mxu0 0.0
        %2585 = vmatpush1.msra.mxu0 0.0
        %2586 = vmatprep.subr.mxu0 0.0
        %2587 = vmatpush1.msra.mxu0 0.0
        %2588 = vmatprep.mubr.f32.mxu0 0.0
        %2589 = vmatmul.mubr.f32.gmra.mrb[0].mxu0 %v1938
        %v2590 = vpop.f32.mrb[0].mxu0
        %v2591 = vadd.f32 0.0, %v2590
        %v2592 = vpop.f32.mrb[0].mxu0
        %v2593 = vadd.f32 0.0, %v2592
        %2594 = vdwg.mxu0
        %2595 = vmatprep.subr.mxu0 %v978
        %2596 = vmatpush1.msra.mxu0 %v977
        %2597 = vmatprep.subr.mxu0 %v982
        %2598 = vmatpush1.msra.mxu0 %v981
        %2599 = vmatprep.subr.mxu0 %v986
        %2600 = vmatpush1.msra.mxu0 %v985
        %2601 = vmatprep.subr.mxu0 %v1004
        %2602 = vmatpush1.msra.mxu0 %v1001
        %2603 = vmatprep.subr.mxu0 0.0
        %2604 = vmatpush1.msra.mxu0 0.0
        %2605 = vmatprep.subr.mxu0 0.0
        %2606 = vmatpush1.msra.mxu0 0.0
        %2607 = vmatprep.subr.mxu0 0.0
        %2608 = vmatpush1.msra.mxu0 0.0
        %2609 = vmatprep.subr.mxu0 0.0
        %2610 = vmatpush1.msra.mxu0 0.0
        %2611 = vmatprep.subr.mxu0 0.0
        %2612 = vmatpush1.msra.mxu0 0.0
        %2613 = vmatprep.subr.mxu0 0.0
        %2614 = vmatpush1.msra.mxu0 0.0
        %2615 = vmatprep.subr.mxu0 0.0
        %2616 = vmatpush1.msra.mxu0 0.0
        %2617 = vmatprep.subr.mxu0 0.0
        %2618 = vmatpush1.msra.mxu0 0.0
        %2619 = vmatprep.subr.mxu0 0.0
        %2620 = vmatpush1.msra.mxu0 0.0
        %2621 = vmatprep.subr.mxu0 0.0
        %2622 = vmatpush1.msra.mxu0 0.0
        %2623 = vmatprep.subr.mxu0 0.0
        %2624 = vmatpush1.msra.mxu0 0.0
        %2625 = vmatprep.subr.mxu0 0.0
        %2626 = vmatpush1.msra.mxu0 0.0
        %2627 = vmatprep.subr.mxu0 0.0
        %2628 = vmatpush1.msra.mxu0 0.0
        %2629 = vmatprep.subr.mxu0 0.0
        %2630 = vmatpush1.msra.mxu0 0.0
        %2631 = vmatprep.subr.mxu0 0.0
        %2632 = vmatpush1.msra.mxu0 0.0
        %2633 = vmatprep.subr.mxu0 0.0
        %2634 = vmatpush1.msra.mxu0 0.0
        %2635 = vmatprep.subr.mxu0 0.0
        %2636 = vmatpush1.msra.mxu0 0.0
        %2637 = vmatprep.subr.mxu0 0.0
        %2638 = vmatpush1.msra.mxu0 0.0
        %2639 = vmatprep.subr.mxu0 0.0
        %2640 = vmatpush1.msra.mxu0 0.0
        %2641 = vmatprep.subr.mxu0 0.0
        %2642 = vmatpush1.msra.mxu0 0.0
        %2643 = vmatprep.subr.mxu0 0.0
        %2644 = vmatpush1.msra.mxu0 0.0
        %2645 = vmatprep.subr.mxu0 0.0
        %2646 = vmatpush1.msra.mxu0 0.0
        %2647 = vmatprep.subr.mxu0 0.0
        %2648 = vmatpush1.msra.mxu0 0.0
        %2649 = vmatprep.subr.mxu0 0.0
        %2650 = vmatpush1.msra.mxu0 0.0
        %2651 = vmatprep.subr.mxu0 0.0
        %2652 = vmatpush1.msra.mxu0 0.0
        %2653 = vmatprep.subr.mxu0 0.0
        %2654 = vmatpush1.msra.mxu0 0.0
        %2655 = vmatprep.subr.mxu0 0.0
        %2656 = vmatpush1.msra.mxu0 0.0
        %2657 = vmatprep.subr.mxu0 0.0
        %2658 = vmatpush1.msra.mxu0 0.0
        %2659 = vmatprep.mubr.f32.mxu0 0.0
        %2660 = vmatmul.mubr.f32.gmra.mrb[0].mxu0 %v1938
        %v2661 = vpop.f32.mrb[0].mxu0
        %v2662 = vadd.f32 0.0, %v2661
        %v2663 = vpop.f32.mrb[0].mxu0
        %v2664 = vadd.f32 0.0, %v2663
        %2665 = vdwg.mxu0
        %v2666 = vadd.f32 %v2520, %v2591
        %v2667 = vadd.f32 %v2521, %v2593
        %v2668 = vadd.f32 %v2522, %v2662
        %v2669 = vadd.f32 %v2523, %v2664
        %v2670 = vld [vmem:[%s792 + $0x1] sm:$0x3f]
        %v2672 = vsel %vm476, %v2670, 0
        %2674 = vmatprep.subr.mxu0 %v1155
        %2675 = vmatpush1.msra.mxu0 %v1154
        %2676 = vmatprep.subr.mxu0 %v1159
        %2677 = vmatpush1.msra.mxu0 %v1158
        %2678 = vmatprep.subr.mxu0 %v1163
        %2679 = vmatpush1.msra.mxu0 %v1162
        %2680 = vmatprep.subr.mxu0 %v1177
        %2681 = vmatpush1.msra.mxu0 %v1174
        %2682 = vmatprep.subr.mxu0 0.0
        %2683 = vmatpush1.msra.mxu0 0.0
        %2684 = vmatprep.subr.mxu0 0.0
        %2685 = vmatpush1.msra.mxu0 0.0
        %2686 = vmatprep.subr.mxu0 0.0
        %2687 = vmatpush1.msra.mxu0 0.0
        %2688 = vmatprep.subr.mxu0 0.0
        %2689 = vmatpush1.msra.mxu0 0.0
        %2690 = vmatprep.subr.mxu0 0.0
        %2691 = vmatpush1.msra.mxu0 0.0
        %2692 = vmatprep.subr.mxu0 0.0
        %2693 = vmatpush1.msra.mxu0 0.0
        %2694 = vmatprep.subr.mxu0 0.0
        %2695 = vmatpush1.msra.mxu0 0.0
        %2696 = vmatprep.subr.mxu0 0.0
        %2697 = vmatpush1.msra.mxu0 0.0
        %2698 = vmatprep.subr.mxu0 0.0
        %2699 = vmatpush1.msra.mxu0 0.0
        %2700 = vmatprep.subr.mxu0 0.0
        %2701 = vmatpush1.msra.mxu0 0.0
        %2702 = vmatprep.subr.mxu0 0.0
        %2703 = vmatpush1.msra.mxu0 0.0
        %2704 = vmatprep.subr.mxu0 0.0
        %2705 = vmatpush1.msra.mxu0 0.0
        %2706 = vmatprep.subr.mxu0 0.0
        %2707 = vmatpush1.msra.mxu0 0.0
        %2708 = vmatprep.subr.mxu0 0.0
        %2709 = vmatpush1.msra.mxu0 0.0
        %2710 = vmatprep.subr.mxu0 0.0
        %2711 = vmatpush1.msra.mxu0 0.0
        %2712 = vmatprep.subr.mxu0 0.0
        %2713 = vmatpush1.msra.mxu0 0.0
        %2714 = vmatprep.subr.mxu0 0.0
        %2715 = vmatpush1.msra.mxu0 0.0
        %2716 = vmatprep.subr.mxu0 0.0
        %2717 = vmatpush1.msra.mxu0 0.0
        %2718 = vmatprep.subr.mxu0 0.0
        %2719 = vmatpush1.msra.mxu0 0.0
        %2720 = vmatprep.subr.mxu0 0.0
        %2721 = vmatpush1.msra.mxu0 0.0
        %2722 = vmatprep.subr.mxu0 0.0
        %2723 = vmatpush1.msra.mxu0 0.0
        %2724 = vmatprep.subr.mxu0 0.0
        %2725 = vmatpush1.msra.mxu0 0.0
        %2726 = vmatprep.subr.mxu0 0.0
        %2727 = vmatpush1.msra.mxu0 0.0
        %2728 = vmatprep.subr.mxu0 0.0
        %2729 = vmatpush1.msra.mxu0 0.0
        %2730 = vmatprep.subr.mxu0 0.0
        %2731 = vmatpush1.msra.mxu0 0.0
        %2732 = vmatprep.subr.mxu0 0.0
        %2733 = vmatpush1.msra.mxu0 0.0
        %2734 = vmatprep.subr.mxu0 0.0
        %2735 = vmatpush1.msra.mxu0 0.0
        %2736 = vmatprep.subr.mxu0 0.0
        %2737 = vmatpush1.msra.mxu0 0.0
        %2738 = vmatprep.mubr.f32.mxu0 0.0
        %2739 = vmatmul.mubr.f32.gmra.mrb[0].mxu0 %v2672
        %v2740 = vpop.f32.mrb[0].mxu0
        %v2741 = vadd.f32 0.0, %v2740
        %v2742 = vpop.f32.mrb[0].mxu0
        %v2743 = vadd.f32 0.0, %v2742
        %2744 = vdwg.mxu0
        %2745 = vmatprep.subr.mxu0 %v1157
        %2746 = vmatpush1.msra.mxu0 %v1156
        %2747 = vmatprep.subr.mxu0 %v1161
        %2748 = vmatpush1.msra.mxu0 %v1160
        %2749 = vmatprep.subr.mxu0 %v1165
        %2750 = vmatpush1.msra.mxu0 %v1164
        %2751 = vmatprep.subr.mxu0 %v1183
        %2752 = vmatpush1.msra.mxu0 %v1180
        %2753 = vmatprep.subr.mxu0 0.0
        %2754 = vmatpush1.msra.mxu0 0.0
        %2755 = vmatprep.subr.mxu0 0.0
        %2756 = vmatpush1.msra.mxu0 0.0
        %2757 = vmatprep.subr.mxu0 0.0
        %2758 = vmatpush1.msra.mxu0 0.0
        %2759 = vmatprep.subr.mxu0 0.0
        %2760 = vmatpush1.msra.mxu0 0.0
        %2761 = vmatprep.subr.mxu0 0.0
        %2762 = vmatpush1.msra.mxu0 0.0
        %2763 = vmatprep.subr.mxu0 0.0
        %2764 = vmatpush1.msra.mxu0 0.0
        %2765 = vmatprep.subr.mxu0 0.0
        %2766 = vmatpush1.msra.mxu0 0.0
        %2767 = vmatprep.subr.mxu0 0.0
        %2768 = vmatpush1.msra.mxu0 0.0
        %2769 = vmatprep.subr.mxu0 0.0
        %2770 = vmatpush1.msra.mxu0 0.0
        %2771 = vmatprep.subr.mxu0 0.0
        %2772 = vmatpush1.msra.mxu0 0.0
        %2773 = vmatprep.subr.mxu0 0.0
        %2774 = vmatpush1.msra.mxu0 0.0
        %2775 = vmatprep.subr.mxu0 0.0
        %2776 = vmatpush1.msra.mxu0 0.0
        %2777 = vmatprep.subr.mxu0 0.0
        %2778 = vmatpush1.msra.mxu0 0.0
        %2779 = vmatprep.subr.mxu0 0.0
        %2780 = vmatpush1.msra.mxu0 0.0
        %2781 = vmatprep.subr.mxu0 0.0
        %2782 = vmatpush1.msra.mxu0 0.0
        %2783 = vmatprep.subr.mxu0 0.0
        %2784 = vmatpush1.msra.mxu0 0.0
        %2785 = vmatprep.subr.mxu0 0.0
        %2786 = vmatpush1.msra.mxu0 0.0
        %2787 = vmatprep.subr.mxu0 0.0
        %2788 = vmatpush1.msra.mxu0 0.0
        %2789 = vmatprep.subr.mxu0 0.0
        %2790 = vmatpush1.msra.mxu0 0.0
        %2791 = vmatprep.subr.mxu0 0.0
        %2792 = vmatpush1.msra.mxu0 0.0
        %2793 = vmatprep.subr.mxu0 0.0
        %2794 = vmatpush1.msra.mxu0 0.0
        %2795 = vmatprep.subr.mxu0 0.0
        %2796 = vmatpush1.msra.mxu0 0.0
        %2797 = vmatprep.subr.mxu0 0.0
        %2798 = vmatpush1.msra.mxu0 0.0
        %2799 = vmatprep.subr.mxu0 0.0
        %2800 = vmatpush1.msra.mxu0 0.0
        %2801 = vmatprep.subr.mxu0 0.0
        %2802 = vmatpush1.msra.mxu0 0.0
        %2803 = vmatprep.subr.mxu0 0.0
        %2804 = vmatpush1.msra.mxu0 0.0
        %2805 = vmatprep.subr.mxu0 0.0
        %2806 = vmatpush1.msra.mxu0 0.0
        %2807 = vmatprep.subr.mxu0 0.0
        %2808 = vmatpush1.msra.mxu0 0.0
        %2809 = vmatprep.mubr.f32.mxu0 0.0
        %2810 = vmatmul.mubr.f32.gmra.mrb[0].mxu0 %v2672
        %v2811 = vpop.f32.mrb[0].mxu0
        %v2812 = vadd.f32 0.0, %v2811
        %v2813 = vpop.f32.mrb[0].mxu0
        %v2814 = vadd.f32 0.0, %v2813
        %2815 = vdwg.mxu0
        %v2816 = vadd.f32 %v2666, %v2741
        %v2817 = vadd.f32 %v2667, %v2743
        %v2818 = vadd.f32 %v2668, %v2812
        %v2819 = vadd.f32 %v2669, %v2814
        %v2820 = vadd.f32 %v2816, %v1335
        %v2821 = vadd.f32 %v2817, %v1339
        %v2822 = vadd.f32 %v2818, %v1343
        %v2823 = vadd.f32 %v2819, %v1347
        %v2824 = vmax.f32 %v2820, 0.0
        %v2825 = vmax.f32 %v2821, 0.0
        %v2826 = vmax.f32 %v2822, 0.0
        %v2827 = vmax.f32 %v2823, 0.0
        %2828 = vmatprep.subr.mxu0 %v461
        %2829 = vmatpush1.msra.mxu0 %v460
        %2830 = vmatprep.subr.mxu0 %v465
        %2831 = vmatpush1.msra.mxu0 %v464
        %2832 = vmatprep.subr.mxu0 %v469
        %2833 = vmatpush1.msra.mxu0 %v468
        %2834 = vmatprep.subr.mxu0 %v485
        %2835 = vmatpush1.msra.mxu0 %v482
        %2836 = vmatprep.subr.mxu0 0.0
        %2837 = vmatpush1.msra.mxu0 0.0
        %2838 = vmatprep.subr.mxu0 0.0
        %2839 = vmatpush1.msra.mxu0 0.0
        %2840 = vmatprep.subr.mxu0 0.0
        %2841 = vmatpush1.msra.mxu0 0.0
        %2842 = vmatprep.subr.mxu0 0.0
        %2843 = vmatpush1.msra.mxu0 0.0
        %2844 = vmatprep.subr.mxu0 0.0
        %2845 = vmatpush1.msra.mxu0 0.0
        %2846 = vmatprep.subr.mxu0 0.0
        %2847 = vmatpush1.msra.mxu0 0.0
        %2848 = vmatprep.subr.mxu0 0.0
        %2849 = vmatpush1.msra.mxu0 0.0
        %2850 = vmatprep.subr.mxu0 0.0
        %2851 = vmatpush1.msra.mxu0 0.0
        %2852 = vmatprep.subr.mxu0 0.0
        %2853 = vmatpush1.msra.mxu0 0.0
        %2854 = vmatprep.subr.mxu0 0.0
        %2855 = vmatpush1.msra.mxu0 0.0
        %2856 = vmatprep.subr.mxu0 0.0
        %2857 = vmatpush1.msra.mxu0 0.0
        %2858 = vmatprep.subr.mxu0 0.0
        %2859 = vmatpush1.msra.mxu0 0.0
        %2860 = vmatprep.subr.mxu0 0.0
        %2861 = vmatpush1.msra.mxu0 0.0
        %2862 = vmatprep.subr.mxu0 0.0
        %2863 = vmatpush1.msra.mxu0 0.0
        %2864 = vmatprep.subr.mxu0 0.0
        %2865 = vmatpush1.msra.mxu0 0.0
        %2866 = vmatprep.subr.mxu0 0.0
        %2867 = vmatpush1.msra.mxu0 0.0
        %2868 = vmatprep.subr.mxu0 0.0
        %2869 = vmatpush1.msra.mxu0 0.0
        %2870 = vmatprep.subr.mxu0 0.0
        %2871 = vmatpush1.msra.mxu0 0.0
        %2872 = vmatprep.subr.mxu0 0.0
        %2873 = vmatpush1.msra.mxu0 0.0
        %2874 = vmatprep.subr.mxu0 0.0
        %2875 = vmatpush1.msra.mxu0 0.0
        %2876 = vmatprep.subr.mxu0 0.0
        %2877 = vmatpush1.msra.mxu0 0.0
        %2878 = vmatprep.subr.mxu0 0.0
        %2879 = vmatpush1.msra.mxu0 0.0
        %2880 = vmatprep.subr.mxu0 0.0
        %2881 = vmatpush1.msra.mxu0 0.0
        %2882 = vmatprep.subr.mxu0 0.0
        %2883 = vmatpush1.msra.mxu0 0.0
        %2884 = vmatprep.subr.mxu0 0.0
        %2885 = vmatpush1.msra.mxu0 0.0
        %2886 = vmatprep.subr.mxu0 0.0
        %2887 = vmatpush1.msra.mxu0 0.0
        %2888 = vmatprep.subr.mxu0 0.0
        %2889 = vmatpush1.msra.mxu0 0.0
        %2890 = vmatprep.subr.mxu0 0.0
        %2891 = vmatpush1.msra.mxu0 0.0
        %2892 = vmatprep.mubr.f32.mxu0 0.0
        %2893 = vmatmul.mubr.f32.gmra.mrb[0].mxu0 %v1171
        %v2894 = vpop.f32.mrb[0].mxu0
        %v2895 = vadd.f32 0.0, %v2894
        %v2896 = vpop.f32.mrb[0].mxu0
        %v2897 = vadd.f32 0.0, %v2896
        %2898 = vdwg.mxu0
        %2899 = vmatprep.subr.mxu0 %v463
        %2900 = vmatpush1.msra.mxu0 %v462
        %2901 = vmatprep.subr.mxu0 %v467
        %2902 = vmatpush1.msra.mxu0 %v466
        %2903 = vmatprep.subr.mxu0 %v471
        %2904 = vmatpush1.msra.mxu0 %v470
        %2905 = vmatprep.subr.mxu0 %v491
        %2906 = vmatpush1.msra.mxu0 %v488
        %2907 = vmatprep.subr.mxu0 0.0
        %2908 = vmatpush1.msra.mxu0 0.0
        %2909 = vmatprep.subr.mxu0 0.0
        %2910 = vmatpush1.msra.mxu0 0.0
        %2911 = vmatprep.subr.mxu0 0.0
        %2912 = vmatpush1.msra.mxu0 0.0
        %2913 = vmatprep.subr.mxu0 0.0
        %2914 = vmatpush1.msra.mxu0 0.0
        %2915 = vmatprep.subr.mxu0 0.0
        %2916 = vmatpush1.msra.mxu0 0.0
        %2917 = vmatprep.subr.mxu0 0.0
        %2918 = vmatpush1.msra.mxu0 0.0
        %2919 = vmatprep.subr.mxu0 0.0
        %2920 = vmatpush1.msra.mxu0 0.0
        %2921 = vmatprep.subr.mxu0 0.0
        %2922 = vmatpush1.msra.mxu0 0.0
        %2923 = vmatprep.subr.mxu0 0.0
        %2924 = vmatpush1.msra.mxu0 0.0
        %2925 = vmatprep.subr.mxu0 0.0
        %2926 = vmatpush1.msra.mxu0 0.0
        %2927 = vmatprep.subr.mxu0 0.0
        %2928 = vmatpush1.msra.mxu0 0.0
        %2929 = vmatprep.subr.mxu0 0.0
        %2930 = vmatpush1.msra.mxu0 0.0
        %2931 = vmatprep.subr.mxu0 0.0
        %2932 = vmatpush1.msra.mxu0 0.0
        %2933 = vmatprep.subr.mxu0 0.0
        %2934 = vmatpush1.msra.mxu0 0.0
        %2935 = vmatprep.subr.mxu0 0.0
        %2936 = vmatpush1.msra.mxu0 0.0
        %2937 = vmatprep.subr.mxu0 0.0
        %2938 = vmatpush1.msra.mxu0 0.0
        %2939 = vmatprep.subr.mxu0 0.0
        %2940 = vmatpush1.msra.mxu0 0.0
        %2941 = vmatprep.subr.mxu0 0.0
        %2942 = vmatpush1.msra.mxu0 0.0
        %2943 = vmatprep.subr.mxu0 0.0
        %2944 = vmatpush1.msra.mxu0 0.0
        %2945 = vmatprep.subr.mxu0 0.0
        %2946 = vmatpush1.msra.mxu0 0.0
        %2947 = vmatprep.subr.mxu0 0.0
        %2948 = vmatpush1.msra.mxu0 0.0
        %2949 = vmatprep.subr.mxu0 0.0
        %2950 = vmatpush1.msra.mxu0 0.0
        %2951 = vmatprep.subr.mxu0 0.0
        %2952 = vmatpush1.msra.mxu0 0.0
        %2953 = vmatprep.subr.mxu0 0.0
        %2954 = vmatpush1.msra.mxu0 0.0
        %2955 = vmatprep.subr.mxu0 0.0
        %2956 = vmatpush1.msra.mxu0 0.0
        %2957 = vmatprep.subr.mxu0 0.0
        %2958 = vmatpush1.msra.mxu0 0.0
        %2959 = vmatprep.subr.mxu0 0.0
        %2960 = vmatpush1.msra.mxu0 0.0
        %2961 = vmatprep.subr.mxu0 0.0
        %2962 = vmatpush1.msra.mxu0 0.0
        %2963 = vmatprep.mubr.f32.mxu0 0.0
        %2964 = vmatmul.mubr.f32.gmra.mrb[0].mxu0 %v1171
        %v2965 = vpop.f32.mrb[0].mxu0
        %v2966 = vadd.f32 0.0, %v2965
        %v2967 = vpop.f32.mrb[0].mxu0
        %v2968 = vadd.f32 0.0, %v2967
        %2969 = vdwg.mxu0
        %2970 = vmatprep.subr.mxu0 %v442
        %2971 = vmatpush1.msra.mxu0 %v441
        %2972 = vmatprep.subr.mxu0 %v446
        %2973 = vmatpush1.msra.mxu0 %v445
        %2974 = vmatprep.subr.mxu0 %v450
        %2975 = vmatpush1.msra.mxu0 %v449
        %2976 = vmatprep.subr.mxu0 %v642
        %2977 = vmatpush1.msra.mxu0 %v639
        %2978 = vmatprep.subr.mxu0 0.0
        %2979 = vmatpush1.msra.mxu0 0.0
        %2980 = vmatprep.subr.mxu0 0.0
        %2981 = vmatpush1.msra.mxu0 0.0
        %2982 = vmatprep.subr.mxu0 0.0
        %2983 = vmatpush1.msra.mxu0 0.0
        %2984 = vmatprep.subr.mxu0 0.0
        %2985 = vmatpush1.msra.mxu0 0.0
        %2986 = vmatprep.subr.mxu0 0.0
        %2987 = vmatpush1.msra.mxu0 0.0
        %2988 = vmatprep.subr.mxu0 0.0
        %2989 = vmatpush1.msra.mxu0 0.0
        %2990 = vmatprep.subr.mxu0 0.0
        %2991 = vmatpush1.msra.mxu0 0.0
        %2992 = vmatprep.subr.mxu0 0.0
        %2993 = vmatpush1.msra.mxu0 0.0
        %2994 = vmatprep.subr.mxu0 0.0
        %2995 = vmatpush1.msra.mxu0 0.0
        %2996 = vmatprep.subr.mxu0 0.0
        %2997 = vmatpush1.msra.mxu0 0.0
        %2998 = vmatprep.subr.mxu0 0.0
        %2999 = vmatpush1.msra.mxu0 0.0
        %3000 = vmatprep.subr.mxu0 0.0
        %3001 = vmatpush1.msra.mxu0 0.0
        %3002 = vmatprep.subr.mxu0 0.0
        %3003 = vmatpush1.msra.mxu0 0.0
        %3004 = vmatprep.subr.mxu0 0.0
        %3005 = vmatpush1.msra.mxu0 0.0
        %3006 = vmatprep.subr.mxu0 0.0
        %3007 = vmatpush1.msra.mxu0 0.0
        %3008 = vmatprep.subr.mxu0 0.0
        %3009 = vmatpush1.msra.mxu0 0.0
        %3010 = vmatprep.subr.mxu0 0.0
        %3011 = vmatpush1.msra.mxu0 0.0
        %3012 = vmatprep.subr.mxu0 0.0
        %3013 = vmatpush1.msra.mxu0 0.0
        %3014 = vmatprep.subr.mxu0 0.0
        %3015 = vmatpush1.msra.mxu0 0.0
        %3016 = vmatprep.subr.mxu0 0.0
        %3017 = vmatpush1.msra.mxu0 0.0
        %3018 = vmatprep.subr.mxu0 0.0
        %3019 = vmatpush1.msra.mxu0 0.0
        %3020 = vmatprep.subr.mxu0 0.0
        %3021 = vmatpush1.msra.mxu0 0.0
        %3022 = vmatprep.subr.mxu0 0.0
        %3023 = vmatpush1.msra.mxu0 0.0
        %3024 = vmatprep.subr.mxu0 0.0
        %3025 = vmatpush1.msra.mxu0 0.0
        %3026 = vmatprep.subr.mxu0 0.0
        %3027 = vmatpush1.msra.mxu0 0.0
        %3028 = vmatprep.subr.mxu0 0.0
        %3029 = vmatpush1.msra.mxu0 0.0
        %3030 = vmatprep.subr.mxu0 0.0
        %3031 = vmatpush1.msra.mxu0 0.0
        %3032 = vmatprep.subr.mxu0 0.0
        %3033 = vmatpush1.msra.mxu0 0.0
        %3034 = vmatprep.mubr.f32.mxu0 0.0
        %3035 = vmatmul.mubr.f32.gmra.mrb[0].mxu0 %v992
        %v3036 = vpop.f32.mrb[0].mxu0
        %v3037 = vadd.f32 %v2895, %v3036
        %v3038 = vpop.f32.mrb[0].mxu0
        %v3039 = vadd.f32 %v2897, %v3038
        %3040 = vdwg.mxu0
        %3041 = vmatprep.subr.mxu0 %v444
        %3042 = vmatpush1.msra.mxu0 %v443
        %3043 = vmatprep.subr.mxu0 %v448
        %3044 = vmatpush1.msra.mxu0 %v447
        %3045 = vmatprep.subr.mxu0 %v452
        %3046 = vmatpush1.msra.mxu0 %v451
        %3047 = vmatprep.subr.mxu0 %v648
        %3048 = vmatpush1.msra.mxu0 %v645
        %3049 = vmatprep.subr.mxu0 0.0
        %3050 = vmatpush1.msra.mxu0 0.0
        %3051 = vmatprep.subr.mxu0 0.0
        %3052 = vmatpush1.msra.mxu0 0.0
        %3053 = vmatprep.subr.mxu0 0.0
        %3054 = vmatpush1.msra.mxu0 0.0
        %3055 = vmatprep.subr.mxu0 0.0
        %3056 = vmatpush1.msra.mxu0 0.0
        %3057 = vmatprep.subr.mxu0 0.0
        %3058 = vmatpush1.msra.mxu0 0.0
        %3059 = vmatprep.subr.mxu0 0.0
        %3060 = vmatpush1.msra.mxu0 0.0
        %3061 = vmatprep.subr.mxu0 0.0
        %3062 = vmatpush1.msra.mxu0 0.0
        %3063 = vmatprep.subr.mxu0 0.0
        %3064 = vmatpush1.msra.mxu0 0.0
        %3065 = vmatprep.subr.mxu0 0.0
        %3066 = vmatpush1.msra.mxu0 0.0
        %3067 = vmatprep.subr.mxu0 0.0
        %3068 = vmatpush1.msra.mxu0 0.0
        %3069 = vmatprep.subr.mxu0 0.0
        %3070 = vmatpush1.msra.mxu0 0.0
        %3071 = vmatprep.subr.mxu0 0.0
        %3072 = vmatpush1.msra.mxu0 0.0
        %3073 = vmatprep.subr.mxu0 0.0
        %3074 = vmatpush1.msra.mxu0 0.0
        %3075 = vmatprep.subr.mxu0 0.0
        %3076 = vmatpush1.msra.mxu0 0.0
        %3077 = vmatprep.subr.mxu0 0.0
        %3078 = vmatpush1.msra.mxu0 0.0
        %3079 = vmatprep.subr.mxu0 0.0
        %3080 = vmatpush1.msra.mxu0 0.0
        %3081 = vmatprep.subr.mxu0 0.0
        %3082 = vmatpush1.msra.mxu0 0.0
        %3083 = vmatprep.subr.mxu0 0.0
        %3084 = vmatpush1.msra.mxu0 0.0
        %3085 = vmatprep.subr.mxu0 0.0
        %3086 = vmatpush1.msra.mxu0 0.0
        %3087 = vmatprep.subr.mxu0 0.0
        %3088 = vmatpush1.msra.mxu0 0.0
        %3089 = vmatprep.subr.mxu0 0.0
        %3090 = vmatpush1.msra.mxu0 0.0
        %3091 = vmatprep.subr.mxu0 0.0
        %3092 = vmatpush1.msra.mxu0 0.0
        %3093 = vmatprep.subr.mxu0 0.0
        %3094 = vmatpush1.msra.mxu0 0.0
        %3095 = vmatprep.subr.mxu0 0.0
        %3096 = vmatpush1.msra.mxu0 0.0
        %3097 = vmatprep.subr.mxu0 0.0
        %3098 = vmatpush1.msra.mxu0 0.0
        %3099 = vmatprep.subr.mxu0 0.0
        %3100 = vmatpush1.msra.mxu0 0.0
        %3101 = vmatprep.subr.mxu0 0.0
        %3102 = vmatpush1.msra.mxu0 0.0
        %3103 = vmatprep.subr.mxu0 0.0
        %3104 = vmatpush1.msra.mxu0 0.0
        %3105 = vmatprep.mubr.f32.mxu0 0.0
        %3106 = vmatmul.mubr.f32.gmra.mrb[0].mxu0 %v992
        %v3107 = vpop.f32.mrb[0].mxu0
        %v3108 = vadd.f32 %v2966, %v3107
        %v3109 = vpop.f32.mrb[0].mxu0
        %v3110 = vadd.f32 %v2968, %v3109
        %3111 = vdwg.mxu0
        %3112 = vmatprep.subr.mxu0 %v796
        %3113 = vmatpush1.msra.mxu0 %v795
        %3114 = vmatprep.subr.mxu0 %v800
        %3115 = vmatpush1.msra.mxu0 %v799
        %3116 = vmatprep.subr.mxu0 %v804
        %3117 = vmatpush1.msra.mxu0 %v803
        %3118 = vmatprep.subr.mxu0 %v818
        %3119 = vmatpush1.msra.mxu0 %v815
        %3120 = vmatprep.subr.mxu0 0.0
        %3121 = vmatpush1.msra.mxu0 0.0
        %3122 = vmatprep.subr.mxu0 0.0
        %3123 = vmatpush1.msra.mxu0 0.0
        %3124 = vmatprep.subr.mxu0 0.0
        %3125 = vmatpush1.msra.mxu0 0.0
        %3126 = vmatprep.subr.mxu0 0.0
        %3127 = vmatpush1.msra.mxu0 0.0
        %3128 = vmatprep.subr.mxu0 0.0
        %3129 = vmatpush1.msra.mxu0 0.0
        %3130 = vmatprep.subr.mxu0 0.0
        %3131 = vmatpush1.msra.mxu0 0.0
        %3132 = vmatprep.subr.mxu0 0.0
        %3133 = vmatpush1.msra.mxu0 0.0
        %3134 = vmatprep.subr.mxu0 0.0
        %3135 = vmatpush1.msra.mxu0 0.0
        %3136 = vmatprep.subr.mxu0 0.0
        %3137 = vmatpush1.msra.mxu0 0.0
        %3138 = vmatprep.subr.mxu0 0.0
        %3139 = vmatpush1.msra.mxu0 0.0
        %3140 = vmatprep.subr.mxu0 0.0
        %3141 = vmatpush1.msra.mxu0 0.0
        %3142 = vmatprep.subr.mxu0 0.0
        %3143 = vmatpush1.msra.mxu0 0.0
        %3144 = vmatprep.subr.mxu0 0.0
        %3145 = vmatpush1.msra.mxu0 0.0
        %3146 = vmatprep.subr.mxu0 0.0
        %3147 = vmatpush1.msra.mxu0 0.0
        %3148 = vmatprep.subr.mxu0 0.0
        %3149 = vmatpush1.msra.mxu0 0.0
        %3150 = vmatprep.subr.mxu0 0.0
        %3151 = vmatpush1.msra.mxu0 0.0
        %3152 = vmatprep.subr.mxu0 0.0
        %3153 = vmatpush1.msra.mxu0 0.0
        %3154 = vmatprep.subr.mxu0 0.0
        %3155 = vmatpush1.msra.mxu0 0.0
        %3156 = vmatprep.subr.mxu0 0.0
        %3157 = vmatpush1.msra.mxu0 0.0
        %3158 = vmatprep.subr.mxu0 0.0
        %3159 = vmatpush1.msra.mxu0 0.0
        %3160 = vmatprep.subr.mxu0 0.0
        %3161 = vmatpush1.msra.mxu0 0.0
        %3162 = vmatprep.subr.mxu0 0.0
        %3163 = vmatpush1.msra.mxu0 0.0
        %3164 = vmatprep.subr.mxu0 0.0
        %3165 = vmatpush1.msra.mxu0 0.0
        %3166 = vmatprep.subr.mxu0 0.0
        %3167 = vmatpush1.msra.mxu0 0.0
        %3168 = vmatprep.subr.mxu0 0.0
        %3169 = vmatpush1.msra.mxu0 0.0
        %3170 = vmatprep.subr.mxu0 0.0
        %3171 = vmatpush1.msra.mxu0 0.0
        %3172 = vmatprep.subr.mxu0 0.0
        %3173 = vmatpush1.msra.mxu0 0.0
        %3174 = vmatprep.subr.mxu0 0.0
        %3175 = vmatpush1.msra.mxu0 0.0
        %3176 = vmatprep.mubr.f32.mxu0 0.0
        %3177 = vmatmul.mubr.f32.gmra.mrb[0].mxu0 %v1938
        %v3178 = vpop.f32.mrb[0].mxu0
        %v3179 = vadd.f32 0.0, %v3178
        %v3180 = vpop.f32.mrb[0].mxu0
        %v3181 = vadd.f32 0.0, %v3180
        %3182 = vdwg.mxu0
        %3183 = vmatprep.subr.mxu0 %v798
        %3184 = vmatpush1.msra.mxu0 %v797
        %3185 = vmatprep.subr.mxu0 %v802
        %3186 = vmatpush1.msra.mxu0 %v801
        %3187 = vmatprep.subr.mxu0 %v806
        %3188 = vmatpush1.msra.mxu0 %v805
        %3189 = vmatprep.subr.mxu0 %v824
        %3190 = vmatpush1.msra.mxu0 %v821
        %3191 = vmatprep.subr.mxu0 0.0
        %3192 = vmatpush1.msra.mxu0 0.0
        %3193 = vmatprep.subr.mxu0 0.0
        %3194 = vmatpush1.msra.mxu0 0.0
        %3195 = vmatprep.subr.mxu0 0.0
        %3196 = vmatpush1.msra.mxu0 0.0
        %3197 = vmatprep.subr.mxu0 0.0
        %3198 = vmatpush1.msra.mxu0 0.0
        %3199 = vmatprep.subr.mxu0 0.0
        %3200 = vmatpush1.msra.mxu0 0.0
        %3201 = vmatprep.subr.mxu0 0.0
        %3202 = vmatpush1.msra.mxu0 0.0
        %3203 = vmatprep.subr.mxu0 0.0
        %3204 = vmatpush1.msra.mxu0 0.0
        %3205 = vmatprep.subr.mxu0 0.0
        %3206 = vmatpush1.msra.mxu0 0.0
        %3207 = vmatprep.subr.mxu0 0.0
        %3208 = vmatpush1.msra.mxu0 0.0
        %3209 = vmatprep.subr.mxu0 0.0
        %3210 = vmatpush1.msra.mxu0 0.0
        %3211 = vmatprep.subr.mxu0 0.0
        %3212 = vmatpush1.msra.mxu0 0.0
        %3213 = vmatprep.subr.mxu0 0.0
        %3214 = vmatpush1.msra.mxu0 0.0
        %3215 = vmatprep.subr.mxu0 0.0
        %3216 = vmatpush1.msra.mxu0 0.0
        %3217 = vmatprep.subr.mxu0 0.0
        %3218 = vmatpush1.msra.mxu0 0.0
        %3219 = vmatprep.subr.mxu0 0.0
        %3220 = vmatpush1.msra.mxu0 0.0
        %3221 = vmatprep.subr.mxu0 0.0
        %3222 = vmatpush1.msra.mxu0 0.0
        %3223 = vmatprep.subr.mxu0 0.0
        %3224 = vmatpush1.msra.mxu0 0.0
        %3225 = vmatprep.subr.mxu0 0.0
        %3226 = vmatpush1.msra.mxu0 0.0
        %3227 = vmatprep.subr.mxu0 0.0
        %3228 = vmatpush1.msra.mxu0 0.0
        %3229 = vmatprep.subr.mxu0 0.0
        %3230 = vmatpush1.msra.mxu0 0.0
        %3231 = vmatprep.subr.mxu0 0.0
        %3232 = vmatpush1.msra.mxu0 0.0
        %3233 = vmatprep.subr.mxu0 0.0
        %3234 = vmatpush1.msra.mxu0 0.0
        %3235 = vmatprep.subr.mxu0 0.0
        %3236 = vmatpush1.msra.mxu0 0.0
        %3237 = vmatprep.subr.mxu0 0.0
        %3238 = vmatpush1.msra.mxu0 0.0
        %3239 = vmatprep.subr.mxu0 0.0
        %3240 = vmatpush1.msra.mxu0 0.0
        %3241 = vmatprep.subr.mxu0 0.0
        %3242 = vmatpush1.msra.mxu0 0.0
        %3243 = vmatprep.subr.mxu0 0.0
        %3244 = vmatpush1.msra.mxu0 0.0
        %3245 = vmatprep.subr.mxu0 0.0
        %3246 = vmatpush1.msra.mxu0 0.0
        %3247 = vmatprep.mubr.f32.mxu0 0.0
        %3248 = vmatmul.mubr.f32.gmra.mrb[0].mxu0 %v1938
        %v3249 = vpop.f32.mrb[0].mxu0
        %v3250 = vadd.f32 0.0, %v3249
        %v3251 = vpop.f32.mrb[0].mxu0
        %v3252 = vadd.f32 0.0, %v3251
        %3253 = vdwg.mxu0
        %v3254 = vadd.f32 %v3037, %v3179
        %v3255 = vadd.f32 %v3039, %v3181
        %v3256 = vadd.f32 %v3108, %v3250
        %v3257 = vadd.f32 %v3110, %v3252
        %3258 = vmatprep.subr.mxu0 %v976
        %3259 = vmatpush1.msra.mxu0 %v975
        %3260 = vmatprep.subr.mxu0 %v980
        %3261 = vmatpush1.msra.mxu0 %v979
        %3262 = vmatprep.subr.mxu0 %v984
        %3263 = vmatpush1.msra.mxu0 %v983
        %3264 = vmatprep.subr.mxu0 %v998
        %3265 = vmatpush1.msra.mxu0 %v995
        %3266 = vmatprep.subr.mxu0 0.0
        %3267 = vmatpush1.msra.mxu0 0.0
        %3268 = vmatprep.subr.mxu0 0.0
        %3269 = vmatpush1.msra.mxu0 0.0
        %3270 = vmatprep.subr.mxu0 0.0
        %3271 = vmatpush1.msra.mxu0 0.0
        %3272 = vmatprep.subr.mxu0 0.0
        %3273 = vmatpush1.msra.mxu0 0.0
        %3274 = vmatprep.subr.mxu0 0.0
        %3275 = vmatpush1.msra.mxu0 0.0
        %3276 = vmatprep.subr.mxu0 0.0
        %3277 = vmatpush1.msra.mxu0 0.0
        %3278 = vmatprep.subr.mxu0 0.0
        %3279 = vmatpush1.msra.mxu0 0.0
        %3280 = vmatprep.subr.mxu0 0.0
        %3281 = vmatpush1.msra.mxu0 0.0
        %3282 = vmatprep.subr.mxu0 0.0
        %3283 = vmatpush1.msra.mxu0 0.0
        %3284 = vmatprep.subr.mxu0 0.0
        %3285 = vmatpush1.msra.mxu0 0.0
        %3286 = vmatprep.subr.mxu0 0.0
        %3287 = vmatpush1.msra.mxu0 0.0
        %3288 = vmatprep.subr.mxu0 0.0
        %3289 = vmatpush1.msra.mxu0 0.0
        %3290 = vmatprep.subr.mxu0 0.0
        %3291 = vmatpush1.msra.mxu0 0.0
        %3292 = vmatprep.subr.mxu0 0.0
        %3293 = vmatpush1.msra.mxu0 0.0
        %3294 = vmatprep.subr.mxu0 0.0
        %3295 = vmatpush1.msra.mxu0 0.0
        %3296 = vmatprep.subr.mxu0 0.0
        %3297 = vmatpush1.msra.mxu0 0.0
        %3298 = vmatprep.subr.mxu0 0.0
        %3299 = vmatpush1.msra.mxu0 0.0
        %3300 = vmatprep.subr.mxu0 0.0
        %3301 = vmatpush1.msra.mxu0 0.0
        %3302 = vmatprep.subr.mxu0 0.0
        %3303 = vmatpush1.msra.mxu0 0.0
        %3304 = vmatprep.subr.mxu0 0.0
        %3305 = vmatpush1.msra.mxu0 0.0
        %3306 = vmatprep.subr.mxu0 0.0
        %3307 = vmatpush1.msra.mxu0 0.0
        %3308 = vmatprep.subr.mxu0 0.0
        %3309 = vmatpush1.msra.mxu0 0.0
        %3310 = vmatprep.subr.mxu0 0.0
        %3311 = vmatpush1.msra.mxu0 0.0
        %3312 = vmatprep.subr.mxu0 0.0
        %3313 = vmatpush1.msra.mxu0 0.0
        %3314 = vmatprep.subr.mxu0 0.0
        %3315 = vmatpush1.msra.mxu0 0.0
        %3316 = vmatprep.subr.mxu0 0.0
        %3317 = vmatpush1.msra.mxu0 0.0
        %3318 = vmatprep.subr.mxu0 0.0
        %3319 = vmatpush1.msra.mxu0 0.0
        %3320 = vmatprep.subr.mxu0 0.0
        %3321 = vmatpush1.msra.mxu0 0.0
        %3322 = vmatprep.mubr.f32.mxu0 0.0
        %3323 = vmatmul.mubr.f32.gmra.mrb[0].mxu0 %v2672
        %v3324 = vpop.f32.mrb[0].mxu0
        %v3325 = vadd.f32 0.0, %v3324
        %v3326 = vpop.f32.mrb[0].mxu0
        %v3327 = vadd.f32 0.0, %v3326
        %3328 = vdwg.mxu0
        %3329 = vmatprep.subr.mxu0 %v978
        %3330 = vmatpush1.msra.mxu0 %v977
        %3331 = vmatprep.subr.mxu0 %v982
        %3332 = vmatpush1.msra.mxu0 %v981
        %3333 = vmatprep.subr.mxu0 %v986
        %3334 = vmatpush1.msra.mxu0 %v985
        %3335 = vmatprep.subr.mxu0 %v1004
        %3336 = vmatpush1.msra.mxu0 %v1001
        %3337 = vmatprep.subr.mxu0 0.0
        %3338 = vmatpush1.msra.mxu0 0.0
        %3339 = vmatprep.subr.mxu0 0.0
        %3340 = vmatpush1.msra.mxu0 0.0
        %3341 = vmatprep.subr.mxu0 0.0
        %3342 = vmatpush1.msra.mxu0 0.0
        %3343 = vmatprep.subr.mxu0 0.0
        %3344 = vmatpush1.msra.mxu0 0.0
        %3345 = vmatprep.subr.mxu0 0.0
        %3346 = vmatpush1.msra.mxu0 0.0
        %3347 = vmatprep.subr.mxu0 0.0
        %3348 = vmatpush1.msra.mxu0 0.0
        %3349 = vmatprep.subr.mxu0 0.0
        %3350 = vmatpush1.msra.mxu0 0.0
        %3351 = vmatprep.subr.mxu0 0.0
        %3352 = vmatpush1.msra.mxu0 0.0
        %3353 = vmatprep.subr.mxu0 0.0
        %3354 = vmatpush1.msra.mxu0 0.0
        %3355 = vmatprep.subr.mxu0 0.0
        %3356 = vmatpush1.msra.mxu0 0.0
        %3357 = vmatprep.subr.mxu0 0.0
        %3358 = vmatpush1.msra.mxu0 0.0
        %3359 = vmatprep.subr.mxu0 0.0
        %3360 = vmatpush1.msra.mxu0 0.0
        %3361 = vmatprep.subr.mxu0 0.0
        %3362 = vmatpush1.msra.mxu0 0.0
        %3363 = vmatprep.subr.mxu0 0.0
        %3364 = vmatpush1.msra.mxu0 0.0
        %3365 = vmatprep.subr.mxu0 0.0
        %3366 = vmatpush1.msra.mxu0 0.0
        %3367 = vmatprep.subr.mxu0 0.0
        %3368 = vmatpush1.msra.mxu0 0.0
        %3369 = vmatprep.subr.mxu0 0.0
        %3370 = vmatpush1.msra.mxu0 0.0
        %3371 = vmatprep.subr.mxu0 0.0
        %3372 = vmatpush1.msra.mxu0 0.0
        %3373 = vmatprep.subr.mxu0 0.0
        %3374 = vmatpush1.msra.mxu0 0.0
        %3375 = vmatprep.subr.mxu0 0.0
        %3376 = vmatpush1.msra.mxu0 0.0
        %3377 = vmatprep.subr.mxu0 0.0
        %3378 = vmatpush1.msra.mxu0 0.0
        %3379 = vmatprep.subr.mxu0 0.0
        %3380 = vmatpush1.msra.mxu0 0.0
        %3381 = vmatprep.subr.mxu0 0.0
        %3382 = vmatpush1.msra.mxu0 0.0
        %3383 = vmatprep.subr.mxu0 0.0
        %3384 = vmatpush1.msra.mxu0 0.0
        %3385 = vmatprep.subr.mxu0 0.0
        %3386 = vmatpush1.msra.mxu0 0.0
        %3387 = vmatprep.subr.mxu0 0.0
        %3388 = vmatpush1.msra.mxu0 0.0
        %3389 = vmatprep.subr.mxu0 0.0
        %3390 = vmatpush1.msra.mxu0 0.0
        %3391 = vmatprep.subr.mxu0 0.0
        %3392 = vmatpush1.msra.mxu0 0.0
        %3393 = vmatprep.mubr.f32.mxu0 0.0
        %3394 = vmatmul.mubr.f32.gmra.mrb[0].mxu0 %v2672
        %v3395 = vpop.f32.mrb[0].mxu0
        %v3396 = vadd.f32 0.0, %v3395
        %v3397 = vpop.f32.mrb[0].mxu0
        %v3398 = vadd.f32 0.0, %v3397
        %3399 = vdwg.mxu0
        %v3400 = vadd.f32 %v3254, %v3325
        %v3401 = vadd.f32 %v3255, %v3327
        %v3402 = vadd.f32 %v3256, %v3396
        %v3403 = vadd.f32 %v3257, %v3398
        %v3404 = vld [vmem:[%s972 + $0x1] sm:$0x3f]
        %v3406 = vsel %vm476, %v3404, 0
        %3408 = vmatprep.subr.mxu0 %v1155
        %3409 = vmatpush1.msra.mxu0 %v1154
        %3410 = vmatprep.subr.mxu0 %v1159
        %3411 = vmatpush1.msra.mxu0 %v1158
        %3412 = vmatprep.subr.mxu0 %v1163
        %3413 = vmatpush1.msra.mxu0 %v1162
        %3414 = vmatprep.subr.mxu0 %v1177
        %3415 = vmatpush1.msra.mxu0 %v1174
        %3416 = vmatprep.subr.mxu0 0.0
        %3417 = vmatpush1.msra.mxu0 0.0
        %3418 = vmatprep.subr.mxu0 0.0
        %3419 = vmatpush1.msra.mxu0 0.0
        %3420 = vmatprep.subr.mxu0 0.0
        %3421 = vmatpush1.msra.mxu0 0.0
        %3422 = vmatprep.subr.mxu0 0.0
        %3423 = vmatpush1.msra.mxu0 0.0
        %3424 = vmatprep.subr.mxu0 0.0
        %3425 = vmatpush1.msra.mxu0 0.0
        %3426 = vmatprep.subr.mxu0 0.0
        %3427 = vmatpush1.msra.mxu0 0.0
        %3428 = vmatprep.subr.mxu0 0.0
        %3429 = vmatpush1.msra.mxu0 0.0
        %3430 = vmatprep.subr.mxu0 0.0
        %3431 = vmatpush1.msra.mxu0 0.0
        %3432 = vmatprep.subr.mxu0 0.0
        %3433 = vmatpush1.msra.mxu0 0.0
        %3434 = vmatprep.subr.mxu0 0.0
        %3435 = vmatpush1.msra.mxu0 0.0
        %3436 = vmatprep.subr.mxu0 0.0
        %3437 = vmatpush1.msra.mxu0 0.0
        %3438 = vmatprep.subr.mxu0 0.0
        %3439 = vmatpush1.msra.mxu0 0.0
        %3440 = vmatprep.subr.mxu0 0.0
        %3441 = vmatpush1.msra.mxu0 0.0
        %3442 = vmatprep.subr.mxu0 0.0
        %3443 = vmatpush1.msra.mxu0 0.0
        %3444 = vmatprep.subr.mxu0 0.0
        %3445 = vmatpush1.msra.mxu0 0.0
        %3446 = vmatprep.subr.mxu0 0.0
        %3447 = vmatpush1.msra.mxu0 0.0
        %3448 = vmatprep.subr.mxu0 0.0
        %3449 = vmatpush1.msra.mxu0 0.0
        %3450 = vmatprep.subr.mxu0 0.0
        %3451 = vmatpush1.msra.mxu0 0.0
        %3452 = vmatprep.subr.mxu0 0.0
        %3453 = vmatpush1.msra.mxu0 0.0
        %3454 = vmatprep.subr.mxu0 0.0
        %3455 = vmatpush1.msra.mxu0 0.0
        %3456 = vmatprep.subr.mxu0 0.0
        %3457 = vmatpush1.msra.mxu0 0.0
        %3458 = vmatprep.subr.mxu0 0.0
        %3459 = vmatpush1.msra.mxu0 0.0
        %3460 = vmatprep.subr.mxu0 0.0
        %3461 = vmatpush1.msra.mxu0 0.0
        %3462 = vmatprep.subr.mxu0 0.0
        %3463 = vmatpush1.msra.mxu0 0.0
        %3464 = vmatprep.subr.mxu0 0.0
        %3465 = vmatpush1.msra.mxu0 0.0
        %3466 = vmatprep.subr.mxu0 0.0
        %3467 = vmatpush1.msra.mxu0 0.0
        %3468 = vmatprep.subr.mxu0 0.0
        %3469 = vmatpush1.msra.mxu0 0.0
        %3470 = vmatprep.subr.mxu0 0.0
        %3471 = vmatpush1.msra.mxu0 0.0
        %3472 = vmatprep.mubr.f32.mxu0 0.0
        %3473 = vmatmul.mubr.f32.gmra.mrb[0].mxu0 %v3406
        %v3474 = vpop.f32.mrb[0].mxu0
        %v3475 = vadd.f32 0.0, %v3474
        %v3476 = vpop.f32.mrb[0].mxu0
        %v3477 = vadd.f32 0.0, %v3476
        %3478 = vdwg.mxu0
        %3479 = vmatprep.subr.mxu0 %v1157
        %3480 = vmatpush1.msra.mxu0 %v1156
        %3481 = vmatprep.subr.mxu0 %v1161
        %3482 = vmatpush1.msra.mxu0 %v1160
        %3483 = vmatprep.subr.mxu0 %v1165
        %3484 = vmatpush1.msra.mxu0 %v1164
        %3485 = vmatprep.subr.mxu0 %v1183
        %3486 = vmatpush1.msra.mxu0 %v1180
        %3487 = vmatprep.subr.mxu0 0.0
        %3488 = vmatpush1.msra.mxu0 0.0
        %3489 = vmatprep.subr.mxu0 0.0
        %3490 = vmatpush1.msra.mxu0 0.0
        %3491 = vmatprep.subr.mxu0 0.0
        %3492 = vmatpush1.msra.mxu0 0.0
        %3493 = vmatprep.subr.mxu0 0.0
        %3494 = vmatpush1.msra.mxu0 0.0
        %3495 = vmatprep.subr.mxu0 0.0
        %3496 = vmatpush1.msra.mxu0 0.0
        %3497 = vmatprep.subr.mxu0 0.0
        %3498 = vmatpush1.msra.mxu0 0.0
        %3499 = vmatprep.subr.mxu0 0.0
        %3500 = vmatpush1.msra.mxu0 0.0
        %3501 = vmatprep.subr.mxu0 0.0
        %3502 = vmatpush1.msra.mxu0 0.0
        %3503 = vmatprep.subr.mxu0 0.0
        %3504 = vmatpush1.msra.mxu0 0.0
        %3505 = vmatprep.subr.mxu0 0.0
        %3506 = vmatpush1.msra.mxu0 0.0
        %3507 = vmatprep.subr.mxu0 0.0
        %3508 = vmatpush1.msra.mxu0 0.0
        %3509 = vmatprep.subr.mxu0 0.0
        %3510 = vmatpush1.msra.mxu0 0.0
        %3511 = vmatprep.subr.mxu0 0.0
        %3512 = vmatpush1.msra.mxu0 0.0
        %3513 = vmatprep.subr.mxu0 0.0
        %3514 = vmatpush1.msra.mxu0 0.0
        %3515 = vmatprep.subr.mxu0 0.0
        %3516 = vmatpush1.msra.mxu0 0.0
        %3517 = vmatprep.subr.mxu0 0.0
        %3518 = vmatpush1.msra.mxu0 0.0
        %3519 = vmatprep.subr.mxu0 0.0
        %3520 = vmatpush1.msra.mxu0 0.0
        %3521 = vmatprep.subr.mxu0 0.0
        %3522 = vmatpush1.msra.mxu0 0.0
        %3523 = vmatprep.subr.mxu0 0.0
        %3524 = vmatpush1.msra.mxu0 0.0
        %3525 = vmatprep.subr.mxu0 0.0
        %3526 = vmatpush1.msra.mxu0 0.0
        %3527 = vmatprep.subr.mxu0 0.0
        %3528 = vmatpush1.msra.mxu0 0.0
        %3529 = vmatprep.subr.mxu0 0.0
        %3530 = vmatpush1.msra.mxu0 0.0
        %3531 = vmatprep.subr.mxu0 0.0
        %3532 = vmatpush1.msra.mxu0 0.0
        %3533 = vmatprep.subr.mxu0 0.0
        %3534 = vmatpush1.msra.mxu0 0.0
        %3535 = vmatprep.subr.mxu0 0.0
        %3536 = vmatpush1.msra.mxu0 0.0
        %3537 = vmatprep.subr.mxu0 0.0
        %3538 = vmatpush1.msra.mxu0 0.0
        %3539 = vmatprep.subr.mxu0 0.0
        %3540 = vmatpush1.msra.mxu0 0.0
        %3541 = vmatprep.subr.mxu0 0.0
        %3542 = vmatpush1.msra.mxu0 0.0
        %3543 = vmatprep.mubr.f32.mxu0 0.0
        %3544 = vmatmul.mubr.f32.gmra.mrb[0].mxu0 %v3406
        %v3545 = vpop.f32.mrb[0].mxu0
        %v3546 = vadd.f32 0.0, %v3545
        %v3547 = vpop.f32.mrb[0].mxu0
        %v3548 = vadd.f32 0.0, %v3547
        %3549 = vdwg.mxu0
        %v3550 = vadd.f32 %v3400, %v3475
        %v3551 = vadd.f32 %v3401, %v3477
        %v3552 = vadd.f32 %v3402, %v3546
        %v3553 = vadd.f32 %v3403, %v3548
        %v3554 = vadd.f32 %v3550, %v1335
        %v3555 = vadd.f32 %v3551, %v1339
        %v3556 = vadd.f32 %v3552, %v1343
        %v3557 = vadd.f32 %v3553, %v1347
        %v3558 = vmax.f32 %v3554, 0.0
        %v3559 = vmax.f32 %v3555, 0.0
        %v3560 = vmax.f32 %v3556, 0.0
        %v3561 = vmax.f32 %v3557, 0.0
        %v3562 = vmax.f32 %v1356, %v2090
        %v3563 = vmax.f32 %v1357, %v2091
        %v3564 = vmax.f32 %v1358, %v2092
        %v3565 = vmax.f32 %v1359, %v2093
        %v3566 = vmax.f32 %v2824, %v3558
        %v3567 = vmax.f32 %v2825, %v3559
        %v3568 = vmax.f32 %v2826, %v3560
        %v3569 = vmax.f32 %v2827, %v3561
        %v3570 = vmax.f32 %v3562, %v3564
        %v3571 = vmax.f32 %v3563, %v3565
        %3572 = vst [vmem:[#allocation2] sm:$0x3f] %v3570
        %3573 = vst [vmem:[#allocation2 + $0x8] sm:$0x3f] %v3571
        %v3574 = vmax.f32 %v3566, %v3568
        %v3575 = vmax.f32 %v3567, %v3569
        %s3576 = scalar_lea.vmem [#allocation2], 16
        %3577 = vst [vmem:[%s3576] sm:$0x3f] %v3574
        %3578 = vst [vmem:[%s3576 + $0x8] sm:$0x3f] %v3575
        %v3579 = vld [vmem:[#allocation10] sm:$0xf]
        %v3580 = vld [vmem:[#allocation2] sm:$0xf]
        %v3581 = vld [vmem:[#allocation2 + $0x8] sm:$0xf]
        %v3582 = vld [vmem:[#allocation9] sm:$0xff]
        %v3583 = vld [vmem:[#allocation9 + $0x8] sm:$0xff]
        %v3584 = vld [vmem:[#allocation9 + $0x10] sm:$0xff]
        %v3585 = vld [vmem:[#allocation9 + $0x18] sm:$0xff]
        %v3586 = vld [vmem:[#allocation9 + $0x20] sm:$0xff]
        %v3587 = vld [vmem:[#allocation9 + $0x28] sm:$0xff]
        %v3588 = vld [vmem:[#allocation9 + $0x30] sm:$0xff]
        %v3589 = vld [vmem:[#allocation9 + $0x38] sm:$0xff]
        %v3590 = vld [vmem:[#allocation9 + $0x40] sm:$0xff]
        %v3591 = vld [vmem:[#allocation9 + $0x48] sm:$0xff]
        %v3592 = vld [vmem:[#allocation9 + $0x50] sm:$0xff]
        %v3593 = vld [vmem:[#allocation9 + $0x58] sm:$0xff]
        %v3594 = vld [vmem:[#allocation9 + $0x60] sm:$0xff]
        %v3595 = vld [vmem:[#allocation9 + $0x68] sm:$0xff]
        %v3596 = vld [vmem:[#allocation9 + $0x70] sm:$0xff]
        %v3597 = vld [vmem:[#allocation9 + $0x78] sm:$0xff]
        %v3598 = vld [vmem:[#allocation9 + $0x80] sm:$0xff]
        %v3599 = vld [vmem:[#allocation9 + $0x88] sm:$0xff]
        %v3600 = vld [vmem:[#allocation9 + $0x90] sm:$0xff]
        %v3601 = vld [vmem:[#allocation9 + $0x98] sm:$0xff]
        %v3602 = vld [vmem:[#allocation9 + $0xa0] sm:$0xff]
        %v3603 = vld [vmem:[#allocation9 + $0xa8] sm:$0xff]
        %v3604 = vld [vmem:[#allocation9 + $0xb0] sm:$0xff]
        %v3605 = vld [vmem:[#allocation9 + $0xb8] sm:$0xff]
        %v3606 = vld [vmem:[#allocation9 + $0xc0] sm:$0xff]
        %v3607 = vld [vmem:[#allocation9 + $0xc8] sm:$0xff]
        %v3608 = vld [vmem:[#allocation9 + $0xd0] sm:$0xff]
        %v3609 = vld [vmem:[#allocation9 + $0xd8] sm:$0xff]
        %v3610 = vld [vmem:[#allocation9 + $0xe0] sm:$0xff]
        %v3611 = vld [vmem:[#allocation9 + $0xe8] sm:$0xff]
        %v3612 = vld [vmem:[#allocation9 + $0xf0] sm:$0xff]
        %v3613 = vld [vmem:[#allocation9 + $0xf8] sm:$0xff]
        %v3614 = vld [vmem:[#allocation9 + $0x100] sm:$0xff]
        %v3615 = vld [vmem:[#allocation9 + $0x108] sm:$0xff]
        %v3616 = vld [vmem:[#allocation9 + $0x110] sm:$0xff]
        %v3617 = vld [vmem:[#allocation9 + $0x118] sm:$0xff]
        %v3618 = vld [vmem:[#allocation9 + $0x120] sm:$0xff]
        %v3619 = vld [vmem:[#allocation9 + $0x128] sm:$0xff]
        %v3620 = vld [vmem:[#allocation9 + $0x130] sm:$0xff]
        %v3621 = vld [vmem:[#allocation9 + $0x138] sm:$0xff]
        %v3622 = vld [vmem:[#allocation9 + $0x140] sm:$0xff]
        %v3623 = vld [vmem:[#allocation9 + $0x148] sm:$0xff]
        %v3624 = vld [vmem:[#allocation9 + $0x150] sm:$0xff]
        %v3625 = vld [vmem:[#allocation9 + $0x158] sm:$0xff]
        %v3626 = vld [vmem:[#allocation9 + $0x160] sm:$0xff]
        %v3627 = vld [vmem:[#allocation9 + $0x168] sm:$0xff]
        %v3628 = vld [vmem:[#allocation9 + $0x170] sm:$0xff]
        %v3629 = vld [vmem:[#allocation9 + $0x178] sm:$0xff]
        %v3630 = vld [vmem:[#allocation9 + $0x180] sm:$0xff]
        %v3631 = vld [vmem:[#allocation9 + $0x188] sm:$0xff]
        %v3632 = vld [vmem:[#allocation9 + $0x190] sm:$0xff]
        %v3633 = vld [vmem:[#allocation9 + $0x198] sm:$0xff]
        %v3634 = vld [vmem:[#allocation9 + $0x1a0] sm:$0xff]
        %v3635 = vld [vmem:[#allocation9 + $0x1a8] sm:$0xff]
        %v3636 = vld [vmem:[#allocation9 + $0x1b0] sm:$0xff]
        %v3637 = vld [vmem:[#allocation9 + $0x1b8] sm:$0xff]
        %v3638 = vld [vmem:[#allocation9 + $0x1c0] sm:$0xff]
        %v3639 = vld [vmem:[#allocation9 + $0x1c8] sm:$0xff]
        %v3640 = vld [vmem:[#allocation9 + $0x1d0] sm:$0xff]
        %v3641 = vld [vmem:[#allocation9 + $0x1d8] sm:$0xff]
        %v3642 = vld [vmem:[#allocation9 + $0x1e0] sm:$0xff]
        %v3643 = vld [vmem:[#allocation9 + $0x1e8] sm:$0xff]
        %v3644 = vld [vmem:[#allocation9 + $0x1f0] sm:$0xff]
        %v3645 = vld [vmem:[#allocation9 + $0x1f8] sm:$0xff]
        %v3646 = vld [vmem:[#allocation9 + $0x200] sm:$0xff]
        %v3647 = vld [vmem:[#allocation9 + $0x208] sm:$0xff]
        %v3648 = vld [vmem:[#allocation9 + $0x210] sm:$0xff]
        %v3649 = vld [vmem:[#allocation9 + $0x218] sm:$0xff]
        %v3650 = vld [vmem:[#allocation9 + $0x220] sm:$0xff]
        %v3651 = vld [vmem:[#allocation9 + $0x228] sm:$0xff]
        %v3652 = vld [vmem:[#allocation9 + $0x230] sm:$0xff]
        %v3653 = vld [vmem:[#allocation9 + $0x238] sm:$0xff]
        %v3654 = vld [vmem:[#allocation9 + $0x240] sm:$0xff]
        %v3655 = vld [vmem:[#allocation9 + $0x248] sm:$0xff]
        %v3656 = vld [vmem:[#allocation9 + $0x250] sm:$0xff]
        %v3657 = vld [vmem:[#allocation9 + $0x258] sm:$0xff]
        %v3658 = vld [vmem:[#allocation9 + $0x260] sm:$0xff]
        %v3659 = vld [vmem:[#allocation9 + $0x268] sm:$0xff]
        %v3660 = vld [vmem:[#allocation9 + $0x270] sm:$0xff]
        %v3661 = vld [vmem:[#allocation9 + $0x278] sm:$0xff]
        %v3662 = vld [vmem:[#allocation9 + $0x280] sm:$0xff]
        %v3663 = vld [vmem:[#allocation9 + $0x288] sm:$0xff]
        %v3664 = vld [vmem:[#allocation9 + $0x290] sm:$0xff]
        %v3665 = vld [vmem:[#allocation9 + $0x298] sm:$0xff]
        %v3666 = vld [vmem:[#allocation9 + $0x2a0] sm:$0xff]
        %v3667 = vld [vmem:[#allocation9 + $0x2a8] sm:$0xff]
        %v3668 = vld [vmem:[#allocation9 + $0x2b0] sm:$0xff]
        %v3669 = vld [vmem:[#allocation9 + $0x2b8] sm:$0xff]
        %v3670 = vld [vmem:[#allocation9 + $0x2c0] sm:$0xff]
        %v3671 = vld [vmem:[#allocation9 + $0x2c8] sm:$0xff]
        %v3672 = vld [vmem:[#allocation9 + $0x2d0] sm:$0xff]
        %v3673 = vld [vmem:[#allocation9 + $0x2d8] sm:$0xff]
        %v3674 = vld [vmem:[#allocation9 + $0x2e0] sm:$0xff]
        %v3675 = vld [vmem:[#allocation9 + $0x2e8] sm:$0xff]
        %v3676 = vld [vmem:[#allocation9 + $0x2f0] sm:$0xff]
        %v3677 = vld [vmem:[#allocation9 + $0x2f8] sm:$0xff]
        %v3678 = vld [vmem:[#allocation9 + $0x300] sm:$0xff]
        %v3679 = vld [vmem:[#allocation9 + $0x308] sm:$0xff]
        %v3680 = vld [vmem:[#allocation9 + $0x310] sm:$0xff]
        %v3681 = vld [vmem:[#allocation9 + $0x318] sm:$0xff]
        %v3682 = vld [vmem:[#allocation9 + $0x320] sm:$0xff]
        %v3683 = vld [vmem:[#allocation9 + $0x328] sm:$0xff]
        %v3684 = vld [vmem:[#allocation9 + $0x330] sm:$0xff]
        %v3685 = vld [vmem:[#allocation9 + $0x338] sm:$0xff]
        %v3686 = vld [vmem:[#allocation9 + $0x340] sm:$0xff]
        %v3687 = vld [vmem:[#allocation9 + $0x348] sm:$0xff]
        %v3688 = vld [vmem:[#allocation9 + $0x350] sm:$0xff]
        %v3689 = vld [vmem:[#allocation9 + $0x358] sm:$0xff]
        %v3690 = vld [vmem:[#allocation9 + $0x360] sm:$0xff]
        %v3691 = vld [vmem:[#allocation9 + $0x368] sm:$0xff]
        %v3692 = vld [vmem:[#allocation9 + $0x370] sm:$0xff]
        %v3693 = vld [vmem:[#allocation9 + $0x378] sm:$0xff]
        %v3694 = vld [vmem:[#allocation9 + $0x380] sm:$0xff]
        %v3695 = vld [vmem:[#allocation9 + $0x388] sm:$0xff]
        %v3696 = vld [vmem:[#allocation9 + $0x390] sm:$0xff]
        %v3697 = vld [vmem:[#allocation9 + $0x398] sm:$0xff]
        %v3698 = vld [vmem:[#allocation9 + $0x3a0] sm:$0xff]
        %v3699 = vld [vmem:[#allocation9 + $0x3a8] sm:$0xff]
        %v3700 = vld [vmem:[#allocation9 + $0x3b0] sm:$0xff]
        %v3701 = vld [vmem:[#allocation9 + $0x3b8] sm:$0xff]
        %v3702 = vld [vmem:[#allocation9 + $0x3c0] sm:$0xff]
        %v3703 = vld [vmem:[#allocation9 + $0x3c8] sm:$0xff]
        %v3704 = vld [vmem:[#allocation9 + $0x3d0] sm:$0xff]
        %v3705 = vld [vmem:[#allocation9 + $0x3d8] sm:$0xff]
        %v3706 = vld [vmem:[#allocation9 + $0x3e0] sm:$0xff]
        %v3707 = vld [vmem:[#allocation9 + $0x3e8] sm:$0xff]
        %v3708 = vld [vmem:[#allocation9 + $0x3f0] sm:$0xff]
        %v3709 = vld [vmem:[#allocation9 + $0x3f8] sm:$0xff]
        %v3710 = vld [vmem:[%s3576] sm:$0xf]
        %v3711 = vld [vmem:[%s3576 + $0x8] sm:$0xf]
        %s3712 = scalar_lea.vmem [#allocation9], 1024
        %v3713 = vld [vmem:[%s3712] sm:$0xff]
        %v3714 = vld [vmem:[%s3712 + $0x8] sm:$0xff]
        %v3715 = vld [vmem:[%s3712 + $0x10] sm:$0xff]
        %v3716 = vld [vmem:[%s3712 + $0x18] sm:$0xff]
        %v3717 = vld [vmem:[%s3712 + $0x20] sm:$0xff]
        %v3718 = vld [vmem:[%s3712 + $0x28] sm:$0xff]
        %v3719 = vld [vmem:[%s3712 + $0x30] sm:$0xff]
        %v3720 = vld [vmem:[%s3712 + $0x38] sm:$0xff]
        %v3721 = vld [vmem:[%s3712 + $0x40] sm:$0xff]
        %v3722 = vld [vmem:[%s3712 + $0x48] sm:$0xff]
        %v3723 = vld [vmem:[%s3712 + $0x50] sm:$0xff]
        %v3724 = vld [vmem:[%s3712 + $0x58] sm:$0xff]
        %v3725 = vld [vmem:[%s3712 + $0x60] sm:$0xff]
        %v3726 = vld [vmem:[%s3712 + $0x68] sm:$0xff]
        %v3727 = vld [vmem:[%s3712 + $0x70] sm:$0xff]
        %v3728 = vld [vmem:[%s3712 + $0x78] sm:$0xff]
        %v3729 = vld [vmem:[%s3712 + $0x80] sm:$0xff]
        %v3730 = vld [vmem:[%s3712 + $0x88] sm:$0xff]
        %v3731 = vld [vmem:[%s3712 + $0x90] sm:$0xff]
        %v3732 = vld [vmem:[%s3712 + $0x98] sm:$0xff]
        %v3733 = vld [vmem:[%s3712 + $0xa0] sm:$0xff]
        %v3734 = vld [vmem:[%s3712 + $0xa8] sm:$0xff]
        %v3735 = vld [vmem:[%s3712 + $0xb0] sm:$0xff]
        %v3736 = vld [vmem:[%s3712 + $0xb8] sm:$0xff]
        %v3737 = vld [vmem:[%s3712 + $0xc0] sm:$0xff]
        %v3738 = vld [vmem:[%s3712 + $0xc8] sm:$0xff]
        %v3739 = vld [vmem:[%s3712 + $0xd0] sm:$0xff]
        %v3740 = vld [vmem:[%s3712 + $0xd8] sm:$0xff]
        %v3741 = vld [vmem:[%s3712 + $0xe0] sm:$0xff]
        %v3742 = vld [vmem:[%s3712 + $0xe8] sm:$0xff]
        %v3743 = vld [vmem:[%s3712 + $0xf0] sm:$0xff]
        %v3744 = vld [vmem:[%s3712 + $0xf8] sm:$0xff]
        %v3745 = vld [vmem:[%s3712 + $0x100] sm:$0xff]
        %v3746 = vld [vmem:[%s3712 + $0x108] sm:$0xff]
        %v3747 = vld [vmem:[%s3712 + $0x110] sm:$0xff]
        %v3748 = vld [vmem:[%s3712 + $0x118] sm:$0xff]
        %v3749 = vld [vmem:[%s3712 + $0x120] sm:$0xff]
        %v3750 = vld [vmem:[%s3712 + $0x128] sm:$0xff]
        %v3751 = vld [vmem:[%s3712 + $0x130] sm:$0xff]
        %v3752 = vld [vmem:[%s3712 + $0x138] sm:$0xff]
        %v3753 = vld [vmem:[%s3712 + $0x140] sm:$0xff]
        %v3754 = vld [vmem:[%s3712 + $0x148] sm:$0xff]
        %v3755 = vld [vmem:[%s3712 + $0x150] sm:$0xff]
        %v3756 = vld [vmem:[%s3712 + $0x158] sm:$0xff]
        %v3757 = vld [vmem:[%s3712 + $0x160] sm:$0xff]
        %v3758 = vld [vmem:[%s3712 + $0x168] sm:$0xff]
        %v3759 = vld [vmem:[%s3712 + $0x170] sm:$0xff]
        %v3760 = vld [vmem:[%s3712 + $0x178] sm:$0xff]
        %v3761 = vld [vmem:[%s3712 + $0x180] sm:$0xff]
        %v3762 = vld [vmem:[%s3712 + $0x188] sm:$0xff]
        %v3763 = vld [vmem:[%s3712 + $0x190] sm:$0xff]
        %v3764 = vld [vmem:[%s3712 + $0x198] sm:$0xff]
        %v3765 = vld [vmem:[%s3712 + $0x1a0] sm:$0xff]
        %v3766 = vld [vmem:[%s3712 + $0x1a8] sm:$0xff]
        %v3767 = vld [vmem:[%s3712 + $0x1b0] sm:$0xff]
        %v3768 = vld [vmem:[%s3712 + $0x1b8] sm:$0xff]
        %v3769 = vld [vmem:[%s3712 + $0x1c0] sm:$0xff]
        %v3770 = vld [vmem:[%s3712 + $0x1c8] sm:$0xff]
        %v3771 = vld [vmem:[%s3712 + $0x1d0] sm:$0xff]
        %v3772 = vld [vmem:[%s3712 + $0x1d8] sm:$0xff]
        %v3773 = vld [vmem:[%s3712 + $0x1e0] sm:$0xff]
        %v3774 = vld [vmem:[%s3712 + $0x1e8] sm:$0xff]
        %v3775 = vld [vmem:[%s3712 + $0x1f0] sm:$0xff]
        %v3776 = vld [vmem:[%s3712 + $0x1f8] sm:$0xff]
        %v3777 = vld [vmem:[%s3712 + $0x200] sm:$0xff]
        %v3778 = vld [vmem:[%s3712 + $0x208] sm:$0xff]
        %v3779 = vld [vmem:[%s3712 + $0x210] sm:$0xff]
        %v3780 = vld [vmem:[%s3712 + $0x218] sm:$0xff]
        %v3781 = vld [vmem:[%s3712 + $0x220] sm:$0xff]
        %v3782 = vld [vmem:[%s3712 + $0x228] sm:$0xff]
        %v3783 = vld [vmem:[%s3712 + $0x230] sm:$0xff]
        %v3784 = vld [vmem:[%s3712 + $0x238] sm:$0xff]
        %v3785 = vld [vmem:[%s3712 + $0x240] sm:$0xff]
        %v3786 = vld [vmem:[%s3712 + $0x248] sm:$0xff]
        %v3787 = vld [vmem:[%s3712 + $0x250] sm:$0xff]
        %v3788 = vld [vmem:[%s3712 + $0x258] sm:$0xff]
        %v3789 = vld [vmem:[%s3712 + $0x260] sm:$0xff]
        %v3790 = vld [vmem:[%s3712 + $0x268] sm:$0xff]
        %v3791 = vld [vmem:[%s3712 + $0x270] sm:$0xff]
        %v3792 = vld [vmem:[%s3712 + $0x278] sm:$0xff]
        %v3793 = vld [vmem:[%s3712 + $0x280] sm:$0xff]
        %v3794 = vld [vmem:[%s3712 + $0x288] sm:$0xff]
        %v3795 = vld [vmem:[%s3712 + $0x290] sm:$0xff]
        %v3796 = vld [vmem:[%s3712 + $0x298] sm:$0xff]
        %v3797 = vld [vmem:[%s3712 + $0x2a0] sm:$0xff]
        %v3798 = vld [vmem:[%s3712 + $0x2a8] sm:$0xff]
        %v3799 = vld [vmem:[%s3712 + $0x2b0] sm:$0xff]
        %v3800 = vld [vmem:[%s3712 + $0x2b8] sm:$0xff]
        %v3801 = vld [vmem:[%s3712 + $0x2c0] sm:$0xff]
        %v3802 = vld [vmem:[%s3712 + $0x2c8] sm:$0xff]
        %v3803 = vld [vmem:[%s3712 + $0x2d0] sm:$0xff]
        %v3804 = vld [vmem:[%s3712 + $0x2d8] sm:$0xff]
        %v3805 = vld [vmem:[%s3712 + $0x2e0] sm:$0xff]
        %v3806 = vld [vmem:[%s3712 + $0x2e8] sm:$0xff]
        %v3807 = vld [vmem:[%s3712 + $0x2f0] sm:$0xff]
        %v3808 = vld [vmem:[%s3712 + $0x2f8] sm:$0xff]
        %v3809 = vld [vmem:[%s3712 + $0x300] sm:$0xff]
        %v3810 = vld [vmem:[%s3712 + $0x308] sm:$0xff]
        %v3811 = vld [vmem:[%s3712 + $0x310] sm:$0xff]
        %v3812 = vld [vmem:[%s3712 + $0x318] sm:$0xff]
        %v3813 = vld [vmem:[%s3712 + $0x320] sm:$0xff]
        %v3814 = vld [vmem:[%s3712 + $0x328] sm:$0xff]
        %v3815 = vld [vmem:[%s3712 + $0x330] sm:$0xff]
        %v3816 = vld [vmem:[%s3712 + $0x338] sm:$0xff]
        %v3817 = vld [vmem:[%s3712 + $0x340] sm:$0xff]
        %v3818 = vld [vmem:[%s3712 + $0x348] sm:$0xff]
        %v3819 = vld [vmem:[%s3712 + $0x350] sm:$0xff]
        %v3820 = vld [vmem:[%s3712 + $0x358] sm:$0xff]
        %v3821 = vld [vmem:[%s3712 + $0x360] sm:$0xff]
        %v3822 = vld [vmem:[%s3712 + $0x368] sm:$0xff]
        %v3823 = vld [vmem:[%s3712 + $0x370] sm:$0xff]
        %v3824 = vld [vmem:[%s3712 + $0x378] sm:$0xff]
        %v3825 = vld [vmem:[%s3712 + $0x380] sm:$0xff]
        %v3826 = vld [vmem:[%s3712 + $0x388] sm:$0xff]
        %v3827 = vld [vmem:[%s3712 + $0x390] sm:$0xff]
        %v3828 = vld [vmem:[%s3712 + $0x398] sm:$0xff]
        %v3829 = vld [vmem:[%s3712 + $0x3a0] sm:$0xff]
        %v3830 = vld [vmem:[%s3712 + $0x3a8] sm:$0xff]
        %v3831 = vld [vmem:[%s3712 + $0x3b0] sm:$0xff]
        %v3832 = vld [vmem:[%s3712 + $0x3b8] sm:$0xff]
        %v3833 = vld [vmem:[%s3712 + $0x3c0] sm:$0xff]
        %v3834 = vld [vmem:[%s3712 + $0x3c8] sm:$0xff]
        %v3835 = vld [vmem:[%s3712 + $0x3d0] sm:$0xff]
        %v3836 = vld [vmem:[%s3712 + $0x3d8] sm:$0xff]
        %v3837 = vld [vmem:[%s3712 + $0x3e0] sm:$0xff]
        %v3838 = vld [vmem:[%s3712 + $0x3e8] sm:$0xff]
        %v3839 = vld [vmem:[%s3712 + $0x3f0] sm:$0xff]
        %v3840 = vld [vmem:[%s3712 + $0x3f8] sm:$0xff]
        %3841 = vmatprep.subr.mxu0 %v3714
        %3842 = vmatpush1.msra.mxu0 %v3713
        %3843 = vmatprep.subr.mxu0 %v3718
        %3844 = vmatpush1.msra.mxu0 %v3717
        %3845 = vmatprep.subr.mxu0 %v3722
        %3846 = vmatpush1.msra.mxu0 %v3721
        %3847 = vmatprep.subr.mxu0 %v3726
        %3848 = vmatpush1.msra.mxu0 %v3725
        %3849 = vmatprep.subr.mxu0 %v3730
        %3850 = vmatpush1.msra.mxu0 %v3729
        %3851 = vmatprep.subr.mxu0 %v3734
        %3852 = vmatpush1.msra.mxu0 %v3733
        %3853 = vmatprep.subr.mxu0 %v3738
        %3854 = vmatpush1.msra.mxu0 %v3737
        %3855 = vmatprep.subr.mxu0 %v3742
        %3856 = vmatpush1.msra.mxu0 %v3741
        %3857 = vmatprep.subr.mxu0 %v3746
        %3858 = vmatpush1.msra.mxu0 %v3745
        %3859 = vmatprep.subr.mxu0 %v3750
        %3860 = vmatpush1.msra.mxu0 %v3749
        %3861 = vmatprep.subr.mxu0 %v3754
        %3862 = vmatpush1.msra.mxu0 %v3753
        %3863 = vmatprep.subr.mxu0 %v3758
        %3864 = vmatpush1.msra.mxu0 %v3757
        %3865 = vmatprep.subr.mxu0 %v3762
        %3866 = vmatpush1.msra.mxu0 %v3761
        %3867 = vmatprep.subr.mxu0 %v3766
        %3868 = vmatpush1.msra.mxu0 %v3765
        %3869 = vmatprep.subr.mxu0 %v3770
        %3870 = vmatpush1.msra.mxu0 %v3769
        %3871 = vmatprep.subr.mxu0 %v3774
        %3872 = vmatpush1.msra.mxu0 %v3773
        %3873 = vmatprep.subr.mxu0 %v3778
        %3874 = vmatpush1.msra.mxu0 %v3777
        %3875 = vmatprep.subr.mxu0 %v3782
        %3876 = vmatpush1.msra.mxu0 %v3781
        %3877 = vmatprep.subr.mxu0 %v3786
        %3878 = vmatpush1.msra.mxu0 %v3785
        %3879 = vmatprep.subr.mxu0 %v3790
        %3880 = vmatpush1.msra.mxu0 %v3789
        %3881 = vmatprep.subr.mxu0 %v3794
        %3882 = vmatpush1.msra.mxu0 %v3793
        %3883 = vmatprep.subr.mxu0 %v3798
        %3884 = vmatpush1.msra.mxu0 %v3797
        %3885 = vmatprep.subr.mxu0 %v3802
        %3886 = vmatpush1.msra.mxu0 %v3801
        %3887 = vmatprep.subr.mxu0 %v3806
        %3888 = vmatpush1.msra.mxu0 %v3805
        %3889 = vmatprep.subr.mxu0 %v3810
        %3890 = vmatpush1.msra.mxu0 %v3809
        %3891 = vmatprep.subr.mxu0 %v3814
        %3892 = vmatpush1.msra.mxu0 %v3813
        %3893 = vmatprep.subr.mxu0 %v3818
        %3894 = vmatpush1.msra.mxu0 %v3817
        %3895 = vmatprep.subr.mxu0 %v3822
        %3896 = vmatpush1.msra.mxu0 %v3821
        %3897 = vmatprep.subr.mxu0 %v3826
        %3898 = vmatpush1.msra.mxu0 %v3825
        %3899 = vmatprep.subr.mxu0 %v3830
        %3900 = vmatpush1.msra.mxu0 %v3829
        %3901 = vmatprep.subr.mxu0 %v3834
        %3902 = vmatpush1.msra.mxu0 %v3833
        %3903 = vmatprep.subr.mxu0 %v3838
        %3904 = vmatpush1.msra.mxu0 %v3837
        %3905 = vmatprep.mubr.f32.mxu0 %v3711
        %3906 = vmatmul.mubr.f32.gmra.mrb[0].mxu0 %v3710
        %v3907 = vpop.f32.mrb[0].mxu0
        %v3908 = vadd.f32 0.0, %v3907
        %v3909 = vpop.f32.mrb[0].mxu0
        %v3910 = vadd.f32 0.0, %v3909
        %3911 = vdwg.mxu0
        %3912 = vmatprep.subr.mxu0 %v3716
        %3913 = vmatpush1.msra.mxu0 %v3715
        %3914 = vmatprep.subr.mxu0 %v3720
        %3915 = vmatpush1.msra.mxu0 %v3719
        %3916 = vmatprep.subr.mxu0 %v3724
        %3917 = vmatpush1.msra.mxu0 %v3723
        %3918 = vmatprep.subr.mxu0 %v3728
        %3919 = vmatpush1.msra.mxu0 %v3727
        %3920 = vmatprep.subr.mxu0 %v3732
        %3921 = vmatpush1.msra.mxu0 %v3731
        %3922 = vmatprep.subr.mxu0 %v3736
        %3923 = vmatpush1.msra.mxu0 %v3735
        %3924 = vmatprep.subr.mxu0 %v3740
        %3925 = vmatpush1.msra.mxu0 %v3739
        %3926 = vmatprep.subr.mxu0 %v3744
        %3927 = vmatpush1.msra.mxu0 %v3743
        %3928 = vmatprep.subr.mxu0 %v3748
        %3929 = vmatpush1.msra.mxu0 %v3747
        %3930 = vmatprep.subr.mxu0 %v3752
        %3931 = vmatpush1.msra.mxu0 %v3751
        %3932 = vmatprep.subr.mxu0 %v3756
        %3933 = vmatpush1.msra.mxu0 %v3755
        %3934 = vmatprep.subr.mxu0 %v3760
        %3935 = vmatpush1.msra.mxu0 %v3759
        %3936 = vmatprep.subr.mxu0 %v3764
        %3937 = vmatpush1.msra.mxu0 %v3763
        %3938 = vmatprep.subr.mxu0 %v3768
        %3939 = vmatpush1.msra.mxu0 %v3767
        %3940 = vmatprep.subr.mxu0 %v3772
        %3941 = vmatpush1.msra.mxu0 %v3771
        %3942 = vmatprep.subr.mxu0 %v3776
        %3943 = vmatpush1.msra.mxu0 %v3775
        %3944 = vmatprep.subr.mxu0 %v3780
        %3945 = vmatpush1.msra.mxu0 %v3779
        %3946 = vmatprep.subr.mxu0 %v3784
        %3947 = vmatpush1.msra.mxu0 %v3783
        %3948 = vmatprep.subr.mxu0 %v3788
        %3949 = vmatpush1.msra.mxu0 %v3787
        %3950 = vmatprep.subr.mxu0 %v3792
        %3951 = vmatpush1.msra.mxu0 %v3791
        %3952 = vmatprep.subr.mxu0 %v3796
        %3953 = vmatpush1.msra.mxu0 %v3795
        %3954 = vmatprep.subr.mxu0 %v3800
        %3955 = vmatpush1.msra.mxu0 %v3799
        %3956 = vmatprep.subr.mxu0 %v3804
        %3957 = vmatpush1.msra.mxu0 %v3803
        %3958 = vmatprep.subr.mxu0 %v3808
        %3959 = vmatpush1.msra.mxu0 %v3807
        %3960 = vmatprep.subr.mxu0 %v3812
        %3961 = vmatpush1.msra.mxu0 %v3811
        %3962 = vmatprep.subr.mxu0 %v3816
        %3963 = vmatpush1.msra.mxu0 %v3815
        %3964 = vmatprep.subr.mxu0 %v3820
        %3965 = vmatpush1.msra.mxu0 %v3819
        %3966 = vmatprep.subr.mxu0 %v3824
        %3967 = vmatpush1.msra.mxu0 %v3823
        %3968 = vmatprep.subr.mxu0 %v3828
        %3969 = vmatpush1.msra.mxu0 %v3827
        %3970 = vmatprep.subr.mxu0 %v3832
        %3971 = vmatpush1.msra.mxu0 %v3831
        %3972 = vmatprep.subr.mxu0 %v3836
        %3973 = vmatpush1.msra.mxu0 %v3835
        %3974 = vmatprep.subr.mxu0 %v3840
        %3975 = vmatpush1.msra.mxu0 %v3839
        %3976 = vmatprep.mubr.f32.mxu0 %v3711
        %3977 = vmatmul.mubr.f32.gmra.mrb[0].mxu0 %v3710
        %v3978 = vpop.f32.mrb[0].mxu0
        %v3979 = vadd.f32 0.0, %v3978
        %v3980 = vpop.f32.mrb[0].mxu0
        %v3981 = vadd.f32 0.0, %v3980
        %3982 = vdwg.mxu0
        %3983 = vmatprep.subr.mxu0 %v3583
        %3984 = vmatpush1.msra.mxu0 %v3582
        %3985 = vmatprep.subr.mxu0 %v3587
        %3986 = vmatpush1.msra.mxu0 %v3586
        %3987 = vmatprep.subr.mxu0 %v3591
        %3988 = vmatpush1.msra.mxu0 %v3590
        %3989 = vmatprep.subr.mxu0 %v3595
        %3990 = vmatpush1.msra.mxu0 %v3594
        %3991 = vmatprep.subr.mxu0 %v3599
        %3992 = vmatpush1.msra.mxu0 %v3598
        %3993 = vmatprep.subr.mxu0 %v3603
        %3994 = vmatpush1.msra.mxu0 %v3602
        %3995 = vmatprep.subr.mxu0 %v3607
        %3996 = vmatpush1.msra.mxu0 %v3606
        %3997 = vmatprep.subr.mxu0 %v3611
        %3998 = vmatpush1.msra.mxu0 %v3610
        %3999 = vmatprep.subr.mxu0 %v3615
        %4000 = vmatpush1.msra.mxu0 %v3614
        %4001 = vmatprep.subr.mxu0 %v3619
        %4002 = vmatpush1.msra.mxu0 %v3618
        %4003 = vmatprep.subr.mxu0 %v3623
        %4004 = vmatpush1.msra.mxu0 %v3622
        %4005 = vmatprep.subr.mxu0 %v3627
        %4006 = vmatpush1.msra.mxu0 %v3626
        %4007 = vmatprep.subr.mxu0 %v3631
        %4008 = vmatpush1.msra.mxu0 %v3630
        %4009 = vmatprep.subr.mxu0 %v3635
        %4010 = vmatpush1.msra.mxu0 %v3634
        %4011 = vmatprep.subr.mxu0 %v3639
        %4012 = vmatpush1.msra.mxu0 %v3638
        %4013 = vmatprep.subr.mxu0 %v3643
        %4014 = vmatpush1.msra.mxu0 %v3642
        %4015 = vmatprep.subr.mxu0 %v3647
        %4016 = vmatpush1.msra.mxu0 %v3646
        %4017 = vmatprep.subr.mxu0 %v3651
        %4018 = vmatpush1.msra.mxu0 %v3650
        %4019 = vmatprep.subr.mxu0 %v3655
        %4020 = vmatpush1.msra.mxu0 %v3654
        %4021 = vmatprep.subr.mxu0 %v3659
        %4022 = vmatpush1.msra.mxu0 %v3658
        %4023 = vmatprep.subr.mxu0 %v3663
        %4024 = vmatpush1.msra.mxu0 %v3662
        %4025 = vmatprep.subr.mxu0 %v3667
        %4026 = vmatpush1.msra.mxu0 %v3666
        %4027 = vmatprep.subr.mxu0 %v3671
        %4028 = vmatpush1.msra.mxu0 %v3670
        %4029 = vmatprep.subr.mxu0 %v3675
        %4030 = vmatpush1.msra.mxu0 %v3674
        %4031 = vmatprep.subr.mxu0 %v3679
        %4032 = vmatpush1.msra.mxu0 %v3678
        %4033 = vmatprep.subr.mxu0 %v3683
        %4034 = vmatpush1.msra.mxu0 %v3682
        %4035 = vmatprep.subr.mxu0 %v3687
        %4036 = vmatpush1.msra.mxu0 %v3686
        %4037 = vmatprep.subr.mxu0 %v3691
        %4038 = vmatpush1.msra.mxu0 %v3690
        %4039 = vmatprep.subr.mxu0 %v3695
        %4040 = vmatpush1.msra.mxu0 %v3694
        %4041 = vmatprep.subr.mxu0 %v3699
        %4042 = vmatpush1.msra.mxu0 %v3698
        %4043 = vmatprep.subr.mxu0 %v3703
        %4044 = vmatpush1.msra.mxu0 %v3702
        %4045 = vmatprep.subr.mxu0 %v3707
        %4046 = vmatpush1.msra.mxu0 %v3706
        %4047 = vmatprep.mubr.f32.mxu0 %v3581
        %4048 = vmatmul.mubr.f32.gmra.mrb[0].mxu0 %v3580
        %v4049 = vpop.f32.mrb[0].mxu0
        %v4050 = vadd.f32 %v3908, %v4049
        %v4051 = vpop.f32.mrb[0].mxu0
        %v4052 = vadd.f32 %v3910, %v4051
        %4053 = vdwg.mxu0
        %4054 = vmatprep.subr.mxu0 %v3585
        %4055 = vmatpush1.msra.mxu0 %v3584
        %4056 = vmatprep.subr.mxu0 %v3589
        %4057 = vmatpush1.msra.mxu0 %v3588
        %4058 = vmatprep.subr.mxu0 %v3593
        %4059 = vmatpush1.msra.mxu0 %v3592
        %4060 = vmatprep.subr.mxu0 %v3597
        %4061 = vmatpush1.msra.mxu0 %v3596
        %4062 = vmatprep.subr.mxu0 %v3601
        %4063 = vmatpush1.msra.mxu0 %v3600
        %4064 = vmatprep.subr.mxu0 %v3605
        %4065 = vmatpush1.msra.mxu0 %v3604
        %4066 = vmatprep.subr.mxu0 %v3609
        %4067 = vmatpush1.msra.mxu0 %v3608
        %4068 = vmatprep.subr.mxu0 %v3613
        %4069 = vmatpush1.msra.mxu0 %v3612
        %4070 = vmatprep.subr.mxu0 %v3617
        %4071 = vmatpush1.msra.mxu0 %v3616
        %4072 = vmatprep.subr.mxu0 %v3621
        %4073 = vmatpush1.msra.mxu0 %v3620
        %4074 = vmatprep.subr.mxu0 %v3625
        %4075 = vmatpush1.msra.mxu0 %v3624
        %4076 = vmatprep.subr.mxu0 %v3629
        %4077 = vmatpush1.msra.mxu0 %v3628
        %4078 = vmatprep.subr.mxu0 %v3633
        %4079 = vmatpush1.msra.mxu0 %v3632
        %4080 = vmatprep.subr.mxu0 %v3637
        %4081 = vmatpush1.msra.mxu0 %v3636
        %4082 = vmatprep.subr.mxu0 %v3641
        %4083 = vmatpush1.msra.mxu0 %v3640
        %4084 = vmatprep.subr.mxu0 %v3645
        %4085 = vmatpush1.msra.mxu0 %v3644
        %4086 = vmatprep.subr.mxu0 %v3649
        %4087 = vmatpush1.msra.mxu0 %v3648
        %4088 = vmatprep.subr.mxu0 %v3653
        %4089 = vmatpush1.msra.mxu0 %v3652
        %4090 = vmatprep.subr.mxu0 %v3657
        %4091 = vmatpush1.msra.mxu0 %v3656
        %4092 = vmatprep.subr.mxu0 %v3661
        %4093 = vmatpush1.msra.mxu0 %v3660
        %4094 = vmatprep.subr.mxu0 %v3665
        %4095 = vmatpush1.msra.mxu0 %v3664
        %4096 = vmatprep.subr.mxu0 %v3669
        %4097 = vmatpush1.msra.mxu0 %v3668
        %4098 = vmatprep.subr.mxu0 %v3673
        %4099 = vmatpush1.msra.mxu0 %v3672
        %4100 = vmatprep.subr.mxu0 %v3677
        %4101 = vmatpush1.msra.mxu0 %v3676
        %4102 = vmatprep.subr.mxu0 %v3681
        %4103 = vmatpush1.msra.mxu0 %v3680
        %4104 = vmatprep.subr.mxu0 %v3685
        %4105 = vmatpush1.msra.mxu0 %v3684
        %4106 = vmatprep.subr.mxu0 %v3689
        %4107 = vmatpush1.msra.mxu0 %v3688
        %4108 = vmatprep.subr.mxu0 %v3693
        %4109 = vmatpush1.msra.mxu0 %v3692
        %4110 = vmatprep.subr.mxu0 %v3697
        %4111 = vmatpush1.msra.mxu0 %v3696
        %4112 = vmatprep.subr.mxu0 %v3701
        %4113 = vmatpush1.msra.mxu0 %v3700
        %4114 = vmatprep.subr.mxu0 %v3705
        %4115 = vmatpush1.msra.mxu0 %v3704
        %4116 = vmatprep.subr.mxu0 %v3709
        %4117 = vmatpush1.msra.mxu0 %v3708
        %4118 = vmatprep.mubr.f32.mxu0 %v3581
        %4119 = vmatmul.mubr.f32.gmra.mrb[0].mxu0 %v3580
        %v4120 = vpop.f32.mrb[0].mxu0
        %v4121 = vadd.f32 %v3979, %v4120
        %v4122 = vpop.f32.mrb[0].mxu0
        %v4123 = vadd.f32 %v3981, %v4122
        %4124 = vdwg.mxu0
        %v4125 = vld [vmem:[#allocation2] sm:$0x1e]
        %v4126 = vld [vmem:[#allocation2 + $0x8] sm:$0x1e]
        %s4127 = scalar_lea.vmem [#allocation9], 2048
        %v4128 = vld [vmem:[%s4127] sm:$0xff]
        %v4129 = vld [vmem:[%s4127 + $0x8] sm:$0xff]
        %v4130 = vld [vmem:[%s4127 + $0x10] sm:$0xff]
        %v4131 = vld [vmem:[%s4127 + $0x18] sm:$0xff]
        %v4132 = vld [vmem:[%s4127 + $0x20] sm:$0xff]
        %v4133 = vld [vmem:[%s4127 + $0x28] sm:$0xff]
        %v4134 = vld [vmem:[%s4127 + $0x30] sm:$0xff]
        %v4135 = vld [vmem:[%s4127 + $0x38] sm:$0xff]
        %v4136 = vld [vmem:[%s4127 + $0x40] sm:$0xff]
        %v4137 = vld [vmem:[%s4127 + $0x48] sm:$0xff]
        %v4138 = vld [vmem:[%s4127 + $0x50] sm:$0xff]
        %v4139 = vld [vmem:[%s4127 + $0x58] sm:$0xff]
        %v4140 = vld [vmem:[%s4127 + $0x60] sm:$0xff]
        %v4141 = vld [vmem:[%s4127 + $0x68] sm:$0xff]
        %v4142 = vld [vmem:[%s4127 + $0x70] sm:$0xff]
        %v4143 = vld [vmem:[%s4127 + $0x78] sm:$0xff]
        %v4144 = vld [vmem:[%s4127 + $0x80] sm:$0xff]
        %v4145 = vld [vmem:[%s4127 + $0x88] sm:$0xff]
        %v4146 = vld [vmem:[%s4127 + $0x90] sm:$0xff]
        %v4147 = vld [vmem:[%s4127 + $0x98] sm:$0xff]
        %v4148 = vld [vmem:[%s4127 + $0xa0] sm:$0xff]
        %v4149 = vld [vmem:[%s4127 + $0xa8] sm:$0xff]
        %v4150 = vld [vmem:[%s4127 + $0xb0] sm:$0xff]
        %v4151 = vld [vmem:[%s4127 + $0xb8] sm:$0xff]
        %v4152 = vld [vmem:[%s4127 + $0xc0] sm:$0xff]
        %v4153 = vld [vmem:[%s4127 + $0xc8] sm:$0xff]
        %v4154 = vld [vmem:[%s4127 + $0xd0] sm:$0xff]
        %v4155 = vld [vmem:[%s4127 + $0xd8] sm:$0xff]
        %v4156 = vld [vmem:[%s4127 + $0xe0] sm:$0xff]
        %v4157 = vld [vmem:[%s4127 + $0xe8] sm:$0xff]
        %v4158 = vld [vmem:[%s4127 + $0xf0] sm:$0xff]
        %v4159 = vld [vmem:[%s4127 + $0xf8] sm:$0xff]
        %v4160 = vld [vmem:[%s4127 + $0x100] sm:$0xff]
        %v4161 = vld [vmem:[%s4127 + $0x108] sm:$0xff]
        %v4162 = vld [vmem:[%s4127 + $0x110] sm:$0xff]
        %v4163 = vld [vmem:[%s4127 + $0x118] sm:$0xff]
        %v4164 = vld [vmem:[%s4127 + $0x120] sm:$0xff]
        %v4165 = vld [vmem:[%s4127 + $0x128] sm:$0xff]
        %v4166 = vld [vmem:[%s4127 + $0x130] sm:$0xff]
        %v4167 = vld [vmem:[%s4127 + $0x138] sm:$0xff]
        %v4168 = vld [vmem:[%s4127 + $0x140] sm:$0xff]
        %v4169 = vld [vmem:[%s4127 + $0x148] sm:$0xff]
        %v4170 = vld [vmem:[%s4127 + $0x150] sm:$0xff]
        %v4171 = vld [vmem:[%s4127 + $0x158] sm:$0xff]
        %v4172 = vld [vmem:[%s4127 + $0x160] sm:$0xff]
        %v4173 = vld [vmem:[%s4127 + $0x168] sm:$0xff]
        %v4174 = vld [vmem:[%s4127 + $0x170] sm:$0xff]
        %v4175 = vld [vmem:[%s4127 + $0x178] sm:$0xff]
        %v4176 = vld [vmem:[%s4127 + $0x180] sm:$0xff]
        %v4177 = vld [vmem:[%s4127 + $0x188] sm:$0xff]
        %v4178 = vld [vmem:[%s4127 + $0x190] sm:$0xff]
        %v4179 = vld [vmem:[%s4127 + $0x198] sm:$0xff]
        %v4180 = vld [vmem:[%s4127 + $0x1a0] sm:$0xff]
        %v4181 = vld [vmem:[%s4127 + $0x1a8] sm:$0xff]
        %v4182 = vld [vmem:[%s4127 + $0x1b0] sm:$0xff]
        %v4183 = vld [vmem:[%s4127 + $0x1b8] sm:$0xff]
        %v4184 = vld [vmem:[%s4127 + $0x1c0] sm:$0xff]
        %v4185 = vld [vmem:[%s4127 + $0x1c8] sm:$0xff]
        %v4186 = vld [vmem:[%s4127 + $0x1d0] sm:$0xff]
        %v4187 = vld [vmem:[%s4127 + $0x1d8] sm:$0xff]
        %v4188 = vld [vmem:[%s4127 + $0x1e0] sm:$0xff]
        %v4189 = vld [vmem:[%s4127 + $0x1e8] sm:$0xff]
        %v4190 = vld [vmem:[%s4127 + $0x1f0] sm:$0xff]
        %v4191 = vld [vmem:[%s4127 + $0x1f8] sm:$0xff]
        %v4192 = vld [vmem:[%s4127 + $0x200] sm:$0xff]
        %v4193 = vld [vmem:[%s4127 + $0x208] sm:$0xff]
        %v4194 = vld [vmem:[%s4127 + $0x210] sm:$0xff]
        %v4195 = vld [vmem:[%s4127 + $0x218] sm:$0xff]
        %v4196 = vld [vmem:[%s4127 + $0x220] sm:$0xff]
        %v4197 = vld [vmem:[%s4127 + $0x228] sm:$0xff]
        %v4198 = vld [vmem:[%s4127 + $0x230] sm:$0xff]
        %v4199 = vld [vmem:[%s4127 + $0x238] sm:$0xff]
        %v4200 = vld [vmem:[%s4127 + $0x240] sm:$0xff]
        %v4201 = vld [vmem:[%s4127 + $0x248] sm:$0xff]
        %v4202 = vld [vmem:[%s4127 + $0x250] sm:$0xff]
        %v4203 = vld [vmem:[%s4127 + $0x258] sm:$0xff]
        %v4204 = vld [vmem:[%s4127 + $0x260] sm:$0xff]
        %v4205 = vld [vmem:[%s4127 + $0x268] sm:$0xff]
        %v4206 = vld [vmem:[%s4127 + $0x270] sm:$0xff]
        %v4207 = vld [vmem:[%s4127 + $0x278] sm:$0xff]
        %v4208 = vld [vmem:[%s4127 + $0x280] sm:$0xff]
        %v4209 = vld [vmem:[%s4127 + $0x288] sm:$0xff]
        %v4210 = vld [vmem:[%s4127 + $0x290] sm:$0xff]
        %v4211 = vld [vmem:[%s4127 + $0x298] sm:$0xff]
        %v4212 = vld [vmem:[%s4127 + $0x2a0] sm:$0xff]
        %v4213 = vld [vmem:[%s4127 + $0x2a8] sm:$0xff]
        %v4214 = vld [vmem:[%s4127 + $0x2b0] sm:$0xff]
        %v4215 = vld [vmem:[%s4127 + $0x2b8] sm:$0xff]
        %v4216 = vld [vmem:[%s4127 + $0x2c0] sm:$0xff]
        %v4217 = vld [vmem:[%s4127 + $0x2c8] sm:$0xff]
        %v4218 = vld [vmem:[%s4127 + $0x2d0] sm:$0xff]
        %v4219 = vld [vmem:[%s4127 + $0x2d8] sm:$0xff]
        %v4220 = vld [vmem:[%s4127 + $0x2e0] sm:$0xff]
        %v4221 = vld [vmem:[%s4127 + $0x2e8] sm:$0xff]
        %v4222 = vld [vmem:[%s4127 + $0x2f0] sm:$0xff]
        %v4223 = vld [vmem:[%s4127 + $0x2f8] sm:$0xff]
        %v4224 = vld [vmem:[%s4127 + $0x300] sm:$0xff]
        %v4225 = vld [vmem:[%s4127 + $0x308] sm:$0xff]
        %v4226 = vld [vmem:[%s4127 + $0x310] sm:$0xff]
        %v4227 = vld [vmem:[%s4127 + $0x318] sm:$0xff]
        %v4228 = vld [vmem:[%s4127 + $0x320] sm:$0xff]
        %v4229 = vld [vmem:[%s4127 + $0x328] sm:$0xff]
        %v4230 = vld [vmem:[%s4127 + $0x330] sm:$0xff]
        %v4231 = vld [vmem:[%s4127 + $0x338] sm:$0xff]
        %v4232 = vld [vmem:[%s4127 + $0x340] sm:$0xff]
        %v4233 = vld [vmem:[%s4127 + $0x348] sm:$0xff]
        %v4234 = vld [vmem:[%s4127 + $0x350] sm:$0xff]
        %v4235 = vld [vmem:[%s4127 + $0x358] sm:$0xff]
        %v4236 = vld [vmem:[%s4127 + $0x360] sm:$0xff]
        %v4237 = vld [vmem:[%s4127 + $0x368] sm:$0xff]
        %v4238 = vld [vmem:[%s4127 + $0x370] sm:$0xff]
        %v4239 = vld [vmem:[%s4127 + $0x378] sm:$0xff]
        %v4240 = vld [vmem:[%s4127 + $0x380] sm:$0xff]
        %v4241 = vld [vmem:[%s4127 + $0x388] sm:$0xff]
        %v4242 = vld [vmem:[%s4127 + $0x390] sm:$0xff]
        %v4243 = vld [vmem:[%s4127 + $0x398] sm:$0xff]
        %v4244 = vld [vmem:[%s4127 + $0x3a0] sm:$0xff]
        %v4245 = vld [vmem:[%s4127 + $0x3a8] sm:$0xff]
        %v4246 = vld [vmem:[%s4127 + $0x3b0] sm:$0xff]
        %v4247 = vld [vmem:[%s4127 + $0x3b8] sm:$0xff]
        %v4248 = vld [vmem:[%s4127 + $0x3c0] sm:$0xff]
        %v4249 = vld [vmem:[%s4127 + $0x3c8] sm:$0xff]
        %v4250 = vld [vmem:[%s4127 + $0x3d0] sm:$0xff]
        %v4251 = vld [vmem:[%s4127 + $0x3d8] sm:$0xff]
        %v4252 = vld [vmem:[%s4127 + $0x3e0] sm:$0xff]
        %v4253 = vld [vmem:[%s4127 + $0x3e8] sm:$0xff]
        %v4254 = vld [vmem:[%s4127 + $0x3f0] sm:$0xff]
        %v4255 = vld [vmem:[%s4127 + $0x3f8] sm:$0xff]
        %v4258 = vrot.slane %v4125, 1
        %v4259 = vrot.slane %v4126, 1
        %4262 = vmatprep.subr.mxu0 %v4129
        %4263 = vmatpush1.msra.mxu0 %v4128
        %4264 = vmatprep.subr.mxu0 %v4133
        %4265 = vmatpush1.msra.mxu0 %v4132
        %4266 = vmatprep.subr.mxu0 %v4137
        %4267 = vmatpush1.msra.mxu0 %v4136
        %4268 = vmatprep.subr.mxu0 %v4141
        %4269 = vmatpush1.msra.mxu0 %v4140
        %4270 = vmatprep.subr.mxu0 %v4145
        %4271 = vmatpush1.msra.mxu0 %v4144
        %4272 = vmatprep.subr.mxu0 %v4149
        %4273 = vmatpush1.msra.mxu0 %v4148
        %4274 = vmatprep.subr.mxu0 %v4153
        %4275 = vmatpush1.msra.mxu0 %v4152
        %4276 = vmatprep.subr.mxu0 %v4157
        %4277 = vmatpush1.msra.mxu0 %v4156
        %4278 = vmatprep.subr.mxu0 %v4161
        %4279 = vmatpush1.msra.mxu0 %v4160
        %4280 = vmatprep.subr.mxu0 %v4165
        %4281 = vmatpush1.msra.mxu0 %v4164
        %4282 = vmatprep.subr.mxu0 %v4169
        %4283 = vmatpush1.msra.mxu0 %v4168
        %4284 = vmatprep.subr.mxu0 %v4173
        %4285 = vmatpush1.msra.mxu0 %v4172
        %4286 = vmatprep.subr.mxu0 %v4177
        %4287 = vmatpush1.msra.mxu0 %v4176
        %4288 = vmatprep.subr.mxu0 %v4181
        %4289 = vmatpush1.msra.mxu0 %v4180
        %4290 = vmatprep.subr.mxu0 %v4185
        %4291 = vmatpush1.msra.mxu0 %v4184
        %4292 = vmatprep.subr.mxu0 %v4189
        %4293 = vmatpush1.msra.mxu0 %v4188
        %4294 = vmatprep.subr.mxu0 %v4193
        %4295 = vmatpush1.msra.mxu0 %v4192
        %4296 = vmatprep.subr.mxu0 %v4197
        %4297 = vmatpush1.msra.mxu0 %v4196
        %4298 = vmatprep.subr.mxu0 %v4201
        %4299 = vmatpush1.msra.mxu0 %v4200
        %4300 = vmatprep.subr.mxu0 %v4205
        %4301 = vmatpush1.msra.mxu0 %v4204
        %4302 = vmatprep.subr.mxu0 %v4209
        %4303 = vmatpush1.msra.mxu0 %v4208
        %4304 = vmatprep.subr.mxu0 %v4213
        %4305 = vmatpush1.msra.mxu0 %v4212
        %4306 = vmatprep.subr.mxu0 %v4217
        %4307 = vmatpush1.msra.mxu0 %v4216
        %4308 = vmatprep.subr.mxu0 %v4221
        %4309 = vmatpush1.msra.mxu0 %v4220
        %4310 = vmatprep.subr.mxu0 %v4225
        %4311 = vmatpush1.msra.mxu0 %v4224
        %4312 = vmatprep.subr.mxu0 %v4229
        %4313 = vmatpush1.msra.mxu0 %v4228
        %4314 = vmatprep.subr.mxu0 %v4233
        %4315 = vmatpush1.msra.mxu0 %v4232
        %4316 = vmatprep.subr.mxu0 %v4237
        %4317 = vmatpush1.msra.mxu0 %v4236
        %4318 = vmatprep.subr.mxu0 %v4241
        %4319 = vmatpush1.msra.mxu0 %v4240
        %4320 = vmatprep.subr.mxu0 %v4245
        %4321 = vmatpush1.msra.mxu0 %v4244
        %4322 = vmatprep.subr.mxu0 %v4249
        %4323 = vmatpush1.msra.mxu0 %v4248
        %4324 = vmatprep.subr.mxu0 %v4253
        %4325 = vmatpush1.msra.mxu0 %v4252
        %4326 = vmatprep.mubr.f32.mxu0 %v4259
        %4327 = vmatmul.mubr.f32.gmra.mrb[0].mxu0 %v4258
        %v4328 = vpop.f32.mrb[0].mxu0
        %v4329 = vadd.f32 0.0, %v4328
        %v4330 = vpop.f32.mrb[0].mxu0
        %v4331 = vadd.f32 0.0, %v4330
        %4332 = vdwg.mxu0
        %4333 = vmatprep.subr.mxu0 %v4131
        %4334 = vmatpush1.msra.mxu0 %v4130
        %4335 = vmatprep.subr.mxu0 %v4135
        %4336 = vmatpush1.msra.mxu0 %v4134
        %4337 = vmatprep.subr.mxu0 %v4139
        %4338 = vmatpush1.msra.mxu0 %v4138
        %4339 = vmatprep.subr.mxu0 %v4143
        %4340 = vmatpush1.msra.mxu0 %v4142
        %4341 = vmatprep.subr.mxu0 %v4147
        %4342 = vmatpush1.msra.mxu0 %v4146
        %4343 = vmatprep.subr.mxu0 %v4151
        %4344 = vmatpush1.msra.mxu0 %v4150
        %4345 = vmatprep.subr.mxu0 %v4155
        %4346 = vmatpush1.msra.mxu0 %v4154
        %4347 = vmatprep.subr.mxu0 %v4159
        %4348 = vmatpush1.msra.mxu0 %v4158
        %4349 = vmatprep.subr.mxu0 %v4163
        %4350 = vmatpush1.msra.mxu0 %v4162
        %4351 = vmatprep.subr.mxu0 %v4167
        %4352 = vmatpush1.msra.mxu0 %v4166
        %4353 = vmatprep.subr.mxu0 %v4171
        %4354 = vmatpush1.msra.mxu0 %v4170
        %4355 = vmatprep.subr.mxu0 %v4175
        %4356 = vmatpush1.msra.mxu0 %v4174
        %4357 = vmatprep.subr.mxu0 %v4179
        %4358 = vmatpush1.msra.mxu0 %v4178
        %4359 = vmatprep.subr.mxu0 %v4183
        %4360 = vmatpush1.msra.mxu0 %v4182
        %4361 = vmatprep.subr.mxu0 %v4187
        %4362 = vmatpush1.msra.mxu0 %v4186
        %4363 = vmatprep.subr.mxu0 %v4191
        %4364 = vmatpush1.msra.mxu0 %v4190
        %4365 = vmatprep.subr.mxu0 %v4195
        %4366 = vmatpush1.msra.mxu0 %v4194
        %4367 = vmatprep.subr.mxu0 %v4199
        %4368 = vmatpush1.msra.mxu0 %v4198
        %4369 = vmatprep.subr.mxu0 %v4203
        %4370 = vmatpush1.msra.mxu0 %v4202
        %4371 = vmatprep.subr.mxu0 %v4207
        %4372 = vmatpush1.msra.mxu0 %v4206
        %4373 = vmatprep.subr.mxu0 %v4211
        %4374 = vmatpush1.msra.mxu0 %v4210
        %4375 = vmatprep.subr.mxu0 %v4215
        %4376 = vmatpush1.msra.mxu0 %v4214
        %4377 = vmatprep.subr.mxu0 %v4219
        %4378 = vmatpush1.msra.mxu0 %v4218
        %4379 = vmatprep.subr.mxu0 %v4223
        %4380 = vmatpush1.msra.mxu0 %v4222
        %4381 = vmatprep.subr.mxu0 %v4227
        %4382 = vmatpush1.msra.mxu0 %v4226
        %4383 = vmatprep.subr.mxu0 %v4231
        %4384 = vmatpush1.msra.mxu0 %v4230
        %4385 = vmatprep.subr.mxu0 %v4235
        %4386 = vmatpush1.msra.mxu0 %v4234
        %4387 = vmatprep.subr.mxu0 %v4239
        %4388 = vmatpush1.msra.mxu0 %v4238
        %4389 = vmatprep.subr.mxu0 %v4243
        %4390 = vmatpush1.msra.mxu0 %v4242
        %4391 = vmatprep.subr.mxu0 %v4247
        %4392 = vmatpush1.msra.mxu0 %v4246
        %4393 = vmatprep.subr.mxu0 %v4251
        %4394 = vmatpush1.msra.mxu0 %v4250
        %4395 = vmatprep.subr.mxu0 %v4255
        %4396 = vmatpush1.msra.mxu0 %v4254
        %4397 = vmatprep.mubr.f32.mxu0 %v4259
        %4398 = vmatmul.mubr.f32.gmra.mrb[0].mxu0 %v4258
        %v4399 = vpop.f32.mrb[0].mxu0
        %v4400 = vadd.f32 0.0, %v4399
        %v4401 = vpop.f32.mrb[0].mxu0
        %v4402 = vadd.f32 0.0, %v4401
        %4403 = vdwg.mxu0
        %v4404 = vadd.f32 %v4050, %v4329
        %v4405 = vadd.f32 %v4052, %v4331
        %v4406 = vadd.f32 %v4121, %v4400
        %v4407 = vadd.f32 %v4123, %v4402
        %v4408 = vld [vmem:[%s3576] sm:$0x1e]
        %v4409 = vld [vmem:[%s3576 + $0x8] sm:$0x1e]
        %s4410 = scalar_lea.vmem [#allocation9], 3072
        %v4411 = vld [vmem:[%s4410] sm:$0xff]
        %v4412 = vld [vmem:[%s4410 + $0x8] sm:$0xff]
        %v4413 = vld [vmem:[%s4410 + $0x10] sm:$0xff]
        %v4414 = vld [vmem:[%s4410 + $0x18] sm:$0xff]
        %v4415 = vld [vmem:[%s4410 + $0x20] sm:$0xff]
        %v4416 = vld [vmem:[%s4410 + $0x28] sm:$0xff]
        %v4417 = vld [vmem:[%s4410 + $0x30] sm:$0xff]
        %v4418 = vld [vmem:[%s4410 + $0x38] sm:$0xff]
        %v4419 = vld [vmem:[%s4410 + $0x40] sm:$0xff]
        %v4420 = vld [vmem:[%s4410 + $0x48] sm:$0xff]
        %v4421 = vld [vmem:[%s4410 + $0x50] sm:$0xff]
        %v4422 = vld [vmem:[%s4410 + $0x58] sm:$0xff]
        %v4423 = vld [vmem:[%s4410 + $0x60] sm:$0xff]
        %v4424 = vld [vmem:[%s4410 + $0x68] sm:$0xff]
        %v4425 = vld [vmem:[%s4410 + $0x70] sm:$0xff]
        %v4426 = vld [vmem:[%s4410 + $0x78] sm:$0xff]
        %v4427 = vld [vmem:[%s4410 + $0x80] sm:$0xff]
        %v4428 = vld [vmem:[%s4410 + $0x88] sm:$0xff]
        %v4429 = vld [vmem:[%s4410 + $0x90] sm:$0xff]
        %v4430 = vld [vmem:[%s4410 + $0x98] sm:$0xff]
        %v4431 = vld [vmem:[%s4410 + $0xa0] sm:$0xff]
        %v4432 = vld [vmem:[%s4410 + $0xa8] sm:$0xff]
        %v4433 = vld [vmem:[%s4410 + $0xb0] sm:$0xff]
        %v4434 = vld [vmem:[%s4410 + $0xb8] sm:$0xff]
        %v4435 = vld [vmem:[%s4410 + $0xc0] sm:$0xff]
        %v4436 = vld [vmem:[%s4410 + $0xc8] sm:$0xff]
        %v4437 = vld [vmem:[%s4410 + $0xd0] sm:$0xff]
        %v4438 = vld [vmem:[%s4410 + $0xd8] sm:$0xff]
        %v4439 = vld [vmem:[%s4410 + $0xe0] sm:$0xff]
        %v4440 = vld [vmem:[%s4410 + $0xe8] sm:$0xff]
        %v4441 = vld [vmem:[%s4410 + $0xf0] sm:$0xff]
        %v4442 = vld [vmem:[%s4410 + $0xf8] sm:$0xff]
        %v4443 = vld [vmem:[%s4410 + $0x100] sm:$0xff]
        %v4444 = vld [vmem:[%s4410 + $0x108] sm:$0xff]
        %v4445 = vld [vmem:[%s4410 + $0x110] sm:$0xff]
        %v4446 = vld [vmem:[%s4410 + $0x118] sm:$0xff]
        %v4447 = vld [vmem:[%s4410 + $0x120] sm:$0xff]
        %v4448 = vld [vmem:[%s4410 + $0x128] sm:$0xff]
        %v4449 = vld [vmem:[%s4410 + $0x130] sm:$0xff]
        %v4450 = vld [vmem:[%s4410 + $0x138] sm:$0xff]
        %v4451 = vld [vmem:[%s4410 + $0x140] sm:$0xff]
        %v4452 = vld [vmem:[%s4410 + $0x148] sm:$0xff]
        %v4453 = vld [vmem:[%s4410 + $0x150] sm:$0xff]
        %v4454 = vld [vmem:[%s4410 + $0x158] sm:$0xff]
        %v4455 = vld [vmem:[%s4410 + $0x160] sm:$0xff]
        %v4456 = vld [vmem:[%s4410 + $0x168] sm:$0xff]
        %v4457 = vld [vmem:[%s4410 + $0x170] sm:$0xff]
        %v4458 = vld [vmem:[%s4410 + $0x178] sm:$0xff]
        %v4459 = vld [vmem:[%s4410 + $0x180] sm:$0xff]
        %v4460 = vld [vmem:[%s4410 + $0x188] sm:$0xff]
        %v4461 = vld [vmem:[%s4410 + $0x190] sm:$0xff]
        %v4462 = vld [vmem:[%s4410 + $0x198] sm:$0xff]
        %v4463 = vld [vmem:[%s4410 + $0x1a0] sm:$0xff]
        %v4464 = vld [vmem:[%s4410 + $0x1a8] sm:$0xff]
        %v4465 = vld [vmem:[%s4410 + $0x1b0] sm:$0xff]
        %v4466 = vld [vmem:[%s4410 + $0x1b8] sm:$0xff]
        %v4467 = vld [vmem:[%s4410 + $0x1c0] sm:$0xff]
        %v4468 = vld [vmem:[%s4410 + $0x1c8] sm:$0xff]
        %v4469 = vld [vmem:[%s4410 + $0x1d0] sm:$0xff]
        %v4470 = vld [vmem:[%s4410 + $0x1d8] sm:$0xff]
        %v4471 = vld [vmem:[%s4410 + $0x1e0] sm:$0xff]
        %v4472 = vld [vmem:[%s4410 + $0x1e8] sm:$0xff]
        %v4473 = vld [vmem:[%s4410 + $0x1f0] sm:$0xff]
        %v4474 = vld [vmem:[%s4410 + $0x1f8] sm:$0xff]
        %v4475 = vld [vmem:[%s4410 + $0x200] sm:$0xff]
        %v4476 = vld [vmem:[%s4410 + $0x208] sm:$0xff]
        %v4477 = vld [vmem:[%s4410 + $0x210] sm:$0xff]
        %v4478 = vld [vmem:[%s4410 + $0x218] sm:$0xff]
        %v4479 = vld [vmem:[%s4410 + $0x220] sm:$0xff]
        %v4480 = vld [vmem:[%s4410 + $0x228] sm:$0xff]
        %v4481 = vld [vmem:[%s4410 + $0x230] sm:$0xff]
        %v4482 = vld [vmem:[%s4410 + $0x238] sm:$0xff]
        %v4483 = vld [vmem:[%s4410 + $0x240] sm:$0xff]
        %v4484 = vld [vmem:[%s4410 + $0x248] sm:$0xff]
        %v4485 = vld [vmem:[%s4410 + $0x250] sm:$0xff]
        %v4486 = vld [vmem:[%s4410 + $0x258] sm:$0xff]
        %v4487 = vld [vmem:[%s4410 + $0x260] sm:$0xff]
        %v4488 = vld [vmem:[%s4410 + $0x268] sm:$0xff]
        %v4489 = vld [vmem:[%s4410 + $0x270] sm:$0xff]
        %v4490 = vld [vmem:[%s4410 + $0x278] sm:$0xff]
        %v4491 = vld [vmem:[%s4410 + $0x280] sm:$0xff]
        %v4492 = vld [vmem:[%s4410 + $0x288] sm:$0xff]
        %v4493 = vld [vmem:[%s4410 + $0x290] sm:$0xff]
        %v4494 = vld [vmem:[%s4410 + $0x298] sm:$0xff]
        %v4495 = vld [vmem:[%s4410 + $0x2a0] sm:$0xff]
        %v4496 = vld [vmem:[%s4410 + $0x2a8] sm:$0xff]
        %v4497 = vld [vmem:[%s4410 + $0x2b0] sm:$0xff]
        %v4498 = vld [vmem:[%s4410 + $0x2b8] sm:$0xff]
        %v4499 = vld [vmem:[%s4410 + $0x2c0] sm:$0xff]
        %v4500 = vld [vmem:[%s4410 + $0x2c8] sm:$0xff]
        %v4501 = vld [vmem:[%s4410 + $0x2d0] sm:$0xff]
        %v4502 = vld [vmem:[%s4410 + $0x2d8] sm:$0xff]
        %v4503 = vld [vmem:[%s4410 + $0x2e0] sm:$0xff]
        %v4504 = vld [vmem:[%s4410 + $0x2e8] sm:$0xff]
        %v4505 = vld [vmem:[%s4410 + $0x2f0] sm:$0xff]
        %v4506 = vld [vmem:[%s4410 + $0x2f8] sm:$0xff]
        %v4507 = vld [vmem:[%s4410 + $0x300] sm:$0xff]
        %v4508 = vld [vmem:[%s4410 + $0x308] sm:$0xff]
        %v4509 = vld [vmem:[%s4410 + $0x310] sm:$0xff]
        %v4510 = vld [vmem:[%s4410 + $0x318] sm:$0xff]
        %v4511 = vld [vmem:[%s4410 + $0x320] sm:$0xff]
        %v4512 = vld [vmem:[%s4410 + $0x328] sm:$0xff]
        %v4513 = vld [vmem:[%s4410 + $0x330] sm:$0xff]
        %v4514 = vld [vmem:[%s4410 + $0x338] sm:$0xff]
        %v4515 = vld [vmem:[%s4410 + $0x340] sm:$0xff]
        %v4516 = vld [vmem:[%s4410 + $0x348] sm:$0xff]
        %v4517 = vld [vmem:[%s4410 + $0x350] sm:$0xff]
        %v4518 = vld [vmem:[%s4410 + $0x358] sm:$0xff]
        %v4519 = vld [vmem:[%s4410 + $0x360] sm:$0xff]
        %v4520 = vld [vmem:[%s4410 + $0x368] sm:$0xff]
        %v4521 = vld [vmem:[%s4410 + $0x370] sm:$0xff]
        %v4522 = vld [vmem:[%s4410 + $0x378] sm:$0xff]
        %v4523 = vld [vmem:[%s4410 + $0x380] sm:$0xff]
        %v4524 = vld [vmem:[%s4410 + $0x388] sm:$0xff]
        %v4525 = vld [vmem:[%s4410 + $0x390] sm:$0xff]
        %v4526 = vld [vmem:[%s4410 + $0x398] sm:$0xff]
        %v4527 = vld [vmem:[%s4410 + $0x3a0] sm:$0xff]
        %v4528 = vld [vmem:[%s4410 + $0x3a8] sm:$0xff]
        %v4529 = vld [vmem:[%s4410 + $0x3b0] sm:$0xff]
        %v4530 = vld [vmem:[%s4410 + $0x3b8] sm:$0xff]
        %v4531 = vld [vmem:[%s4410 + $0x3c0] sm:$0xff]
        %v4532 = vld [vmem:[%s4410 + $0x3c8] sm:$0xff]
        %v4533 = vld [vmem:[%s4410 + $0x3d0] sm:$0xff]
        %v4534 = vld [vmem:[%s4410 + $0x3d8] sm:$0xff]
        %v4535 = vld [vmem:[%s4410 + $0x3e0] sm:$0xff]
        %v4536 = vld [vmem:[%s4410 + $0x3e8] sm:$0xff]
        %v4537 = vld [vmem:[%s4410 + $0x3f0] sm:$0xff]
        %v4538 = vld [vmem:[%s4410 + $0x3f8] sm:$0xff]
        %v4541 = vrot.slane %v4408, 1
        %v4542 = vrot.slane %v4409, 1
        %4545 = vmatprep.subr.mxu0 %v4412
        %4546 = vmatpush1.msra.mxu0 %v4411
        %4547 = vmatprep.subr.mxu0 %v4416
        %4548 = vmatpush1.msra.mxu0 %v4415
        %4549 = vmatprep.subr.mxu0 %v4420
        %4550 = vmatpush1.msra.mxu0 %v4419
        %4551 = vmatprep.subr.mxu0 %v4424
        %4552 = vmatpush1.msra.mxu0 %v4423
        %4553 = vmatprep.subr.mxu0 %v4428
        %4554 = vmatpush1.msra.mxu0 %v4427
        %4555 = vmatprep.subr.mxu0 %v4432
        %4556 = vmatpush1.msra.mxu0 %v4431
        %4557 = vmatprep.subr.mxu0 %v4436
        %4558 = vmatpush1.msra.mxu0 %v4435
        %4559 = vmatprep.subr.mxu0 %v4440
        %4560 = vmatpush1.msra.mxu0 %v4439
        %4561 = vmatprep.subr.mxu0 %v4444
        %4562 = vmatpush1.msra.mxu0 %v4443
        %4563 = vmatprep.subr.mxu0 %v4448
        %4564 = vmatpush1.msra.mxu0 %v4447
        %4565 = vmatprep.subr.mxu0 %v4452
        %4566 = vmatpush1.msra.mxu0 %v4451
        %4567 = vmatprep.subr.mxu0 %v4456
        %4568 = vmatpush1.msra.mxu0 %v4455
        %4569 = vmatprep.subr.mxu0 %v4460
        %4570 = vmatpush1.msra.mxu0 %v4459
        %4571 = vmatprep.subr.mxu0 %v4464
        %4572 = vmatpush1.msra.mxu0 %v4463
        %4573 = vmatprep.subr.mxu0 %v4468
        %4574 = vmatpush1.msra.mxu0 %v4467
        %4575 = vmatprep.subr.mxu0 %v4472
        %4576 = vmatpush1.msra.mxu0 %v4471
        %4577 = vmatprep.subr.mxu0 %v4476
        %4578 = vmatpush1.msra.mxu0 %v4475
        %4579 = vmatprep.subr.mxu0 %v4480
        %4580 = vmatpush1.msra.mxu0 %v4479
        %4581 = vmatprep.subr.mxu0 %v4484
        %4582 = vmatpush1.msra.mxu0 %v4483
        %4583 = vmatprep.subr.mxu0 %v4488
        %4584 = vmatpush1.msra.mxu0 %v4487
        %4585 = vmatprep.subr.mxu0 %v4492
        %4586 = vmatpush1.msra.mxu0 %v4491
        %4587 = vmatprep.subr.mxu0 %v4496
        %4588 = vmatpush1.msra.mxu0 %v4495
        %4589 = vmatprep.subr.mxu0 %v4500
        %4590 = vmatpush1.msra.mxu0 %v4499
        %4591 = vmatprep.subr.mxu0 %v4504
        %4592 = vmatpush1.msra.mxu0 %v4503
        %4593 = vmatprep.subr.mxu0 %v4508
        %4594 = vmatpush1.msra.mxu0 %v4507
        %4595 = vmatprep.subr.mxu0 %v4512
        %4596 = vmatpush1.msra.mxu0 %v4511
        %4597 = vmatprep.subr.mxu0 %v4516
        %4598 = vmatpush1.msra.mxu0 %v4515
        %4599 = vmatprep.subr.mxu0 %v4520
        %4600 = vmatpush1.msra.mxu0 %v4519
        %4601 = vmatprep.subr.mxu0 %v4524
        %4602 = vmatpush1.msra.mxu0 %v4523
        %4603 = vmatprep.subr.mxu0 %v4528
        %4604 = vmatpush1.msra.mxu0 %v4527
        %4605 = vmatprep.subr.mxu0 %v4532
        %4606 = vmatpush1.msra.mxu0 %v4531
        %4607 = vmatprep.subr.mxu0 %v4536
        %4608 = vmatpush1.msra.mxu0 %v4535
        %4609 = vmatprep.mubr.f32.mxu0 %v4542
        %4610 = vmatmul.mubr.f32.gmra.mrb[0].mxu0 %v4541
        %v4611 = vpop.f32.mrb[0].mxu0
        %v4612 = vadd.f32 0.0, %v4611
        %v4613 = vpop.f32.mrb[0].mxu0
        %v4614 = vadd.f32 0.0, %v4613
        %4615 = vdwg.mxu0
        %4616 = vmatprep.subr.mxu0 %v4414
        %4617 = vmatpush1.msra.mxu0 %v4413
        %4618 = vmatprep.subr.mxu0 %v4418
        %4619 = vmatpush1.msra.mxu0 %v4417
        %4620 = vmatprep.subr.mxu0 %v4422
        %4621 = vmatpush1.msra.mxu0 %v4421
        %4622 = vmatprep.subr.mxu0 %v4426
        %4623 = vmatpush1.msra.mxu0 %v4425
        %4624 = vmatprep.subr.mxu0 %v4430
        %4625 = vmatpush1.msra.mxu0 %v4429
        %4626 = vmatprep.subr.mxu0 %v4434
        %4627 = vmatpush1.msra.mxu0 %v4433
        %4628 = vmatprep.subr.mxu0 %v4438
        %4629 = vmatpush1.msra.mxu0 %v4437
        %4630 = vmatprep.subr.mxu0 %v4442
        %4631 = vmatpush1.msra.mxu0 %v4441
        %4632 = vmatprep.subr.mxu0 %v4446
        %4633 = vmatpush1.msra.mxu0 %v4445
        %4634 = vmatprep.subr.mxu0 %v4450
        %4635 = vmatpush1.msra.mxu0 %v4449
        %4636 = vmatprep.subr.mxu0 %v4454
        %4637 = vmatpush1.msra.mxu0 %v4453
        %4638 = vmatprep.subr.mxu0 %v4458
        %4639 = vmatpush1.msra.mxu0 %v4457
        %4640 = vmatprep.subr.mxu0 %v4462
        %4641 = vmatpush1.msra.mxu0 %v4461
        %4642 = vmatprep.subr.mxu0 %v4466
        %4643 = vmatpush1.msra.mxu0 %v4465
        %4644 = vmatprep.subr.mxu0 %v4470
        %4645 = vmatpush1.msra.mxu0 %v4469
        %4646 = vmatprep.subr.mxu0 %v4474
        %4647 = vmatpush1.msra.mxu0 %v4473
        %4648 = vmatprep.subr.mxu0 %v4478
        %4649 = vmatpush1.msra.mxu0 %v4477
        %4650 = vmatprep.subr.mxu0 %v4482
        %4651 = vmatpush1.msra.mxu0 %v4481
        %4652 = vmatprep.subr.mxu0 %v4486
        %4653 = vmatpush1.msra.mxu0 %v4485
        %4654 = vmatprep.subr.mxu0 %v4490
        %4655 = vmatpush1.msra.mxu0 %v4489
        %4656 = vmatprep.subr.mxu0 %v4494
        %4657 = vmatpush1.msra.mxu0 %v4493
        %4658 = vmatprep.subr.mxu0 %v4498
        %4659 = vmatpush1.msra.mxu0 %v4497
        %4660 = vmatprep.subr.mxu0 %v4502
        %4661 = vmatpush1.msra.mxu0 %v4501
        %4662 = vmatprep.subr.mxu0 %v4506
        %4663 = vmatpush1.msra.mxu0 %v4505
        %4664 = vmatprep.subr.mxu0 %v4510
        %4665 = vmatpush1.msra.mxu0 %v4509
        %4666 = vmatprep.subr.mxu0 %v4514
        %4667 = vmatpush1.msra.mxu0 %v4513
        %4668 = vmatprep.subr.mxu0 %v4518
        %4669 = vmatpush1.msra.mxu0 %v4517
        %4670 = vmatprep.subr.mxu0 %v4522
        %4671 = vmatpush1.msra.mxu0 %v4521
        %4672 = vmatprep.subr.mxu0 %v4526
        %4673 = vmatpush1.msra.mxu0 %v4525
        %4674 = vmatprep.subr.mxu0 %v4530
        %4675 = vmatpush1.msra.mxu0 %v4529
        %4676 = vmatprep.subr.mxu0 %v4534
        %4677 = vmatpush1.msra.mxu0 %v4533
        %4678 = vmatprep.subr.mxu0 %v4538
        %4679 = vmatpush1.msra.mxu0 %v4537
        %4680 = vmatprep.mubr.f32.mxu0 %v4542
        %4681 = vmatmul.mubr.f32.gmra.mrb[0].mxu0 %v4541
        %v4682 = vpop.f32.mrb[0].mxu0
        %v4683 = vadd.f32 0.0, %v4682
        %v4684 = vpop.f32.mrb[0].mxu0
        %v4685 = vadd.f32 0.0, %v4684
        %4686 = vdwg.mxu0
        %v4687 = vadd.f32 %v4404, %v4612
        %v4688 = vadd.f32 %v4405, %v4614
        %v4689 = vadd.f32 %v4406, %v4683
        %v4690 = vadd.f32 %v4407, %v4685
        %v4691 = vld [vmem:[#allocation2] sm:$0x3c]
        %v4692 = vld [vmem:[#allocation2 + $0x8] sm:$0x3c]
        %s4693 = scalar_lea.vmem [#allocation9], 4096
        %v4694 = vld [vmem:[%s4693] sm:$0xff]
        %v4695 = vld [vmem:[%s4693 + $0x8] sm:$0xff]
        %v4696 = vld [vmem:[%s4693 + $0x10] sm:$0xff]
        %v4697 = vld [vmem:[%s4693 + $0x18] sm:$0xff]
        %v4698 = vld [vmem:[%s4693 + $0x20] sm:$0xff]
        %v4699 = vld [vmem:[%s4693 + $0x28] sm:$0xff]
        %v4700 = vld [vmem:[%s4693 + $0x30] sm:$0xff]
        %v4701 = vld [vmem:[%s4693 + $0x38] sm:$0xff]
        %v4702 = vld [vmem:[%s4693 + $0x40] sm:$0xff]
        %v4703 = vld [vmem:[%s4693 + $0x48] sm:$0xff]
        %v4704 = vld [vmem:[%s4693 + $0x50] sm:$0xff]
        %v4705 = vld [vmem:[%s4693 + $0x58] sm:$0xff]
        %v4706 = vld [vmem:[%s4693 + $0x60] sm:$0xff]
        %v4707 = vld [vmem:[%s4693 + $0x68] sm:$0xff]
        %v4708 = vld [vmem:[%s4693 + $0x70] sm:$0xff]
        %v4709 = vld [vmem:[%s4693 + $0x78] sm:$0xff]
        %v4710 = vld [vmem:[%s4693 + $0x80] sm:$0xff]
        %v4711 = vld [vmem:[%s4693 + $0x88] sm:$0xff]
        %v4712 = vld [vmem:[%s4693 + $0x90] sm:$0xff]
        %v4713 = vld [vmem:[%s4693 + $0x98] sm:$0xff]
        %v4714 = vld [vmem:[%s4693 + $0xa0] sm:$0xff]
        %v4715 = vld [vmem:[%s4693 + $0xa8] sm:$0xff]
        %v4716 = vld [vmem:[%s4693 + $0xb0] sm:$0xff]
        %v4717 = vld [vmem:[%s4693 + $0xb8] sm:$0xff]
        %v4718 = vld [vmem:[%s4693 + $0xc0] sm:$0xff]
        %v4719 = vld [vmem:[%s4693 + $0xc8] sm:$0xff]
        %v4720 = vld [vmem:[%s4693 + $0xd0] sm:$0xff]
        %v4721 = vld [vmem:[%s4693 + $0xd8] sm:$0xff]
        %v4722 = vld [vmem:[%s4693 + $0xe0] sm:$0xff]
        %v4723 = vld [vmem:[%s4693 + $0xe8] sm:$0xff]
        %v4724 = vld [vmem:[%s4693 + $0xf0] sm:$0xff]
        %v4725 = vld [vmem:[%s4693 + $0xf8] sm:$0xff]
        %v4726 = vld [vmem:[%s4693 + $0x100] sm:$0xff]
        %v4727 = vld [vmem:[%s4693 + $0x108] sm:$0xff]
        %v4728 = vld [vmem:[%s4693 + $0x110] sm:$0xff]
        %v4729 = vld [vmem:[%s4693 + $0x118] sm:$0xff]
        %v4730 = vld [vmem:[%s4693 + $0x120] sm:$0xff]
        %v4731 = vld [vmem:[%s4693 + $0x128] sm:$0xff]
        %v4732 = vld [vmem:[%s4693 + $0x130] sm:$0xff]
        %v4733 = vld [vmem:[%s4693 + $0x138] sm:$0xff]
        %v4734 = vld [vmem:[%s4693 + $0x140] sm:$0xff]
        %v4735 = vld [vmem:[%s4693 + $0x148] sm:$0xff]
        %v4736 = vld [vmem:[%s4693 + $0x150] sm:$0xff]
        %v4737 = vld [vmem:[%s4693 + $0x158] sm:$0xff]
        %v4738 = vld [vmem:[%s4693 + $0x160] sm:$0xff]
        %v4739 = vld [vmem:[%s4693 + $0x168] sm:$0xff]
        %v4740 = vld [vmem:[%s4693 + $0x170] sm:$0xff]
        %v4741 = vld [vmem:[%s4693 + $0x178] sm:$0xff]
        %v4742 = vld [vmem:[%s4693 + $0x180] sm:$0xff]
        %v4743 = vld [vmem:[%s4693 + $0x188] sm:$0xff]
        %v4744 = vld [vmem:[%s4693 + $0x190] sm:$0xff]
        %v4745 = vld [vmem:[%s4693 + $0x198] sm:$0xff]
        %v4746 = vld [vmem:[%s4693 + $0x1a0] sm:$0xff]
        %v4747 = vld [vmem:[%s4693 + $0x1a8] sm:$0xff]
        %v4748 = vld [vmem:[%s4693 + $0x1b0] sm:$0xff]
        %v4749 = vld [vmem:[%s4693 + $0x1b8] sm:$0xff]
        %v4750 = vld [vmem:[%s4693 + $0x1c0] sm:$0xff]
        %v4751 = vld [vmem:[%s4693 + $0x1c8] sm:$0xff]
        %v4752 = vld [vmem:[%s4693 + $0x1d0] sm:$0xff]
        %v4753 = vld [vmem:[%s4693 + $0x1d8] sm:$0xff]
        %v4754 = vld [vmem:[%s4693 + $0x1e0] sm:$0xff]
        %v4755 = vld [vmem:[%s4693 + $0x1e8] sm:$0xff]
        %v4756 = vld [vmem:[%s4693 + $0x1f0] sm:$0xff]
        %v4757 = vld [vmem:[%s4693 + $0x1f8] sm:$0xff]
        %v4758 = vld [vmem:[%s4693 + $0x200] sm:$0xff]
        %v4759 = vld [vmem:[%s4693 + $0x208] sm:$0xff]
        %v4760 = vld [vmem:[%s4693 + $0x210] sm:$0xff]
        %v4761 = vld [vmem:[%s4693 + $0x218] sm:$0xff]
        %v4762 = vld [vmem:[%s4693 + $0x220] sm:$0xff]
        %v4763 = vld [vmem:[%s4693 + $0x228] sm:$0xff]
        %v4764 = vld [vmem:[%s4693 + $0x230] sm:$0xff]
        %v4765 = vld [vmem:[%s4693 + $0x238] sm:$0xff]
        %v4766 = vld [vmem:[%s4693 + $0x240] sm:$0xff]
        %v4767 = vld [vmem:[%s4693 + $0x248] sm:$0xff]
        %v4768 = vld [vmem:[%s4693 + $0x250] sm:$0xff]
        %v4769 = vld [vmem:[%s4693 + $0x258] sm:$0xff]
        %v4770 = vld [vmem:[%s4693 + $0x260] sm:$0xff]
        %v4771 = vld [vmem:[%s4693 + $0x268] sm:$0xff]
        %v4772 = vld [vmem:[%s4693 + $0x270] sm:$0xff]
        %v4773 = vld [vmem:[%s4693 + $0x278] sm:$0xff]
        %v4774 = vld [vmem:[%s4693 + $0x280] sm:$0xff]
        %v4775 = vld [vmem:[%s4693 + $0x288] sm:$0xff]
        %v4776 = vld [vmem:[%s4693 + $0x290] sm:$0xff]
        %v4777 = vld [vmem:[%s4693 + $0x298] sm:$0xff]
        %v4778 = vld [vmem:[%s4693 + $0x2a0] sm:$0xff]
        %v4779 = vld [vmem:[%s4693 + $0x2a8] sm:$0xff]
        %v4780 = vld [vmem:[%s4693 + $0x2b0] sm:$0xff]
        %v4781 = vld [vmem:[%s4693 + $0x2b8] sm:$0xff]
        %v4782 = vld [vmem:[%s4693 + $0x2c0] sm:$0xff]
        %v4783 = vld [vmem:[%s4693 + $0x2c8] sm:$0xff]
        %v4784 = vld [vmem:[%s4693 + $0x2d0] sm:$0xff]
        %v4785 = vld [vmem:[%s4693 + $0x2d8] sm:$0xff]
        %v4786 = vld [vmem:[%s4693 + $0x2e0] sm:$0xff]
        %v4787 = vld [vmem:[%s4693 + $0x2e8] sm:$0xff]
        %v4788 = vld [vmem:[%s4693 + $0x2f0] sm:$0xff]
        %v4789 = vld [vmem:[%s4693 + $0x2f8] sm:$0xff]
        %v4790 = vld [vmem:[%s4693 + $0x300] sm:$0xff]
        %v4791 = vld [vmem:[%s4693 + $0x308] sm:$0xff]
        %v4792 = vld [vmem:[%s4693 + $0x310] sm:$0xff]
        %v4793 = vld [vmem:[%s4693 + $0x318] sm:$0xff]
        %v4794 = vld [vmem:[%s4693 + $0x320] sm:$0xff]
        %v4795 = vld [vmem:[%s4693 + $0x328] sm:$0xff]
        %v4796 = vld [vmem:[%s4693 + $0x330] sm:$0xff]
        %v4797 = vld [vmem:[%s4693 + $0x338] sm:$0xff]
        %v4798 = vld [vmem:[%s4693 + $0x340] sm:$0xff]
        %v4799 = vld [vmem:[%s4693 + $0x348] sm:$0xff]
        %v4800 = vld [vmem:[%s4693 + $0x350] sm:$0xff]
        %v4801 = vld [vmem:[%s4693 + $0x358] sm:$0xff]
        %v4802 = vld [vmem:[%s4693 + $0x360] sm:$0xff]
        %v4803 = vld [vmem:[%s4693 + $0x368] sm:$0xff]
        %v4804 = vld [vmem:[%s4693 + $0x370] sm:$0xff]
        %v4805 = vld [vmem:[%s4693 + $0x378] sm:$0xff]
        %v4806 = vld [vmem:[%s4693 + $0x380] sm:$0xff]
        %v4807 = vld [vmem:[%s4693 + $0x388] sm:$0xff]
        %v4808 = vld [vmem:[%s4693 + $0x390] sm:$0xff]
        %v4809 = vld [vmem:[%s4693 + $0x398] sm:$0xff]
        %v4810 = vld [vmem:[%s4693 + $0x3a0] sm:$0xff]
        %v4811 = vld [vmem:[%s4693 + $0x3a8] sm:$0xff]
        %v4812 = vld [vmem:[%s4693 + $0x3b0] sm:$0xff]
        %v4813 = vld [vmem:[%s4693 + $0x3b8] sm:$0xff]
        %v4814 = vld [vmem:[%s4693 + $0x3c0] sm:$0xff]
        %v4815 = vld [vmem:[%s4693 + $0x3c8] sm:$0xff]
        %v4816 = vld [vmem:[%s4693 + $0x3d0] sm:$0xff]
        %v4817 = vld [vmem:[%s4693 + $0x3d8] sm:$0xff]
        %v4818 = vld [vmem:[%s4693 + $0x3e0] sm:$0xff]
        %v4819 = vld [vmem:[%s4693 + $0x3e8] sm:$0xff]
        %v4820 = vld [vmem:[%s4693 + $0x3f0] sm:$0xff]
        %v4821 = vld [vmem:[%s4693 + $0x3f8] sm:$0xff]
        %v4824 = vrot.slane %v4691, 2
        %v4825 = vrot.slane %v4692, 2
        %4828 = vmatprep.subr.mxu0 %v4695
        %4829 = vmatpush1.msra.mxu0 %v4694
        %4830 = vmatprep.subr.mxu0 %v4699
        %4831 = vmatpush1.msra.mxu0 %v4698
        %4832 = vmatprep.subr.mxu0 %v4703
        %4833 = vmatpush1.msra.mxu0 %v4702
        %4834 = vmatprep.subr.mxu0 %v4707
        %4835 = vmatpush1.msra.mxu0 %v4706
        %4836 = vmatprep.subr.mxu0 %v4711
        %4837 = vmatpush1.msra.mxu0 %v4710
        %4838 = vmatprep.subr.mxu0 %v4715
        %4839 = vmatpush1.msra.mxu0 %v4714
        %4840 = vmatprep.subr.mxu0 %v4719
        %4841 = vmatpush1.msra.mxu0 %v4718
        %4842 = vmatprep.subr.mxu0 %v4723
        %4843 = vmatpush1.msra.mxu0 %v4722
        %4844 = vmatprep.subr.mxu0 %v4727
        %4845 = vmatpush1.msra.mxu0 %v4726
        %4846 = vmatprep.subr.mxu0 %v4731
        %4847 = vmatpush1.msra.mxu0 %v4730
        %4848 = vmatprep.subr.mxu0 %v4735
        %4849 = vmatpush1.msra.mxu0 %v4734
        %4850 = vmatprep.subr.mxu0 %v4739
        %4851 = vmatpush1.msra.mxu0 %v4738
        %4852 = vmatprep.subr.mxu0 %v4743
        %4853 = vmatpush1.msra.mxu0 %v4742
        %4854 = vmatprep.subr.mxu0 %v4747
        %4855 = vmatpush1.msra.mxu0 %v4746
        %4856 = vmatprep.subr.mxu0 %v4751
        %4857 = vmatpush1.msra.mxu0 %v4750
        %4858 = vmatprep.subr.mxu0 %v4755
        %4859 = vmatpush1.msra.mxu0 %v4754
        %4860 = vmatprep.subr.mxu0 %v4759
        %4861 = vmatpush1.msra.mxu0 %v4758
        %4862 = vmatprep.subr.mxu0 %v4763
        %4863 = vmatpush1.msra.mxu0 %v4762
        %4864 = vmatprep.subr.mxu0 %v4767
        %4865 = vmatpush1.msra.mxu0 %v4766
        %4866 = vmatprep.subr.mxu0 %v4771
        %4867 = vmatpush1.msra.mxu0 %v4770
        %4868 = vmatprep.subr.mxu0 %v4775
        %4869 = vmatpush1.msra.mxu0 %v4774
        %4870 = vmatprep.subr.mxu0 %v4779
        %4871 = vmatpush1.msra.mxu0 %v4778
        %4872 = vmatprep.subr.mxu0 %v4783
        %4873 = vmatpush1.msra.mxu0 %v4782
        %4874 = vmatprep.subr.mxu0 %v4787
        %4875 = vmatpush1.msra.mxu0 %v4786
        %4876 = vmatprep.subr.mxu0 %v4791
        %4877 = vmatpush1.msra.mxu0 %v4790
        %4878 = vmatprep.subr.mxu0 %v4795
        %4879 = vmatpush1.msra.mxu0 %v4794
        %4880 = vmatprep.subr.mxu0 %v4799
        %4881 = vmatpush1.msra.mxu0 %v4798
        %4882 = vmatprep.subr.mxu0 %v4803
        %4883 = vmatpush1.msra.mxu0 %v4802
        %4884 = vmatprep.subr.mxu0 %v4807
        %4885 = vmatpush1.msra.mxu0 %v4806
        %4886 = vmatprep.subr.mxu0 %v4811
        %4887 = vmatpush1.msra.mxu0 %v4810
        %4888 = vmatprep.subr.mxu0 %v4815
        %4889 = vmatpush1.msra.mxu0 %v4814
        %4890 = vmatprep.subr.mxu0 %v4819
        %4891 = vmatpush1.msra.mxu0 %v4818
        %4892 = vmatprep.mubr.f32.mxu0 %v4825
        %4893 = vmatmul.mubr.f32.gmra.mrb[0].mxu0 %v4824
        %v4894 = vpop.f32.mrb[0].mxu0
        %v4895 = vadd.f32 0.0, %v4894
        %v4896 = vpop.f32.mrb[0].mxu0
        %v4897 = vadd.f32 0.0, %v4896
        %4898 = vdwg.mxu0
        %4899 = vmatprep.subr.mxu0 %v4697
        %4900 = vmatpush1.msra.mxu0 %v4696
        %4901 = vmatprep.subr.mxu0 %v4701
        %4902 = vmatpush1.msra.mxu0 %v4700
        %4903 = vmatprep.subr.mxu0 %v4705
        %4904 = vmatpush1.msra.mxu0 %v4704
        %4905 = vmatprep.subr.mxu0 %v4709
        %4906 = vmatpush1.msra.mxu0 %v4708
        %4907 = vmatprep.subr.mxu0 %v4713
        %4908 = vmatpush1.msra.mxu0 %v4712
        %4909 = vmatprep.subr.mxu0 %v4717
        %4910 = vmatpush1.msra.mxu0 %v4716
        %4911 = vmatprep.subr.mxu0 %v4721
        %4912 = vmatpush1.msra.mxu0 %v4720
        %4913 = vmatprep.subr.mxu0 %v4725
        %4914 = vmatpush1.msra.mxu0 %v4724
        %4915 = vmatprep.subr.mxu0 %v4729
        %4916 = vmatpush1.msra.mxu0 %v4728
        %4917 = vmatprep.subr.mxu0 %v4733
        %4918 = vmatpush1.msra.mxu0 %v4732
        %4919 = vmatprep.subr.mxu0 %v4737
        %4920 = vmatpush1.msra.mxu0 %v4736
        %4921 = vmatprep.subr.mxu0 %v4741
        %4922 = vmatpush1.msra.mxu0 %v4740
        %4923 = vmatprep.subr.mxu0 %v4745
        %4924 = vmatpush1.msra.mxu0 %v4744
        %4925 = vmatprep.subr.mxu0 %v4749
        %4926 = vmatpush1.msra.mxu0 %v4748
        %4927 = vmatprep.subr.mxu0 %v4753
        %4928 = vmatpush1.msra.mxu0 %v4752
        %4929 = vmatprep.subr.mxu0 %v4757
        %4930 = vmatpush1.msra.mxu0 %v4756
        %4931 = vmatprep.subr.mxu0 %v4761
        %4932 = vmatpush1.msra.mxu0 %v4760
        %4933 = vmatprep.subr.mxu0 %v4765
        %4934 = vmatpush1.msra.mxu0 %v4764
        %4935 = vmatprep.subr.mxu0 %v4769
        %4936 = vmatpush1.msra.mxu0 %v4768
        %4937 = vmatprep.subr.mxu0 %v4773
        %4938 = vmatpush1.msra.mxu0 %v4772
        %4939 = vmatprep.subr.mxu0 %v4777
        %4940 = vmatpush1.msra.mxu0 %v4776
        %4941 = vmatprep.subr.mxu0 %v4781
        %4942 = vmatpush1.msra.mxu0 %v4780
        %4943 = vmatprep.subr.mxu0 %v4785
        %4944 = vmatpush1.msra.mxu0 %v4784
        %4945 = vmatprep.subr.mxu0 %v4789
        %4946 = vmatpush1.msra.mxu0 %v4788
        %4947 = vmatprep.subr.mxu0 %v4793
        %4948 = vmatpush1.msra.mxu0 %v4792
        %4949 = vmatprep.subr.mxu0 %v4797
        %4950 = vmatpush1.msra.mxu0 %v4796
        %4951 = vmatprep.subr.mxu0 %v4801
        %4952 = vmatpush1.msra.mxu0 %v4800
        %4953 = vmatprep.subr.mxu0 %v4805
        %4954 = vmatpush1.msra.mxu0 %v4804
        %4955 = vmatprep.subr.mxu0 %v4809
        %4956 = vmatpush1.msra.mxu0 %v4808
        %4957 = vmatprep.subr.mxu0 %v4813
        %4958 = vmatpush1.msra.mxu0 %v4812
        %4959 = vmatprep.subr.mxu0 %v4817
        %4960 = vmatpush1.msra.mxu0 %v4816
        %4961 = vmatprep.subr.mxu0 %v4821
        %4962 = vmatpush1.msra.mxu0 %v4820
        %4963 = vmatprep.mubr.f32.mxu0 %v4825
        %4964 = vmatmul.mubr.f32.gmra.mrb[0].mxu0 %v4824
        %v4965 = vpop.f32.mrb[0].mxu0
        %v4966 = vadd.f32 0.0, %v4965
        %v4967 = vpop.f32.mrb[0].mxu0
        %v4968 = vadd.f32 0.0, %v4967
        %4969 = vdwg.mxu0
        %v4970 = vadd.f32 %v4687, %v4895
        %v4971 = vadd.f32 %v4688, %v4897
        %v4972 = vadd.f32 %v4689, %v4966
        %v4973 = vadd.f32 %v4690, %v4968
        %v4975 = vlaneseq
        %v4976 = vshrl.u32 %v4975, 7
        %v4977 = vsub.s32 0, %v4976
        %v4978 = vrot.slane %v3579, %v4977
        %v4979 = vlaneseq
        %v4980 = vshrl.u32 %v4979, 7
        %v4981 = vsub.s32 1, %v4980
        %v4982 = vrot.slane %v3579, %v4981
        %v4983 = vlaneseq
        %v4984 = vshrl.u32 %v4983, 7
        %v4985 = vsub.s32 2, %v4984
        %v4986 = vrot.slane %v3579, %v4985
        %v4987 = vlaneseq
        %v4988 = vshrl.u32 %v4987, 7
        %v4989 = vsub.s32 3, %v4988
        %v4990 = vrot.slane %v3579, %v4989
        %v4995 = vadd.f32 %v4970, %v4978
        %v4996 = vadd.f32 %v4971, %v4982
        %v4997 = vadd.f32 %v4972, %v4986
        %v4998 = vadd.f32 %v4973, %v4990
        %v4999 = vmax.f32 %v4995, 0.0
        %v5000 = vmax.f32 %v4996, 0.0
        %v5001 = vmax.f32 %v4997, 0.0
        %v5002 = vmax.f32 %v4998, 0.0
        %5003 = vmatprep.subr.mxu0 %v3714
        %5004 = vmatpush1.msra.mxu0 %v3713
        %5005 = vmatprep.subr.mxu0 %v3718
        %5006 = vmatpush1.msra.mxu0 %v3717
        %5007 = vmatprep.subr.mxu0 %v3722
        %5008 = vmatpush1.msra.mxu0 %v3721
        %5009 = vmatprep.subr.mxu0 %v3726
        %5010 = vmatpush1.msra.mxu0 %v3725
        %5011 = vmatprep.subr.mxu0 %v3730
        %5012 = vmatpush1.msra.mxu0 %v3729
        %5013 = vmatprep.subr.mxu0 %v3734
        %5014 = vmatpush1.msra.mxu0 %v3733
        %5015 = vmatprep.subr.mxu0 %v3738
        %5016 = vmatpush1.msra.mxu0 %v3737
        %5017 = vmatprep.subr.mxu0 %v3742
        %5018 = vmatpush1.msra.mxu0 %v3741
        %5019 = vmatprep.subr.mxu0 %v3746
        %5020 = vmatpush1.msra.mxu0 %v3745
        %5021 = vmatprep.subr.mxu0 %v3750
        %5022 = vmatpush1.msra.mxu0 %v3749
        %5023 = vmatprep.subr.mxu0 %v3754
        %5024 = vmatpush1.msra.mxu0 %v3753
        %5025 = vmatprep.subr.mxu0 %v3758
        %5026 = vmatpush1.msra.mxu0 %v3757
        %5027 = vmatprep.subr.mxu0 %v3762
        %5028 = vmatpush1.msra.mxu0 %v3761
        %5029 = vmatprep.subr.mxu0 %v3766
        %5030 = vmatpush1.msra.mxu0 %v3765
        %5031 = vmatprep.subr.mxu0 %v3770
        %5032 = vmatpush1.msra.mxu0 %v3769
        %5033 = vmatprep.subr.mxu0 %v3774
        %5034 = vmatpush1.msra.mxu0 %v3773
        %5035 = vmatprep.subr.mxu0 %v3778
        %5036 = vmatpush1.msra.mxu0 %v3777
        %5037 = vmatprep.subr.mxu0 %v3782
        %5038 = vmatpush1.msra.mxu0 %v3781
        %5039 = vmatprep.subr.mxu0 %v3786
        %5040 = vmatpush1.msra.mxu0 %v3785
        %5041 = vmatprep.subr.mxu0 %v3790
        %5042 = vmatpush1.msra.mxu0 %v3789
        %5043 = vmatprep.subr.mxu0 %v3794
        %5044 = vmatpush1.msra.mxu0 %v3793
        %5045 = vmatprep.subr.mxu0 %v3798
        %5046 = vmatpush1.msra.mxu0 %v3797
        %5047 = vmatprep.subr.mxu0 %v3802
        %5048 = vmatpush1.msra.mxu0 %v3801
        %5049 = vmatprep.subr.mxu0 %v3806
        %5050 = vmatpush1.msra.mxu0 %v3805
        %5051 = vmatprep.subr.mxu0 %v3810
        %5052 = vmatpush1.msra.mxu0 %v3809
        %5053 = vmatprep.subr.mxu0 %v3814
        %5054 = vmatpush1.msra.mxu0 %v3813
        %5055 = vmatprep.subr.mxu0 %v3818
        %5056 = vmatpush1.msra.mxu0 %v3817
        %5057 = vmatprep.subr.mxu0 %v3822
        %5058 = vmatpush1.msra.mxu0 %v3821
        %5059 = vmatprep.subr.mxu0 %v3826
        %5060 = vmatpush1.msra.mxu0 %v3825
        %5061 = vmatprep.subr.mxu0 %v3830
        %5062 = vmatpush1.msra.mxu0 %v3829
        %5063 = vmatprep.subr.mxu0 %v3834
        %5064 = vmatpush1.msra.mxu0 %v3833
        %5065 = vmatprep.subr.mxu0 %v3838
        %5066 = vmatpush1.msra.mxu0 %v3837
        %5067 = vmatprep.mubr.f32.mxu0 %v4259
        %5068 = vmatmul.mubr.f32.gmra.mrb[0].mxu0 %v4258
        %v5069 = vpop.f32.mrb[0].mxu0
        %v5070 = vadd.f32 0.0, %v5069
        %v5071 = vpop.f32.mrb[0].mxu0
        %v5072 = vadd.f32 0.0, %v5071
        %5073 = vdwg.mxu0
        %5074 = vmatprep.subr.mxu0 %v3716
        %5075 = vmatpush1.msra.mxu0 %v3715
        %5076 = vmatprep.subr.mxu0 %v3720
        %5077 = vmatpush1.msra.mxu0 %v3719
        %5078 = vmatprep.subr.mxu0 %v3724
        %5079 = vmatpush1.msra.mxu0 %v3723
        %5080 = vmatprep.subr.mxu0 %v3728
        %5081 = vmatpush1.msra.mxu0 %v3727
        %5082 = vmatprep.subr.mxu0 %v3732
        %5083 = vmatpush1.msra.mxu0 %v3731
        %5084 = vmatprep.subr.mxu0 %v3736
        %5085 = vmatpush1.msra.mxu0 %v3735
        %5086 = vmatprep.subr.mxu0 %v3740
        %5087 = vmatpush1.msra.mxu0 %v3739
        %5088 = vmatprep.subr.mxu0 %v3744
        %5089 = vmatpush1.msra.mxu0 %v3743
        %5090 = vmatprep.subr.mxu0 %v3748
        %5091 = vmatpush1.msra.mxu0 %v3747
        %5092 = vmatprep.subr.mxu0 %v3752
        %5093 = vmatpush1.msra.mxu0 %v3751
        %5094 = vmatprep.subr.mxu0 %v3756
        %5095 = vmatpush1.msra.mxu0 %v3755
        %5096 = vmatprep.subr.mxu0 %v3760
        %5097 = vmatpush1.msra.mxu0 %v3759
        %5098 = vmatprep.subr.mxu0 %v3764
        %5099 = vmatpush1.msra.mxu0 %v3763
        %5100 = vmatprep.subr.mxu0 %v3768
        %5101 = vmatpush1.msra.mxu0 %v3767
        %5102 = vmatprep.subr.mxu0 %v3772
        %5103 = vmatpush1.msra.mxu0 %v3771
        %5104 = vmatprep.subr.mxu0 %v3776
        %5105 = vmatpush1.msra.mxu0 %v3775
        %5106 = vmatprep.subr.mxu0 %v3780
        %5107 = vmatpush1.msra.mxu0 %v3779
        %5108 = vmatprep.subr.mxu0 %v3784
        %5109 = vmatpush1.msra.mxu0 %v3783
        %5110 = vmatprep.subr.mxu0 %v3788
        %5111 = vmatpush1.msra.mxu0 %v3787
        %5112 = vmatprep.subr.mxu0 %v3792
        %5113 = vmatpush1.msra.mxu0 %v3791
        %5114 = vmatprep.subr.mxu0 %v3796
        %5115 = vmatpush1.msra.mxu0 %v3795
        %5116 = vmatprep.subr.mxu0 %v3800
        %5117 = vmatpush1.msra.mxu0 %v3799
        %5118 = vmatprep.subr.mxu0 %v3804
        %5119 = vmatpush1.msra.mxu0 %v3803
        %5120 = vmatprep.subr.mxu0 %v3808
        %5121 = vmatpush1.msra.mxu0 %v3807
        %5122 = vmatprep.subr.mxu0 %v3812
        %5123 = vmatpush1.msra.mxu0 %v3811
        %5124 = vmatprep.subr.mxu0 %v3816
        %5125 = vmatpush1.msra.mxu0 %v3815
        %5126 = vmatprep.subr.mxu0 %v3820
        %5127 = vmatpush1.msra.mxu0 %v3819
        %5128 = vmatprep.subr.mxu0 %v3824
        %5129 = vmatpush1.msra.mxu0 %v3823
        %5130 = vmatprep.subr.mxu0 %v3828
        %5131 = vmatpush1.msra.mxu0 %v3827
        %5132 = vmatprep.subr.mxu0 %v3832
        %5133 = vmatpush1.msra.mxu0 %v3831
        %5134 = vmatprep.subr.mxu0 %v3836
        %5135 = vmatpush1.msra.mxu0 %v3835
        %5136 = vmatprep.subr.mxu0 %v3840
        %5137 = vmatpush1.msra.mxu0 %v3839
        %5138 = vmatprep.mubr.f32.mxu0 %v4259
        %5139 = vmatmul.mubr.f32.gmra.mrb[0].mxu0 %v4258
        %v5140 = vpop.f32.mrb[0].mxu0
        %v5141 = vadd.f32 0.0, %v5140
        %v5142 = vpop.f32.mrb[0].mxu0
        %v5143 = vadd.f32 0.0, %v5142
        %5144 = vdwg.mxu0
        %5145 = vmatprep.subr.mxu0 %v3583
        %5146 = vmatpush1.msra.mxu0 %v3582
        %5147 = vmatprep.subr.mxu0 %v3587
        %5148 = vmatpush1.msra.mxu0 %v3586
        %5149 = vmatprep.subr.mxu0 %v3591
        %5150 = vmatpush1.msra.mxu0 %v3590
        %5151 = vmatprep.subr.mxu0 %v3595
        %5152 = vmatpush1.msra.mxu0 %v3594
        %5153 = vmatprep.subr.mxu0 %v3599
        %5154 = vmatpush1.msra.mxu0 %v3598
        %5155 = vmatprep.subr.mxu0 %v3603
        %5156 = vmatpush1.msra.mxu0 %v3602
        %5157 = vmatprep.subr.mxu0 %v3607
        %5158 = vmatpush1.msra.mxu0 %v3606
        %5159 = vmatprep.subr.mxu0 %v3611
        %5160 = vmatpush1.msra.mxu0 %v3610
        %5161 = vmatprep.subr.mxu0 %v3615
        %5162 = vmatpush1.msra.mxu0 %v3614
        %5163 = vmatprep.subr.mxu0 %v3619
        %5164 = vmatpush1.msra.mxu0 %v3618
        %5165 = vmatprep.subr.mxu0 %v3623
        %5166 = vmatpush1.msra.mxu0 %v3622
        %5167 = vmatprep.subr.mxu0 %v3627
        %5168 = vmatpush1.msra.mxu0 %v3626
        %5169 = vmatprep.subr.mxu0 %v3631
        %5170 = vmatpush1.msra.mxu0 %v3630
        %5171 = vmatprep.subr.mxu0 %v3635
        %5172 = vmatpush1.msra.mxu0 %v3634
        %5173 = vmatprep.subr.mxu0 %v3639
        %5174 = vmatpush1.msra.mxu0 %v3638
        %5175 = vmatprep.subr.mxu0 %v3643
        %5176 = vmatpush1.msra.mxu0 %v3642
        %5177 = vmatprep.subr.mxu0 %v3647
        %5178 = vmatpush1.msra.mxu0 %v3646
        %5179 = vmatprep.subr.mxu0 %v3651
        %5180 = vmatpush1.msra.mxu0 %v3650
        %5181 = vmatprep.subr.mxu0 %v3655
        %5182 = vmatpush1.msra.mxu0 %v3654
        %5183 = vmatprep.subr.mxu0 %v3659
        %5184 = vmatpush1.msra.mxu0 %v3658
        %5185 = vmatprep.subr.mxu0 %v3663
        %5186 = vmatpush1.msra.mxu0 %v3662
        %5187 = vmatprep.subr.mxu0 %v3667
        %5188 = vmatpush1.msra.mxu0 %v3666
        %5189 = vmatprep.subr.mxu0 %v3671
        %5190 = vmatpush1.msra.mxu0 %v3670
        %5191 = vmatprep.subr.mxu0 %v3675
        %5192 = vmatpush1.msra.mxu0 %v3674
        %5193 = vmatprep.subr.mxu0 %v3679
        %5194 = vmatpush1.msra.mxu0 %v3678
        %5195 = vmatprep.subr.mxu0 %v3683
        %5196 = vmatpush1.msra.mxu0 %v3682
        %5197 = vmatprep.subr.mxu0 %v3687
        %5198 = vmatpush1.msra.mxu0 %v3686
        %5199 = vmatprep.subr.mxu0 %v3691
        %5200 = vmatpush1.msra.mxu0 %v3690
        %5201 = vmatprep.subr.mxu0 %v3695
        %5202 = vmatpush1.msra.mxu0 %v3694
        %5203 = vmatprep.subr.mxu0 %v3699
        %5204 = vmatpush1.msra.mxu0 %v3698
        %5205 = vmatprep.subr.mxu0 %v3703
        %5206 = vmatpush1.msra.mxu0 %v3702
        %5207 = vmatprep.subr.mxu0 %v3707
        %5208 = vmatpush1.msra.mxu0 %v3706
        %5209 = vmatprep.mubr.f32.mxu0 %v3711
        %5210 = vmatmul.mubr.f32.gmra.mrb[0].mxu0 %v3710
        %v5211 = vpop.f32.mrb[0].mxu0
        %v5212 = vadd.f32 %v5070, %v5211
        %v5213 = vpop.f32.mrb[0].mxu0
        %v5214 = vadd.f32 %v5072, %v5213
        %5215 = vdwg.mxu0
        %5216 = vmatprep.subr.mxu0 %v3585
        %5217 = vmatpush1.msra.mxu0 %v3584
        %5218 = vmatprep.subr.mxu0 %v3589
        %5219 = vmatpush1.msra.mxu0 %v3588
        %5220 = vmatprep.subr.mxu0 %v3593
        %5221 = vmatpush1.msra.mxu0 %v3592
        %5222 = vmatprep.subr.mxu0 %v3597
        %5223 = vmatpush1.msra.mxu0 %v3596
        %5224 = vmatprep.subr.mxu0 %v3601
        %5225 = vmatpush1.msra.mxu0 %v3600
        %5226 = vmatprep.subr.mxu0 %v3605
        %5227 = vmatpush1.msra.mxu0 %v3604
        %5228 = vmatprep.subr.mxu0 %v3609
        %5229 = vmatpush1.msra.mxu0 %v3608
        %5230 = vmatprep.subr.mxu0 %v3613
        %5231 = vmatpush1.msra.mxu0 %v3612
        %5232 = vmatprep.subr.mxu0 %v3617
        %5233 = vmatpush1.msra.mxu0 %v3616
        %5234 = vmatprep.subr.mxu0 %v3621
        %5235 = vmatpush1.msra.mxu0 %v3620
        %5236 = vmatprep.subr.mxu0 %v3625
        %5237 = vmatpush1.msra.mxu0 %v3624
        %5238 = vmatprep.subr.mxu0 %v3629
        %5239 = vmatpush1.msra.mxu0 %v3628
        %5240 = vmatprep.subr.mxu0 %v3633
        %5241 = vmatpush1.msra.mxu0 %v3632
        %5242 = vmatprep.subr.mxu0 %v3637
        %5243 = vmatpush1.msra.mxu0 %v3636
        %5244 = vmatprep.subr.mxu0 %v3641
        %5245 = vmatpush1.msra.mxu0 %v3640
        %5246 = vmatprep.subr.mxu0 %v3645
        %5247 = vmatpush1.msra.mxu0 %v3644
        %5248 = vmatprep.subr.mxu0 %v3649
        %5249 = vmatpush1.msra.mxu0 %v3648
        %5250 = vmatprep.subr.mxu0 %v3653
        %5251 = vmatpush1.msra.mxu0 %v3652
        %5252 = vmatprep.subr.mxu0 %v3657
        %5253 = vmatpush1.msra.mxu0 %v3656
        %5254 = vmatprep.subr.mxu0 %v3661
        %5255 = vmatpush1.msra.mxu0 %v3660
        %5256 = vmatprep.subr.mxu0 %v3665
        %5257 = vmatpush1.msra.mxu0 %v3664
        %5258 = vmatprep.subr.mxu0 %v3669
        %5259 = vmatpush1.msra.mxu0 %v3668
        %5260 = vmatprep.subr.mxu0 %v3673
        %5261 = vmatpush1.msra.mxu0 %v3672
        %5262 = vmatprep.subr.mxu0 %v3677
        %5263 = vmatpush1.msra.mxu0 %v3676
        %5264 = vmatprep.subr.mxu0 %v3681
        %5265 = vmatpush1.msra.mxu0 %v3680
        %5266 = vmatprep.subr.mxu0 %v3685
        %5267 = vmatpush1.msra.mxu0 %v3684
        %5268 = vmatprep.subr.mxu0 %v3689
        %5269 = vmatpush1.msra.mxu0 %v3688
        %5270 = vmatprep.subr.mxu0 %v3693
        %5271 = vmatpush1.msra.mxu0 %v3692
        %5272 = vmatprep.subr.mxu0 %v3697
        %5273 = vmatpush1.msra.mxu0 %v3696
        %5274 = vmatprep.subr.mxu0 %v3701
        %5275 = vmatpush1.msra.mxu0 %v3700
        %5276 = vmatprep.subr.mxu0 %v3705
        %5277 = vmatpush1.msra.mxu0 %v3704
        %5278 = vmatprep.subr.mxu0 %v3709
        %5279 = vmatpush1.msra.mxu0 %v3708
        %5280 = vmatprep.mubr.f32.mxu0 %v3711
        %5281 = vmatmul.mubr.f32.gmra.mrb[0].mxu0 %v3710
        %v5282 = vpop.f32.mrb[0].mxu0
        %v5283 = vadd.f32 %v5141, %v5282
        %v5284 = vpop.f32.mrb[0].mxu0
        %v5285 = vadd.f32 %v5143, %v5284
        %5286 = vdwg.mxu0
        %5287 = vmatprep.subr.mxu0 %v4129
        %5288 = vmatpush1.msra.mxu0 %v4128
        %5289 = vmatprep.subr.mxu0 %v4133
        %5290 = vmatpush1.msra.mxu0 %v4132
        %5291 = vmatprep.subr.mxu0 %v4137
        %5292 = vmatpush1.msra.mxu0 %v4136
        %5293 = vmatprep.subr.mxu0 %v4141
        %5294 = vmatpush1.msra.mxu0 %v4140
        %5295 = vmatprep.subr.mxu0 %v4145
        %5296 = vmatpush1.msra.mxu0 %v4144
        %5297 = vmatprep.subr.mxu0 %v4149
        %5298 = vmatpush1.msra.mxu0 %v4148
        %5299 = vmatprep.subr.mxu0 %v4153
        %5300 = vmatpush1.msra.mxu0 %v4152
        %5301 = vmatprep.subr.mxu0 %v4157
        %5302 = vmatpush1.msra.mxu0 %v4156
        %5303 = vmatprep.subr.mxu0 %v4161
        %5304 = vmatpush1.msra.mxu0 %v4160
        %5305 = vmatprep.subr.mxu0 %v4165
        %5306 = vmatpush1.msra.mxu0 %v4164
        %5307 = vmatprep.subr.mxu0 %v4169
        %5308 = vmatpush1.msra.mxu0 %v4168
        %5309 = vmatprep.subr.mxu0 %v4173
        %5310 = vmatpush1.msra.mxu0 %v4172
        %5311 = vmatprep.subr.mxu0 %v4177
        %5312 = vmatpush1.msra.mxu0 %v4176
        %5313 = vmatprep.subr.mxu0 %v4181
        %5314 = vmatpush1.msra.mxu0 %v4180
        %5315 = vmatprep.subr.mxu0 %v4185
        %5316 = vmatpush1.msra.mxu0 %v4184
        %5317 = vmatprep.subr.mxu0 %v4189
        %5318 = vmatpush1.msra.mxu0 %v4188
        %5319 = vmatprep.subr.mxu0 %v4193
        %5320 = vmatpush1.msra.mxu0 %v4192
        %5321 = vmatprep.subr.mxu0 %v4197
        %5322 = vmatpush1.msra.mxu0 %v4196
        %5323 = vmatprep.subr.mxu0 %v4201
        %5324 = vmatpush1.msra.mxu0 %v4200
        %5325 = vmatprep.subr.mxu0 %v4205
        %5326 = vmatpush1.msra.mxu0 %v4204
        %5327 = vmatprep.subr.mxu0 %v4209
        %5328 = vmatpush1.msra.mxu0 %v4208
        %5329 = vmatprep.subr.mxu0 %v4213
        %5330 = vmatpush1.msra.mxu0 %v4212
        %5331 = vmatprep.subr.mxu0 %v4217
        %5332 = vmatpush1.msra.mxu0 %v4216
        %5333 = vmatprep.subr.mxu0 %v4221
        %5334 = vmatpush1.msra.mxu0 %v4220
        %5335 = vmatprep.subr.mxu0 %v4225
        %5336 = vmatpush1.msra.mxu0 %v4224
        %5337 = vmatprep.subr.mxu0 %v4229
        %5338 = vmatpush1.msra.mxu0 %v4228
        %5339 = vmatprep.subr.mxu0 %v4233
        %5340 = vmatpush1.msra.mxu0 %v4232
        %5341 = vmatprep.subr.mxu0 %v4237
        %5342 = vmatpush1.msra.mxu0 %v4236
        %5343 = vmatprep.subr.mxu0 %v4241
        %5344 = vmatpush1.msra.mxu0 %v4240
        %5345 = vmatprep.subr.mxu0 %v4245
        %5346 = vmatpush1.msra.mxu0 %v4244
        %5347 = vmatprep.subr.mxu0 %v4249
        %5348 = vmatpush1.msra.mxu0 %v4248
        %5349 = vmatprep.subr.mxu0 %v4253
        %5350 = vmatpush1.msra.mxu0 %v4252
        %5351 = vmatprep.mubr.f32.mxu0 %v4542
        %5352 = vmatmul.mubr.f32.gmra.mrb[0].mxu0 %v4541
        %v5353 = vpop.f32.mrb[0].mxu0
        %v5354 = vadd.f32 0.0, %v5353
        %v5355 = vpop.f32.mrb[0].mxu0
        %v5356 = vadd.f32 0.0, %v5355
        %5357 = vdwg.mxu0
        %5358 = vmatprep.subr.mxu0 %v4131
        %5359 = vmatpush1.msra.mxu0 %v4130
        %5360 = vmatprep.subr.mxu0 %v4135
        %5361 = vmatpush1.msra.mxu0 %v4134
        %5362 = vmatprep.subr.mxu0 %v4139
        %5363 = vmatpush1.msra.mxu0 %v4138
        %5364 = vmatprep.subr.mxu0 %v4143
        %5365 = vmatpush1.msra.mxu0 %v4142
        %5366 = vmatprep.subr.mxu0 %v4147
        %5367 = vmatpush1.msra.mxu0 %v4146
        %5368 = vmatprep.subr.mxu0 %v4151
        %5369 = vmatpush1.msra.mxu0 %v4150
        %5370 = vmatprep.subr.mxu0 %v4155
        %5371 = vmatpush1.msra.mxu0 %v4154
        %5372 = vmatprep.subr.mxu0 %v4159
        %5373 = vmatpush1.msra.mxu0 %v4158
        %5374 = vmatprep.subr.mxu0 %v4163
        %5375 = vmatpush1.msra.mxu0 %v4162
        %5376 = vmatprep.subr.mxu0 %v4167
        %5377 = vmatpush1.msra.mxu0 %v4166
        %5378 = vmatprep.subr.mxu0 %v4171
        %5379 = vmatpush1.msra.mxu0 %v4170
        %5380 = vmatprep.subr.mxu0 %v4175
        %5381 = vmatpush1.msra.mxu0 %v4174
        %5382 = vmatprep.subr.mxu0 %v4179
        %5383 = vmatpush1.msra.mxu0 %v4178
        %5384 = vmatprep.subr.mxu0 %v4183
        %5385 = vmatpush1.msra.mxu0 %v4182
        %5386 = vmatprep.subr.mxu0 %v4187
        %5387 = vmatpush1.msra.mxu0 %v4186
        %5388 = vmatprep.subr.mxu0 %v4191
        %5389 = vmatpush1.msra.mxu0 %v4190
        %5390 = vmatprep.subr.mxu0 %v4195
        %5391 = vmatpush1.msra.mxu0 %v4194
        %5392 = vmatprep.subr.mxu0 %v4199
        %5393 = vmatpush1.msra.mxu0 %v4198
        %5394 = vmatprep.subr.mxu0 %v4203
        %5395 = vmatpush1.msra.mxu0 %v4202
        %5396 = vmatprep.subr.mxu0 %v4207
        %5397 = vmatpush1.msra.mxu0 %v4206
        %5398 = vmatprep.subr.mxu0 %v4211
        %5399 = vmatpush1.msra.mxu0 %v4210
        %5400 = vmatprep.subr.mxu0 %v4215
        %5401 = vmatpush1.msra.mxu0 %v4214
        %5402 = vmatprep.subr.mxu0 %v4219
        %5403 = vmatpush1.msra.mxu0 %v4218
        %5404 = vmatprep.subr.mxu0 %v4223
        %5405 = vmatpush1.msra.mxu0 %v4222
        %5406 = vmatprep.subr.mxu0 %v4227
        %5407 = vmatpush1.msra.mxu0 %v4226
        %5408 = vmatprep.subr.mxu0 %v4231
        %5409 = vmatpush1.msra.mxu0 %v4230
        %5410 = vmatprep.subr.mxu0 %v4235
        %5411 = vmatpush1.msra.mxu0 %v4234
        %5412 = vmatprep.subr.mxu0 %v4239
        %5413 = vmatpush1.msra.mxu0 %v4238
        %5414 = vmatprep.subr.mxu0 %v4243
        %5415 = vmatpush1.msra.mxu0 %v4242
        %5416 = vmatprep.subr.mxu0 %v4247
        %5417 = vmatpush1.msra.mxu0 %v4246
        %5418 = vmatprep.subr.mxu0 %v4251
        %5419 = vmatpush1.msra.mxu0 %v4250
        %5420 = vmatprep.subr.mxu0 %v4255
        %5421 = vmatpush1.msra.mxu0 %v4254
        %5422 = vmatprep.mubr.f32.mxu0 %v4542
        %5423 = vmatmul.mubr.f32.gmra.mrb[0].mxu0 %v4541
        %v5424 = vpop.f32.mrb[0].mxu0
        %v5425 = vadd.f32 0.0, %v5424
        %v5426 = vpop.f32.mrb[0].mxu0
        %v5427 = vadd.f32 0.0, %v5426
        %5428 = vdwg.mxu0
        %v5429 = vadd.f32 %v5212, %v5354
        %v5430 = vadd.f32 %v5214, %v5356
        %v5431 = vadd.f32 %v5283, %v5425
        %v5432 = vadd.f32 %v5285, %v5427
        %5433 = vmatprep.subr.mxu0 %v4412
        %5434 = vmatpush1.msra.mxu0 %v4411
        %5435 = vmatprep.subr.mxu0 %v4416
        %5436 = vmatpush1.msra.mxu0 %v4415
        %5437 = vmatprep.subr.mxu0 %v4420
        %5438 = vmatpush1.msra.mxu0 %v4419
        %5439 = vmatprep.subr.mxu0 %v4424
        %5440 = vmatpush1.msra.mxu0 %v4423
        %5441 = vmatprep.subr.mxu0 %v4428
        %5442 = vmatpush1.msra.mxu0 %v4427
        %5443 = vmatprep.subr.mxu0 %v4432
        %5444 = vmatpush1.msra.mxu0 %v4431
        %5445 = vmatprep.subr.mxu0 %v4436
        %5446 = vmatpush1.msra.mxu0 %v4435
        %5447 = vmatprep.subr.mxu0 %v4440
        %5448 = vmatpush1.msra.mxu0 %v4439
        %5449 = vmatprep.subr.mxu0 %v4444
        %5450 = vmatpush1.msra.mxu0 %v4443
        %5451 = vmatprep.subr.mxu0 %v4448
        %5452 = vmatpush1.msra.mxu0 %v4447
        %5453 = vmatprep.subr.mxu0 %v4452
        %5454 = vmatpush1.msra.mxu0 %v4451
        %5455 = vmatprep.subr.mxu0 %v4456
        %5456 = vmatpush1.msra.mxu0 %v4455
        %5457 = vmatprep.subr.mxu0 %v4460
        %5458 = vmatpush1.msra.mxu0 %v4459
        %5459 = vmatprep.subr.mxu0 %v4464
        %5460 = vmatpush1.msra.mxu0 %v4463
        %5461 = vmatprep.subr.mxu0 %v4468
        %5462 = vmatpush1.msra.mxu0 %v4467
        %5463 = vmatprep.subr.mxu0 %v4472
        %5464 = vmatpush1.msra.mxu0 %v4471
        %5465 = vmatprep.subr.mxu0 %v4476
        %5466 = vmatpush1.msra.mxu0 %v4475
        %5467 = vmatprep.subr.mxu0 %v4480
        %5468 = vmatpush1.msra.mxu0 %v4479
        %5469 = vmatprep.subr.mxu0 %v4484
        %5470 = vmatpush1.msra.mxu0 %v4483
        %5471 = vmatprep.subr.mxu0 %v4488
        %5472 = vmatpush1.msra.mxu0 %v4487
        %5473 = vmatprep.subr.mxu0 %v4492
        %5474 = vmatpush1.msra.mxu0 %v4491
        %5475 = vmatprep.subr.mxu0 %v4496
        %5476 = vmatpush1.msra.mxu0 %v4495
        %5477 = vmatprep.subr.mxu0 %v4500
        %5478 = vmatpush1.msra.mxu0 %v4499
        %5479 = vmatprep.subr.mxu0 %v4504
        %5480 = vmatpush1.msra.mxu0 %v4503
        %5481 = vmatprep.subr.mxu0 %v4508
        %5482 = vmatpush1.msra.mxu0 %v4507
        %5483 = vmatprep.subr.mxu0 %v4512
        %5484 = vmatpush1.msra.mxu0 %v4511
        %5485 = vmatprep.subr.mxu0 %v4516
        %5486 = vmatpush1.msra.mxu0 %v4515
        %5487 = vmatprep.subr.mxu0 %v4520
        %5488 = vmatpush1.msra.mxu0 %v4519
        %5489 = vmatprep.subr.mxu0 %v4524
        %5490 = vmatpush1.msra.mxu0 %v4523
        %5491 = vmatprep.subr.mxu0 %v4528
        %5492 = vmatpush1.msra.mxu0 %v4527
        %5493 = vmatprep.subr.mxu0 %v4532
        %5494 = vmatpush1.msra.mxu0 %v4531
        %5495 = vmatprep.subr.mxu0 %v4536
        %5496 = vmatpush1.msra.mxu0 %v4535
        %5497 = vmatprep.mubr.f32.mxu0 %v4825
        %5498 = vmatmul.mubr.f32.gmra.mrb[0].mxu0 %v4824
        %v5499 = vpop.f32.mrb[0].mxu0
        %v5500 = vadd.f32 0.0, %v5499
        %v5501 = vpop.f32.mrb[0].mxu0
        %v5502 = vadd.f32 0.0, %v5501
        %5503 = vdwg.mxu0
        %5504 = vmatprep.subr.mxu0 %v4414
        %5505 = vmatpush1.msra.mxu0 %v4413
        %5506 = vmatprep.subr.mxu0 %v4418
        %5507 = vmatpush1.msra.mxu0 %v4417
        %5508 = vmatprep.subr.mxu0 %v4422
        %5509 = vmatpush1.msra.mxu0 %v4421
        %5510 = vmatprep.subr.mxu0 %v4426
        %5511 = vmatpush1.msra.mxu0 %v4425
        %5512 = vmatprep.subr.mxu0 %v4430
        %5513 = vmatpush1.msra.mxu0 %v4429
        %5514 = vmatprep.subr.mxu0 %v4434
        %5515 = vmatpush1.msra.mxu0 %v4433
        %5516 = vmatprep.subr.mxu0 %v4438
        %5517 = vmatpush1.msra.mxu0 %v4437
        %5518 = vmatprep.subr.mxu0 %v4442
        %5519 = vmatpush1.msra.mxu0 %v4441
        %5520 = vmatprep.subr.mxu0 %v4446
        %5521 = vmatpush1.msra.mxu0 %v4445
        %5522 = vmatprep.subr.mxu0 %v4450
        %5523 = vmatpush1.msra.mxu0 %v4449
        %5524 = vmatprep.subr.mxu0 %v4454
        %5525 = vmatpush1.msra.mxu0 %v4453
        %5526 = vmatprep.subr.mxu0 %v4458
        %5527 = vmatpush1.msra.mxu0 %v4457
        %5528 = vmatprep.subr.mxu0 %v4462
        %5529 = vmatpush1.msra.mxu0 %v4461
        %5530 = vmatprep.subr.mxu0 %v4466
        %5531 = vmatpush1.msra.mxu0 %v4465
        %5532 = vmatprep.subr.mxu0 %v4470
        %5533 = vmatpush1.msra.mxu0 %v4469
        %5534 = vmatprep.subr.mxu0 %v4474
        %5535 = vmatpush1.msra.mxu0 %v4473
        %5536 = vmatprep.subr.mxu0 %v4478
        %5537 = vmatpush1.msra.mxu0 %v4477
        %5538 = vmatprep.subr.mxu0 %v4482
        %5539 = vmatpush1.msra.mxu0 %v4481
        %5540 = vmatprep.subr.mxu0 %v4486
        %5541 = vmatpush1.msra.mxu0 %v4485
        %5542 = vmatprep.subr.mxu0 %v4490
        %5543 = vmatpush1.msra.mxu0 %v4489
        %5544 = vmatprep.subr.mxu0 %v4494
        %5545 = vmatpush1.msra.mxu0 %v4493
        %5546 = vmatprep.subr.mxu0 %v4498
        %5547 = vmatpush1.msra.mxu0 %v4497
        %5548 = vmatprep.subr.mxu0 %v4502
        %5549 = vmatpush1.msra.mxu0 %v4501
        %5550 = vmatprep.subr.mxu0 %v4506
        %5551 = vmatpush1.msra.mxu0 %v4505
        %5552 = vmatprep.subr.mxu0 %v4510
        %5553 = vmatpush1.msra.mxu0 %v4509
        %5554 = vmatprep.subr.mxu0 %v4514
        %5555 = vmatpush1.msra.mxu0 %v4513
        %5556 = vmatprep.subr.mxu0 %v4518
        %5557 = vmatpush1.msra.mxu0 %v4517
        %5558 = vmatprep.subr.mxu0 %v4522
        %5559 = vmatpush1.msra.mxu0 %v4521
        %5560 = vmatprep.subr.mxu0 %v4526
        %5561 = vmatpush1.msra.mxu0 %v4525
        %5562 = vmatprep.subr.mxu0 %v4530
        %5563 = vmatpush1.msra.mxu0 %v4529
        %5564 = vmatprep.subr.mxu0 %v4534
        %5565 = vmatpush1.msra.mxu0 %v4533
        %5566 = vmatprep.subr.mxu0 %v4538
        %5567 = vmatpush1.msra.mxu0 %v4537
        %5568 = vmatprep.mubr.f32.mxu0 %v4825
        %5569 = vmatmul.mubr.f32.gmra.mrb[0].mxu0 %v4824
        %v5570 = vpop.f32.mrb[0].mxu0
        %v5571 = vadd.f32 0.0, %v5570
        %v5572 = vpop.f32.mrb[0].mxu0
        %v5573 = vadd.f32 0.0, %v5572
        %5574 = vdwg.mxu0
        %v5575 = vadd.f32 %v5429, %v5500
        %v5576 = vadd.f32 %v5430, %v5502
        %v5577 = vadd.f32 %v5431, %v5571
        %v5578 = vadd.f32 %v5432, %v5573
        %v5579 = vld [vmem:[%s3576] sm:$0x3c]
        %v5580 = vld [vmem:[%s3576 + $0x8] sm:$0x3c]
        %v5583 = vrot.slane %v5579, 2
        %v5584 = vrot.slane %v5580, 2
        %5587 = vmatprep.subr.mxu0 %v4695
        %5588 = vmatpush1.msra.mxu0 %v4694
        %5589 = vmatprep.subr.mxu0 %v4699
        %5590 = vmatpush1.msra.mxu0 %v4698
        %5591 = vmatprep.subr.mxu0 %v4703
        %5592 = vmatpush1.msra.mxu0 %v4702
        %5593 = vmatprep.subr.mxu0 %v4707
        %5594 = vmatpush1.msra.mxu0 %v4706
        %5595 = vmatprep.subr.mxu0 %v4711
        %5596 = vmatpush1.msra.mxu0 %v4710
        %5597 = vmatprep.subr.mxu0 %v4715
        %5598 = vmatpush1.msra.mxu0 %v4714
        %5599 = vmatprep.subr.mxu0 %v4719
        %5600 = vmatpush1.msra.mxu0 %v4718
        %5601 = vmatprep.subr.mxu0 %v4723
        %5602 = vmatpush1.msra.mxu0 %v4722
        %5603 = vmatprep.subr.mxu0 %v4727
        %5604 = vmatpush1.msra.mxu0 %v4726
        %5605 = vmatprep.subr.mxu0 %v4731
        %5606 = vmatpush1.msra.mxu0 %v4730
        %5607 = vmatprep.subr.mxu0 %v4735
        %5608 = vmatpush1.msra.mxu0 %v4734
        %5609 = vmatprep.subr.mxu0 %v4739
        %5610 = vmatpush1.msra.mxu0 %v4738
        %5611 = vmatprep.subr.mxu0 %v4743
        %5612 = vmatpush1.msra.mxu0 %v4742
        %5613 = vmatprep.subr.mxu0 %v4747
        %5614 = vmatpush1.msra.mxu0 %v4746
        %5615 = vmatprep.subr.mxu0 %v4751
        %5616 = vmatpush1.msra.mxu0 %v4750
        %5617 = vmatprep.subr.mxu0 %v4755
        %5618 = vmatpush1.msra.mxu0 %v4754
        %5619 = vmatprep.subr.mxu0 %v4759
        %5620 = vmatpush1.msra.mxu0 %v4758
        %5621 = vmatprep.subr.mxu0 %v4763
        %5622 = vmatpush1.msra.mxu0 %v4762
        %5623 = vmatprep.subr.mxu0 %v4767
        %5624 = vmatpush1.msra.mxu0 %v4766
        %5625 = vmatprep.subr.mxu0 %v4771
        %5626 = vmatpush1.msra.mxu0 %v4770
        %5627 = vmatprep.subr.mxu0 %v4775
        %5628 = vmatpush1.msra.mxu0 %v4774
        %5629 = vmatprep.subr.mxu0 %v4779
        %5630 = vmatpush1.msra.mxu0 %v4778
        %5631 = vmatprep.subr.mxu0 %v4783
        %5632 = vmatpush1.msra.mxu0 %v4782
        %5633 = vmatprep.subr.mxu0 %v4787
        %5634 = vmatpush1.msra.mxu0 %v4786
        %5635 = vmatprep.subr.mxu0 %v4791
        %5636 = vmatpush1.msra.mxu0 %v4790
        %5637 = vmatprep.subr.mxu0 %v4795
        %5638 = vmatpush1.msra.mxu0 %v4794
        %5639 = vmatprep.subr.mxu0 %v4799
        %5640 = vmatpush1.msra.mxu0 %v4798
        %5641 = vmatprep.subr.mxu0 %v4803
        %5642 = vmatpush1.msra.mxu0 %v4802
        %5643 = vmatprep.subr.mxu0 %v4807
        %5644 = vmatpush1.msra.mxu0 %v4806
        %5645 = vmatprep.subr.mxu0 %v4811
        %5646 = vmatpush1.msra.mxu0 %v4810
        %5647 = vmatprep.subr.mxu0 %v4815
        %5648 = vmatpush1.msra.mxu0 %v4814
        %5649 = vmatprep.subr.mxu0 %v4819
        %5650 = vmatpush1.msra.mxu0 %v4818
        %5651 = vmatprep.mubr.f32.mxu0 %v5584
        %5652 = vmatmul.mubr.f32.gmra.mrb[0].mxu0 %v5583
        %v5653 = vpop.f32.mrb[0].mxu0
        %v5654 = vadd.f32 0.0, %v5653
        %v5655 = vpop.f32.mrb[0].mxu0
        %v5656 = vadd.f32 0.0, %v5655
        %5657 = vdwg.mxu0
        %5658 = vmatprep.subr.mxu0 %v4697
        %5659 = vmatpush1.msra.mxu0 %v4696
        %5660 = vmatprep.subr.mxu0 %v4701
        %5661 = vmatpush1.msra.mxu0 %v4700
        %5662 = vmatprep.subr.mxu0 %v4705
        %5663 = vmatpush1.msra.mxu0 %v4704
        %5664 = vmatprep.subr.mxu0 %v4709
        %5665 = vmatpush1.msra.mxu0 %v4708
        %5666 = vmatprep.subr.mxu0 %v4713
        %5667 = vmatpush1.msra.mxu0 %v4712
        %5668 = vmatprep.subr.mxu0 %v4717
        %5669 = vmatpush1.msra.mxu0 %v4716
        %5670 = vmatprep.subr.mxu0 %v4721
        %5671 = vmatpush1.msra.mxu0 %v4720
        %5672 = vmatprep.subr.mxu0 %v4725
        %5673 = vmatpush1.msra.mxu0 %v4724
        %5674 = vmatprep.subr.mxu0 %v4729
        %5675 = vmatpush1.msra.mxu0 %v4728
        %5676 = vmatprep.subr.mxu0 %v4733
        %5677 = vmatpush1.msra.mxu0 %v4732
        %5678 = vmatprep.subr.mxu0 %v4737
        %5679 = vmatpush1.msra.mxu0 %v4736
        %5680 = vmatprep.subr.mxu0 %v4741
        %5681 = vmatpush1.msra.mxu0 %v4740
        %5682 = vmatprep.subr.mxu0 %v4745
        %5683 = vmatpush1.msra.mxu0 %v4744
        %5684 = vmatprep.subr.mxu0 %v4749
        %5685 = vmatpush1.msra.mxu0 %v4748
        %5686 = vmatprep.subr.mxu0 %v4753
        %5687 = vmatpush1.msra.mxu0 %v4752
        %5688 = vmatprep.subr.mxu0 %v4757
        %5689 = vmatpush1.msra.mxu0 %v4756
        %5690 = vmatprep.subr.mxu0 %v4761
        %5691 = vmatpush1.msra.mxu0 %v4760
        %5692 = vmatprep.subr.mxu0 %v4765
        %5693 = vmatpush1.msra.mxu0 %v4764
        %5694 = vmatprep.subr.mxu0 %v4769
        %5695 = vmatpush1.msra.mxu0 %v4768
        %5696 = vmatprep.subr.mxu0 %v4773
        %5697 = vmatpush1.msra.mxu0 %v4772
        %5698 = vmatprep.subr.mxu0 %v4777
        %5699 = vmatpush1.msra.mxu0 %v4776
        %5700 = vmatprep.subr.mxu0 %v4781
        %5701 = vmatpush1.msra.mxu0 %v4780
        %5702 = vmatprep.subr.mxu0 %v4785
        %5703 = vmatpush1.msra.mxu0 %v4784
        %5704 = vmatprep.subr.mxu0 %v4789
        %5705 = vmatpush1.msra.mxu0 %v4788
        %5706 = vmatprep.subr.mxu0 %v4793
        %5707 = vmatpush1.msra.mxu0 %v4792
        %5708 = vmatprep.subr.mxu0 %v4797
        %5709 = vmatpush1.msra.mxu0 %v4796
        %5710 = vmatprep.subr.mxu0 %v4801
        %5711 = vmatpush1.msra.mxu0 %v4800
        %5712 = vmatprep.subr.mxu0 %v4805
        %5713 = vmatpush1.msra.mxu0 %v4804
        %5714 = vmatprep.subr.mxu0 %v4809
        %5715 = vmatpush1.msra.mxu0 %v4808
        %5716 = vmatprep.subr.mxu0 %v4813
        %5717 = vmatpush1.msra.mxu0 %v4812
        %5718 = vmatprep.subr.mxu0 %v4817
        %5719 = vmatpush1.msra.mxu0 %v4816
        %5720 = vmatprep.subr.mxu0 %v4821
        %5721 = vmatpush1.msra.mxu0 %v4820
        %5722 = vmatprep.mubr.f32.mxu0 %v5584
        %5723 = vmatmul.mubr.f32.gmra.mrb[0].mxu0 %v5583
        %v5724 = vpop.f32.mrb[0].mxu0
        %v5725 = vadd.f32 0.0, %v5724
        %v5726 = vpop.f32.mrb[0].mxu0
        %v5727 = vadd.f32 0.0, %v5726
        %5728 = vdwg.mxu0
        %v5729 = vadd.f32 %v5575, %v5654
        %v5730 = vadd.f32 %v5576, %v5656
        %v5731 = vadd.f32 %v5577, %v5725
        %v5732 = vadd.f32 %v5578, %v5727
        %v5733 = vadd.f32 %v5729, %v4978
        %v5734 = vadd.f32 %v5730, %v4982
        %v5735 = vadd.f32 %v5731, %v4986
        %v5736 = vadd.f32 %v5732, %v4990
        %v5737 = vmax.f32 %v5733, 0.0
        %v5738 = vmax.f32 %v5734, 0.0
        %v5739 = vmax.f32 %v5735, 0.0
        %v5740 = vmax.f32 %v5736, 0.0
        %v5741 = vmax.f32 %v4999, %v5737
        %v5742 = vmax.f32 %v5000, %v5738
        %v5743 = vmax.f32 %v5001, %v5739
        %v5744 = vmax.f32 %v5002, %v5740
        %v5745 = vmax.f32 %v5741, %v5743
        %v5746 = vmax.f32 %v5742, %v5744
        %v5749 = vcombine.low %v5745, %v5746
        %5751 = vst [vmem:[#allocation3] sm:$0xff] %v5749
        %v5752 = vld [vmem:[#allocation13] sm:$0xf]
        %v5753 = vld [vmem:[#allocation3] ss:$4 sm:$0x3]
        %v5754 = vld [vmem:[#allocation12] sm:$0xff]
        %v5755 = vld [vmem:[#allocation12 + $0x8] sm:$0xff]
        %v5756 = vld [vmem:[#allocation12 + $0x10] sm:$0xff]
        %v5757 = vld [vmem:[#allocation12 + $0x18] sm:$0xff]
        %v5758 = vld [vmem:[#allocation12 + $0x20] sm:$0xff]
        %v5759 = vld [vmem:[#allocation12 + $0x28] sm:$0xff]
        %v5760 = vld [vmem:[#allocation12 + $0x30] sm:$0xff]
        %v5761 = vld [vmem:[#allocation12 + $0x38] sm:$0xff]
        %v5762 = vld [vmem:[#allocation12 + $0x40] sm:$0xff]
        %v5763 = vld [vmem:[#allocation12 + $0x48] sm:$0xff]
        %v5764 = vld [vmem:[#allocation12 + $0x50] sm:$0xff]
        %v5765 = vld [vmem:[#allocation12 + $0x58] sm:$0xff]
        %v5766 = vld [vmem:[#allocation12 + $0x60] sm:$0xff]
        %v5767 = vld [vmem:[#allocation12 + $0x68] sm:$0xff]
        %v5768 = vld [vmem:[#allocation12 + $0x70] sm:$0xff]
        %v5769 = vld [vmem:[#allocation12 + $0x78] sm:$0xff]
        %v5770 = vld [vmem:[#allocation12 + $0x80] sm:$0xff]
        %v5771 = vld [vmem:[#allocation12 + $0x88] sm:$0xff]
        %v5772 = vld [vmem:[#allocation12 + $0x90] sm:$0xff]
        %v5773 = vld [vmem:[#allocation12 + $0x98] sm:$0xff]
        %v5774 = vld [vmem:[#allocation12 + $0xa0] sm:$0xff]
        %v5775 = vld [vmem:[#allocation12 + $0xa8] sm:$0xff]
        %v5776 = vld [vmem:[#allocation12 + $0xb0] sm:$0xff]
        %v5777 = vld [vmem:[#allocation12 + $0xb8] sm:$0xff]
        %v5778 = vld [vmem:[#allocation12 + $0xc0] sm:$0xff]
        %v5779 = vld [vmem:[#allocation12 + $0xc8] sm:$0xff]
        %v5780 = vld [vmem:[#allocation12 + $0xd0] sm:$0xff]
        %v5781 = vld [vmem:[#allocation12 + $0xd8] sm:$0xff]
        %v5782 = vld [vmem:[#allocation12 + $0xe0] sm:$0xff]
        %v5783 = vld [vmem:[#allocation12 + $0xe8] sm:$0xff]
        %v5784 = vld [vmem:[#allocation12 + $0xf0] sm:$0xff]
        %v5785 = vld [vmem:[#allocation12 + $0xf8] sm:$0xff]
        %v5786 = vld [vmem:[#allocation12 + $0x100] sm:$0xff]
        %v5787 = vld [vmem:[#allocation12 + $0x108] sm:$0xff]
        %v5788 = vld [vmem:[#allocation12 + $0x110] sm:$0xff]
        %v5789 = vld [vmem:[#allocation12 + $0x118] sm:$0xff]
        %v5790 = vld [vmem:[#allocation12 + $0x120] sm:$0xff]
        %v5791 = vld [vmem:[#allocation12 + $0x128] sm:$0xff]
        %v5792 = vld [vmem:[#allocation12 + $0x130] sm:$0xff]
        %v5793 = vld [vmem:[#allocation12 + $0x138] sm:$0xff]
        %v5794 = vld [vmem:[#allocation12 + $0x140] sm:$0xff]
        %v5795 = vld [vmem:[#allocation12 + $0x148] sm:$0xff]
        %v5796 = vld [vmem:[#allocation12 + $0x150] sm:$0xff]
        %v5797 = vld [vmem:[#allocation12 + $0x158] sm:$0xff]
        %v5798 = vld [vmem:[#allocation12 + $0x160] sm:$0xff]
        %v5799 = vld [vmem:[#allocation12 + $0x168] sm:$0xff]
        %v5800 = vld [vmem:[#allocation12 + $0x170] sm:$0xff]
        %v5801 = vld [vmem:[#allocation12 + $0x178] sm:$0xff]
        %v5802 = vld [vmem:[#allocation12 + $0x180] sm:$0xff]
        %v5803 = vld [vmem:[#allocation12 + $0x188] sm:$0xff]
        %v5804 = vld [vmem:[#allocation12 + $0x190] sm:$0xff]
        %v5805 = vld [vmem:[#allocation12 + $0x198] sm:$0xff]
        %v5806 = vld [vmem:[#allocation12 + $0x1a0] sm:$0xff]
        %v5807 = vld [vmem:[#allocation12 + $0x1a8] sm:$0xff]
        %v5808 = vld [vmem:[#allocation12 + $0x1b0] sm:$0xff]
        %v5809 = vld [vmem:[#allocation12 + $0x1b8] sm:$0xff]
        %v5810 = vld [vmem:[#allocation12 + $0x1c0] sm:$0xff]
        %v5811 = vld [vmem:[#allocation12 + $0x1c8] sm:$0xff]
        %v5812 = vld [vmem:[#allocation12 + $0x1d0] sm:$0xff]
        %v5813 = vld [vmem:[#allocation12 + $0x1d8] sm:$0xff]
        %v5814 = vld [vmem:[#allocation12 + $0x1e0] sm:$0xff]
        %v5815 = vld [vmem:[#allocation12 + $0x1e8] sm:$0xff]
        %v5816 = vld [vmem:[#allocation12 + $0x1f0] sm:$0xff]
        %v5817 = vld [vmem:[#allocation12 + $0x1f8] sm:$0xff]
        %v5818 = vld [vmem:[#allocation12 + $0x200] sm:$0xff]
        %v5819 = vld [vmem:[#allocation12 + $0x208] sm:$0xff]
        %v5820 = vld [vmem:[#allocation12 + $0x210] sm:$0xff]
        %v5821 = vld [vmem:[#allocation12 + $0x218] sm:$0xff]
        %v5822 = vld [vmem:[#allocation12 + $0x220] sm:$0xff]
        %v5823 = vld [vmem:[#allocation12 + $0x228] sm:$0xff]
        %v5824 = vld [vmem:[#allocation12 + $0x230] sm:$0xff]
        %v5825 = vld [vmem:[#allocation12 + $0x238] sm:$0xff]
        %v5826 = vld [vmem:[#allocation12 + $0x240] sm:$0xff]
        %v5827 = vld [vmem:[#allocation12 + $0x248] sm:$0xff]
        %v5828 = vld [vmem:[#allocation12 + $0x250] sm:$0xff]
        %v5829 = vld [vmem:[#allocation12 + $0x258] sm:$0xff]
        %v5830 = vld [vmem:[#allocation12 + $0x260] sm:$0xff]
        %v5831 = vld [vmem:[#allocation12 + $0x268] sm:$0xff]
        %v5832 = vld [vmem:[#allocation12 + $0x270] sm:$0xff]
        %v5833 = vld [vmem:[#allocation12 + $0x278] sm:$0xff]
        %v5834 = vld [vmem:[#allocation12 + $0x280] sm:$0xff]
        %v5835 = vld [vmem:[#allocation12 + $0x288] sm:$0xff]
        %v5836 = vld [vmem:[#allocation12 + $0x290] sm:$0xff]
        %v5837 = vld [vmem:[#allocation12 + $0x298] sm:$0xff]
        %v5838 = vld [vmem:[#allocation12 + $0x2a0] sm:$0xff]
        %v5839 = vld [vmem:[#allocation12 + $0x2a8] sm:$0xff]
        %v5840 = vld [vmem:[#allocation12 + $0x2b0] sm:$0xff]
        %v5841 = vld [vmem:[#allocation12 + $0x2b8] sm:$0xff]
        %v5842 = vld [vmem:[#allocation12 + $0x2c0] sm:$0xff]
        %v5843 = vld [vmem:[#allocation12 + $0x2c8] sm:$0xff]
        %v5844 = vld [vmem:[#allocation12 + $0x2d0] sm:$0xff]
        %v5845 = vld [vmem:[#allocation12 + $0x2d8] sm:$0xff]
        %v5846 = vld [vmem:[#allocation12 + $0x2e0] sm:$0xff]
        %v5847 = vld [vmem:[#allocation12 + $0x2e8] sm:$0xff]
        %v5848 = vld [vmem:[#allocation12 + $0x2f0] sm:$0xff]
        %v5849 = vld [vmem:[#allocation12 + $0x2f8] sm:$0xff]
        %v5850 = vld [vmem:[#allocation12 + $0x300] sm:$0xff]
        %v5851 = vld [vmem:[#allocation12 + $0x308] sm:$0xff]
        %v5852 = vld [vmem:[#allocation12 + $0x310] sm:$0xff]
        %v5853 = vld [vmem:[#allocation12 + $0x318] sm:$0xff]
        %v5854 = vld [vmem:[#allocation12 + $0x320] sm:$0xff]
        %v5855 = vld [vmem:[#allocation12 + $0x328] sm:$0xff]
        %v5856 = vld [vmem:[#allocation12 + $0x330] sm:$0xff]
        %v5857 = vld [vmem:[#allocation12 + $0x338] sm:$0xff]
        %v5858 = vld [vmem:[#allocation12 + $0x340] sm:$0xff]
        %v5859 = vld [vmem:[#allocation12 + $0x348] sm:$0xff]
        %v5860 = vld [vmem:[#allocation12 + $0x350] sm:$0xff]
        %v5861 = vld [vmem:[#allocation12 + $0x358] sm:$0xff]
        %v5862 = vld [vmem:[#allocation12 + $0x360] sm:$0xff]
        %v5863 = vld [vmem:[#allocation12 + $0x368] sm:$0xff]
        %v5864 = vld [vmem:[#allocation12 + $0x370] sm:$0xff]
        %v5865 = vld [vmem:[#allocation12 + $0x378] sm:$0xff]
        %v5866 = vld [vmem:[#allocation12 + $0x380] sm:$0xff]
        %v5867 = vld [vmem:[#allocation12 + $0x388] sm:$0xff]
        %v5868 = vld [vmem:[#allocation12 + $0x390] sm:$0xff]
        %v5869 = vld [vmem:[#allocation12 + $0x398] sm:$0xff]
        %v5870 = vld [vmem:[#allocation12 + $0x3a0] sm:$0xff]
        %v5871 = vld [vmem:[#allocation12 + $0x3a8] sm:$0xff]
        %v5872 = vld [vmem:[#allocation12 + $0x3b0] sm:$0xff]
        %v5873 = vld [vmem:[#allocation12 + $0x3b8] sm:$0xff]
        %v5874 = vld [vmem:[#allocation12 + $0x3c0] sm:$0xff]
        %v5875 = vld [vmem:[#allocation12 + $0x3c8] sm:$0xff]
        %v5876 = vld [vmem:[#allocation12 + $0x3d0] sm:$0xff]
        %v5877 = vld [vmem:[#allocation12 + $0x3d8] sm:$0xff]
        %v5878 = vld [vmem:[#allocation12 + $0x3e0] sm:$0xff]
        %v5879 = vld [vmem:[#allocation12 + $0x3e8] sm:$0xff]
        %v5880 = vld [vmem:[#allocation12 + $0x3f0] sm:$0xff]
        %v5881 = vld [vmem:[#allocation12 + $0x3f8] sm:$0xff]
        %v5883 = vlaneseq
        %v5884 = vshrl.u32 %v5883, 7
        %v5885 = vsub.s32 0, %v5884
        %v5886 = vrot.slane %v5753, %v5885
        %v5887 = vlaneseq
        %v5888 = vshrl.u32 %v5887, 7
        %v5889 = vsub.s32 1, %v5888
        %v5890 = vrot.slane %v5753, %v5889
        %5893 = vmatprep.subr.mxu0 %v5755
        %5894 = vmatpush1.msra.mxu0 %v5754
        %5895 = vmatprep.subr.mxu0 %v5759
        %5896 = vmatpush1.msra.mxu0 %v5758
        %5897 = vmatprep.subr.mxu0 %v5763
        %5898 = vmatpush1.msra.mxu0 %v5762
        %5899 = vmatprep.subr.mxu0 %v5767
        %5900 = vmatpush1.msra.mxu0 %v5766
        %5901 = vmatprep.subr.mxu0 %v5771
        %5902 = vmatpush1.msra.mxu0 %v5770
        %5903 = vmatprep.subr.mxu0 %v5775
        %5904 = vmatpush1.msra.mxu0 %v5774
        %5905 = vmatprep.subr.mxu0 %v5779
        %5906 = vmatpush1.msra.mxu0 %v5778
        %5907 = vmatprep.subr.mxu0 %v5783
        %5908 = vmatpush1.msra.mxu0 %v5782
        %5909 = vmatprep.subr.mxu0 %v5787
        %5910 = vmatpush1.msra.mxu0 %v5786
        %5911 = vmatprep.subr.mxu0 %v5791
        %5912 = vmatpush1.msra.mxu0 %v5790
        %5913 = vmatprep.subr.mxu0 %v5795
        %5914 = vmatpush1.msra.mxu0 %v5794
        %5915 = vmatprep.subr.mxu0 %v5799
        %5916 = vmatpush1.msra.mxu0 %v5798
        %5917 = vmatprep.subr.mxu0 %v5803
        %5918 = vmatpush1.msra.mxu0 %v5802
        %5919 = vmatprep.subr.mxu0 %v5807
        %5920 = vmatpush1.msra.mxu0 %v5806
        %5921 = vmatprep.subr.mxu0 %v5811
        %5922 = vmatpush1.msra.mxu0 %v5810
        %5923 = vmatprep.subr.mxu0 %v5815
        %5924 = vmatpush1.msra.mxu0 %v5814
        %5925 = vmatprep.subr.mxu0 %v5819
        %5926 = vmatpush1.msra.mxu0 %v5818
        %5927 = vmatprep.subr.mxu0 %v5823
        %5928 = vmatpush1.msra.mxu0 %v5822
        %5929 = vmatprep.subr.mxu0 %v5827
        %5930 = vmatpush1.msra.mxu0 %v5826
        %5931 = vmatprep.subr.mxu0 %v5831
        %5932 = vmatpush1.msra.mxu0 %v5830
        %5933 = vmatprep.subr.mxu0 %v5835
        %5934 = vmatpush1.msra.mxu0 %v5834
        %5935 = vmatprep.subr.mxu0 %v5839
        %5936 = vmatpush1.msra.mxu0 %v5838
        %5937 = vmatprep.subr.mxu0 %v5843
        %5938 = vmatpush1.msra.mxu0 %v5842
        %5939 = vmatprep.subr.mxu0 %v5847
        %5940 = vmatpush1.msra.mxu0 %v5846
        %5941 = vmatprep.subr.mxu0 %v5851
        %5942 = vmatpush1.msra.mxu0 %v5850
        %5943 = vmatprep.subr.mxu0 %v5855
        %5944 = vmatpush1.msra.mxu0 %v5854
        %5945 = vmatprep.subr.mxu0 %v5859
        %5946 = vmatpush1.msra.mxu0 %v5858
        %5947 = vmatprep.subr.mxu0 %v5863
        %5948 = vmatpush1.msra.mxu0 %v5862
        %5949 = vmatprep.subr.mxu0 %v5867
        %5950 = vmatpush1.msra.mxu0 %v5866
        %5951 = vmatprep.subr.mxu0 %v5871
        %5952 = vmatpush1.msra.mxu0 %v5870
        %5953 = vmatprep.subr.mxu0 %v5875
        %5954 = vmatpush1.msra.mxu0 %v5874
        %5955 = vmatprep.subr.mxu0 %v5879
        %5956 = vmatpush1.msra.mxu0 %v5878
        %5957 = vmatprep.mubr.f32.mxu0 %v5890
        %5958 = vmatmul.mubr.f32.gmra.mrb[0].mxu0 %v5886
        %v5959 = vpop.f32.mrb[0].mxu0
        %v5960 = vadd.f32 0.0, %v5959
        %v5961 = vpop.f32.mrb[0].mxu0
        %v5962 = vadd.f32 0.0, %v5961
        %5963 = vdwg.mxu0
        %5964 = vmatprep.subr.mxu0 %v5757
        %5965 = vmatpush1.msra.mxu0 %v5756
        %5966 = vmatprep.subr.mxu0 %v5761
        %5967 = vmatpush1.msra.mxu0 %v5760
        %5968 = vmatprep.subr.mxu0 %v5765
        %5969 = vmatpush1.msra.mxu0 %v5764
        %5970 = vmatprep.subr.mxu0 %v5769
        %5971 = vmatpush1.msra.mxu0 %v5768
        %5972 = vmatprep.subr.mxu0 %v5773
        %5973 = vmatpush1.msra.mxu0 %v5772
        %5974 = vmatprep.subr.mxu0 %v5777
        %5975 = vmatpush1.msra.mxu0 %v5776
        %5976 = vmatprep.subr.mxu0 %v5781
        %5977 = vmatpush1.msra.mxu0 %v5780
        %5978 = vmatprep.subr.mxu0 %v5785
        %5979 = vmatpush1.msra.mxu0 %v5784
        %5980 = vmatprep.subr.mxu0 %v5789
        %5981 = vmatpush1.msra.mxu0 %v5788
        %5982 = vmatprep.subr.mxu0 %v5793
        %5983 = vmatpush1.msra.mxu0 %v5792
        %5984 = vmatprep.subr.mxu0 %v5797
        %5985 = vmatpush1.msra.mxu0 %v5796
        %5986 = vmatprep.subr.mxu0 %v5801
        %5987 = vmatpush1.msra.mxu0 %v5800
        %5988 = vmatprep.subr.mxu0 %v5805
        %5989 = vmatpush1.msra.mxu0 %v5804
        %5990 = vmatprep.subr.mxu0 %v5809
        %5991 = vmatpush1.msra.mxu0 %v5808
        %5992 = vmatprep.subr.mxu0 %v5813
        %5993 = vmatpush1.msra.mxu0 %v5812
        %5994 = vmatprep.subr.mxu0 %v5817
        %5995 = vmatpush1.msra.mxu0 %v5816
        %5996 = vmatprep.subr.mxu0 %v5821
        %5997 = vmatpush1.msra.mxu0 %v5820
        %5998 = vmatprep.subr.mxu0 %v5825
        %5999 = vmatpush1.msra.mxu0 %v5824
        %6000 = vmatprep.subr.mxu0 %v5829
        %6001 = vmatpush1.msra.mxu0 %v5828
        %6002 = vmatprep.subr.mxu0 %v5833
        %6003 = vmatpush1.msra.mxu0 %v5832
        %6004 = vmatprep.subr.mxu0 %v5837
        %6005 = vmatpush1.msra.mxu0 %v5836
        %6006 = vmatprep.subr.mxu0 %v5841
        %6007 = vmatpush1.msra.mxu0 %v5840
        %6008 = vmatprep.subr.mxu0 %v5845
        %6009 = vmatpush1.msra.mxu0 %v5844
        %6010 = vmatprep.subr.mxu0 %v5849
        %6011 = vmatpush1.msra.mxu0 %v5848
        %6012 = vmatprep.subr.mxu0 %v5853
        %6013 = vmatpush1.msra.mxu0 %v5852
        %6014 = vmatprep.subr.mxu0 %v5857
        %6015 = vmatpush1.msra.mxu0 %v5856
        %6016 = vmatprep.subr.mxu0 %v5861
        %6017 = vmatpush1.msra.mxu0 %v5860
        %6018 = vmatprep.subr.mxu0 %v5865
        %6019 = vmatpush1.msra.mxu0 %v5864
        %6020 = vmatprep.subr.mxu0 %v5869
        %6021 = vmatpush1.msra.mxu0 %v5868
        %6022 = vmatprep.subr.mxu0 %v5873
        %6023 = vmatpush1.msra.mxu0 %v5872
        %6024 = vmatprep.subr.mxu0 %v5877
        %6025 = vmatpush1.msra.mxu0 %v5876
        %6026 = vmatprep.subr.mxu0 %v5881
        %6027 = vmatpush1.msra.mxu0 %v5880
        %6028 = vmatprep.mubr.f32.mxu0 %v5890
        %6029 = vmatmul.mubr.f32.gmra.mrb[0].mxu0 %v5886
        %v6030 = vpop.f32.mrb[0].mxu0
        %v6031 = vadd.f32 0.0, %v6030
        %v6032 = vpop.f32.mrb[0].mxu0
        %v6033 = vadd.f32 0.0, %v6032
        %6034 = vdwg.mxu0
        %v6039 = vcombine.low %v5960, %v5962
        %v6040 = vcombine.low %v6031, %v6033
        %v6042 = vunpack.c.l.s4 1966171168
        %v6043 = vunpack.c.0.s8 %v6042
        %v6044 = vlaneseq
        %v6045 = vshrl.u32 %v6044, 7
        %v6046 = vsub.s32 %v6043, %v6045
        %v6047 = vrot.slane %v6039, %v6046
        %v6049 = vunpack.c.l.s4 1966171168
        %v6050 = vunpack.c.0.s8 %v6049
        %v6051 = vlaneseq
        %v6052 = vshrl.u32 %v6051, 7
        %v6053 = vsub.s32 %v6050, %v6052
        %v6054 = vrot.slane %v6040, %v6053
        %v6055 = vcombine.low %v6047, %v6054
        %v6057 = vunpack.c.l.s4 1966171168
        %v6058 = vunpack.c.0.s8 %v6057
        %v6059 = vlaneseq
        %v6060 = vshrl.u32 %v6059, 7
        %v6061 = vsub.s32 %v6058, %v6060
        %v6062 = vrot.slane %v6055, %v6061
        %v6064 = vadd.f32 %v5752, %v6062
        %s6065 = scalar_lea.vmem [#allocation3], 1
        %v6066 = vld [vmem:[%s6065] ss:$4 sm:$0x3]
        %s6067 = scalar_lea.vmem [#allocation12], 1024
        %v6068 = vld [vmem:[%s6067] sm:$0xff]
        %v6069 = vld [vmem:[%s6067 + $0x8] sm:$0xff]
        %v6070 = vld [vmem:[%s6067 + $0x10] sm:$0xff]
        %v6071 = vld [vmem:[%s6067 + $0x18] sm:$0xff]
        %v6072 = vld [vmem:[%s6067 + $0x20] sm:$0xff]
        %v6073 = vld [vmem:[%s6067 + $0x28] sm:$0xff]
        %v6074 = vld [vmem:[%s6067 + $0x30] sm:$0xff]
        %v6075 = vld [vmem:[%s6067 + $0x38] sm:$0xff]
        %v6076 = vld [vmem:[%s6067 + $0x40] sm:$0xff]
        %v6077 = vld [vmem:[%s6067 + $0x48] sm:$0xff]
        %v6078 = vld [vmem:[%s6067 + $0x50] sm:$0xff]
        %v6079 = vld [vmem:[%s6067 + $0x58] sm:$0xff]
        %v6080 = vld [vmem:[%s6067 + $0x60] sm:$0xff]
        %v6081 = vld [vmem:[%s6067 + $0x68] sm:$0xff]
        %v6082 = vld [vmem:[%s6067 + $0x70] sm:$0xff]
        %v6083 = vld [vmem:[%s6067 + $0x78] sm:$0xff]
        %v6084 = vld [vmem:[%s6067 + $0x80] sm:$0xff]
        %v6085 = vld [vmem:[%s6067 + $0x88] sm:$0xff]
        %v6086 = vld [vmem:[%s6067 + $0x90] sm:$0xff]
        %v6087 = vld [vmem:[%s6067 + $0x98] sm:$0xff]
        %v6088 = vld [vmem:[%s6067 + $0xa0] sm:$0xff]
        %v6089 = vld [vmem:[%s6067 + $0xa8] sm:$0xff]
        %v6090 = vld [vmem:[%s6067 + $0xb0] sm:$0xff]
        %v6091 = vld [vmem:[%s6067 + $0xb8] sm:$0xff]
        %v6092 = vld [vmem:[%s6067 + $0xc0] sm:$0xff]
        %v6093 = vld [vmem:[%s6067 + $0xc8] sm:$0xff]
        %v6094 = vld [vmem:[%s6067 + $0xd0] sm:$0xff]
        %v6095 = vld [vmem:[%s6067 + $0xd8] sm:$0xff]
        %v6096 = vld [vmem:[%s6067 + $0xe0] sm:$0xff]
        %v6097 = vld [vmem:[%s6067 + $0xe8] sm:$0xff]
        %v6098 = vld [vmem:[%s6067 + $0xf0] sm:$0xff]
        %v6099 = vld [vmem:[%s6067 + $0xf8] sm:$0xff]
        %v6100 = vld [vmem:[%s6067 + $0x100] sm:$0xff]
        %v6101 = vld [vmem:[%s6067 + $0x108] sm:$0xff]
        %v6102 = vld [vmem:[%s6067 + $0x110] sm:$0xff]
        %v6103 = vld [vmem:[%s6067 + $0x118] sm:$0xff]
        %v6104 = vld [vmem:[%s6067 + $0x120] sm:$0xff]
        %v6105 = vld [vmem:[%s6067 + $0x128] sm:$0xff]
        %v6106 = vld [vmem:[%s6067 + $0x130] sm:$0xff]
        %v6107 = vld [vmem:[%s6067 + $0x138] sm:$0xff]
        %v6108 = vld [vmem:[%s6067 + $0x140] sm:$0xff]
        %v6109 = vld [vmem:[%s6067 + $0x148] sm:$0xff]
        %v6110 = vld [vmem:[%s6067 + $0x150] sm:$0xff]
        %v6111 = vld [vmem:[%s6067 + $0x158] sm:$0xff]
        %v6112 = vld [vmem:[%s6067 + $0x160] sm:$0xff]
        %v6113 = vld [vmem:[%s6067 + $0x168] sm:$0xff]
        %v6114 = vld [vmem:[%s6067 + $0x170] sm:$0xff]
        %v6115 = vld [vmem:[%s6067 + $0x178] sm:$0xff]
        %v6116 = vld [vmem:[%s6067 + $0x180] sm:$0xff]
        %v6117 = vld [vmem:[%s6067 + $0x188] sm:$0xff]
        %v6118 = vld [vmem:[%s6067 + $0x190] sm:$0xff]
        %v6119 = vld [vmem:[%s6067 + $0x198] sm:$0xff]
        %v6120 = vld [vmem:[%s6067 + $0x1a0] sm:$0xff]
        %v6121 = vld [vmem:[%s6067 + $0x1a8] sm:$0xff]
        %v6122 = vld [vmem:[%s6067 + $0x1b0] sm:$0xff]
        %v6123 = vld [vmem:[%s6067 + $0x1b8] sm:$0xff]
        %v6124 = vld [vmem:[%s6067 + $0x1c0] sm:$0xff]
        %v6125 = vld [vmem:[%s6067 + $0x1c8] sm:$0xff]
        %v6126 = vld [vmem:[%s6067 + $0x1d0] sm:$0xff]
        %v6127 = vld [vmem:[%s6067 + $0x1d8] sm:$0xff]
        %v6128 = vld [vmem:[%s6067 + $0x1e0] sm:$0xff]
        %v6129 = vld [vmem:[%s6067 + $0x1e8] sm:$0xff]
        %v6130 = vld [vmem:[%s6067 + $0x1f0] sm:$0xff]
        %v6131 = vld [vmem:[%s6067 + $0x1f8] sm:$0xff]
        %v6132 = vld [vmem:[%s6067 + $0x200] sm:$0xff]
        %v6133 = vld [vmem:[%s6067 + $0x208] sm:$0xff]
        %v6134 = vld [vmem:[%s6067 + $0x210] sm:$0xff]
        %v6135 = vld [vmem:[%s6067 + $0x218] sm:$0xff]
        %v6136 = vld [vmem:[%s6067 + $0x220] sm:$0xff]
        %v6137 = vld [vmem:[%s6067 + $0x228] sm:$0xff]
        %v6138 = vld [vmem:[%s6067 + $0x230] sm:$0xff]
        %v6139 = vld [vmem:[%s6067 + $0x238] sm:$0xff]
        %v6140 = vld [vmem:[%s6067 + $0x240] sm:$0xff]
        %v6141 = vld [vmem:[%s6067 + $0x248] sm:$0xff]
        %v6142 = vld [vmem:[%s6067 + $0x250] sm:$0xff]
        %v6143 = vld [vmem:[%s6067 + $0x258] sm:$0xff]
        %v6144 = vld [vmem:[%s6067 + $0x260] sm:$0xff]
        %v6145 = vld [vmem:[%s6067 + $0x268] sm:$0xff]
        %v6146 = vld [vmem:[%s6067 + $0x270] sm:$0xff]
        %v6147 = vld [vmem:[%s6067 + $0x278] sm:$0xff]
        %v6148 = vld [vmem:[%s6067 + $0x280] sm:$0xff]
        %v6149 = vld [vmem:[%s6067 + $0x288] sm:$0xff]
        %v6150 = vld [vmem:[%s6067 + $0x290] sm:$0xff]
        %v6151 = vld [vmem:[%s6067 + $0x298] sm:$0xff]
        %v6152 = vld [vmem:[%s6067 + $0x2a0] sm:$0xff]
        %v6153 = vld [vmem:[%s6067 + $0x2a8] sm:$0xff]
        %v6154 = vld [vmem:[%s6067 + $0x2b0] sm:$0xff]
        %v6155 = vld [vmem:[%s6067 + $0x2b8] sm:$0xff]
        %v6156 = vld [vmem:[%s6067 + $0x2c0] sm:$0xff]
        %v6157 = vld [vmem:[%s6067 + $0x2c8] sm:$0xff]
        %v6158 = vld [vmem:[%s6067 + $0x2d0] sm:$0xff]
        %v6159 = vld [vmem:[%s6067 + $0x2d8] sm:$0xff]
        %v6160 = vld [vmem:[%s6067 + $0x2e0] sm:$0xff]
        %v6161 = vld [vmem:[%s6067 + $0x2e8] sm:$0xff]
        %v6162 = vld [vmem:[%s6067 + $0x2f0] sm:$0xff]
        %v6163 = vld [vmem:[%s6067 + $0x2f8] sm:$0xff]
        %v6164 = vld [vmem:[%s6067 + $0x300] sm:$0xff]
        %v6165 = vld [vmem:[%s6067 + $0x308] sm:$0xff]
        %v6166 = vld [vmem:[%s6067 + $0x310] sm:$0xff]
        %v6167 = vld [vmem:[%s6067 + $0x318] sm:$0xff]
        %v6168 = vld [vmem:[%s6067 + $0x320] sm:$0xff]
        %v6169 = vld [vmem:[%s6067 + $0x328] sm:$0xff]
        %v6170 = vld [vmem:[%s6067 + $0x330] sm:$0xff]
        %v6171 = vld [vmem:[%s6067 + $0x338] sm:$0xff]
        %v6172 = vld [vmem:[%s6067 + $0x340] sm:$0xff]
        %v6173 = vld [vmem:[%s6067 + $0x348] sm:$0xff]
        %v6174 = vld [vmem:[%s6067 + $0x350] sm:$0xff]
        %v6175 = vld [vmem:[%s6067 + $0x358] sm:$0xff]
        %v6176 = vld [vmem:[%s6067 + $0x360] sm:$0xff]
        %v6177 = vld [vmem:[%s6067 + $0x368] sm:$0xff]
        %v6178 = vld [vmem:[%s6067 + $0x370] sm:$0xff]
        %v6179 = vld [vmem:[%s6067 + $0x378] sm:$0xff]
        %v6180 = vld [vmem:[%s6067 + $0x380] sm:$0xff]
        %v6181 = vld [vmem:[%s6067 + $0x388] sm:$0xff]
        %v6182 = vld [vmem:[%s6067 + $0x390] sm:$0xff]
        %v6183 = vld [vmem:[%s6067 + $0x398] sm:$0xff]
        %v6184 = vld [vmem:[%s6067 + $0x3a0] sm:$0xff]
        %v6185 = vld [vmem:[%s6067 + $0x3a8] sm:$0xff]
        %v6186 = vld [vmem:[%s6067 + $0x3b0] sm:$0xff]
        %v6187 = vld [vmem:[%s6067 + $0x3b8] sm:$0xff]
        %v6188 = vld [vmem:[%s6067 + $0x3c0] sm:$0xff]
        %v6189 = vld [vmem:[%s6067 + $0x3c8] sm:$0xff]
        %v6190 = vld [vmem:[%s6067 + $0x3d0] sm:$0xff]
        %v6191 = vld [vmem:[%s6067 + $0x3d8] sm:$0xff]
        %v6192 = vld [vmem:[%s6067 + $0x3e0] sm:$0xff]
        %v6193 = vld [vmem:[%s6067 + $0x3e8] sm:$0xff]
        %v6194 = vld [vmem:[%s6067 + $0x3f0] sm:$0xff]
        %v6195 = vld [vmem:[%s6067 + $0x3f8] sm:$0xff]
        %v6197 = vlaneseq
        %v6198 = vshrl.u32 %v6197, 7
        %v6199 = vsub.s32 0, %v6198
        %v6200 = vrot.slane %v6066, %v6199
        %v6201 = vlaneseq
        %v6202 = vshrl.u32 %v6201, 7
        %v6203 = vsub.s32 1, %v6202
        %v6204 = vrot.slane %v6066, %v6203
        %6207 = vmatprep.subr.mxu0 %v6069
        %6208 = vmatpush1.msra.mxu0 %v6068
        %6209 = vmatprep.subr.mxu0 %v6073
        %6210 = vmatpush1.msra.mxu0 %v6072
        %6211 = vmatprep.subr.mxu0 %v6077
        %6212 = vmatpush1.msra.mxu0 %v6076
        %6213 = vmatprep.subr.mxu0 %v6081
        %6214 = vmatpush1.msra.mxu0 %v6080
        %6215 = vmatprep.subr.mxu0 %v6085
        %6216 = vmatpush1.msra.mxu0 %v6084
        %6217 = vmatprep.subr.mxu0 %v6089
        %6218 = vmatpush1.msra.mxu0 %v6088
        %6219 = vmatprep.subr.mxu0 %v6093
        %6220 = vmatpush1.msra.mxu0 %v6092
        %6221 = vmatprep.subr.mxu0 %v6097
        %6222 = vmatpush1.msra.mxu0 %v6096
        %6223 = vmatprep.subr.mxu0 %v6101
        %6224 = vmatpush1.msra.mxu0 %v6100
        %6225 = vmatprep.subr.mxu0 %v6105
        %6226 = vmatpush1.msra.mxu0 %v6104
        %6227 = vmatprep.subr.mxu0 %v6109
        %6228 = vmatpush1.msra.mxu0 %v6108
        %6229 = vmatprep.subr.mxu0 %v6113
        %6230 = vmatpush1.msra.mxu0 %v6112
        %6231 = vmatprep.subr.mxu0 %v6117
        %6232 = vmatpush1.msra.mxu0 %v6116
        %6233 = vmatprep.subr.mxu0 %v6121
        %6234 = vmatpush1.msra.mxu0 %v6120
        %6235 = vmatprep.subr.mxu0 %v6125
        %6236 = vmatpush1.msra.mxu0 %v6124
        %6237 = vmatprep.subr.mxu0 %v6129
        %6238 = vmatpush1.msra.mxu0 %v6128
        %6239 = vmatprep.subr.mxu0 %v6133
        %6240 = vmatpush1.msra.mxu0 %v6132
        %6241 = vmatprep.subr.mxu0 %v6137
        %6242 = vmatpush1.msra.mxu0 %v6136
        %6243 = vmatprep.subr.mxu0 %v6141
        %6244 = vmatpush1.msra.mxu0 %v6140
        %6245 = vmatprep.subr.mxu0 %v6145
        %6246 = vmatpush1.msra.mxu0 %v6144
        %6247 = vmatprep.subr.mxu0 %v6149
        %6248 = vmatpush1.msra.mxu0 %v6148
        %6249 = vmatprep.subr.mxu0 %v6153
        %6250 = vmatpush1.msra.mxu0 %v6152
        %6251 = vmatprep.subr.mxu0 %v6157
        %6252 = vmatpush1.msra.mxu0 %v6156
        %6253 = vmatprep.subr.mxu0 %v6161
        %6254 = vmatpush1.msra.mxu0 %v6160
        %6255 = vmatprep.subr.mxu0 %v6165
        %6256 = vmatpush1.msra.mxu0 %v6164
        %6257 = vmatprep.subr.mxu0 %v6169
        %6258 = vmatpush1.msra.mxu0 %v6168
        %6259 = vmatprep.subr.mxu0 %v6173
        %6260 = vmatpush1.msra.mxu0 %v6172
        %6261 = vmatprep.subr.mxu0 %v6177
        %6262 = vmatpush1.msra.mxu0 %v6176
        %6263 = vmatprep.subr.mxu0 %v6181
        %6264 = vmatpush1.msra.mxu0 %v6180
        %6265 = vmatprep.subr.mxu0 %v6185
        %6266 = vmatpush1.msra.mxu0 %v6184
        %6267 = vmatprep.subr.mxu0 %v6189
        %6268 = vmatpush1.msra.mxu0 %v6188
        %6269 = vmatprep.subr.mxu0 %v6193
        %6270 = vmatpush1.msra.mxu0 %v6192
        %6271 = vmatprep.mubr.f32.mxu0 %v6204
        %6272 = vmatmul.mubr.f32.gmra.mrb[0].mxu0 %v6200
        %v6273 = vpop.f32.mrb[0].mxu0
        %v6274 = vadd.f32 0.0, %v6273
        %v6275 = vpop.f32.mrb[0].mxu0
        %v6276 = vadd.f32 0.0, %v6275
        %6277 = vdwg.mxu0
        %6278 = vmatprep.subr.mxu0 %v6071
        %6279 = vmatpush1.msra.mxu0 %v6070
        %6280 = vmatprep.subr.mxu0 %v6075
        %6281 = vmatpush1.msra.mxu0 %v6074
        %6282 = vmatprep.subr.mxu0 %v6079
        %6283 = vmatpush1.msra.mxu0 %v6078
        %6284 = vmatprep.subr.mxu0 %v6083
        %6285 = vmatpush1.msra.mxu0 %v6082
        %6286 = vmatprep.subr.mxu0 %v6087
        %6287 = vmatpush1.msra.mxu0 %v6086
        %6288 = vmatprep.subr.mxu0 %v6091
        %6289 = vmatpush1.msra.mxu0 %v6090
        %6290 = vmatprep.subr.mxu0 %v6095
        %6291 = vmatpush1.msra.mxu0 %v6094
        %6292 = vmatprep.subr.mxu0 %v6099
        %6293 = vmatpush1.msra.mxu0 %v6098
        %6294 = vmatprep.subr.mxu0 %v6103
        %6295 = vmatpush1.msra.mxu0 %v6102
        %6296 = vmatprep.subr.mxu0 %v6107
        %6297 = vmatpush1.msra.mxu0 %v6106
        %6298 = vmatprep.subr.mxu0 %v6111
        %6299 = vmatpush1.msra.mxu0 %v6110
        %6300 = vmatprep.subr.mxu0 %v6115
        %6301 = vmatpush1.msra.mxu0 %v6114
        %6302 = vmatprep.subr.mxu0 %v6119
        %6303 = vmatpush1.msra.mxu0 %v6118
        %6304 = vmatprep.subr.mxu0 %v6123
        %6305 = vmatpush1.msra.mxu0 %v6122
        %6306 = vmatprep.subr.mxu0 %v6127
        %6307 = vmatpush1.msra.mxu0 %v6126
        %6308 = vmatprep.subr.mxu0 %v6131
        %6309 = vmatpush1.msra.mxu0 %v6130
        %6310 = vmatprep.subr.mxu0 %v6135
        %6311 = vmatpush1.msra.mxu0 %v6134
        %6312 = vmatprep.subr.mxu0 %v6139
        %6313 = vmatpush1.msra.mxu0 %v6138
        %6314 = vmatprep.subr.mxu0 %v6143
        %6315 = vmatpush1.msra.mxu0 %v6142
        %6316 = vmatprep.subr.mxu0 %v6147
        %6317 = vmatpush1.msra.mxu0 %v6146
        %6318 = vmatprep.subr.mxu0 %v6151
        %6319 = vmatpush1.msra.mxu0 %v6150
        %6320 = vmatprep.subr.mxu0 %v6155
        %6321 = vmatpush1.msra.mxu0 %v6154
        %6322 = vmatprep.subr.mxu0 %v6159
        %6323 = vmatpush1.msra.mxu0 %v6158
        %6324 = vmatprep.subr.mxu0 %v6163
        %6325 = vmatpush1.msra.mxu0 %v6162
        %6326 = vmatprep.subr.mxu0 %v6167
        %6327 = vmatpush1.msra.mxu0 %v6166
        %6328 = vmatprep.subr.mxu0 %v6171
        %6329 = vmatpush1.msra.mxu0 %v6170
        %6330 = vmatprep.subr.mxu0 %v6175
        %6331 = vmatpush1.msra.mxu0 %v6174
        %6332 = vmatprep.subr.mxu0 %v6179
        %6333 = vmatpush1.msra.mxu0 %v6178
        %6334 = vmatprep.subr.mxu0 %v6183
        %6335 = vmatpush1.msra.mxu0 %v6182
        %6336 = vmatprep.subr.mxu0 %v6187
        %6337 = vmatpush1.msra.mxu0 %v6186
        %6338 = vmatprep.subr.mxu0 %v6191
        %6339 = vmatpush1.msra.mxu0 %v6190
        %6340 = vmatprep.subr.mxu0 %v6195
        %6341 = vmatpush1.msra.mxu0 %v6194
        %6342 = vmatprep.mubr.f32.mxu0 %v6204
        %6343 = vmatmul.mubr.f32.gmra.mrb[0].mxu0 %v6200
        %v6344 = vpop.f32.mrb[0].mxu0
        %v6345 = vadd.f32 0.0, %v6344
        %v6346 = vpop.f32.mrb[0].mxu0
        %v6347 = vadd.f32 0.0, %v6346
        %6348 = vdwg.mxu0
        %v6353 = vcombine.low %v6274, %v6276
        %v6354 = vcombine.low %v6345, %v6347
        %v6356 = vunpack.c.l.s4 1966171168
        %v6357 = vunpack.c.0.s8 %v6356
        %v6358 = vlaneseq
        %v6359 = vshrl.u32 %v6358, 7
        %v6360 = vsub.s32 %v6357, %v6359
        %v6361 = vrot.slane %v6353, %v6360
        %v6363 = vunpack.c.l.s4 1966171168
        %v6364 = vunpack.c.0.s8 %v6363
        %v6365 = vlaneseq
        %v6366 = vshrl.u32 %v6365, 7
        %v6367 = vsub.s32 %v6364, %v6366
        %v6368 = vrot.slane %v6354, %v6367
        %v6369 = vcombine.low %v6361, %v6368
        %v6371 = vunpack.c.l.s4 1966171168
        %v6372 = vunpack.c.0.s8 %v6371
        %v6373 = vlaneseq
        %v6374 = vshrl.u32 %v6373, 7
        %v6375 = vsub.s32 %v6372, %v6374
        %v6376 = vrot.slane %v6369, %v6375
        %v6378 = vadd.f32 %v6064, %v6376
        %s6379 = scalar_lea.vmem [#allocation3], 2
        %v6380 = vld [vmem:[%s6379] ss:$4 sm:$0x3]
        %s6381 = scalar_lea.vmem [#allocation12], 2048
        %v6382 = vld [vmem:[%s6381] sm:$0xff]
        %v6383 = vld [vmem:[%s6381 + $0x8] sm:$0xff]
        %v6384 = vld [vmem:[%s6381 + $0x10] sm:$0xff]
        %v6385 = vld [vmem:[%s6381 + $0x18] sm:$0xff]
        %v6386 = vld [vmem:[%s6381 + $0x20] sm:$0xff]
        %v6387 = vld [vmem:[%s6381 + $0x28] sm:$0xff]
        %v6388 = vld [vmem:[%s6381 + $0x30] sm:$0xff]
        %v6389 = vld [vmem:[%s6381 + $0x38] sm:$0xff]
        %v6390 = vld [vmem:[%s6381 + $0x40] sm:$0xff]
        %v6391 = vld [vmem:[%s6381 + $0x48] sm:$0xff]
        %v6392 = vld [vmem:[%s6381 + $0x50] sm:$0xff]
        %v6393 = vld [vmem:[%s6381 + $0x58] sm:$0xff]
        %v6394 = vld [vmem:[%s6381 + $0x60] sm:$0xff]
        %v6395 = vld [vmem:[%s6381 + $0x68] sm:$0xff]
        %v6396 = vld [vmem:[%s6381 + $0x70] sm:$0xff]
        %v6397 = vld [vmem:[%s6381 + $0x78] sm:$0xff]
        %v6398 = vld [vmem:[%s6381 + $0x80] sm:$0xff]
        %v6399 = vld [vmem:[%s6381 + $0x88] sm:$0xff]
        %v6400 = vld [vmem:[%s6381 + $0x90] sm:$0xff]
        %v6401 = vld [vmem:[%s6381 + $0x98] sm:$0xff]
        %v6402 = vld [vmem:[%s6381 + $0xa0] sm:$0xff]
        %v6403 = vld [vmem:[%s6381 + $0xa8] sm:$0xff]
        %v6404 = vld [vmem:[%s6381 + $0xb0] sm:$0xff]
        %v6405 = vld [vmem:[%s6381 + $0xb8] sm:$0xff]
        %v6406 = vld [vmem:[%s6381 + $0xc0] sm:$0xff]
        %v6407 = vld [vmem:[%s6381 + $0xc8] sm:$0xff]
        %v6408 = vld [vmem:[%s6381 + $0xd0] sm:$0xff]
        %v6409 = vld [vmem:[%s6381 + $0xd8] sm:$0xff]
        %v6410 = vld [vmem:[%s6381 + $0xe0] sm:$0xff]
        %v6411 = vld [vmem:[%s6381 + $0xe8] sm:$0xff]
        %v6412 = vld [vmem:[%s6381 + $0xf0] sm:$0xff]
        %v6413 = vld [vmem:[%s6381 + $0xf8] sm:$0xff]
        %v6414 = vld [vmem:[%s6381 + $0x100] sm:$0xff]
        %v6415 = vld [vmem:[%s6381 + $0x108] sm:$0xff]
        %v6416 = vld [vmem:[%s6381 + $0x110] sm:$0xff]
        %v6417 = vld [vmem:[%s6381 + $0x118] sm:$0xff]
        %v6418 = vld [vmem:[%s6381 + $0x120] sm:$0xff]
        %v6419 = vld [vmem:[%s6381 + $0x128] sm:$0xff]
        %v6420 = vld [vmem:[%s6381 + $0x130] sm:$0xff]
        %v6421 = vld [vmem:[%s6381 + $0x138] sm:$0xff]
        %v6422 = vld [vmem:[%s6381 + $0x140] sm:$0xff]
        %v6423 = vld [vmem:[%s6381 + $0x148] sm:$0xff]
        %v6424 = vld [vmem:[%s6381 + $0x150] sm:$0xff]
        %v6425 = vld [vmem:[%s6381 + $0x158] sm:$0xff]
        %v6426 = vld [vmem:[%s6381 + $0x160] sm:$0xff]
        %v6427 = vld [vmem:[%s6381 + $0x168] sm:$0xff]
        %v6428 = vld [vmem:[%s6381 + $0x170] sm:$0xff]
        %v6429 = vld [vmem:[%s6381 + $0x178] sm:$0xff]
        %v6430 = vld [vmem:[%s6381 + $0x180] sm:$0xff]
        %v6431 = vld [vmem:[%s6381 + $0x188] sm:$0xff]
        %v6432 = vld [vmem:[%s6381 + $0x190] sm:$0xff]
        %v6433 = vld [vmem:[%s6381 + $0x198] sm:$0xff]
        %v6434 = vld [vmem:[%s6381 + $0x1a0] sm:$0xff]
        %v6435 = vld [vmem:[%s6381 + $0x1a8] sm:$0xff]
        %v6436 = vld [vmem:[%s6381 + $0x1b0] sm:$0xff]
        %v6437 = vld [vmem:[%s6381 + $0x1b8] sm:$0xff]
        %v6438 = vld [vmem:[%s6381 + $0x1c0] sm:$0xff]
        %v6439 = vld [vmem:[%s6381 + $0x1c8] sm:$0xff]
        %v6440 = vld [vmem:[%s6381 + $0x1d0] sm:$0xff]
        %v6441 = vld [vmem:[%s6381 + $0x1d8] sm:$0xff]
        %v6442 = vld [vmem:[%s6381 + $0x1e0] sm:$0xff]
        %v6443 = vld [vmem:[%s6381 + $0x1e8] sm:$0xff]
        %v6444 = vld [vmem:[%s6381 + $0x1f0] sm:$0xff]
        %v6445 = vld [vmem:[%s6381 + $0x1f8] sm:$0xff]
        %v6446 = vld [vmem:[%s6381 + $0x200] sm:$0xff]
        %v6447 = vld [vmem:[%s6381 + $0x208] sm:$0xff]
        %v6448 = vld [vmem:[%s6381 + $0x210] sm:$0xff]
        %v6449 = vld [vmem:[%s6381 + $0x218] sm:$0xff]
        %v6450 = vld [vmem:[%s6381 + $0x220] sm:$0xff]
        %v6451 = vld [vmem:[%s6381 + $0x228] sm:$0xff]
        %v6452 = vld [vmem:[%s6381 + $0x230] sm:$0xff]
        %v6453 = vld [vmem:[%s6381 + $0x238] sm:$0xff]
        %v6454 = vld [vmem:[%s6381 + $0x240] sm:$0xff]
        %v6455 = vld [vmem:[%s6381 + $0x248] sm:$0xff]
        %v6456 = vld [vmem:[%s6381 + $0x250] sm:$0xff]
        %v6457 = vld [vmem:[%s6381 + $0x258] sm:$0xff]
        %v6458 = vld [vmem:[%s6381 + $0x260] sm:$0xff]
        %v6459 = vld [vmem:[%s6381 + $0x268] sm:$0xff]
        %v6460 = vld [vmem:[%s6381 + $0x270] sm:$0xff]
        %v6461 = vld [vmem:[%s6381 + $0x278] sm:$0xff]
        %v6462 = vld [vmem:[%s6381 + $0x280] sm:$0xff]
        %v6463 = vld [vmem:[%s6381 + $0x288] sm:$0xff]
        %v6464 = vld [vmem:[%s6381 + $0x290] sm:$0xff]
        %v6465 = vld [vmem:[%s6381 + $0x298] sm:$0xff]
        %v6466 = vld [vmem:[%s6381 + $0x2a0] sm:$0xff]
        %v6467 = vld [vmem:[%s6381 + $0x2a8] sm:$0xff]
        %v6468 = vld [vmem:[%s6381 + $0x2b0] sm:$0xff]
        %v6469 = vld [vmem:[%s6381 + $0x2b8] sm:$0xff]
        %v6470 = vld [vmem:[%s6381 + $0x2c0] sm:$0xff]
        %v6471 = vld [vmem:[%s6381 + $0x2c8] sm:$0xff]
        %v6472 = vld [vmem:[%s6381 + $0x2d0] sm:$0xff]
        %v6473 = vld [vmem:[%s6381 + $0x2d8] sm:$0xff]
        %v6474 = vld [vmem:[%s6381 + $0x2e0] sm:$0xff]
        %v6475 = vld [vmem:[%s6381 + $0x2e8] sm:$0xff]
        %v6476 = vld [vmem:[%s6381 + $0x2f0] sm:$0xff]
        %v6477 = vld [vmem:[%s6381 + $0x2f8] sm:$0xff]
        %v6478 = vld [vmem:[%s6381 + $0x300] sm:$0xff]
        %v6479 = vld [vmem:[%s6381 + $0x308] sm:$0xff]
        %v6480 = vld [vmem:[%s6381 + $0x310] sm:$0xff]
        %v6481 = vld [vmem:[%s6381 + $0x318] sm:$0xff]
        %v6482 = vld [vmem:[%s6381 + $0x320] sm:$0xff]
        %v6483 = vld [vmem:[%s6381 + $0x328] sm:$0xff]
        %v6484 = vld [vmem:[%s6381 + $0x330] sm:$0xff]
        %v6485 = vld [vmem:[%s6381 + $0x338] sm:$0xff]
        %v6486 = vld [vmem:[%s6381 + $0x340] sm:$0xff]
        %v6487 = vld [vmem:[%s6381 + $0x348] sm:$0xff]
        %v6488 = vld [vmem:[%s6381 + $0x350] sm:$0xff]
        %v6489 = vld [vmem:[%s6381 + $0x358] sm:$0xff]
        %v6490 = vld [vmem:[%s6381 + $0x360] sm:$0xff]
        %v6491 = vld [vmem:[%s6381 + $0x368] sm:$0xff]
        %v6492 = vld [vmem:[%s6381 + $0x370] sm:$0xff]
        %v6493 = vld [vmem:[%s6381 + $0x378] sm:$0xff]
        %v6494 = vld [vmem:[%s6381 + $0x380] sm:$0xff]
        %v6495 = vld [vmem:[%s6381 + $0x388] sm:$0xff]
        %v6496 = vld [vmem:[%s6381 + $0x390] sm:$0xff]
        %v6497 = vld [vmem:[%s6381 + $0x398] sm:$0xff]
        %v6498 = vld [vmem:[%s6381 + $0x3a0] sm:$0xff]
        %v6499 = vld [vmem:[%s6381 + $0x3a8] sm:$0xff]
        %v6500 = vld [vmem:[%s6381 + $0x3b0] sm:$0xff]
        %v6501 = vld [vmem:[%s6381 + $0x3b8] sm:$0xff]
        %v6502 = vld [vmem:[%s6381 + $0x3c0] sm:$0xff]
        %v6503 = vld [vmem:[%s6381 + $0x3c8] sm:$0xff]
        %v6504 = vld [vmem:[%s6381 + $0x3d0] sm:$0xff]
        %v6505 = vld [vmem:[%s6381 + $0x3d8] sm:$0xff]
        %v6506 = vld [vmem:[%s6381 + $0x3e0] sm:$0xff]
        %v6507 = vld [vmem:[%s6381 + $0x3e8] sm:$0xff]
        %v6508 = vld [vmem:[%s6381 + $0x3f0] sm:$0xff]
        %v6509 = vld [vmem:[%s6381 + $0x3f8] sm:$0xff]
        %v6511 = vlaneseq
        %v6512 = vshrl.u32 %v6511, 7
        %v6513 = vsub.s32 0, %v6512
        %v6514 = vrot.slane %v6380, %v6513
        %v6515 = vlaneseq
        %v6516 = vshrl.u32 %v6515, 7
        %v6517 = vsub.s32 1, %v6516
        %v6518 = vrot.slane %v6380, %v6517
        %6521 = vmatprep.subr.mxu0 %v6383
        %6522 = vmatpush1.msra.mxu0 %v6382
        %6523 = vmatprep.subr.mxu0 %v6387
        %6524 = vmatpush1.msra.mxu0 %v6386
        %6525 = vmatprep.subr.mxu0 %v6391
        %6526 = vmatpush1.msra.mxu0 %v6390
        %6527 = vmatprep.subr.mxu0 %v6395
        %6528 = vmatpush1.msra.mxu0 %v6394
        %6529 = vmatprep.subr.mxu0 %v6399
        %6530 = vmatpush1.msra.mxu0 %v6398
        %6531 = vmatprep.subr.mxu0 %v6403
        %6532 = vmatpush1.msra.mxu0 %v6402
        %6533 = vmatprep.subr.mxu0 %v6407
        %6534 = vmatpush1.msra.mxu0 %v6406
        %6535 = vmatprep.subr.mxu0 %v6411
        %6536 = vmatpush1.msra.mxu0 %v6410
        %6537 = vmatprep.subr.mxu0 %v6415
        %6538 = vmatpush1.msra.mxu0 %v6414
        %6539 = vmatprep.subr.mxu0 %v6419
        %6540 = vmatpush1.msra.mxu0 %v6418
        %6541 = vmatprep.subr.mxu0 %v6423
        %6542 = vmatpush1.msra.mxu0 %v6422
        %6543 = vmatprep.subr.mxu0 %v6427
        %6544 = vmatpush1.msra.mxu0 %v6426
        %6545 = vmatprep.subr.mxu0 %v6431
        %6546 = vmatpush1.msra.mxu0 %v6430
        %6547 = vmatprep.subr.mxu0 %v6435
        %6548 = vmatpush1.msra.mxu0 %v6434
        %6549 = vmatprep.subr.mxu0 %v6439
        %6550 = vmatpush1.msra.mxu0 %v6438
        %6551 = vmatprep.subr.mxu0 %v6443
        %6552 = vmatpush1.msra.mxu0 %v6442
        %6553 = vmatprep.subr.mxu0 %v6447
        %6554 = vmatpush1.msra.mxu0 %v6446
        %6555 = vmatprep.subr.mxu0 %v6451
        %6556 = vmatpush1.msra.mxu0 %v6450
        %6557 = vmatprep.subr.mxu0 %v6455
        %6558 = vmatpush1.msra.mxu0 %v6454
        %6559 = vmatprep.subr.mxu0 %v6459
        %6560 = vmatpush1.msra.mxu0 %v6458
        %6561 = vmatprep.subr.mxu0 %v6463
        %6562 = vmatpush1.msra.mxu0 %v6462
        %6563 = vmatprep.subr.mxu0 %v6467
        %6564 = vmatpush1.msra.mxu0 %v6466
        %6565 = vmatprep.subr.mxu0 %v6471
        %6566 = vmatpush1.msra.mxu0 %v6470
        %6567 = vmatprep.subr.mxu0 %v6475
        %6568 = vmatpush1.msra.mxu0 %v6474
        %6569 = vmatprep.subr.mxu0 %v6479
        %6570 = vmatpush1.msra.mxu0 %v6478
        %6571 = vmatprep.subr.mxu0 %v6483
        %6572 = vmatpush1.msra.mxu0 %v6482
        %6573 = vmatprep.subr.mxu0 %v6487
        %6574 = vmatpush1.msra.mxu0 %v6486
        %6575 = vmatprep.subr.mxu0 %v6491
        %6576 = vmatpush1.msra.mxu0 %v6490
        %6577 = vmatprep.subr.mxu0 %v6495
        %6578 = vmatpush1.msra.mxu0 %v6494
        %6579 = vmatprep.subr.mxu0 %v6499
        %6580 = vmatpush1.msra.mxu0 %v6498
        %6581 = vmatprep.subr.mxu0 %v6503
        %6582 = vmatpush1.msra.mxu0 %v6502
        %6583 = vmatprep.subr.mxu0 %v6507
        %6584 = vmatpush1.msra.mxu0 %v6506
        %6585 = vmatprep.mubr.f32.mxu0 %v6518
        %6586 = vmatmul.mubr.f32.gmra.mrb[0].mxu0 %v6514
        %v6587 = vpop.f32.mrb[0].mxu0
        %v6588 = vadd.f32 0.0, %v6587
        %v6589 = vpop.f32.mrb[0].mxu0
        %v6590 = vadd.f32 0.0, %v6589
        %6591 = vdwg.mxu0
        %6592 = vmatprep.subr.mxu0 %v6385
        %6593 = vmatpush1.msra.mxu0 %v6384
        %6594 = vmatprep.subr.mxu0 %v6389
        %6595 = vmatpush1.msra.mxu0 %v6388
        %6596 = vmatprep.subr.mxu0 %v6393
        %6597 = vmatpush1.msra.mxu0 %v6392
        %6598 = vmatprep.subr.mxu0 %v6397
        %6599 = vmatpush1.msra.mxu0 %v6396
        %6600 = vmatprep.subr.mxu0 %v6401
        %6601 = vmatpush1.msra.mxu0 %v6400
        %6602 = vmatprep.subr.mxu0 %v6405
        %6603 = vmatpush1.msra.mxu0 %v6404
        %6604 = vmatprep.subr.mxu0 %v6409
        %6605 = vmatpush1.msra.mxu0 %v6408
        %6606 = vmatprep.subr.mxu0 %v6413
        %6607 = vmatpush1.msra.mxu0 %v6412
        %6608 = vmatprep.subr.mxu0 %v6417
        %6609 = vmatpush1.msra.mxu0 %v6416
        %6610 = vmatprep.subr.mxu0 %v6421
        %6611 = vmatpush1.msra.mxu0 %v6420
        %6612 = vmatprep.subr.mxu0 %v6425
        %6613 = vmatpush1.msra.mxu0 %v6424
        %6614 = vmatprep.subr.mxu0 %v6429
        %6615 = vmatpush1.msra.mxu0 %v6428
        %6616 = vmatprep.subr.mxu0 %v6433
        %6617 = vmatpush1.msra.mxu0 %v6432
        %6618 = vmatprep.subr.mxu0 %v6437
        %6619 = vmatpush1.msra.mxu0 %v6436
        %6620 = vmatprep.subr.mxu0 %v6441
        %6621 = vmatpush1.msra.mxu0 %v6440
        %6622 = vmatprep.subr.mxu0 %v6445
        %6623 = vmatpush1.msra.mxu0 %v6444
        %6624 = vmatprep.subr.mxu0 %v6449
        %6625 = vmatpush1.msra.mxu0 %v6448
        %6626 = vmatprep.subr.mxu0 %v6453
        %6627 = vmatpush1.msra.mxu0 %v6452
        %6628 = vmatprep.subr.mxu0 %v6457
        %6629 = vmatpush1.msra.mxu0 %v6456
        %6630 = vmatprep.subr.mxu0 %v6461
        %6631 = vmatpush1.msra.mxu0 %v6460
        %6632 = vmatprep.subr.mxu0 %v6465
        %6633 = vmatpush1.msra.mxu0 %v6464
        %6634 = vmatprep.subr.mxu0 %v6469
        %6635 = vmatpush1.msra.mxu0 %v6468
        %6636 = vmatprep.subr.mxu0 %v6473
        %6637 = vmatpush1.msra.mxu0 %v6472
        %6638 = vmatprep.subr.mxu0 %v6477
        %6639 = vmatpush1.msra.mxu0 %v6476
        %6640 = vmatprep.subr.mxu0 %v6481
        %6641 = vmatpush1.msra.mxu0 %v6480
        %6642 = vmatprep.subr.mxu0 %v6485
        %6643 = vmatpush1.msra.mxu0 %v6484
        %6644 = vmatprep.subr.mxu0 %v6489
        %6645 = vmatpush1.msra.mxu0 %v6488
        %6646 = vmatprep.subr.mxu0 %v6493
        %6647 = vmatpush1.msra.mxu0 %v6492
        %6648 = vmatprep.subr.mxu0 %v6497
        %6649 = vmatpush1.msra.mxu0 %v6496
        %6650 = vmatprep.subr.mxu0 %v6501
        %6651 = vmatpush1.msra.mxu0 %v6500
        %6652 = vmatprep.subr.mxu0 %v6505
        %6653 = vmatpush1.msra.mxu0 %v6504
        %6654 = vmatprep.subr.mxu0 %v6509
        %6655 = vmatpush1.msra.mxu0 %v6508
        %6656 = vmatprep.mubr.f32.mxu0 %v6518
        %6657 = vmatmul.mubr.f32.gmra.mrb[0].mxu0 %v6514
        %v6658 = vpop.f32.mrb[0].mxu0
        %v6659 = vadd.f32 0.0, %v6658
        %v6660 = vpop.f32.mrb[0].mxu0
        %v6661 = vadd.f32 0.0, %v6660
        %6662 = vdwg.mxu0
        %v6667 = vcombine.low %v6588, %v6590
        %v6668 = vcombine.low %v6659, %v6661
        %v6670 = vunpack.c.l.s4 1966171168
        %v6671 = vunpack.c.0.s8 %v6670
        %v6672 = vlaneseq
        %v6673 = vshrl.u32 %v6672, 7
        %v6674 = vsub.s32 %v6671, %v6673
        %v6675 = vrot.slane %v6667, %v6674
        %v6677 = vunpack.c.l.s4 1966171168
        %v6678 = vunpack.c.0.s8 %v6677
        %v6679 = vlaneseq
        %v6680 = vshrl.u32 %v6679, 7
        %v6681 = vsub.s32 %v6678, %v6680
        %v6682 = vrot.slane %v6668, %v6681
        %v6683 = vcombine.low %v6675, %v6682
        %v6685 = vunpack.c.l.s4 1966171168
        %v6686 = vunpack.c.0.s8 %v6685
        %v6687 = vlaneseq
        %v6688 = vshrl.u32 %v6687, 7
        %v6689 = vsub.s32 %v6686, %v6688
        %v6690 = vrot.slane %v6683, %v6689
        %v6692 = vadd.f32 %v6378, %v6690
        %s6693 = scalar_lea.vmem [#allocation3], 3
        %v6694 = vld [vmem:[%s6693] ss:$4 sm:$0x3]
        %s6695 = scalar_lea.vmem [#allocation12], 3072
        %v6696 = vld [vmem:[%s6695] sm:$0xff]
        %v6697 = vld [vmem:[%s6695 + $0x8] sm:$0xff]
        %v6698 = vld [vmem:[%s6695 + $0x10] sm:$0xff]
        %v6699 = vld [vmem:[%s6695 + $0x18] sm:$0xff]
        %v6700 = vld [vmem:[%s6695 + $0x20] sm:$0xff]
        %v6701 = vld [vmem:[%s6695 + $0x28] sm:$0xff]
        %v6702 = vld [vmem:[%s6695 + $0x30] sm:$0xff]
        %v6703 = vld [vmem:[%s6695 + $0x38] sm:$0xff]
        %v6704 = vld [vmem:[%s6695 + $0x40] sm:$0xff]
        %v6705 = vld [vmem:[%s6695 + $0x48] sm:$0xff]
        %v6706 = vld [vmem:[%s6695 + $0x50] sm:$0xff]
        %v6707 = vld [vmem:[%s6695 + $0x58] sm:$0xff]
        %v6708 = vld [vmem:[%s6695 + $0x60] sm:$0xff]
        %v6709 = vld [vmem:[%s6695 + $0x68] sm:$0xff]
        %v6710 = vld [vmem:[%s6695 + $0x70] sm:$0xff]
        %v6711 = vld [vmem:[%s6695 + $0x78] sm:$0xff]
        %v6712 = vld [vmem:[%s6695 + $0x80] sm:$0xff]
        %v6713 = vld [vmem:[%s6695 + $0x88] sm:$0xff]
        %v6714 = vld [vmem:[%s6695 + $0x90] sm:$0xff]
        %v6715 = vld [vmem:[%s6695 + $0x98] sm:$0xff]
        %v6716 = vld [vmem:[%s6695 + $0xa0] sm:$0xff]
        %v6717 = vld [vmem:[%s6695 + $0xa8] sm:$0xff]
        %v6718 = vld [vmem:[%s6695 + $0xb0] sm:$0xff]
        %v6719 = vld [vmem:[%s6695 + $0xb8] sm:$0xff]
        %v6720 = vld [vmem:[%s6695 + $0xc0] sm:$0xff]
        %v6721 = vld [vmem:[%s6695 + $0xc8] sm:$0xff]
        %v6722 = vld [vmem:[%s6695 + $0xd0] sm:$0xff]
        %v6723 = vld [vmem:[%s6695 + $0xd8] sm:$0xff]
        %v6724 = vld [vmem:[%s6695 + $0xe0] sm:$0xff]
        %v6725 = vld [vmem:[%s6695 + $0xe8] sm:$0xff]
        %v6726 = vld [vmem:[%s6695 + $0xf0] sm:$0xff]
        %v6727 = vld [vmem:[%s6695 + $0xf8] sm:$0xff]
        %v6728 = vld [vmem:[%s6695 + $0x100] sm:$0xff]
        %v6729 = vld [vmem:[%s6695 + $0x108] sm:$0xff]
        %v6730 = vld [vmem:[%s6695 + $0x110] sm:$0xff]
        %v6731 = vld [vmem:[%s6695 + $0x118] sm:$0xff]
        %v6732 = vld [vmem:[%s6695 + $0x120] sm:$0xff]
        %v6733 = vld [vmem:[%s6695 + $0x128] sm:$0xff]
        %v6734 = vld [vmem:[%s6695 + $0x130] sm:$0xff]
        %v6735 = vld [vmem:[%s6695 + $0x138] sm:$0xff]
        %v6736 = vld [vmem:[%s6695 + $0x140] sm:$0xff]
        %v6737 = vld [vmem:[%s6695 + $0x148] sm:$0xff]
        %v6738 = vld [vmem:[%s6695 + $0x150] sm:$0xff]
        %v6739 = vld [vmem:[%s6695 + $0x158] sm:$0xff]
        %v6740 = vld [vmem:[%s6695 + $0x160] sm:$0xff]
        %v6741 = vld [vmem:[%s6695 + $0x168] sm:$0xff]
        %v6742 = vld [vmem:[%s6695 + $0x170] sm:$0xff]
        %v6743 = vld [vmem:[%s6695 + $0x178] sm:$0xff]
        %v6744 = vld [vmem:[%s6695 + $0x180] sm:$0xff]
        %v6745 = vld [vmem:[%s6695 + $0x188] sm:$0xff]
        %v6746 = vld [vmem:[%s6695 + $0x190] sm:$0xff]
        %v6747 = vld [vmem:[%s6695 + $0x198] sm:$0xff]
        %v6748 = vld [vmem:[%s6695 + $0x1a0] sm:$0xff]
        %v6749 = vld [vmem:[%s6695 + $0x1a8] sm:$0xff]
        %v6750 = vld [vmem:[%s6695 + $0x1b0] sm:$0xff]
        %v6751 = vld [vmem:[%s6695 + $0x1b8] sm:$0xff]
        %v6752 = vld [vmem:[%s6695 + $0x1c0] sm:$0xff]
        %v6753 = vld [vmem:[%s6695 + $0x1c8] sm:$0xff]
        %v6754 = vld [vmem:[%s6695 + $0x1d0] sm:$0xff]
        %v6755 = vld [vmem:[%s6695 + $0x1d8] sm:$0xff]
        %v6756 = vld [vmem:[%s6695 + $0x1e0] sm:$0xff]
        %v6757 = vld [vmem:[%s6695 + $0x1e8] sm:$0xff]
        %v6758 = vld [vmem:[%s6695 + $0x1f0] sm:$0xff]
        %v6759 = vld [vmem:[%s6695 + $0x1f8] sm:$0xff]
        %v6760 = vld [vmem:[%s6695 + $0x200] sm:$0xff]
        %v6761 = vld [vmem:[%s6695 + $0x208] sm:$0xff]
        %v6762 = vld [vmem:[%s6695 + $0x210] sm:$0xff]
        %v6763 = vld [vmem:[%s6695 + $0x218] sm:$0xff]
        %v6764 = vld [vmem:[%s6695 + $0x220] sm:$0xff]
        %v6765 = vld [vmem:[%s6695 + $0x228] sm:$0xff]
        %v6766 = vld [vmem:[%s6695 + $0x230] sm:$0xff]
        %v6767 = vld [vmem:[%s6695 + $0x238] sm:$0xff]
        %v6768 = vld [vmem:[%s6695 + $0x240] sm:$0xff]
        %v6769 = vld [vmem:[%s6695 + $0x248] sm:$0xff]
        %v6770 = vld [vmem:[%s6695 + $0x250] sm:$0xff]
        %v6771 = vld [vmem:[%s6695 + $0x258] sm:$0xff]
        %v6772 = vld [vmem:[%s6695 + $0x260] sm:$0xff]
        %v6773 = vld [vmem:[%s6695 + $0x268] sm:$0xff]
        %v6774 = vld [vmem:[%s6695 + $0x270] sm:$0xff]
        %v6775 = vld [vmem:[%s6695 + $0x278] sm:$0xff]
        %v6776 = vld [vmem:[%s6695 + $0x280] sm:$0xff]
        %v6777 = vld [vmem:[%s6695 + $0x288] sm:$0xff]
        %v6778 = vld [vmem:[%s6695 + $0x290] sm:$0xff]
        %v6779 = vld [vmem:[%s6695 + $0x298] sm:$0xff]
        %v6780 = vld [vmem:[%s6695 + $0x2a0] sm:$0xff]
        %v6781 = vld [vmem:[%s6695 + $0x2a8] sm:$0xff]
        %v6782 = vld [vmem:[%s6695 + $0x2b0] sm:$0xff]
        %v6783 = vld [vmem:[%s6695 + $0x2b8] sm:$0xff]
        %v6784 = vld [vmem:[%s6695 + $0x2c0] sm:$0xff]
        %v6785 = vld [vmem:[%s6695 + $0x2c8] sm:$0xff]
        %v6786 = vld [vmem:[%s6695 + $0x2d0] sm:$0xff]
        %v6787 = vld [vmem:[%s6695 + $0x2d8] sm:$0xff]
        %v6788 = vld [vmem:[%s6695 + $0x2e0] sm:$0xff]
        %v6789 = vld [vmem:[%s6695 + $0x2e8] sm:$0xff]
        %v6790 = vld [vmem:[%s6695 + $0x2f0] sm:$0xff]
        %v6791 = vld [vmem:[%s6695 + $0x2f8] sm:$0xff]
        %v6792 = vld [vmem:[%s6695 + $0x300] sm:$0xff]
        %v6793 = vld [vmem:[%s6695 + $0x308] sm:$0xff]
        %v6794 = vld [vmem:[%s6695 + $0x310] sm:$0xff]
        %v6795 = vld [vmem:[%s6695 + $0x318] sm:$0xff]
        %v6796 = vld [vmem:[%s6695 + $0x320] sm:$0xff]
        %v6797 = vld [vmem:[%s6695 + $0x328] sm:$0xff]
        %v6798 = vld [vmem:[%s6695 + $0x330] sm:$0xff]
        %v6799 = vld [vmem:[%s6695 + $0x338] sm:$0xff]
        %v6800 = vld [vmem:[%s6695 + $0x340] sm:$0xff]
        %v6801 = vld [vmem:[%s6695 + $0x348] sm:$0xff]
        %v6802 = vld [vmem:[%s6695 + $0x350] sm:$0xff]
        %v6803 = vld [vmem:[%s6695 + $0x358] sm:$0xff]
        %v6804 = vld [vmem:[%s6695 + $0x360] sm:$0xff]
        %v6805 = vld [vmem:[%s6695 + $0x368] sm:$0xff]
        %v6806 = vld [vmem:[%s6695 + $0x370] sm:$0xff]
        %v6807 = vld [vmem:[%s6695 + $0x378] sm:$0xff]
        %v6808 = vld [vmem:[%s6695 + $0x380] sm:$0xff]
        %v6809 = vld [vmem:[%s6695 + $0x388] sm:$0xff]
        %v6810 = vld [vmem:[%s6695 + $0x390] sm:$0xff]
        %v6811 = vld [vmem:[%s6695 + $0x398] sm:$0xff]
        %v6812 = vld [vmem:[%s6695 + $0x3a0] sm:$0xff]
        %v6813 = vld [vmem:[%s6695 + $0x3a8] sm:$0xff]
        %v6814 = vld [vmem:[%s6695 + $0x3b0] sm:$0xff]
        %v6815 = vld [vmem:[%s6695 + $0x3b8] sm:$0xff]
        %v6816 = vld [vmem:[%s6695 + $0x3c0] sm:$0xff]
        %v6817 = vld [vmem:[%s6695 + $0x3c8] sm:$0xff]
        %v6818 = vld [vmem:[%s6695 + $0x3d0] sm:$0xff]
        %v6819 = vld [vmem:[%s6695 + $0x3d8] sm:$0xff]
        %v6820 = vld [vmem:[%s6695 + $0x3e0] sm:$0xff]
        %v6821 = vld [vmem:[%s6695 + $0x3e8] sm:$0xff]
        %v6822 = vld [vmem:[%s6695 + $0x3f0] sm:$0xff]
        %v6823 = vld [vmem:[%s6695 + $0x3f8] sm:$0xff]
        %v6825 = vlaneseq
        %v6826 = vshrl.u32 %v6825, 7
        %v6827 = vsub.s32 0, %v6826
        %v6828 = vrot.slane %v6694, %v6827
        %v6829 = vlaneseq
        %v6830 = vshrl.u32 %v6829, 7
        %v6831 = vsub.s32 1, %v6830
        %v6832 = vrot.slane %v6694, %v6831
        %6835 = vmatprep.subr.mxu0 %v6697
        %6836 = vmatpush1.msra.mxu0 %v6696
        %6837 = vmatprep.subr.mxu0 %v6701
        %6838 = vmatpush1.msra.mxu0 %v6700
        %6839 = vmatprep.subr.mxu0 %v6705
        %6840 = vmatpush1.msra.mxu0 %v6704
        %6841 = vmatprep.subr.mxu0 %v6709
        %6842 = vmatpush1.msra.mxu0 %v6708
        %6843 = vmatprep.subr.mxu0 %v6713
        %6844 = vmatpush1.msra.mxu0 %v6712
        %6845 = vmatprep.subr.mxu0 %v6717
        %6846 = vmatpush1.msra.mxu0 %v6716
        %6847 = vmatprep.subr.mxu0 %v6721
        %6848 = vmatpush1.msra.mxu0 %v6720
        %6849 = vmatprep.subr.mxu0 %v6725
        %6850 = vmatpush1.msra.mxu0 %v6724
        %6851 = vmatprep.subr.mxu0 %v6729
        %6852 = vmatpush1.msra.mxu0 %v6728
        %6853 = vmatprep.subr.mxu0 %v6733
        %6854 = vmatpush1.msra.mxu0 %v6732
        %6855 = vmatprep.subr.mxu0 %v6737
        %6856 = vmatpush1.msra.mxu0 %v6736
        %6857 = vmatprep.subr.mxu0 %v6741
        %6858 = vmatpush1.msra.mxu0 %v6740
        %6859 = vmatprep.subr.mxu0 %v6745
        %6860 = vmatpush1.msra.mxu0 %v6744
        %6861 = vmatprep.subr.mxu0 %v6749
        %6862 = vmatpush1.msra.mxu0 %v6748
        %6863 = vmatprep.subr.mxu0 %v6753
        %6864 = vmatpush1.msra.mxu0 %v6752
        %6865 = vmatprep.subr.mxu0 %v6757
        %6866 = vmatpush1.msra.mxu0 %v6756
        %6867 = vmatprep.subr.mxu0 %v6761
        %6868 = vmatpush1.msra.mxu0 %v6760
        %6869 = vmatprep.subr.mxu0 %v6765
        %6870 = vmatpush1.msra.mxu0 %v6764
        %6871 = vmatprep.subr.mxu0 %v6769
        %6872 = vmatpush1.msra.mxu0 %v6768
        %6873 = vmatprep.subr.mxu0 %v6773
        %6874 = vmatpush1.msra.mxu0 %v6772
        %6875 = vmatprep.subr.mxu0 %v6777
        %6876 = vmatpush1.msra.mxu0 %v6776
        %6877 = vmatprep.subr.mxu0 %v6781
        %6878 = vmatpush1.msra.mxu0 %v6780
        %6879 = vmatprep.subr.mxu0 %v6785
        %6880 = vmatpush1.msra.mxu0 %v6784
        %6881 = vmatprep.subr.mxu0 %v6789
        %6882 = vmatpush1.msra.mxu0 %v6788
        %6883 = vmatprep.subr.mxu0 %v6793
        %6884 = vmatpush1.msra.mxu0 %v6792
        %6885 = vmatprep.subr.mxu0 %v6797
        %6886 = vmatpush1.msra.mxu0 %v6796
        %6887 = vmatprep.subr.mxu0 %v6801
        %6888 = vmatpush1.msra.mxu0 %v6800
        %6889 = vmatprep.subr.mxu0 %v6805
        %6890 = vmatpush1.msra.mxu0 %v6804
        %6891 = vmatprep.subr.mxu0 %v6809
        %6892 = vmatpush1.msra.mxu0 %v6808
        %6893 = vmatprep.subr.mxu0 %v6813
        %6894 = vmatpush1.msra.mxu0 %v6812
        %6895 = vmatprep.subr.mxu0 %v6817
        %6896 = vmatpush1.msra.mxu0 %v6816
        %6897 = vmatprep.subr.mxu0 %v6821
        %6898 = vmatpush1.msra.mxu0 %v6820
        %6899 = vmatprep.mubr.f32.mxu0 %v6832
        %6900 = vmatmul.mubr.f32.gmra.mrb[0].mxu0 %v6828
        %v6901 = vpop.f32.mrb[0].mxu0
        %v6902 = vadd.f32 0.0, %v6901
        %v6903 = vpop.f32.mrb[0].mxu0
        %v6904 = vadd.f32 0.0, %v6903
        %6905 = vdwg.mxu0
        %6906 = vmatprep.subr.mxu0 %v6699
        %6907 = vmatpush1.msra.mxu0 %v6698
        %6908 = vmatprep.subr.mxu0 %v6703
        %6909 = vmatpush1.msra.mxu0 %v6702
        %6910 = vmatprep.subr.mxu0 %v6707
        %6911 = vmatpush1.msra.mxu0 %v6706
        %6912 = vmatprep.subr.mxu0 %v6711
        %6913 = vmatpush1.msra.mxu0 %v6710
        %6914 = vmatprep.subr.mxu0 %v6715
        %6915 = vmatpush1.msra.mxu0 %v6714
        %6916 = vmatprep.subr.mxu0 %v6719
        %6917 = vmatpush1.msra.mxu0 %v6718
        %6918 = vmatprep.subr.mxu0 %v6723
        %6919 = vmatpush1.msra.mxu0 %v6722
        %6920 = vmatprep.subr.mxu0 %v6727
        %6921 = vmatpush1.msra.mxu0 %v6726
        %6922 = vmatprep.subr.mxu0 %v6731
        %6923 = vmatpush1.msra.mxu0 %v6730
        %6924 = vmatprep.subr.mxu0 %v6735
        %6925 = vmatpush1.msra.mxu0 %v6734
        %6926 = vmatprep.subr.mxu0 %v6739
        %6927 = vmatpush1.msra.mxu0 %v6738
        %6928 = vmatprep.subr.mxu0 %v6743
        %6929 = vmatpush1.msra.mxu0 %v6742
        %6930 = vmatprep.subr.mxu0 %v6747
        %6931 = vmatpush1.msra.mxu0 %v6746
        %6932 = vmatprep.subr.mxu0 %v6751
        %6933 = vmatpush1.msra.mxu0 %v6750
        %6934 = vmatprep.subr.mxu0 %v6755
        %6935 = vmatpush1.msra.mxu0 %v6754
        %6936 = vmatprep.subr.mxu0 %v6759
        %6937 = vmatpush1.msra.mxu0 %v6758
        %6938 = vmatprep.subr.mxu0 %v6763
        %6939 = vmatpush1.msra.mxu0 %v6762
        %6940 = vmatprep.subr.mxu0 %v6767
        %6941 = vmatpush1.msra.mxu0 %v6766
        %6942 = vmatprep.subr.mxu0 %v6771
        %6943 = vmatpush1.msra.mxu0 %v6770
        %6944 = vmatprep.subr.mxu0 %v6775
        %6945 = vmatpush1.msra.mxu0 %v6774
        %6946 = vmatprep.subr.mxu0 %v6779
        %6947 = vmatpush1.msra.mxu0 %v6778
        %6948 = vmatprep.subr.mxu0 %v6783
        %6949 = vmatpush1.msra.mxu0 %v6782
        %6950 = vmatprep.subr.mxu0 %v6787
        %6951 = vmatpush1.msra.mxu0 %v6786
        %6952 = vmatprep.subr.mxu0 %v6791
        %6953 = vmatpush1.msra.mxu0 %v6790
        %6954 = vmatprep.subr.mxu0 %v6795
        %6955 = vmatpush1.msra.mxu0 %v6794
        %6956 = vmatprep.subr.mxu0 %v6799
        %6957 = vmatpush1.msra.mxu0 %v6798
        %6958 = vmatprep.subr.mxu0 %v6803
        %6959 = vmatpush1.msra.mxu0 %v6802
        %6960 = vmatprep.subr.mxu0 %v6807
        %6961 = vmatpush1.msra.mxu0 %v6806
        %6962 = vmatprep.subr.mxu0 %v6811
        %6963 = vmatpush1.msra.mxu0 %v6810
        %6964 = vmatprep.subr.mxu0 %v6815
        %6965 = vmatpush1.msra.mxu0 %v6814
        %6966 = vmatprep.subr.mxu0 %v6819
        %6967 = vmatpush1.msra.mxu0 %v6818
        %6968 = vmatprep.subr.mxu0 %v6823
        %6969 = vmatpush1.msra.mxu0 %v6822
        %6970 = vmatprep.mubr.f32.mxu0 %v6832
        %6971 = vmatmul.mubr.f32.gmra.mrb[0].mxu0 %v6828
        %v6972 = vpop.f32.mrb[0].mxu0
        %v6973 = vadd.f32 0.0, %v6972
        %v6974 = vpop.f32.mrb[0].mxu0
        %v6975 = vadd.f32 0.0, %v6974
        %6976 = vdwg.mxu0
        %v6981 = vcombine.low %v6902, %v6904
        %v6982 = vcombine.low %v6973, %v6975
        %v6984 = vunpack.c.l.s4 1966171168
        %v6985 = vunpack.c.0.s8 %v6984
        %v6986 = vlaneseq
        %v6987 = vshrl.u32 %v6986, 7
        %v6988 = vsub.s32 %v6985, %v6987
        %v6989 = vrot.slane %v6981, %v6988
        %v6991 = vunpack.c.l.s4 1966171168
        %v6992 = vunpack.c.0.s8 %v6991
        %v6993 = vlaneseq
        %v6994 = vshrl.u32 %v6993, 7
        %v6995 = vsub.s32 %v6992, %v6994
        %v6996 = vrot.slane %v6982, %v6995
        %v6997 = vcombine.low %v6989, %v6996
        %v6999 = vunpack.c.l.s4 1966171168
        %v7000 = vunpack.c.0.s8 %v6999
        %v7001 = vlaneseq
        %v7002 = vshrl.u32 %v7001, 7
        %v7003 = vsub.s32 %v7000, %v7002
        %v7004 = vrot.slane %v6997, %v7003
        %v7006 = vadd.f32 %v6692, %v7004
        %v7007 = vmax.f32 %v7006, 0.0
        %v7008 = vld [vmem:[#allocation15] sm:$0xff]
        %v7009 = vld [vmem:[#allocation15 + $0x8] sm:$0xff]
        %v7010 = vld [vmem:[#allocation15 + $0x10] sm:$0xff]
        %v7011 = vld [vmem:[#allocation15 + $0x18] sm:$0xff]
        %v7012 = vld [vmem:[#allocation15 + $0x20] sm:$0xff]
        %v7013 = vld [vmem:[#allocation15 + $0x28] sm:$0xff]
        %v7014 = vld [vmem:[#allocation15 + $0x30] sm:$0xff]
        %v7015 = vld [vmem:[#allocation15 + $0x38] sm:$0xff]
        %v7016 = vld [vmem:[#allocation15 + $0x40] sm:$0xff]
        %v7017 = vld [vmem:[#allocation15 + $0x48] sm:$0xff]
        %v7018 = vld [vmem:[#allocation15 + $0x50] sm:$0xff]
        %v7019 = vld [vmem:[#allocation15 + $0x58] sm:$0xff]
        %v7020 = vld [vmem:[#allocation15 + $0x60] sm:$0xff]
        %v7021 = vld [vmem:[#allocation15 + $0x68] sm:$0xff]
        %v7022 = vld [vmem:[#allocation15 + $0x70] sm:$0xff]
        %v7023 = vld [vmem:[#allocation15 + $0x78] sm:$0xff]
        %v7024 = vld [vmem:[#allocation15 + $0x80] sm:$0xff]
        %v7025 = vld [vmem:[#allocation15 + $0x88] sm:$0xff]
        %v7026 = vld [vmem:[#allocation15 + $0x90] sm:$0xff]
        %v7027 = vld [vmem:[#allocation15 + $0x98] sm:$0xff]
        %v7028 = vld [vmem:[#allocation15 + $0xa0] sm:$0xff]
        %v7029 = vld [vmem:[#allocation15 + $0xa8] sm:$0xff]
        %v7030 = vld [vmem:[#allocation15 + $0xb0] sm:$0xff]
        %v7031 = vld [vmem:[#allocation15 + $0xb8] sm:$0xff]
        %v7032 = vld [vmem:[#allocation15 + $0xc0] sm:$0xff]
        %v7033 = vld [vmem:[#allocation15 + $0xc8] sm:$0xff]
        %v7034 = vld [vmem:[#allocation15 + $0xd0] sm:$0xff]
        %v7035 = vld [vmem:[#allocation15 + $0xd8] sm:$0xff]
        %v7036 = vld [vmem:[#allocation15 + $0xe0] sm:$0xff]
        %v7037 = vld [vmem:[#allocation15 + $0xe8] sm:$0xff]
        %v7038 = vld [vmem:[#allocation15 + $0xf0] sm:$0xff]
        %v7039 = vld [vmem:[#allocation15 + $0xf8] sm:$0xff]
        %v7040 = vld [vmem:[#allocation15 + $0x100] sm:$0xff]
        %v7041 = vld [vmem:[#allocation15 + $0x108] sm:$0xff]
        %v7042 = vld [vmem:[#allocation15 + $0x110] sm:$0xff]
        %v7043 = vld [vmem:[#allocation15 + $0x118] sm:$0xff]
        %v7044 = vld [vmem:[#allocation15 + $0x120] sm:$0xff]
        %v7045 = vld [vmem:[#allocation15 + $0x128] sm:$0xff]
        %v7046 = vld [vmem:[#allocation15 + $0x130] sm:$0xff]
        %v7047 = vld [vmem:[#allocation15 + $0x138] sm:$0xff]
        %v7048 = vld [vmem:[#allocation15 + $0x140] sm:$0xff]
        %v7049 = vld [vmem:[#allocation15 + $0x148] sm:$0xff]
        %v7050 = vld [vmem:[#allocation15 + $0x150] sm:$0xff]
        %v7051 = vld [vmem:[#allocation15 + $0x158] sm:$0xff]
        %v7052 = vld [vmem:[#allocation15 + $0x160] sm:$0xff]
        %v7053 = vld [vmem:[#allocation15 + $0x168] sm:$0xff]
        %v7054 = vld [vmem:[#allocation15 + $0x170] sm:$0xff]
        %v7055 = vld [vmem:[#allocation15 + $0x178] sm:$0xff]
        %v7056 = vld [vmem:[#allocation15 + $0x180] sm:$0xff]
        %v7057 = vld [vmem:[#allocation15 + $0x188] sm:$0xff]
        %v7058 = vld [vmem:[#allocation15 + $0x190] sm:$0xff]
        %v7059 = vld [vmem:[#allocation15 + $0x198] sm:$0xff]
        %v7060 = vld [vmem:[#allocation15 + $0x1a0] sm:$0xff]
        %v7061 = vld [vmem:[#allocation15 + $0x1a8] sm:$0xff]
        %v7062 = vld [vmem:[#allocation15 + $0x1b0] sm:$0xff]
        %v7063 = vld [vmem:[#allocation15 + $0x1b8] sm:$0xff]
        %v7064 = vld [vmem:[#allocation15 + $0x1c0] sm:$0xff]
        %v7065 = vld [vmem:[#allocation15 + $0x1c8] sm:$0xff]
        %v7066 = vld [vmem:[#allocation15 + $0x1d0] sm:$0xff]
        %v7067 = vld [vmem:[#allocation15 + $0x1d8] sm:$0xff]
        %v7068 = vld [vmem:[#allocation15 + $0x1e0] sm:$0xff]
        %v7069 = vld [vmem:[#allocation15 + $0x1e8] sm:$0xff]
        %v7070 = vld [vmem:[#allocation15 + $0x1f0] sm:$0xff]
        %v7071 = vld [vmem:[#allocation15 + $0x1f8] sm:$0xff]
        %v7072 = vld [vmem:[#allocation16] sm:$0x1]
        %v7074 = vlaneseq
        %v7075 = vshrl.u32 %v7074, 7
        %v7076 = vsub.s32 0, %v7075
        %v7077 = vrot.slane %v7007, %v7076
        %v7078 = vlaneseq
        %v7079 = vshrl.u32 %v7078, 7
        %v7080 = vsub.s32 1, %v7079
        %v7081 = vrot.slane %v7007, %v7080
        %v7082 = vlaneseq
        %v7083 = vshrl.u32 %v7082, 7
        %v7084 = vsub.s32 2, %v7083
        %v7085 = vrot.slane %v7007, %v7084
        %v7086 = vlaneseq
        %v7087 = vshrl.u32 %v7086, 7
        %v7088 = vsub.s32 3, %v7087
        %v7089 = vrot.slane %v7007, %v7088
        %7094 = vmatprep.subr.mxu0 0.0
        %7095 = vmatpush1.msra.mxu0 %v7008
        %7096 = vmatprep.subr.mxu0 0.0
        %7097 = vmatpush1.msra.mxu0 %v7009
        %7098 = vmatprep.subr.mxu0 0.0
        %7099 = vmatpush1.msra.mxu0 %v7010
        %7100 = vmatprep.subr.mxu0 0.0
        %7101 = vmatpush1.msra.mxu0 %v7011
        %7102 = vmatprep.subr.mxu0 0.0
        %7103 = vmatpush1.msra.mxu0 %v7012
        %7104 = vmatprep.subr.mxu0 0.0
        %7105 = vmatpush1.msra.mxu0 %v7013
        %7106 = vmatprep.subr.mxu0 0.0
        %7107 = vmatpush1.msra.mxu0 %v7014
        %7108 = vmatprep.subr.mxu0 0.0
        %7109 = vmatpush1.msra.mxu0 %v7015
        %7110 = vmatprep.subr.mxu0 0.0
        %7111 = vmatpush1.msra.mxu0 %v7016
        %7112 = vmatprep.subr.mxu0 0.0
        %7113 = vmatpush1.msra.mxu0 %v7017
        %7114 = vmatprep.subr.mxu0 0.0
        %7115 = vmatpush1.msra.mxu0 %v7018
        %7116 = vmatprep.subr.mxu0 0.0
        %7117 = vmatpush1.msra.mxu0 %v7019
        %7118 = vmatprep.subr.mxu0 0.0
        %7119 = vmatpush1.msra.mxu0 %v7020
        %7120 = vmatprep.subr.mxu0 0.0
        %7121 = vmatpush1.msra.mxu0 %v7021
        %7122 = vmatprep.subr.mxu0 0.0
        %7123 = vmatpush1.msra.mxu0 %v7022
        %7124 = vmatprep.subr.mxu0 0.0
        %7125 = vmatpush1.msra.mxu0 %v7023
        %7126 = vmatprep.subr.mxu0 0.0
        %7127 = vmatpush1.msra.mxu0 %v7024
        %7128 = vmatprep.subr.mxu0 0.0
        %7129 = vmatpush1.msra.mxu0 %v7025
        %7130 = vmatprep.subr.mxu0 0.0
        %7131 = vmatpush1.msra.mxu0 %v7026
        %7132 = vmatprep.subr.mxu0 0.0
        %7133 = vmatpush1.msra.mxu0 %v7027
        %7134 = vmatprep.subr.mxu0 0.0
        %7135 = vmatpush1.msra.mxu0 %v7028
        %7136 = vmatprep.subr.mxu0 0.0
        %7137 = vmatpush1.msra.mxu0 %v7029
        %7138 = vmatprep.subr.mxu0 0.0
        %7139 = vmatpush1.msra.mxu0 %v7030
        %7140 = vmatprep.subr.mxu0 0.0
        %7141 = vmatpush1.msra.mxu0 %v7031
        %7142 = vmatprep.subr.mxu0 0.0
        %7143 = vmatpush1.msra.mxu0 %v7032
        %7144 = vmatprep.subr.mxu0 0.0
        %7145 = vmatpush1.msra.mxu0 %v7033
        %7146 = vmatprep.subr.mxu0 0.0
        %7147 = vmatpush1.msra.mxu0 %v7034
        %7148 = vmatprep.subr.mxu0 0.0
        %7149 = vmatpush1.msra.mxu0 %v7035
        %7150 = vmatprep.subr.mxu0 0.0
        %7151 = vmatpush1.msra.mxu0 %v7036
        %7152 = vmatprep.subr.mxu0 0.0
        %7153 = vmatpush1.msra.mxu0 %v7037
        %7154 = vmatprep.subr.mxu0 0.0
        %7155 = vmatpush1.msra.mxu0 %v7038
        %7156 = vmatprep.subr.mxu0 0.0
        %7157 = vmatpush1.msra.mxu0 %v7039
        %7158 = vmatprep.mubr.f32.mxu0 %v7081
        %7159 = vmatmul.mubr.f32.gmra.mrb[0].mxu0 %v7077
        %v7160 = vpop.f32.mrb[0].mxu0
        %v7161 = vadd.f32 %v7072, %v7160
        %v7162 = vpop.f32.mrb[0].mxu0
        %7163 = vdwg.mxu0
        %7164 = vmatprep.subr.mxu0 0.0
        %7165 = vmatpush1.msra.mxu0 %v7040
        %7166 = vmatprep.subr.mxu0 0.0
        %7167 = vmatpush1.msra.mxu0 %v7041
        %7168 = vmatprep.subr.mxu0 0.0
        %7169 = vmatpush1.msra.mxu0 %v7042
        %7170 = vmatprep.subr.mxu0 0.0
        %7171 = vmatpush1.msra.mxu0 %v7043
        %7172 = vmatprep.subr.mxu0 0.0
        %7173 = vmatpush1.msra.mxu0 %v7044
        %7174 = vmatprep.subr.mxu0 0.0
        %7175 = vmatpush1.msra.mxu0 %v7045
        %7176 = vmatprep.subr.mxu0 0.0
        %7177 = vmatpush1.msra.mxu0 %v7046
        %7178 = vmatprep.subr.mxu0 0.0
        %7179 = vmatpush1.msra.mxu0 %v7047
        %7180 = vmatprep.subr.mxu0 0.0
        %7181 = vmatpush1.msra.mxu0 %v7048
        %7182 = vmatprep.subr.mxu0 0.0
        %7183 = vmatpush1.msra.mxu0 %v7049
        %7184 = vmatprep.subr.mxu0 0.0
        %7185 = vmatpush1.msra.mxu0 %v7050
        %7186 = vmatprep.subr.mxu0 0.0
        %7187 = vmatpush1.msra.mxu0 %v7051
        %7188 = vmatprep.subr.mxu0 0.0
        %7189 = vmatpush1.msra.mxu0 %v7052
        %7190 = vmatprep.subr.mxu0 0.0
        %7191 = vmatpush1.msra.mxu0 %v7053
        %7192 = vmatprep.subr.mxu0 0.0
        %7193 = vmatpush1.msra.mxu0 %v7054
        %7194 = vmatprep.subr.mxu0 0.0
        %7195 = vmatpush1.msra.mxu0 %v7055
        %7196 = vmatprep.subr.mxu0 0.0
        %7197 = vmatpush1.msra.mxu0 %v7056
        %7198 = vmatprep.subr.mxu0 0.0
        %7199 = vmatpush1.msra.mxu0 %v7057
        %7200 = vmatprep.subr.mxu0 0.0
        %7201 = vmatpush1.msra.mxu0 %v7058
        %7202 = vmatprep.subr.mxu0 0.0
        %7203 = vmatpush1.msra.mxu0 %v7059
        %7204 = vmatprep.subr.mxu0 0.0
        %7205 = vmatpush1.msra.mxu0 %v7060
        %7206 = vmatprep.subr.mxu0 0.0
        %7207 = vmatpush1.msra.mxu0 %v7061
        %7208 = vmatprep.subr.mxu0 0.0
        %7209 = vmatpush1.msra.mxu0 %v7062
        %7210 = vmatprep.subr.mxu0 0.0
        %7211 = vmatpush1.msra.mxu0 %v7063
        %7212 = vmatprep.subr.mxu0 0.0
        %7213 = vmatpush1.msra.mxu0 %v7064
        %7214 = vmatprep.subr.mxu0 0.0
        %7215 = vmatpush1.msra.mxu0 %v7065
        %7216 = vmatprep.subr.mxu0 0.0
        %7217 = vmatpush1.msra.mxu0 %v7066
        %7218 = vmatprep.subr.mxu0 0.0
        %7219 = vmatpush1.msra.mxu0 %v7067
        %7220 = vmatprep.subr.mxu0 0.0
        %7221 = vmatpush1.msra.mxu0 %v7068
        %7222 = vmatprep.subr.mxu0 0.0
        %7223 = vmatpush1.msra.mxu0 %v7069
        %7224 = vmatprep.subr.mxu0 0.0
        %7225 = vmatpush1.msra.mxu0 %v7070
        %7226 = vmatprep.subr.mxu0 0.0
        %7227 = vmatpush1.msra.mxu0 %v7071
        %7228 = vmatprep.mubr.f32.mxu0 %v7089
        %7229 = vmatmul.mubr.f32.gmra.mrb[0].mxu0 %v7085
        %v7230 = vpop.f32.mrb[0].mxu0
        %v7231 = vadd.f32 %v7161, %v7230
        %v7232 = vpop.f32.mrb[0].mxu0
        %7233 = vdwg.mxu0
        %7234 = vst [vmem:[%s433] sm:$0x1] %v7231
        %s7235 = sand.u32 %s230, 1
        %s7236 = scalar_lea.sflag [#allocation6], %s7235
        %s7237 = sand.u32 %s230, 1
        %s7238 = scalar_lea.vmem [#allocation18], %s7237
        // Predicated region
        $region89: #{_lenet5_forward.1} parent=55 // pred_check
          %p7239 = pneg %p240
        $region90: #{_lenet5_forward.1} parent=55 // pred_check_branch
          %7241 = sbr.rel (%p7239) target = $region92
        $region91: #{_lenet5_forward.1} parent=55 // pred_region
          %s7243 = ssub.s32 16, 16
          %7244 = vsyncadd %s7236, %s7243
          %s7245 = smul.addr %s28, 16
          %s7246 = scalar_lea.hbm %s9, %s7245
          %s7248 = sshll.u32 %s7238, 4
          %s7249 = int_to_ptr.vmem [resolvable:$true] %s7248
          %7251 = dma.vmem_to_hbm [thread:$0]  %s7249, 16, %s7246, %s7236
        $region92: #{_lenet5_forward.1} parent=55 // pred_fallthru
          _
      $region56: #{_lenet5_forward.1} parent=5 // pred_fallthru
        _
      %p7252 = scmp.le.s32.totalorder 2, %s23
      // Predicated region
      $region93: #{_lenet5_forward.1} parent=5 // pred_check
        %p7253 = pneg %p7252
      $region94: #{_lenet5_forward.1} parent=5 // pred_check_branch
        %7255 = sbr.rel (%p7253) target = $region96
      $region95: #{_lenet5_forward.1} parent=5 // pred_region
        %s7256 = ssub.s32 %s23, 2
        // Predicated region
        $region97: #{_lenet5_forward.1} parent=95 // pred_check
          %p7257 = pneg %p246
        $region98: #{_lenet5_forward.1} parent=95 // pred_check_branch
          %7259 = sbr.rel (%p7257) target = $region100
        $region99: #{_lenet5_forward.1} parent=95 // pred_region
          %s7260 = sand.u32 %s231, 1
          %s7261 = scalar_lea.sflag [#allocation6], %s7260
          %s7262 = sand.u32 %s231, 1
          %s7263 = scalar_lea.vmem [#allocation18], %s7262
          %7264 = dma.done %s7261, 16
        $region100: #{_lenet5_forward.1} parent=95 // pred_fallthru
          _
      $region96: #{_lenet5_forward.1} parent=5 // pred_fallthru
        _
    $region6: #{_lenet5_forward.1} parent=1 // loop_footer
      %s27 = sadd.s32 1, %s23
    $region7: #{_lenet5_forward.1} parent=1 // loop_footer_branch
      %22 = sbr.rel target = $region3
    $region8: #{_lenet5_forward.1} parent=1 // loop_exit
      _
    %7265 = vsyncpa [#allocation5], 1
    %s7266 = scalar_lea.sflag [#allocation5], 1
    %7267 = vsyncpa %s7266, 1
    %7268 = vsyncpa [#allocation8], 1
    %7269 = vsyncpa [#allocation11], 1
    %7270 = vsyncpa [#allocation14], 1
    %7271 = vsyncpa [#allocation17], 1
    %7272 = vsyncpa [#allocation6], 1
    %s7273 = scalar_lea.sflag [#allocation6], 1
    %7274 = vsyncpa %s7273, 1

</llo_original>
